<compile_context>
chip_gen: v7x
topology: tpu7x:2x2x1
jax: 0.10.0
libtpu: 0.0.40
codegen_flags: <defaults>
</compile_context>

<pallas_src>
import jax
import jax.numpy as jnp
from jax.experimental import pallas as pl
from jax.experimental.pallas import tpu as pltpu

INPUT_DIM = 3
HIDDEN = 128
EXTRA_OBS = 1
Z_DIM_LIST = [1, 2, 4]
ALL_Z = sum(Z_DIM_LIST)      # 7
PAD8 = 8                     # tiny feature dims zero-padded to 8 lanes
OUT_LANES = 32               # packed output slab: xrec8 | mu8 | lv8 | z8
LRELU_SLOPE = 0.2

# lane offsets inside the packed (block_B, 32) output slab
XREC_OFF, MU_OFF, LV_OFF, Z_OFF = 0, 8, 16, 24


def _round_up(n, m):
    return ((n + m - 1) // m) * m


def _default_ew_dtype():
    """bf16 elementwise on v6e/v7x (bf16 VPU); f32 on v5e and older."""
    try:
        kind = jax.devices()[0].device_kind.lower()
    except Exception:
        return jnp.float32
    if any(t in kind for t in ("v2", "v3", "v4", "v5")):
        return jnp.float32
    return jnp.bfloat16


def betavae_kernel(xe_ref, w_in_ref, w_hid_ref, w_out_ref,
                   b_in_ref, b_hid_ref, b_out_ref, out_ref):
    ew = b_in_ref.dtype  # elementwise dtype (bf16 on v6e/v7x, f32 on v5e)

    def lrelu(h):
        return jnp.maximum(h, LRELU_SLOPE * h)

    def dense_in(h, e):           # Linear(8p -> 128) + LeakyReLU
        acc = jnp.dot(h.astype(jnp.bfloat16), w_in_ref[e],
                      preferred_element_type=jnp.float32)
        return lrelu(acc.astype(ew) + b_in_ref[e:e + 1, :])

    def dense_hid(h, k):          # Linear(128 -> 128) + LeakyReLU
        acc = jnp.dot(h.astype(jnp.bfloat16), w_hid_ref[k],
                      preferred_element_type=jnp.float32)
        return lrelu(acc.astype(ew) + b_hid_ref[k:k + 1, :])

    def dense_out(h, k):          # Linear(128 -> 8p), no activation, f32 output
        acc = jnp.dot(h.astype(jnp.bfloat16), w_out_ref[k],
                      preferred_element_type=jnp.float32)
        return acc + b_out_ref[k:k + 1, :]

    def encoder(h, e):
        # Sequential(Linear, LReLU, Linear, LReLU, Linear, LReLU, Linear, LReLU, Linear)
        h = dense_in(h, e)
        h = dense_hid(h, 3 * e + 0)
        h = dense_hid(h, 3 * e + 1)
        h = dense_hid(h, 3 * e + 2)
        return dense_out(h, e)

    x8 = xe_ref[:, 0:PAD8]                 # (bb, 8) f32, lanes 3..7 zero-padded
    eps8 = xe_ref[:, PAD8:2 * PAD8]        # (bb, 8) f32, lane 7 zero-padded

    # _encode: chain of encoders, each consuming the previous full output.
    z0 = encoder(x8, 0)    # lanes 0..3 mu, 4..7 logvar
    z1 = encoder(z0, 1)    # lanes 0..1 mu, 2..3 logvar, 4..7 exact zeros
    z2 = encoder(z1, 2)    # lane 0 mu, lane 1 logvar, 2..7 exact zeros

    # Assemble mu / logvar in registers (no VMEM round trip); lane 7 is an explicit zero.
    zero1 = jnp.zeros_like(z2[:, 0:1])
    mu8 = jnp.concatenate([z0[:, 0:4], z1[:, 0:2], z2[:, 0:1], zero1], axis=-1)
    lv8 = jnp.concatenate([z0[:, 4:8], z1[:, 2:4], z2[:, 1:2], zero1], axis=-1)

    # reparametrize: z = mu + exp(logvar / 2) * eps   (lane 7: 0 + 1*0 = 0)
    z8 = mu8 + jnp.exp(0.5 * lv8) * eps8

    # decoder: LReLU, Linear(7->128), LReLU, Linear(128->128), LReLU, Linear(128->3)
    h = lrelu(z8)
    h = dense_in(h, 3)
    h = dense_hid(h, 9)
    xrec8 = dense_out(h, 3)                # lanes 0..2 real, 3..7 exact zeros

    # Store each 8-lane group exactly once; every lane 0..31 is covered (no zero-init needed).
    out_ref[:, XREC_OFF:XREC_OFF + PAD8] = xrec8
    out_ref[:, MU_OFF:MU_OFF + PAD8] = mu8
    out_ref[:, LV_OFF:LV_OFF + PAD8] = lv8
    out_ref[:, Z_OFF:Z_OFF + PAD8] = z8


def init_params(key, ew_dtype=None):
    """Kaiming-normal weights (std=sqrt(2/fan_in)), zero biases, stacked + padded.

    Weights are stored (fan_in, fan_out) so the kernel computes x @ W + b (same math as
    PyTorch's x @ W.T). Tiny dims are zero-padded to 8 (numerically exact); weights bf16,
    hidden-layer biases in the elementwise dtype, final-layer biases f32.
    """
    if ew_dtype is None:
        ew_dtype = _default_ew_dtype()

    in_dims = [INPUT_DIM * EXTRA_OBS, 2 * Z_DIM_LIST[2], 2 * Z_DIM_LIST[1], ALL_Z]   # 3, 8, 4, 7
    out_dims = [2 * Z_DIM_LIST[2], 2 * Z_DIM_LIST[1], 2 * Z_DIM_LIST[0], INPUT_DIM]  # 8, 4, 2, 3

    keys = jax.random.split(key, 18)
    ki = 0
    w_in = jnp.zeros((4, PAD8, HIDDEN), jnp.float32)
    w_hid = jnp.zeros((10, HIDDEN, HIDDEN), jnp.float32)
    w_out = jnp.zeros((4, HIDDEN, PAD8), jnp.float32)
    b_in = jnp.zeros((4, HIDDEN), jnp.float32)
    b_hid = jnp.zeros((10, HIDDEN), jnp.float32)
    b_out = jnp.zeros((4, PAD8), jnp.float32)

    def kaiming(k, fi, fo):
        return jax.random.normal(k, (fi, fo), jnp.float32) * (2.0 / fi) ** 0.5

    hid_slot = 0
    for blk in range(4):  # encoders 0..2, decoder == 3
        fi = in_dims[blk]
        w_in = w_in.at[blk, :fi, :].set(kaiming(keys[ki], fi, HIDDEN)); ki += 1
        n_hidden = 3 if blk < 3 else 1
        for _ in range(n_hidden):
            w_hid = w_hid.at[hid_slot].set(kaiming(keys[ki], HIDDEN, HIDDEN)); ki += 1
            hid_slot += 1
        fo = out_dims[blk]
        w_out = w_out.at[blk, :, :fo].set(kaiming(keys[ki], HIDDEN, fo)); ki += 1

    return dict(
        w_in=w_in.astype(jnp.bfloat16), w_hid=w_hid.astype(jnp.bfloat16),
        w_out=w_out.astype(jnp.bfloat16),
        b_in=b_in.astype(ew_dtype), b_hid=b_hid.astype(ew_dtype), b_out=b_out)


def betavae_forward(x, eps, params, *, block_b=512):
    """Returns (x_recon, mu, logvar, z), matching BetaVAE_MLP.forward(x, return_z=True)."""
    B = x.shape[0]
    assert x.shape == (B, INPUT_DIM) and eps.shape == (B, ALL_Z)

    bb = _round_up(max(1, min(block_b, B)), 8)
    # v7x megacore: prefer >=2 batch blocks when the batch is large enough to split.
    if B >= 16 and _round_up(B, bb) // bb < 2:
        bb = _round_up(pl.cdiv(B, 2), 8)
    Bp = _round_up(B, bb)
    grid = (Bp // bb,)

    # Pack x and eps into one (Bp, 16) f32 streamed input (lanes: x 0..2, eps 8..14).
    xe = jnp.zeros((Bp, 2 * PAD8), jnp.float32)
    xe = xe.at[:B, :INPUT_DIM].set(x.astype(jnp.float32))
    xe = xe.at[:B, PAD8:PAD8 + ALL_Z].set(eps.astype(jnp.float32))

    param_order = ("w_in", "w_hid", "w_out", "b_in", "b_hid", "b_out")
    param_args = [params[k] for k in param_order]

    xe_spec = pl.BlockSpec((bb, 2 * PAD8), lambda i: (i, 0))
    # Constant block indices -> parameters DMA'd once, resident in VMEM across the grid.
    param_specs = [pl.BlockSpec(p.shape, (lambda nd: (lambda i: (0,) * nd))(p.ndim))
                   for p in param_args]
    out_spec = pl.BlockSpec((bb, OUT_LANES), lambda i: (i, 0))

    flops = 2 * Bp * (4 * PAD8 * HIDDEN + 10 * HIDDEN * HIDDEN + 4 * HIDDEN * PAD8)
    bytes_accessed = (sum(int(p.size) * p.dtype.itemsize for p in param_args)
                      + int(xe.size) * 4 + Bp * OUT_LANES * 4)
    cost = pl.CostEstimate(flops=flops, transcendentals=Bp * PAD8,
                           bytes_accessed=bytes_accessed)

    slab = pl.pallas_call(
        betavae_kernel,
        out_shape=jax.ShapeDtypeStruct((Bp, OUT_LANES), jnp.float32),
        grid=grid,
        in_specs=[xe_spec] + param_specs,
        out_specs=out_spec,
        compiler_params=pltpu.CompilerParams(dimension_semantics=("parallel",)),
        cost_estimate=cost,
    )(xe, *param_args)

    x_recon = slab[:B, XREC_OFF:XREC_OFF + INPUT_DIM]
    mu = slab[:B, MU_OFF:MU_OFF + ALL_Z]
    logvar = slab[:B, LV_OFF:LV_OFF + ALL_Z]
    z = slab[:B, Z_OFF:Z_OFF + ALL_Z]
    return x_recon, mu, logvar, z


def betavae_reference(x, eps, params):
    """Pure-JAX f32 reference using the same stored (bf16) weights, for correctness checks."""
    w_in = params["w_in"].astype(jnp.float32)
    w_hid = params["w_hid"].astype(jnp.float32)
    w_out = params["w_out"].astype(jnp.float32)
    b_in = params["b_in"].astype(jnp.float32)
    b_hid = params["b_hid"].astype(jnp.float32)
    b_out = params["b_out"].astype(jnp.float32)

    def lrelu(h):
        return jnp.where(h > 0, h, LRELU_SLOPE * h)

    def encoder_block(h, e):
        h = lrelu(h @ w_in[e] + b_in[e])
        for j in range(3):
            h = lrelu(h @ w_hid[3 * e + j] + b_hid[3 * e + j])
        return h @ w_out[e] + b_out[e]

    B = x.shape[0]
    x8 = jnp.zeros((B, PAD8), jnp.float32).at[:, :INPUT_DIM].set(x)
    z0 = encoder_block(x8, 0)
    z1 = encoder_block(z0, 1)
    z2 = encoder_block(z1, 2)
    mu = jnp.concatenate([z0[:, :4], z1[:, :2], z2[:, :1]], axis=-1)
    logvar = jnp.concatenate([z0[:, 4:8], z1[:, 2:4], z2[:, 1:2]], axis=-1)
    z = mu + jnp.exp(0.5 * logvar) * eps
    z8 = jnp.zeros((B, PAD8), jnp.float32).at[:, :ALL_Z].set(z)
    h = lrelu(z8)
    h = lrelu(h @ w_in[3] + b_in[3])
    h = lrelu(h @ w_hid[9] + b_hid[9])
    x_recon = (h @ w_out[3] + b_out[3])[:, :INPUT_DIM]
    return x_recon, mu, logvar, z


if __name__ == "__main__":
    key = jax.random.PRNGKey(0)
    kx, keps, kp = jax.random.split(key, 3)

    B = 1024  # 2 batch blocks of 512 rows -> both v7x TensorCores busy, grid overhead amortized
    x = jax.random.normal(kx, (B, INPUT_DIM), jnp.float32)
    eps = jax.random.normal(keps, (B, ALL_Z), jnp.float32)
    params = init_params(kp)

    fwd = jax.jit(lambda x_, e_, p_: betavae_forward(x_, e_, p_, block_b=512))
    x_recon, mu, logvar, z = fwd(x, eps, params)
    jax.block_until_ready((x_recon, mu, logvar, z))

    assert x_recon.shape == (B, INPUT_DIM)
    assert mu.shape == (B, ALL_Z)
    assert logvar.shape == (B, ALL_Z)
    assert z.shape == (B, ALL_Z)

    # Correctness vs. pure-JAX f32 reference (tolerance covers bf16 activation rounding).
    refs = betavae_reference(x, eps, params)
    for name, a, b in zip(("x_recon", "mu", "logvar", "z"),
                          (x_recon, mu, logvar, z), refs):
        assert bool(jnp.all(jnp.isfinite(a))), f"{name} has non-finite values"
        diff = jnp.abs(a - b)
        tol = 0.15 + 0.15 * jnp.abs(b)
        assert bool(jnp.all(diff <= tol)), (
            f"{name} mismatch: max abs diff {float(jnp.max(diff)):.4f}")

    print("KERNEL_OK")
</pallas_src>

<mosaic_0001>
module attributes {stable_mosaic.version = 11 : i64} {
  func.func @betavae_kernel(%arg0: i32, %arg1: memref<512x16xf32, #tpu.memory_space<vmem>>, %arg2: memref<4x8x128xbf16, #tpu.memory_space<vmem>>, %arg3: memref<10x128x128xbf16, #tpu.memory_space<vmem>>, %arg4: memref<4x128x8xbf16, #tpu.memory_space<vmem>>, %arg5: memref<4x128xbf16, #tpu.memory_space<vmem>>, %arg6: memref<10x128xbf16, #tpu.memory_space<vmem>>, %arg7: memref<4x8xf32, #tpu.memory_space<vmem>>, %arg8: memref<512x32xf32, #tpu.memory_space<vmem>>) attributes {dimension_semantics = [#tpu.dimension_semantics<parallel>], iteration_bounds = array<i64: 2>, scalar_prefetch = 0 : i64, scratch_operands = 0 : i64, tpu.core_type = #tpu.core_type<tc>, window_params = [{transform_indices = @transform_0, window_bounds = array<i64: 512, 16>}, {pipeline_mode = #tpu.pipeline_mode<synchronous>, transform_indices = @transform_1, window_bounds = array<i64: 4, 8, 128>}, {pipeline_mode = #tpu.pipeline_mode<synchronous>, transform_indices = @transform_2, window_bounds = array<i64: 10, 128, 128>}, {pipeline_mode = #tpu.pipeline_mode<synchronous>, transform_indices = @transform_3, window_bounds = array<i64: 4, 128, 8>}, {pipeline_mode = #tpu.pipeline_mode<synchronous>, transform_indices = @transform_4, window_bounds = array<i64: 4, 128>}, {pipeline_mode = #tpu.pipeline_mode<synchronous>, transform_indices = @transform_5, window_bounds = array<i64: 10, 128>}, {pipeline_mode = #tpu.pipeline_mode<synchronous>, transform_indices = @transform_6, window_bounds = array<i64: 4, 8>}, {transform_indices = @transform_7, window_bounds = array<i64: 512, 32>}]} {
    %c0 = arith.constant 0 : index
    %c0_0 = arith.constant 0 : index
    %0 = vector.load %arg1[%c0, %c0_0] : memref<512x16xf32, #tpu.memory_space<vmem>>, vector<512x8xf32>
    %c0_1 = arith.constant 0 : index
    %c8 = arith.constant 8 : index
    %1 = vector.load %arg1[%c0_1, %c8] : memref<512x16xf32, #tpu.memory_space<vmem>>, vector<512x8xf32>
    %2 = arith.truncf %0 : vector<512x8xf32> to vector<512x8xbf16>
    %c0_2 = arith.constant 0 : index
    %c0_3 = arith.constant 0 : index
    %c0_4 = arith.constant 0 : index
    %3 = vector.load %arg2[%c0_2, %c0_3, %c0_4] : memref<4x8x128xbf16, #tpu.memory_space<vmem>>, vector<1x8x128xbf16>
    %4 = vector.shape_cast %3 : vector<1x8x128xbf16> to vector<8x128xbf16>
    %cst = arith.constant dense<0.000000e+00> : vector<512x128xf32>
    %5 = tpu.matmul %2, %4, %cst {dimension_numbers = #tpu.dot_dimension_numbers<[1], [0], [0], [1], [0, 0, 1, 1], [], []>} : vector<512x8xbf16>, vector<8x128xbf16>, vector<512x128xf32> -> vector<512x128xf32>
    %6 = arith.truncf %5 : vector<512x128xf32> to vector<512x128xbf16>
    %c0_5 = arith.constant 0 : index
    %c0_6 = arith.constant 0 : index
    %7 = vector.load %arg5[%c0_5, %c0_6] : memref<4x128xbf16, #tpu.memory_space<vmem>>, vector<1x128xbf16>
    %8 = vector.broadcast %7 : vector<1x128xbf16> to vector<512x128xbf16>
    %9 = arith.addf %6, %8 : vector<512x128xbf16>
    %cst_7 = arith.constant 2.001950e-01 : bf16
    %10 = vector.broadcast %cst_7 : bf16 to vector<512x128xbf16>
    %11 = arith.mulf %10, %9 : vector<512x128xbf16>
    %12 = arith.maximumf %9, %11 : vector<512x128xbf16>
    %c0_8 = arith.constant 0 : index
    %c0_9 = arith.constant 0 : index
    %c0_10 = arith.constant 0 : index
    %13 = vector.load %arg3[%c0_8, %c0_9, %c0_10] : memref<10x128x128xbf16, #tpu.memory_space<vmem>>, vector<1x128x128xbf16>
    %14 = vector.shape_cast %13 : vector<1x128x128xbf16> to vector<128x128xbf16>
    %cst_11 = arith.constant dense<0.000000e+00> : vector<512x128xf32>
    %15 = tpu.matmul %12, %14, %cst_11 {dimension_numbers = #tpu.dot_dimension_numbers<[1], [0], [0], [1], [0, 0, 1, 1], [], []>} : vector<512x128xbf16>, vector<128x128xbf16>, vector<512x128xf32> -> vector<512x128xf32>
    %16 = arith.truncf %15 : vector<512x128xf32> to vector<512x128xbf16>
    %c0_12 = arith.constant 0 : index
    %c0_13 = arith.constant 0 : index
    %17 = vector.load %arg6[%c0_12, %c0_13] : memref<10x128xbf16, #tpu.memory_space<vmem>>, vector<1x128xbf16>
    %18 = vector.broadcast %17 : vector<1x128xbf16> to vector<512x128xbf16>
    %19 = arith.addf %16, %18 : vector<512x128xbf16>
    %cst_14 = arith.constant 2.001950e-01 : bf16
    %20 = vector.broadcast %cst_14 : bf16 to vector<512x128xbf16>
    %21 = arith.mulf %20, %19 : vector<512x128xbf16>
    %22 = arith.maximumf %19, %21 : vector<512x128xbf16>
    %c1 = arith.constant 1 : index
    %c0_15 = arith.constant 0 : index
    %c0_16 = arith.constant 0 : index
    %23 = vector.load %arg3[%c1, %c0_15, %c0_16] : memref<10x128x128xbf16, #tpu.memory_space<vmem>>, vector<1x128x128xbf16>
    %24 = vector.shape_cast %23 : vector<1x128x128xbf16> to vector<128x128xbf16>
    %cst_17 = arith.constant dense<0.000000e+00> : vector<512x128xf32>
    %25 = tpu.matmul %22, %24, %cst_17 {dimension_numbers = #tpu.dot_dimension_numbers<[1], [0], [0], [1], [0, 0, 1, 1], [], []>} : vector<512x128xbf16>, vector<128x128xbf16>, vector<512x128xf32> -> vector<512x128xf32>
    %26 = arith.truncf %25 : vector<512x128xf32> to vector<512x128xbf16>
    %c1_18 = arith.constant 1 : index
    %c0_19 = arith.constant 0 : index
    %27 = vector.load %arg6[%c1_18, %c0_19] : memref<10x128xbf16, #tpu.memory_space<vmem>>, vector<1x128xbf16>
    %28 = vector.broadcast %27 : vector<1x128xbf16> to vector<512x128xbf16>
    %29 = arith.addf %26, %28 : vector<512x128xbf16>
    %cst_20 = arith.constant 2.001950e-01 : bf16
    %30 = vector.broadcast %cst_20 : bf16 to vector<512x128xbf16>
    %31 = arith.mulf %30, %29 : vector<512x128xbf16>
    %32 = arith.maximumf %29, %31 : vector<512x128xbf16>
    %c2 = arith.constant 2 : index
    %c0_21 = arith.constant 0 : index
    %c0_22 = arith.constant 0 : index
    %33 = vector.load %arg3[%c2, %c0_21, %c0_22] : memref<10x128x128xbf16, #tpu.memory_space<vmem>>, vector<1x128x128xbf16>
    %34 = vector.shape_cast %33 : vector<1x128x128xbf16> to vector<128x128xbf16>
    %cst_23 = arith.constant dense<0.000000e+00> : vector<512x128xf32>
    %35 = tpu.matmul %32, %34, %cst_23 {dimension_numbers = #tpu.dot_dimension_numbers<[1], [0], [0], [1], [0, 0, 1, 1], [], []>} : vector<512x128xbf16>, vector<128x128xbf16>, vector<512x128xf32> -> vector<512x128xf32>
    %36 = arith.truncf %35 : vector<512x128xf32> to vector<512x128xbf16>
    %c2_24 = arith.constant 2 : index
    %c0_25 = arith.constant 0 : index
    %37 = vector.load %arg6[%c2_24, %c0_25] : memref<10x128xbf16, #tpu.memory_space<vmem>>, vector<1x128xbf16>
    %38 = vector.broadcast %37 : vector<1x128xbf16> to vector<512x128xbf16>
    %39 = arith.addf %36, %38 : vector<512x128xbf16>
    %cst_26 = arith.constant 2.001950e-01 : bf16
    %40 = vector.broadcast %cst_26 : bf16 to vector<512x128xbf16>
    %41 = arith.mulf %40, %39 : vector<512x128xbf16>
    %42 = arith.maximumf %39, %41 : vector<512x128xbf16>
    %c0_27 = arith.constant 0 : index
    %c0_28 = arith.constant 0 : index
    %c0_29 = arith.constant 0 : index
    %43 = vector.load %arg4[%c0_27, %c0_28, %c0_29] : memref<4x128x8xbf16, #tpu.memory_space<vmem>>, vector<1x128x8xbf16>
    %44 = vector.shape_cast %43 : vector<1x128x8xbf16> to vector<128x8xbf16>
    %cst_30 = arith.constant dense<0.000000e+00> : vector<512x8xf32>
    %45 = tpu.matmul %42, %44, %cst_30 {dimension_numbers = #tpu.dot_dimension_numbers<[1], [0], [0], [1], [0, 0, 1, 1], [], []>} : vector<512x128xbf16>, vector<128x8xbf16>, vector<512x8xf32> -> vector<512x8xf32>
    %c0_31 = arith.constant 0 : index
    %c0_32 = arith.constant 0 : index
    %46 = vector.load %arg7[%c0_31, %c0_32] : memref<4x8xf32, #tpu.memory_space<vmem>>, vector<1x8xf32>
    %47 = vector.broadcast %46 : vector<1x8xf32> to vector<512x8xf32>
    %48 = arith.addf %45, %47 : vector<512x8xf32>
    %49 = arith.truncf %48 : vector<512x8xf32> to vector<512x8xbf16>
    %c1_33 = arith.constant 1 : index
    %c0_34 = arith.constant 0 : index
    %c0_35 = arith.constant 0 : index
    %50 = vector.load %arg2[%c1_33, %c0_34, %c0_35] : memref<4x8x128xbf16, #tpu.memory_space<vmem>>, vector<1x8x128xbf16>
    %51 = vector.shape_cast %50 : vector<1x8x128xbf16> to vector<8x128xbf16>
    %cst_36 = arith.constant dense<0.000000e+00> : vector<512x128xf32>
    %52 = tpu.matmul %49, %51, %cst_36 {dimension_numbers = #tpu.dot_dimension_numbers<[1], [0], [0], [1], [0, 0, 1, 1], [], []>} : vector<512x8xbf16>, vector<8x128xbf16>, vector<512x128xf32> -> vector<512x128xf32>
    %53 = arith.truncf %52 : vector<512x128xf32> to vector<512x128xbf16>
    %c1_37 = arith.constant 1 : index
    %c0_38 = arith.constant 0 : index
    %54 = vector.load %arg5[%c1_37, %c0_38] : memref<4x128xbf16, #tpu.memory_space<vmem>>, vector<1x128xbf16>
    %55 = vector.broadcast %54 : vector<1x128xbf16> to vector<512x128xbf16>
    %56 = arith.addf %53, %55 : vector<512x128xbf16>
    %cst_39 = arith.constant 2.001950e-01 : bf16
    %57 = vector.broadcast %cst_39 : bf16 to vector<512x128xbf16>
    %58 = arith.mulf %57, %56 : vector<512x128xbf16>
    %59 = arith.maximumf %56, %58 : vector<512x128xbf16>
    %c3 = arith.constant 3 : index
    %c0_40 = arith.constant 0 : index
    %c0_41 = arith.constant 0 : index
    %60 = vector.load %arg3[%c3, %c0_40, %c0_41] : memref<10x128x128xbf16, #tpu.memory_space<vmem>>, vector<1x128x128xbf16>
    %61 = vector.shape_cast %60 : vector<1x128x128xbf16> to vector<128x128xbf16>
    %cst_42 = arith.constant dense<0.000000e+00> : vector<512x128xf32>
    %62 = tpu.matmul %59, %61, %cst_42 {dimension_numbers = #tpu.dot_dimension_numbers<[1], [0], [0], [1], [0, 0, 1, 1], [], []>} : vector<512x128xbf16>, vector<128x128xbf16>, vector<512x128xf32> -> vector<512x128xf32>
    %63 = arith.truncf %62 : vector<512x128xf32> to vector<512x128xbf16>
    %c3_43 = arith.constant 3 : index
    %c0_44 = arith.constant 0 : index
    %64 = vector.load %arg6[%c3_43, %c0_44] : memref<10x128xbf16, #tpu.memory_space<vmem>>, vector<1x128xbf16>
    %65 = vector.broadcast %64 : vector<1x128xbf16> to vector<512x128xbf16>
    %66 = arith.addf %63, %65 : vector<512x128xbf16>
    %cst_45 = arith.constant 2.001950e-01 : bf16
    %67 = vector.broadcast %cst_45 : bf16 to vector<512x128xbf16>
    %68 = arith.mulf %67, %66 : vector<512x128xbf16>
    %69 = arith.maximumf %66, %68 : vector<512x128xbf16>
    %c4 = arith.constant 4 : index
    %c0_46 = arith.constant 0 : index
    %c0_47 = arith.constant 0 : index
    %70 = vector.load %arg3[%c4, %c0_46, %c0_47] : memref<10x128x128xbf16, #tpu.memory_space<vmem>>, vector<1x128x128xbf16>
    %71 = vector.shape_cast %70 : vector<1x128x128xbf16> to vector<128x128xbf16>
    %cst_48 = arith.constant dense<0.000000e+00> : vector<512x128xf32>
    %72 = tpu.matmul %69, %71, %cst_48 {dimension_numbers = #tpu.dot_dimension_numbers<[1], [0], [0], [1], [0, 0, 1, 1], [], []>} : vector<512x128xbf16>, vector<128x128xbf16>, vector<512x128xf32> -> vector<512x128xf32>
    %73 = arith.truncf %72 : vector<512x128xf32> to vector<512x128xbf16>
    %c4_49 = arith.constant 4 : index
    %c0_50 = arith.constant 0 : index
    %74 = vector.load %arg6[%c4_49, %c0_50] : memref<10x128xbf16, #tpu.memory_space<vmem>>, vector<1x128xbf16>
    %75 = vector.broadcast %74 : vector<1x128xbf16> to vector<512x128xbf16>
    %76 = arith.addf %73, %75 : vector<512x128xbf16>
    %cst_51 = arith.constant 2.001950e-01 : bf16
    %77 = vector.broadcast %cst_51 : bf16 to vector<512x128xbf16>
    %78 = arith.mulf %77, %76 : vector<512x128xbf16>
    %79 = arith.maximumf %76, %78 : vector<512x128xbf16>
    %c5 = arith.constant 5 : index
    %c0_52 = arith.constant 0 : index
    %c0_53 = arith.constant 0 : index
    %80 = vector.load %arg3[%c5, %c0_52, %c0_53] : memref<10x128x128xbf16, #tpu.memory_space<vmem>>, vector<1x128x128xbf16>
    %81 = vector.shape_cast %80 : vector<1x128x128xbf16> to vector<128x128xbf16>
    %cst_54 = arith.constant dense<0.000000e+00> : vector<512x128xf32>
    %82 = tpu.matmul %79, %81, %cst_54 {dimension_numbers = #tpu.dot_dimension_numbers<[1], [0], [0], [1], [0, 0, 1, 1], [], []>} : vector<512x128xbf16>, vector<128x128xbf16>, vector<512x128xf32> -> vector<512x128xf32>
    %83 = arith.truncf %82 : vector<512x128xf32> to vector<512x128xbf16>
    %c5_55 = arith.constant 5 : index
    %c0_56 = arith.constant 0 : index
    %84 = vector.load %arg6[%c5_55, %c0_56] : memref<10x128xbf16, #tpu.memory_space<vmem>>, vector<1x128xbf16>
    %85 = vector.broadcast %84 : vector<1x128xbf16> to vector<512x128xbf16>
    %86 = arith.addf %83, %85 : vector<512x128xbf16>
    %cst_57 = arith.constant 2.001950e-01 : bf16
    %87 = vector.broadcast %cst_57 : bf16 to vector<512x128xbf16>
    %88 = arith.mulf %87, %86 : vector<512x128xbf16>
    %89 = arith.maximumf %86, %88 : vector<512x128xbf16>
    %c1_58 = arith.constant 1 : index
    %c0_59 = arith.constant 0 : index
    %c0_60 = arith.constant 0 : index
    %90 = vector.load %arg4[%c1_58, %c0_59, %c0_60] : memref<4x128x8xbf16, #tpu.memory_space<vmem>>, vector<1x128x8xbf16>
    %91 = vector.shape_cast %90 : vector<1x128x8xbf16> to vector<128x8xbf16>
    %cst_61 = arith.constant dense<0.000000e+00> : vector<512x8xf32>
    %92 = tpu.matmul %89, %91, %cst_61 {dimension_numbers = #tpu.dot_dimension_numbers<[1], [0], [0], [1], [0, 0, 1, 1], [], []>} : vector<512x128xbf16>, vector<128x8xbf16>, vector<512x8xf32> -> vector<512x8xf32>
    %c1_62 = arith.constant 1 : index
    %c0_63 = arith.constant 0 : index
    %93 = vector.load %arg7[%c1_62, %c0_63] : memref<4x8xf32, #tpu.memory_space<vmem>>, vector<1x8xf32>
    %94 = vector.broadcast %93 : vector<1x8xf32> to vector<512x8xf32>
    %95 = arith.addf %92, %94 : vector<512x8xf32>
    %96 = arith.truncf %95 : vector<512x8xf32> to vector<512x8xbf16>
    %c2_64 = arith.constant 2 : index
    %c0_65 = arith.constant 0 : index
    %c0_66 = arith.constant 0 : index
    %97 = vector.load %arg2[%c2_64, %c0_65, %c0_66] : memref<4x8x128xbf16, #tpu.memory_space<vmem>>, vector<1x8x128xbf16>
    %98 = vector.shape_cast %97 : vector<1x8x128xbf16> to vector<8x128xbf16>
    %cst_67 = arith.constant dense<0.000000e+00> : vector<512x128xf32>
    %99 = tpu.matmul %96, %98, %cst_67 {dimension_numbers = #tpu.dot_dimension_numbers<[1], [0], [0], [1], [0, 0, 1, 1], [], []>} : vector<512x8xbf16>, vector<8x128xbf16>, vector<512x128xf32> -> vector<512x128xf32>
    %100 = arith.truncf %99 : vector<512x128xf32> to vector<512x128xbf16>
    %c2_68 = arith.constant 2 : index
    %c0_69 = arith.constant 0 : index
    %101 = vector.load %arg5[%c2_68, %c0_69] : memref<4x128xbf16, #tpu.memory_space<vmem>>, vector<1x128xbf16>
    %102 = vector.broadcast %101 : vector<1x128xbf16> to vector<512x128xbf16>
    %103 = arith.addf %100, %102 : vector<512x128xbf16>
    %cst_70 = arith.constant 2.001950e-01 : bf16
    %104 = vector.broadcast %cst_70 : bf16 to vector<512x128xbf16>
    %105 = arith.mulf %104, %103 : vector<512x128xbf16>
    %106 = arith.maximumf %103, %105 : vector<512x128xbf16>
    %c6 = arith.constant 6 : index
    %c0_71 = arith.constant 0 : index
    %c0_72 = arith.constant 0 : index
    %107 = vector.load %arg3[%c6, %c0_71, %c0_72] : memref<10x128x128xbf16, #tpu.memory_space<vmem>>, vector<1x128x128xbf16>
    %108 = vector.shape_cast %107 : vector<1x128x128xbf16> to vector<128x128xbf16>
    %cst_73 = arith.constant dense<0.000000e+00> : vector<512x128xf32>
    %109 = tpu.matmul %106, %108, %cst_73 {dimension_numbers = #tpu.dot_dimension_numbers<[1], [0], [0], [1], [0, 0, 1, 1], [], []>} : vector<512x128xbf16>, vector<128x128xbf16>, vector<512x128xf32> -> vector<512x128xf32>
    %110 = arith.truncf %109 : vector<512x128xf32> to vector<512x128xbf16>
    %c6_74 = arith.constant 6 : index
    %c0_75 = arith.constant 0 : index
    %111 = vector.load %arg6[%c6_74, %c0_75] : memref<10x128xbf16, #tpu.memory_space<vmem>>, vector<1x128xbf16>
    %112 = vector.broadcast %111 : vector<1x128xbf16> to vector<512x128xbf16>
    %113 = arith.addf %110, %112 : vector<512x128xbf16>
    %cst_76 = arith.constant 2.001950e-01 : bf16
    %114 = vector.broadcast %cst_76 : bf16 to vector<512x128xbf16>
    %115 = arith.mulf %114, %113 : vector<512x128xbf16>
    %116 = arith.maximumf %113, %115 : vector<512x128xbf16>
    %c7 = arith.constant 7 : index
    %c0_77 = arith.constant 0 : index
    %c0_78 = arith.constant 0 : index
    %117 = vector.load %arg3[%c7, %c0_77, %c0_78] : memref<10x128x128xbf16, #tpu.memory_space<vmem>>, vector<1x128x128xbf16>
    %118 = vector.shape_cast %117 : vector<1x128x128xbf16> to vector<128x128xbf16>
    %cst_79 = arith.constant dense<0.000000e+00> : vector<512x128xf32>
    %119 = tpu.matmul %116, %118, %cst_79 {dimension_numbers = #tpu.dot_dimension_numbers<[1], [0], [0], [1], [0, 0, 1, 1], [], []>} : vector<512x128xbf16>, vector<128x128xbf16>, vector<512x128xf32> -> vector<512x128xf32>
    %120 = arith.truncf %119 : vector<512x128xf32> to vector<512x128xbf16>
    %c7_80 = arith.constant 7 : index
    %c0_81 = arith.constant 0 : index
    %121 = vector.load %arg6[%c7_80, %c0_81] : memref<10x128xbf16, #tpu.memory_space<vmem>>, vector<1x128xbf16>
    %122 = vector.broadcast %121 : vector<1x128xbf16> to vector<512x128xbf16>
    %123 = arith.addf %120, %122 : vector<512x128xbf16>
    %cst_82 = arith.constant 2.001950e-01 : bf16
    %124 = vector.broadcast %cst_82 : bf16 to vector<512x128xbf16>
    %125 = arith.mulf %124, %123 : vector<512x128xbf16>
    %126 = arith.maximumf %123, %125 : vector<512x128xbf16>
    %c8_83 = arith.constant 8 : index
    %c0_84 = arith.constant 0 : index
    %c0_85 = arith.constant 0 : index
    %127 = vector.load %arg3[%c8_83, %c0_84, %c0_85] : memref<10x128x128xbf16, #tpu.memory_space<vmem>>, vector<1x128x128xbf16>
    %128 = vector.shape_cast %127 : vector<1x128x128xbf16> to vector<128x128xbf16>
    %cst_86 = arith.constant dense<0.000000e+00> : vector<512x128xf32>
    %129 = tpu.matmul %126, %128, %cst_86 {dimension_numbers = #tpu.dot_dimension_numbers<[1], [0], [0], [1], [0, 0, 1, 1], [], []>} : vector<512x128xbf16>, vector<128x128xbf16>, vector<512x128xf32> -> vector<512x128xf32>
    %130 = arith.truncf %129 : vector<512x128xf32> to vector<512x128xbf16>
    %c8_87 = arith.constant 8 : index
    %c0_88 = arith.constant 0 : index
    %131 = vector.load %arg6[%c8_87, %c0_88] : memref<10x128xbf16, #tpu.memory_space<vmem>>, vector<1x128xbf16>
    %132 = vector.broadcast %131 : vector<1x128xbf16> to vector<512x128xbf16>
    %133 = arith.addf %130, %132 : vector<512x128xbf16>
    %cst_89 = arith.constant 2.001950e-01 : bf16
    %134 = vector.broadcast %cst_89 : bf16 to vector<512x128xbf16>
    %135 = arith.mulf %134, %133 : vector<512x128xbf16>
    %136 = arith.maximumf %133, %135 : vector<512x128xbf16>
    %c2_90 = arith.constant 2 : index
    %c0_91 = arith.constant 0 : index
    %c0_92 = arith.constant 0 : index
    %137 = vector.load %arg4[%c2_90, %c0_91, %c0_92] : memref<4x128x8xbf16, #tpu.memory_space<vmem>>, vector<1x128x8xbf16>
    %138 = vector.shape_cast %137 : vector<1x128x8xbf16> to vector<128x8xbf16>
    %cst_93 = arith.constant dense<0.000000e+00> : vector<512x8xf32>
    %139 = tpu.matmul %136, %138, %cst_93 {dimension_numbers = #tpu.dot_dimension_numbers<[1], [0], [0], [1], [0, 0, 1, 1], [], []>} : vector<512x128xbf16>, vector<128x8xbf16>, vector<512x8xf32> -> vector<512x8xf32>
    %c2_94 = arith.constant 2 : index
    %c0_95 = arith.constant 0 : index
    %140 = vector.load %arg7[%c2_94, %c0_95] : memref<4x8xf32, #tpu.memory_space<vmem>>, vector<1x8xf32>
    %141 = vector.broadcast %140 : vector<1x8xf32> to vector<512x8xf32>
    %142 = arith.addf %139, %141 : vector<512x8xf32>
    %cst_96 = arith.constant 0.000000e+00 : f32
    %143 = vector.broadcast %cst_96 : f32 to vector<512x1xf32>
    %144 = vector.extract_strided_slice %48 {offsets = [0, 0], sizes = [512, 4], strides = [1, 1]} : vector<512x8xf32> to vector<512x4xf32>
    %145 = vector.extract_strided_slice %95 {offsets = [0, 0], sizes = [512, 2], strides = [1, 1]} : vector<512x8xf32> to vector<512x2xf32>
    %146 = vector.extract_strided_slice %142 {offsets = [0, 0], sizes = [512, 1], strides = [1, 1]} : vector<512x8xf32> to vector<512x1xf32>
    %147 = tpu.concatenate %144, %145, %146, %143 in 1 : vector<512x4xf32>, vector<512x2xf32>, vector<512x1xf32>, vector<512x1xf32> -> vector<512x8xf32>
    %148 = vector.extract_strided_slice %48 {offsets = [0, 4], sizes = [512, 4], strides = [1, 1]} : vector<512x8xf32> to vector<512x4xf32>
    %149 = vector.extract_strided_slice %95 {offsets = [0, 2], sizes = [512, 2], strides = [1, 1]} : vector<512x8xf32> to vector<512x2xf32>
    %150 = vector.extract_strided_slice %142 {offsets = [0, 1], sizes = [512, 1], strides = [1, 1]} : vector<512x8xf32> to vector<512x1xf32>
    %151 = tpu.concatenate %148, %149, %150, %143 in 1 : vector<512x4xf32>, vector<512x2xf32>, vector<512x1xf32>, vector<512x1xf32> -> vector<512x8xf32>
    %cst_97 = arith.constant 5.000000e-01 : f32
    %152 = vector.broadcast %cst_97 : f32 to vector<512x8xf32>
    %153 = arith.mulf %152, %151 : vector<512x8xf32>
    %154 = math.exp %153 : vector<512x8xf32>
    %155 = arith.mulf %154, %1 : vector<512x8xf32>
    %156 = arith.addf %147, %155 : vector<512x8xf32>
    %cst_98 = arith.constant 2.000000e-01 : f32
    %157 = vector.broadcast %cst_98 : f32 to vector<512x8xf32>
    %158 = arith.mulf %157, %156 : vector<512x8xf32>
    %159 = arith.maximumf %156, %158 : vector<512x8xf32>
    %160 = arith.truncf %159 : vector<512x8xf32> to vector<512x8xbf16>
    %c3_99 = arith.constant 3 : index
    %c0_100 = arith.constant 0 : index
    %c0_101 = arith.constant 0 : index
    %161 = vector.load %arg2[%c3_99, %c0_100, %c0_101] : memref<4x8x128xbf16, #tpu.memory_space<vmem>>, vector<1x8x128xbf16>
    %162 = vector.shape_cast %161 : vector<1x8x128xbf16> to vector<8x128xbf16>
    %cst_102 = arith.constant dense<0.000000e+00> : vector<512x128xf32>
    %163 = tpu.matmul %160, %162, %cst_102 {dimension_numbers = #tpu.dot_dimension_numbers<[1], [0], [0], [1], [0, 0, 1, 1], [], []>} : vector<512x8xbf16>, vector<8x128xbf16>, vector<512x128xf32> -> vector<512x128xf32>
    %164 = arith.truncf %163 : vector<512x128xf32> to vector<512x128xbf16>
    %c3_103 = arith.constant 3 : index
    %c0_104 = arith.constant 0 : index
    %165 = vector.load %arg5[%c3_103, %c0_104] : memref<4x128xbf16, #tpu.memory_space<vmem>>, vector<1x128xbf16>
    %166 = vector.broadcast %165 : vector<1x128xbf16> to vector<512x128xbf16>
    %167 = arith.addf %164, %166 : vector<512x128xbf16>
    %cst_105 = arith.constant 2.001950e-01 : bf16
    %168 = vector.broadcast %cst_105 : bf16 to vector<512x128xbf16>
    %169 = arith.mulf %168, %167 : vector<512x128xbf16>
    %170 = arith.maximumf %167, %169 : vector<512x128xbf16>
    %c9 = arith.constant 9 : index
    %c0_106 = arith.constant 0 : index
    %c0_107 = arith.constant 0 : index
    %171 = vector.load %arg3[%c9, %c0_106, %c0_107] : memref<10x128x128xbf16, #tpu.memory_space<vmem>>, vector<1x128x128xbf16>
    %172 = vector.shape_cast %171 : vector<1x128x128xbf16> to vector<128x128xbf16>
    %cst_108 = arith.constant dense<0.000000e+00> : vector<512x128xf32>
    %173 = tpu.matmul %170, %172, %cst_108 {dimension_numbers = #tpu.dot_dimension_numbers<[1], [0], [0], [1], [0, 0, 1, 1], [], []>} : vector<512x128xbf16>, vector<128x128xbf16>, vector<512x128xf32> -> vector<512x128xf32>
    %174 = arith.truncf %173 : vector<512x128xf32> to vector<512x128xbf16>
    %c9_109 = arith.constant 9 : index
    %c0_110 = arith.constant 0 : index
    %175 = vector.load %arg6[%c9_109, %c0_110] : memref<10x128xbf16, #tpu.memory_space<vmem>>, vector<1x128xbf16>
    %176 = vector.broadcast %175 : vector<1x128xbf16> to vector<512x128xbf16>
    %177 = arith.addf %174, %176 : vector<512x128xbf16>
    %cst_111 = arith.constant 2.001950e-01 : bf16
    %178 = vector.broadcast %cst_111 : bf16 to vector<512x128xbf16>
    %179 = arith.mulf %178, %177 : vector<512x128xbf16>
    %180 = arith.maximumf %177, %179 : vector<512x128xbf16>
    %c3_112 = arith.constant 3 : index
    %c0_113 = arith.constant 0 : index
    %c0_114 = arith.constant 0 : index
    %181 = vector.load %arg4[%c3_112, %c0_113, %c0_114] : memref<4x128x8xbf16, #tpu.memory_space<vmem>>, vector<1x128x8xbf16>
    %182 = vector.shape_cast %181 : vector<1x128x8xbf16> to vector<128x8xbf16>
    %cst_115 = arith.constant dense<0.000000e+00> : vector<512x8xf32>
    %183 = tpu.matmul %180, %182, %cst_115 {dimension_numbers = #tpu.dot_dimension_numbers<[1], [0], [0], [1], [0, 0, 1, 1], [], []>} : vector<512x128xbf16>, vector<128x8xbf16>, vector<512x8xf32> -> vector<512x8xf32>
    %c3_116 = arith.constant 3 : index
    %c0_117 = arith.constant 0 : index
    %184 = vector.load %arg7[%c3_116, %c0_117] : memref<4x8xf32, #tpu.memory_space<vmem>>, vector<1x8xf32>
    %185 = vector.broadcast %184 : vector<1x8xf32> to vector<512x8xf32>
    %186 = arith.addf %183, %185 : vector<512x8xf32>
    %c0_118 = arith.constant 0 : index
    %c0_119 = arith.constant 0 : index
    %187 = vector.load %arg8[%c0_118, %c0_119] : memref<512x32xf32, #tpu.memory_space<vmem>>, vector<512x8xf32>
    tpu.vector_store %arg8[%c0_118, %c0_119], %186 {strides = array<i32>} : memref<512x32xf32, #tpu.memory_space<vmem>>, vector<512x8xf32>,
    %c0_120 = arith.constant 0 : index
    %c8_121 = arith.constant 8 : index
    %188 = vector.load %arg8[%c0_120, %c8_121] : memref<512x32xf32, #tpu.memory_space<vmem>>, vector<512x8xf32>
    tpu.vector_store %arg8[%c0_120, %c8_121], %147 {strides = array<i32>} : memref<512x32xf32, #tpu.memory_space<vmem>>, vector<512x8xf32>,
    %c0_122 = arith.constant 0 : index
    %c16 = arith.constant 16 : index
    %189 = vector.load %arg8[%c0_122, %c16] : memref<512x32xf32, #tpu.memory_space<vmem>>, vector<512x8xf32>
    tpu.vector_store %arg8[%c0_122, %c16], %151 {strides = array<i32>} : memref<512x32xf32, #tpu.memory_space<vmem>>, vector<512x8xf32>,
    %c0_123 = arith.constant 0 : index
    %c24 = arith.constant 24 : index
    %190 = vector.load %arg8[%c0_123, %c24] : memref<512x32xf32, #tpu.memory_space<vmem>>, vector<512x8xf32>
    tpu.vector_store %arg8[%c0_123, %c24], %156 {strides = array<i32>} : memref<512x32xf32, #tpu.memory_space<vmem>>, vector<512x8xf32>,
    return
  }
  func.func @transform_0(%arg0: i32) -> (i32, i32) {
    %c0_i32 = arith.constant 0 : i32
    %c0_i32_0 = arith.constant 0 : i32
    return %arg0, %c0_i32 : i32, i32
  }
  func.func @transform_1(%arg0: i32) -> (i32, i32, i32) {
    %c0_i32 = arith.constant 0 : i32
    %c0_i32_0 = arith.constant 0 : i32
    %c0_i32_1 = arith.constant 0 : i32
    %c0_i32_2 = arith.constant 0 : i32
    return %c0_i32, %c0_i32_0, %c0_i32_1 : i32, i32, i32
  }
  func.func @transform_2(%arg0: i32) -> (i32, i32, i32) {
    %c0_i32 = arith.constant 0 : i32
    %c0_i32_0 = arith.constant 0 : i32
    %c0_i32_1 = arith.constant 0 : i32
    %c0_i32_2 = arith.constant 0 : i32
    return %c0_i32, %c0_i32_0, %c0_i32_1 : i32, i32, i32
  }
  func.func @transform_3(%arg0: i32) -> (i32, i32, i32) {
    %c0_i32 = arith.constant 0 : i32
    %c0_i32_0 = arith.constant 0 : i32
    %c0_i32_1 = arith.constant 0 : i32
    %c0_i32_2 = arith.constant 0 : i32
    return %c0_i32, %c0_i32_0, %c0_i32_1 : i32, i32, i32
  }
  func.func @transform_4(%arg0: i32) -> (i32, i32) {
    %c0_i32 = arith.constant 0 : i32
    %c0_i32_0 = arith.constant 0 : i32
    %c0_i32_1 = arith.constant 0 : i32
    return %c0_i32, %c0_i32_0 : i32, i32
  }
  func.func @transform_5(%arg0: i32) -> (i32, i32) {
    %c0_i32 = arith.constant 0 : i32
    %c0_i32_0 = arith.constant 0 : i32
    %c0_i32_1 = arith.constant 0 : i32
    return %c0_i32, %c0_i32_0 : i32, i32
  }
  func.func @transform_6(%arg0: i32) -> (i32, i32) {
    %c0_i32 = arith.constant 0 : i32
    %c0_i32_0 = arith.constant 0 : i32
    %c0_i32_1 = arith.constant 0 : i32
    return %c0_i32, %c0_i32_0 : i32, i32
  }
  func.func @transform_7(%arg0: i32) -> (i32, i32) {
    %c0_i32 = arith.constant 0 : i32
    %c0_i32_0 = arith.constant 0 : i32
    return %arg0, %c0_i32 : i32, i32
  }
}

</mosaic_0001>

<llo_original>
// kernel: _lambda_.1
$region0: #{_lambda_.1}
  #allocation0 [shape = 'u32[]', space=smem, size = 0x4, offset = 0x4, fixed_abs, tag = 'smem constant byte address 0x4 - core index']
  #allocation1 [shape = 'u32[144,128]{1,0:T(1,128)}', space=vmem, size = 0x12000, scoped, tag = 'internal scratch']
  %s0 = inlined_call_operand.vmem [shape: f32[1024,16], index: 0, kind: input, shape index: {}]
  %s1 = inlined_call_operand.vmem [shape: bf16[4,8,128], index: 1, kind: input, shape index: {}]
  %s2 = inlined_call_operand.vmem [shape: bf16[10,128,128], index: 2, kind: input, shape index: {}]
  %s3 = inlined_call_operand.vmem [shape: bf16[4,128,8], index: 3, kind: input, shape index: {}]
  %s4 = inlined_call_operand.vmem [shape: bf16[4,128], index: 4, kind: input, shape index: {}]
  %s5 = inlined_call_operand.vmem [shape: bf16[10,128], index: 5, kind: input, shape index: {}]
  %s6 = inlined_call_operand.vmem [shape: f32[4,8], index: 6, kind: input, shape index: {}]
  %s7 = inlined_call_operand.vmem [shape: f32[1024,32], index: 7, kind: output, shape index: {}]
  %s8 = sld [smem:[#allocation0]]
  $region61: #{_lambda_.1} parent=0
    _
  %s10 = ssub.s32 1, %s8
  %s11 = scalar_select 0, %s10, %s8
  loop: start=0, step=1, limit=4
  $region2: #{_lambda_.1} parent=0 // loop_pre_header
    _
  $region3: #{_lambda_.1} parent=0 // loop_header
    %s13 = sphi 0, %s17
    %p14 = scmp.ge.s32.totalorder %s13, 4
    %s23 = sphi 0, %s25
    %s26 = sphi 0, %s23
    %s27 = sphi 0, %s26
    %s43 = sphi 0, %s27
    %s47 = sphi 0, %s47
    %s49 = sphi 0, %s47
    %s50 = sphi 0, %s49
    %s64 = sphi 0, %s50
    %s68 = sphi 0, %s68
    %s70 = sphi 0, %s68
    %s71 = sphi 0, %s70
    %s85 = sphi 0, %s71
    %s89 = sphi 0, %s89
    %s91 = sphi 0, %s89
    %s92 = sphi 0, %s91
    %s106 = sphi 0, %s92
    %s110 = sphi 0, %s110
    %s112 = sphi 0, %s110
    %s113 = sphi 0, %s112
    %s127 = sphi 0, %s113
    %s131 = sphi 0, %s131
    %s133 = sphi 0, %s131
    %s134 = sphi 0, %s133
    %s148 = sphi 0, %s134
    %s152 = sphi 0, %s152
    %s154 = sphi 0, %s152
    %s155 = sphi 0, %s154
    %s169 = sphi 0, %s155
    %s175 = sphi 0, %s177
    %s178 = sphi 0, %s175
    %s179 = sphi 0, %s178
    %s195 = sphi 0, %s179
  $region4: #{_lambda_.1} parent=0 // loop_header_branch
    %16 = sbr.rel (%p14) target = $region8
  $region5: #{_lambda_.1} parent=0 // loop_body
    %s18 = ssub.s32 %s13, 1
    %s19 = ssub.s32 %s13, 2
    %s20 = sadd.s32 %s13, 1
    %s21 = ssub.s32 %s13, %s20
    %p22 = scmp.eq.s32.totalorder %s21, 0
    %s24 = sadd.s32 %s23, 1
    %s25 = scalar_select %p22, %s23, %s24
    %p28 = pneg %p22
    %p29 = scmp.eq.s32.totalorder %s13, 1
    %p30 = por %p28, %p29
    %p31 = scmp.ne.s32.totalorder %s23, %s26
    %p32 = scmp.eq.s32.totalorder %s13, 0
    %p33 = por %p31, %p32
    %p34 = scmp.ne.s32.totalorder %s23, %s26
    %p35 = scmp.eq.s32.totalorder %s18, 1
    %p36 = por %p34, %p35
    %p37 = scmp.ne.s32.totalorder %s26, %s27
    %p38 = scmp.eq.s32.totalorder %s18, 0
    %p39 = por %p37, %p38
    %p40 = scmp.ne.s32.totalorder %s26, %s27
    %p41 = scmp.eq.s32.totalorder %s19, 1
    %p42 = por %p40, %p41
    %p44 = scmp.ne.s32.totalorder %s27, %s43
    %p45 = scmp.eq.s32.totalorder %s19, 0
    %p46 = por %p44, %p45
    %s48 = sadd.s32 %s47, 1
    %p51 = scmp.eq.s32.totalorder %s13, 1
    %p52 = scmp.ne.s32.totalorder %s47, %s49
    %p53 = scmp.eq.s32.totalorder %s13, 0
    %p54 = por %p52, %p53
    %p55 = scmp.ne.s32.totalorder %s47, %s49
    %p56 = scmp.eq.s32.totalorder %s18, 1
    %p57 = por %p55, %p56
    %p58 = scmp.ne.s32.totalorder %s49, %s50
    %p59 = scmp.eq.s32.totalorder %s18, 0
    %p60 = por %p58, %p59
    %p61 = scmp.ne.s32.totalorder %s49, %s50
    %p62 = scmp.eq.s32.totalorder %s19, 1
    %p63 = por %p61, %p62
    %p65 = scmp.ne.s32.totalorder %s50, %s64
    %p66 = scmp.eq.s32.totalorder %s19, 0
    %p67 = por %p65, %p66
    %s69 = sadd.s32 %s68, 1
    %p72 = scmp.eq.s32.totalorder %s13, 1
    %p73 = scmp.ne.s32.totalorder %s68, %s70
    %p74 = scmp.eq.s32.totalorder %s13, 0
    %p75 = por %p73, %p74
    %p76 = scmp.ne.s32.totalorder %s68, %s70
    %p77 = scmp.eq.s32.totalorder %s18, 1
    %p78 = por %p76, %p77
    %p79 = scmp.ne.s32.totalorder %s70, %s71
    %p80 = scmp.eq.s32.totalorder %s18, 0
    %p81 = por %p79, %p80
    %p82 = scmp.ne.s32.totalorder %s70, %s71
    %p83 = scmp.eq.s32.totalorder %s19, 1
    %p84 = por %p82, %p83
    %p86 = scmp.ne.s32.totalorder %s71, %s85
    %p87 = scmp.eq.s32.totalorder %s19, 0
    %p88 = por %p86, %p87
    %s90 = sadd.s32 %s89, 1
    %p93 = scmp.eq.s32.totalorder %s13, 1
    %p94 = scmp.ne.s32.totalorder %s89, %s91
    %p95 = scmp.eq.s32.totalorder %s13, 0
    %p96 = por %p94, %p95
    %p97 = scmp.ne.s32.totalorder %s89, %s91
    %p98 = scmp.eq.s32.totalorder %s18, 1
    %p99 = por %p97, %p98
    %p100 = scmp.ne.s32.totalorder %s91, %s92
    %p101 = scmp.eq.s32.totalorder %s18, 0
    %p102 = por %p100, %p101
    %p103 = scmp.ne.s32.totalorder %s91, %s92
    %p104 = scmp.eq.s32.totalorder %s19, 1
    %p105 = por %p103, %p104
    %p107 = scmp.ne.s32.totalorder %s92, %s106
    %p108 = scmp.eq.s32.totalorder %s19, 0
    %p109 = por %p107, %p108
    %s111 = sadd.s32 %s110, 1
    %p114 = scmp.eq.s32.totalorder %s13, 1
    %p115 = scmp.ne.s32.totalorder %s110, %s112
    %p116 = scmp.eq.s32.totalorder %s13, 0
    %p117 = por %p115, %p116
    %p118 = scmp.ne.s32.totalorder %s110, %s112
    %p119 = scmp.eq.s32.totalorder %s18, 1
    %p120 = por %p118, %p119
    %p121 = scmp.ne.s32.totalorder %s112, %s113
    %p122 = scmp.eq.s32.totalorder %s18, 0
    %p123 = por %p121, %p122
    %p124 = scmp.ne.s32.totalorder %s112, %s113
    %p125 = scmp.eq.s32.totalorder %s19, 1
    %p126 = por %p124, %p125
    %p128 = scmp.ne.s32.totalorder %s113, %s127
    %p129 = scmp.eq.s32.totalorder %s19, 0
    %p130 = por %p128, %p129
    %s132 = sadd.s32 %s131, 1
    %p135 = scmp.eq.s32.totalorder %s13, 1
    %p136 = scmp.ne.s32.totalorder %s131, %s133
    %p137 = scmp.eq.s32.totalorder %s13, 0
    %p138 = por %p136, %p137
    %p139 = scmp.ne.s32.totalorder %s131, %s133
    %p140 = scmp.eq.s32.totalorder %s18, 1
    %p141 = por %p139, %p140
    %p142 = scmp.ne.s32.totalorder %s133, %s134
    %p143 = scmp.eq.s32.totalorder %s18, 0
    %p144 = por %p142, %p143
    %p145 = scmp.ne.s32.totalorder %s133, %s134
    %p146 = scmp.eq.s32.totalorder %s19, 1
    %p147 = por %p145, %p146
    %p149 = scmp.ne.s32.totalorder %s134, %s148
    %p150 = scmp.eq.s32.totalorder %s19, 0
    %p151 = por %p149, %p150
    %s153 = sadd.s32 %s152, 1
    %p156 = scmp.eq.s32.totalorder %s13, 1
    %p157 = scmp.ne.s32.totalorder %s152, %s154
    %p158 = scmp.eq.s32.totalorder %s13, 0
    %p159 = por %p157, %p158
    %p160 = scmp.ne.s32.totalorder %s152, %s154
    %p161 = scmp.eq.s32.totalorder %s18, 1
    %p162 = por %p160, %p161
    %p163 = scmp.ne.s32.totalorder %s154, %s155
    %p164 = scmp.eq.s32.totalorder %s18, 0
    %p165 = por %p163, %p164
    %p166 = scmp.ne.s32.totalorder %s154, %s155
    %p167 = scmp.eq.s32.totalorder %s19, 1
    %p168 = por %p166, %p167
    %p170 = scmp.ne.s32.totalorder %s155, %s169
    %p171 = scmp.eq.s32.totalorder %s19, 0
    %p172 = por %p170, %p171
    %s173 = ssub.s32 %s13, %s20
    %p174 = scmp.eq.s32.totalorder %s173, 0
    %s176 = sadd.s32 %s175, 1
    %s177 = scalar_select %p174, %s175, %s176
    %p180 = pneg %p174
    %p181 = scmp.eq.s32.totalorder %s13, 1
    %p182 = por %p180, %p181
    %p183 = scmp.ne.s32.totalorder %s175, %s178
    %p184 = scmp.eq.s32.totalorder %s13, 0
    %p185 = por %p183, %p184
    %p186 = scmp.ne.s32.totalorder %s175, %s178
    %p187 = scmp.eq.s32.totalorder %s18, 1
    %p188 = por %p186, %p187
    %p189 = scmp.ne.s32.totalorder %s178, %s179
    %p190 = scmp.eq.s32.totalorder %s18, 0
    %p191 = por %p189, %p190
    %p192 = scmp.ne.s32.totalorder %s178, %s179
    %p193 = scmp.eq.s32.totalorder %s19, 1
    %p194 = por %p192, %p193
    %p196 = scmp.ne.s32.totalorder %s179, %s195
    %p197 = scmp.eq.s32.totalorder %s19, 0
    %p198 = por %p196, %p197
    %p199 = scmp.le.s32.totalorder 1, %s13
    %p200 = scmp.lt.s32.totalorder %s13, 3
    %p201 = pnand %p199, %p200
    %p202 = pneg %p201
    // Predicated region
    $region9: #{_lambda_.1} parent=5 // pred_check
      _
    $region10: #{_lambda_.1} parent=5 // pred_check_branch
      %204 = sbr.rel (%p201) target = $region12
    $region11: #{_lambda_.1} parent=5 // pred_region
      %s205 = ssub.s32 %s13, 1
      // Predicated region
      $region13: #{_lambda_.1} parent=11 // pred_check
        %p206 = pneg %p60
      $region14: #{_lambda_.1} parent=11 // pred_check_branch
        %208 = sbr.rel (%p206) target = $region16
      $region15: #{_lambda_.1} parent=11 // pred_region
        _
      $region16: #{_lambda_.1} parent=11 // pred_fallthru
        _
      // Predicated region
      $region17: #{_lambda_.1} parent=11 // pred_check
        %p209 = pneg %p81
      $region18: #{_lambda_.1} parent=11 // pred_check_branch
        %211 = sbr.rel (%p209) target = $region20
      $region19: #{_lambda_.1} parent=11 // pred_region
        _
      $region20: #{_lambda_.1} parent=11 // pred_fallthru
        _
      // Predicated region
      $region21: #{_lambda_.1} parent=11 // pred_check
        %p212 = pneg %p102
      $region22: #{_lambda_.1} parent=11 // pred_check_branch
        %214 = sbr.rel (%p212) target = $region24
      $region23: #{_lambda_.1} parent=11 // pred_region
        _
      $region24: #{_lambda_.1} parent=11 // pred_fallthru
        _
      // Predicated region
      $region25: #{_lambda_.1} parent=11 // pred_check
        %p215 = pneg %p123
      $region26: #{_lambda_.1} parent=11 // pred_check_branch
        %217 = sbr.rel (%p215) target = $region28
      $region27: #{_lambda_.1} parent=11 // pred_region
        _
      $region28: #{_lambda_.1} parent=11 // pred_fallthru
        _
      // Predicated region
      $region29: #{_lambda_.1} parent=11 // pred_check
        %p218 = pneg %p144
      $region30: #{_lambda_.1} parent=11 // pred_check_branch
        %220 = sbr.rel (%p218) target = $region32
      $region31: #{_lambda_.1} parent=11 // pred_region
        _
      $region32: #{_lambda_.1} parent=11 // pred_fallthru
        _
      // Predicated region
      $region33: #{_lambda_.1} parent=11 // pred_check
        %p221 = pneg %p165
      $region34: #{_lambda_.1} parent=11 // pred_check_branch
        %223 = sbr.rel (%p221) target = $region36
      $region35: #{_lambda_.1} parent=11 // pred_region
        _
      $region36: #{_lambda_.1} parent=11 // pred_fallthru
        _
    $region12: #{_lambda_.1} parent=5 // pred_fallthru
      _
    %p224 = scmp.lt.s32.totalorder %s13, 2
    // Predicated region
    $region37: #{_lambda_.1} parent=5 // pred_check
      %p225 = pneg %p224
    $region38: #{_lambda_.1} parent=5 // pred_check_branch
      %227 = sbr.rel (%p225) target = $region40
    $region39: #{_lambda_.1} parent=5 // pred_region
      // Predicated region
      $region41: #{_lambda_.1} parent=39 // pred_check
        %p228 = pneg %p33
      $region42: #{_lambda_.1} parent=39 // pred_check_branch
        %230 = sbr.rel (%p228) target = $region44
      $region43: #{_lambda_.1} parent=39 // pred_region
        %s231 = smul.u32 64, %s13
        %p232 = scmp.lt.s32.totalorder %s231, 127
        %s233 = scalar_select %p232, %s231, 127
        %s234 = smul.addr %s233, 8
        %s235 = scalar_lea.vmem %s0, %s234
        %s236 = smul.u32 64, %s13
      $region44: #{_lambda_.1} parent=39 // pred_fallthru
        _
    $region40: #{_lambda_.1} parent=5 // pred_fallthru
      _
    %p237 = scmp.le.s32.totalorder 1, %s13
    %p238 = scmp.lt.s32.totalorder %s13, 3
    %p239 = pnand %p237, %p238
    %p240 = pneg %p239
    // Predicated region
    $region45: #{_lambda_.1} parent=5 // pred_check
      _
    $region46: #{_lambda_.1} parent=5 // pred_check_branch
      %242 = sbr.rel (%p239) target = $region48
    $region47: #{_lambda_.1} parent=5 // pred_region
      %s243 = ssub.s32 %s13, 1
      %s244 = smul.u32 64, %s18
      %p245 = scmp.lt.s32.totalorder %s244, 127
      %s246 = scalar_select %p245, %s244, 127
      %s247 = smul.addr %s246, 8
      %s248 = scalar_lea.vmem %s0, %s247
      %p249 = pneg %p39
      %p250 = pneg %p36
      %p251 = pneg %p60
      %p252 = pneg %p57
      %p253 = pneg %p81
      %p254 = pneg %p78
      %p255 = pneg %p102
      %p256 = pneg %p99
      %p257 = pneg %p123
      %p258 = pneg %p120
      %p259 = pneg %p144
      %p260 = pneg %p141
      %p261 = pneg %p165
      %p262 = pneg %p162
      %p263 = pneg %p191
      %p264 = pneg %p188
      %s265 = smul.u32 64, %s18
      %p266 = scmp.lt.s32.totalorder %s265, 127
      %s267 = scalar_select %p266, %s265, 127
      %s268 = smul.addr %s267, 8
      %s269 = scalar_lea.vmem %s7, %s268
      %s270 = smul.u32 64, %s18
      %p271 = scmp.lt.s32.totalorder %s270, 127
      %s272 = scalar_select %p271, %s270, 127
      %s273 = smul.addr %s272, 8
      %s274 = scalar_lea.vmem %s0, %s273
      %s275 = smul.u32 64, %s18
      %s276 = smul.u32 64, %s18
      %p277 = scmp.lt.s32.totalorder %s276, 127
      %s278 = scalar_select %p277, %s276, 127
      %s279 = smul.addr %s278, 8
      %s280 = scalar_lea.vmem %s7, %s279
      %s281 = smul.u32 64, %s18
      %v284 = vld [vmem:[%s274] sm:$0xff]
      %v285 = vld [vmem:[%s274 + $0x8] sm:$0xff]
      %v286 = vld [vmem:[%s274 + $0x10] sm:$0xff]
      %v287 = vld [vmem:[%s274 + $0x18] sm:$0xff]
      %v288 = vld [vmem:[%s274 + $0x20] sm:$0xff]
      %v289 = vld [vmem:[%s274 + $0x28] sm:$0xff]
      %v290 = vld [vmem:[%s274 + $0x30] sm:$0xff]
      %v291 = vld [vmem:[%s274 + $0x38] sm:$0xff]
      %v292 = vld [vmem:[%s274 + $0x40] sm:$0xff]
      %v293 = vld [vmem:[%s274 + $0x48] sm:$0xff]
      %v294 = vld [vmem:[%s274 + $0x50] sm:$0xff]
      %v295 = vld [vmem:[%s274 + $0x58] sm:$0xff]
      %v296 = vld [vmem:[%s274 + $0x60] sm:$0xff]
      %v297 = vld [vmem:[%s274 + $0x68] sm:$0xff]
      %v298 = vld [vmem:[%s274 + $0x70] sm:$0xff]
      %v299 = vld [vmem:[%s274 + $0x78] sm:$0xff]
      %v300 = vld [vmem:[%s274 + $0x80] sm:$0xff]
      %v301 = vld [vmem:[%s274 + $0x88] sm:$0xff]
      %v302 = vld [vmem:[%s274 + $0x90] sm:$0xff]
      %v303 = vld [vmem:[%s274 + $0x98] sm:$0xff]
      %v304 = vld [vmem:[%s274 + $0xa0] sm:$0xff]
      %v305 = vld [vmem:[%s274 + $0xa8] sm:$0xff]
      %v306 = vld [vmem:[%s274 + $0xb0] sm:$0xff]
      %v307 = vld [vmem:[%s274 + $0xb8] sm:$0xff]
      %v308 = vld [vmem:[%s274 + $0xc0] sm:$0xff]
      %v309 = vld [vmem:[%s274 + $0xc8] sm:$0xff]
      %v310 = vld [vmem:[%s274 + $0xd0] sm:$0xff]
      %v311 = vld [vmem:[%s274 + $0xd8] sm:$0xff]
      %v312 = vld [vmem:[%s274 + $0xe0] sm:$0xff]
      %v313 = vld [vmem:[%s274 + $0xe8] sm:$0xff]
      %v314 = vld [vmem:[%s274 + $0xf0] sm:$0xff]
      %v315 = vld [vmem:[%s274 + $0xf8] sm:$0xff]
      %v316 = vld [vmem:[%s274 + $0x100] sm:$0xff]
      %v317 = vld [vmem:[%s274 + $0x108] sm:$0xff]
      %v318 = vld [vmem:[%s274 + $0x110] sm:$0xff]
      %v319 = vld [vmem:[%s274 + $0x118] sm:$0xff]
      %v320 = vld [vmem:[%s274 + $0x120] sm:$0xff]
      %v321 = vld [vmem:[%s274 + $0x128] sm:$0xff]
      %v322 = vld [vmem:[%s274 + $0x130] sm:$0xff]
      %v323 = vld [vmem:[%s274 + $0x138] sm:$0xff]
      %v324 = vld [vmem:[%s274 + $0x140] sm:$0xff]
      %v325 = vld [vmem:[%s274 + $0x148] sm:$0xff]
      %v326 = vld [vmem:[%s274 + $0x150] sm:$0xff]
      %v327 = vld [vmem:[%s274 + $0x158] sm:$0xff]
      %v328 = vld [vmem:[%s274 + $0x160] sm:$0xff]
      %v329 = vld [vmem:[%s274 + $0x168] sm:$0xff]
      %v330 = vld [vmem:[%s274 + $0x170] sm:$0xff]
      %v331 = vld [vmem:[%s274 + $0x178] sm:$0xff]
      %v332 = vld [vmem:[%s274 + $0x180] sm:$0xff]
      %v333 = vld [vmem:[%s274 + $0x188] sm:$0xff]
      %v334 = vld [vmem:[%s274 + $0x190] sm:$0xff]
      %v335 = vld [vmem:[%s274 + $0x198] sm:$0xff]
      %v336 = vld [vmem:[%s274 + $0x1a0] sm:$0xff]
      %v337 = vld [vmem:[%s274 + $0x1a8] sm:$0xff]
      %v338 = vld [vmem:[%s274 + $0x1b0] sm:$0xff]
      %v339 = vld [vmem:[%s274 + $0x1b8] sm:$0xff]
      %v340 = vld [vmem:[%s274 + $0x1c0] sm:$0xff]
      %v341 = vld [vmem:[%s274 + $0x1c8] sm:$0xff]
      %v342 = vld [vmem:[%s274 + $0x1d0] sm:$0xff]
      %v343 = vld [vmem:[%s274 + $0x1d8] sm:$0xff]
      %v344 = vld [vmem:[%s274 + $0x1e0] sm:$0xff]
      %v345 = vld [vmem:[%s274 + $0x1e8] sm:$0xff]
      %v346 = vld [vmem:[%s274 + $0x1f0] sm:$0xff]
      %v347 = vld [vmem:[%s274 + $0x1f8] sm:$0xff]
      %v348 = vpack.c.bf16 %v285, %v284
      %v349 = vpack.c.bf16 %v287, %v286
      %v350 = vpack.c.bf16 %v289, %v288
      %v351 = vpack.c.bf16 %v291, %v290
      %v352 = vpack.c.bf16 %v293, %v292
      %v353 = vpack.c.bf16 %v295, %v294
      %v354 = vpack.c.bf16 %v297, %v296
      %v355 = vpack.c.bf16 %v299, %v298
      %v356 = vpack.c.bf16 %v301, %v300
      %v357 = vpack.c.bf16 %v303, %v302
      %v358 = vpack.c.bf16 %v305, %v304
      %v359 = vpack.c.bf16 %v307, %v306
      %v360 = vpack.c.bf16 %v309, %v308
      %v361 = vpack.c.bf16 %v311, %v310
      %v362 = vpack.c.bf16 %v313, %v312
      %v363 = vpack.c.bf16 %v315, %v314
      %v364 = vpack.c.bf16 %v317, %v316
      %v365 = vpack.c.bf16 %v319, %v318
      %v366 = vpack.c.bf16 %v321, %v320
      %v367 = vpack.c.bf16 %v323, %v322
      %v368 = vpack.c.bf16 %v325, %v324
      %v369 = vpack.c.bf16 %v327, %v326
      %v370 = vpack.c.bf16 %v329, %v328
      %v371 = vpack.c.bf16 %v331, %v330
      %v372 = vpack.c.bf16 %v333, %v332
      %v373 = vpack.c.bf16 %v335, %v334
      %v374 = vpack.c.bf16 %v337, %v336
      %v375 = vpack.c.bf16 %v339, %v338
      %v376 = vpack.c.bf16 %v341, %v340
      %v377 = vpack.c.bf16 %v343, %v342
      %v378 = vpack.c.bf16 %v345, %v344
      %v379 = vpack.c.bf16 %v347, %v346
      %v380 = vld [vmem:[%s1] sm:$0xf]
      %vm381 = vcmask 64512
      %v383 = vsel %vm381, %v348, 0
      %v386 = vsel %vm381, %v349, 0
      %v389 = vsel %vm381, %v350, 0
      %v392 = vsel %vm381, %v351, 0
      %v395 = vsel %vm381, %v352, 0
      %v398 = vsel %vm381, %v353, 0
      %v401 = vsel %vm381, %v354, 0
      %v404 = vsel %vm381, %v355, 0
      %v407 = vsel %vm381, %v356, 0
      %v410 = vsel %vm381, %v357, 0
      %v413 = vsel %vm381, %v358, 0
      %v416 = vsel %vm381, %v359, 0
      %v419 = vsel %vm381, %v360, 0
      %v422 = vsel %vm381, %v361, 0
      %v425 = vsel %vm381, %v362, 0
      %v428 = vsel %vm381, %v363, 0
      %v431 = vsel %vm381, %v364, 0
      %v434 = vsel %vm381, %v365, 0
      %v437 = vsel %vm381, %v366, 0
      %v440 = vsel %vm381, %v367, 0
      %v443 = vsel %vm381, %v368, 0
      %v446 = vsel %vm381, %v369, 0
      %v449 = vsel %vm381, %v370, 0
      %v452 = vsel %vm381, %v371, 0
      %v455 = vsel %vm381, %v372, 0
      %v458 = vsel %vm381, %v373, 0
      %v461 = vsel %vm381, %v374, 0
      %v464 = vsel %vm381, %v375, 0
      %v467 = vsel %vm381, %v376, 0
      %v470 = vsel %vm381, %v377, 0
      %v473 = vsel %vm381, %v378, 0
      %v476 = vsel %vm381, %v379, 0
      %vm478 = vcmask 1043456
      %v480 = vsel %vm478, %v380, 0
      %482 = vmatprep.subr.bf16.mxu0 0
      %483 = vmatpush1.bf16.msra.mxu0 %v480
      %484 = vmatprep.subr.bf16.mxu0 0
      %485 = vmatpush1.bf16.msra.mxu0 0
      %486 = vmatprep.subr.bf16.mxu0 0
      %487 = vmatpush1.bf16.msra.mxu0 0
      %488 = vmatprep.subr.bf16.mxu0 0
      %489 = vmatpush1.bf16.msra.mxu0 0
      %490 = vmatprep.subr.bf16.mxu0 0
      %491 = vmatpush1.bf16.msra.mxu0 0
      %492 = vmatprep.subr.bf16.mxu0 0
      %493 = vmatpush1.bf16.msra.mxu0 0
      %494 = vmatprep.subr.bf16.mxu0 0
      %495 = vmatpush1.bf16.msra.mxu0 0
      %496 = vmatprep.subr.bf16.mxu0 0
      %497 = vmatpush1.bf16.msra.mxu0 0
      %498 = vmatprep.subr.bf16.mxu0 0
      %499 = vmatpush1.bf16.msra.mxu0 0
      %500 = vmatprep.subr.bf16.mxu0 0
      %501 = vmatpush1.bf16.msra.mxu0 0
      %502 = vmatprep.subr.bf16.mxu0 0
      %503 = vmatpush1.bf16.msra.mxu0 0
      %504 = vmatprep.subr.bf16.mxu0 0
      %505 = vmatpush1.bf16.msra.mxu0 0
      %506 = vmatprep.subr.bf16.mxu0 0
      %507 = vmatpush1.bf16.msra.mxu0 0
      %508 = vmatprep.subr.bf16.mxu0 0
      %509 = vmatpush1.bf16.msra.mxu0 0
      %510 = vmatprep.subr.bf16.mxu0 0
      %511 = vmatpush1.bf16.msra.mxu0 0
      %512 = vmatprep.subr.bf16.mxu0 0
      %513 = vmatpush1.bf16.msra.mxu0 0
      %514 = vmatprep.mubr.bf16.mxu0 0
      %515 = vmatmul.mubr.bf16.gmra.mrb[0].mxu0 %v383
      %v516 = vpop.f32.mrb[0].mxu0
      %v517 = vadd.f32 0.0, %v516
      %v518 = vpop.f32.mrb[0].mxu0
      %v519 = vpop.f32.mrb[0].mxu0
      %v520 = vadd.f32 0.0, %v519
      %v521 = vpop.f32.mrb[0].mxu0
      %522 = vmatprep.mubr.bf16.mxu0 0
      %523 = vmatmul.mubr.bf16.gmra.mrb[0].mxu0 %v386
      %v524 = vpop.f32.mrb[0].mxu0
      %v525 = vadd.f32 0.0, %v524
      %v526 = vpop.f32.mrb[0].mxu0
      %v527 = vpop.f32.mrb[0].mxu0
      %v528 = vadd.f32 0.0, %v527
      %v529 = vpop.f32.mrb[0].mxu0
      %530 = vmatprep.mubr.bf16.mxu0 0
      %531 = vmatmul.mubr.bf16.gmra.mrb[0].mxu0 %v389
      %v532 = vpop.f32.mrb[0].mxu0
      %v533 = vadd.f32 0.0, %v532
      %v534 = vpop.f32.mrb[0].mxu0
      %v535 = vpop.f32.mrb[0].mxu0
      %v536 = vadd.f32 0.0, %v535
      %v537 = vpop.f32.mrb[0].mxu0
      %538 = vmatprep.mubr.bf16.mxu0 0
      %539 = vmatmul.mubr.bf16.gmra.mrb[0].mxu0 %v392
      %v540 = vpop.f32.mrb[0].mxu0
      %v541 = vadd.f32 0.0, %v540
      %v542 = vpop.f32.mrb[0].mxu0
      %v543 = vpop.f32.mrb[0].mxu0
      %v544 = vadd.f32 0.0, %v543
      %v545 = vpop.f32.mrb[0].mxu0
      %546 = vmatprep.mubr.bf16.mxu0 0
      %547 = vmatmul.mubr.bf16.gmra.mrb[0].mxu0 %v395
      %v548 = vpop.f32.mrb[0].mxu0
      %v549 = vadd.f32 0.0, %v548
      %v550 = vpop.f32.mrb[0].mxu0
      %v551 = vpop.f32.mrb[0].mxu0
      %v552 = vadd.f32 0.0, %v551
      %v553 = vpop.f32.mrb[0].mxu0
      %554 = vmatprep.mubr.bf16.mxu0 0
      %555 = vmatmul.mubr.bf16.gmra.mrb[0].mxu0 %v398
      %v556 = vpop.f32.mrb[0].mxu0
      %v557 = vadd.f32 0.0, %v556
      %v558 = vpop.f32.mrb[0].mxu0
      %v559 = vpop.f32.mrb[0].mxu0
      %v560 = vadd.f32 0.0, %v559
      %v561 = vpop.f32.mrb[0].mxu0
      %562 = vmatprep.mubr.bf16.mxu0 0
      %563 = vmatmul.mubr.bf16.gmra.mrb[0].mxu0 %v401
      %v564 = vpop.f32.mrb[0].mxu0
      %v565 = vadd.f32 0.0, %v564
      %v566 = vpop.f32.mrb[0].mxu0
      %v567 = vpop.f32.mrb[0].mxu0
      %v568 = vadd.f32 0.0, %v567
      %v569 = vpop.f32.mrb[0].mxu0
      %570 = vmatprep.mubr.bf16.mxu0 0
      %571 = vmatmul.mubr.bf16.gmra.mrb[0].mxu0 %v404
      %v572 = vpop.f32.mrb[0].mxu0
      %v573 = vadd.f32 0.0, %v572
      %v574 = vpop.f32.mrb[0].mxu0
      %v575 = vpop.f32.mrb[0].mxu0
      %v576 = vadd.f32 0.0, %v575
      %v577 = vpop.f32.mrb[0].mxu0
      %578 = vmatprep.mubr.bf16.mxu0 0
      %579 = vmatmul.mubr.bf16.gmra.mrb[0].mxu0 %v407
      %v580 = vpop.f32.mrb[0].mxu0
      %v581 = vadd.f32 0.0, %v580
      %v582 = vpop.f32.mrb[0].mxu0
      %v583 = vpop.f32.mrb[0].mxu0
      %v584 = vadd.f32 0.0, %v583
      %v585 = vpop.f32.mrb[0].mxu0
      %586 = vmatprep.mubr.bf16.mxu0 0
      %587 = vmatmul.mubr.bf16.gmra.mrb[0].mxu0 %v410
      %v588 = vpop.f32.mrb[0].mxu0
      %v589 = vadd.f32 0.0, %v588
      %v590 = vpop.f32.mrb[0].mxu0
      %v591 = vpop.f32.mrb[0].mxu0
      %v592 = vadd.f32 0.0, %v591
      %v593 = vpop.f32.mrb[0].mxu0
      %594 = vmatprep.mubr.bf16.mxu0 0
      %595 = vmatmul.mubr.bf16.gmra.mrb[0].mxu0 %v413
      %v596 = vpop.f32.mrb[0].mxu0
      %v597 = vadd.f32 0.0, %v596
      %v598 = vpop.f32.mrb[0].mxu0
      %v599 = vpop.f32.mrb[0].mxu0
      %v600 = vadd.f32 0.0, %v599
      %v601 = vpop.f32.mrb[0].mxu0
      %602 = vmatprep.mubr.bf16.mxu0 0
      %603 = vmatmul.mubr.bf16.gmra.mrb[0].mxu0 %v416
      %v604 = vpop.f32.mrb[0].mxu0
      %v605 = vadd.f32 0.0, %v604
      %v606 = vpop.f32.mrb[0].mxu0
      %v607 = vpop.f32.mrb[0].mxu0
      %v608 = vadd.f32 0.0, %v607
      %v609 = vpop.f32.mrb[0].mxu0
      %610 = vmatprep.mubr.bf16.mxu0 0
      %611 = vmatmul.mubr.bf16.gmra.mrb[0].mxu0 %v419
      %v612 = vpop.f32.mrb[0].mxu0
      %v613 = vadd.f32 0.0, %v612
      %v614 = vpop.f32.mrb[0].mxu0
      %v615 = vpop.f32.mrb[0].mxu0
      %v616 = vadd.f32 0.0, %v615
      %v617 = vpop.f32.mrb[0].mxu0
      %618 = vmatprep.mubr.bf16.mxu0 0
      %619 = vmatmul.mubr.bf16.gmra.mrb[0].mxu0 %v422
      %v620 = vpop.f32.mrb[0].mxu0
      %v621 = vadd.f32 0.0, %v620
      %v622 = vpop.f32.mrb[0].mxu0
      %v623 = vpop.f32.mrb[0].mxu0
      %v624 = vadd.f32 0.0, %v623
      %v625 = vpop.f32.mrb[0].mxu0
      %626 = vmatprep.mubr.bf16.mxu0 0
      %627 = vmatmul.mubr.bf16.gmra.mrb[0].mxu0 %v425
      %v628 = vpop.f32.mrb[0].mxu0
      %v629 = vadd.f32 0.0, %v628
      %v630 = vpop.f32.mrb[0].mxu0
      %v631 = vpop.f32.mrb[0].mxu0
      %v632 = vadd.f32 0.0, %v631
      %v633 = vpop.f32.mrb[0].mxu0
      %634 = vmatprep.mubr.bf16.mxu0 0
      %635 = vmatmul.mubr.bf16.gmra.mrb[0].mxu0 %v428
      %v636 = vpop.f32.mrb[0].mxu0
      %v637 = vadd.f32 0.0, %v636
      %v638 = vpop.f32.mrb[0].mxu0
      %v639 = vpop.f32.mrb[0].mxu0
      %v640 = vadd.f32 0.0, %v639
      %v641 = vpop.f32.mrb[0].mxu0
      %642 = vmatprep.mubr.bf16.mxu0 0
      %643 = vmatmul.mubr.bf16.gmra.mrb[0].mxu0 %v431
      %v644 = vpop.f32.mrb[0].mxu0
      %v645 = vadd.f32 0.0, %v644
      %v646 = vpop.f32.mrb[0].mxu0
      %v647 = vpop.f32.mrb[0].mxu0
      %v648 = vadd.f32 0.0, %v647
      %v649 = vpop.f32.mrb[0].mxu0
      %650 = vmatprep.mubr.bf16.mxu0 0
      %651 = vmatmul.mubr.bf16.gmra.mrb[0].mxu0 %v434
      %v652 = vpop.f32.mrb[0].mxu0
      %v653 = vadd.f32 0.0, %v652
      %v654 = vpop.f32.mrb[0].mxu0
      %v655 = vpop.f32.mrb[0].mxu0
      %v656 = vadd.f32 0.0, %v655
      %v657 = vpop.f32.mrb[0].mxu0
      %658 = vmatprep.mubr.bf16.mxu0 0
      %659 = vmatmul.mubr.bf16.gmra.mrb[0].mxu0 %v437
      %v660 = vpop.f32.mrb[0].mxu0
      %v661 = vadd.f32 0.0, %v660
      %v662 = vpop.f32.mrb[0].mxu0
      %v663 = vpop.f32.mrb[0].mxu0
      %v664 = vadd.f32 0.0, %v663
      %v665 = vpop.f32.mrb[0].mxu0
      %666 = vmatprep.mubr.bf16.mxu0 0
      %667 = vmatmul.mubr.bf16.gmra.mrb[0].mxu0 %v440
      %v668 = vpop.f32.mrb[0].mxu0
      %v669 = vadd.f32 0.0, %v668
      %v670 = vpop.f32.mrb[0].mxu0
      %v671 = vpop.f32.mrb[0].mxu0
      %v672 = vadd.f32 0.0, %v671
      %v673 = vpop.f32.mrb[0].mxu0
      %674 = vmatprep.mubr.bf16.mxu0 0
      %675 = vmatmul.mubr.bf16.gmra.mrb[0].mxu0 %v443
      %v676 = vpop.f32.mrb[0].mxu0
      %v677 = vadd.f32 0.0, %v676
      %v678 = vpop.f32.mrb[0].mxu0
      %v679 = vpop.f32.mrb[0].mxu0
      %v680 = vadd.f32 0.0, %v679
      %v681 = vpop.f32.mrb[0].mxu0
      %682 = vmatprep.mubr.bf16.mxu0 0
      %683 = vmatmul.mubr.bf16.gmra.mrb[0].mxu0 %v446
      %v684 = vpop.f32.mrb[0].mxu0
      %v685 = vadd.f32 0.0, %v684
      %v686 = vpop.f32.mrb[0].mxu0
      %v687 = vpop.f32.mrb[0].mxu0
      %v688 = vadd.f32 0.0, %v687
      %v689 = vpop.f32.mrb[0].mxu0
      %690 = vmatprep.mubr.bf16.mxu0 0
      %691 = vmatmul.mubr.bf16.gmra.mrb[0].mxu0 %v449
      %v692 = vpop.f32.mrb[0].mxu0
      %v693 = vadd.f32 0.0, %v692
      %v694 = vpop.f32.mrb[0].mxu0
      %v695 = vpop.f32.mrb[0].mxu0
      %v696 = vadd.f32 0.0, %v695
      %v697 = vpop.f32.mrb[0].mxu0
      %698 = vmatprep.mubr.bf16.mxu0 0
      %699 = vmatmul.mubr.bf16.gmra.mrb[0].mxu0 %v452
      %v700 = vpop.f32.mrb[0].mxu0
      %v701 = vadd.f32 0.0, %v700
      %v702 = vpop.f32.mrb[0].mxu0
      %v703 = vpop.f32.mrb[0].mxu0
      %v704 = vadd.f32 0.0, %v703
      %v705 = vpop.f32.mrb[0].mxu0
      %706 = vmatprep.mubr.bf16.mxu0 0
      %707 = vmatmul.mubr.bf16.gmra.mrb[0].mxu0 %v455
      %v708 = vpop.f32.mrb[0].mxu0
      %v709 = vadd.f32 0.0, %v708
      %v710 = vpop.f32.mrb[0].mxu0
      %v711 = vpop.f32.mrb[0].mxu0
      %v712 = vadd.f32 0.0, %v711
      %v713 = vpop.f32.mrb[0].mxu0
      %714 = vmatprep.mubr.bf16.mxu0 0
      %715 = vmatmul.mubr.bf16.gmra.mrb[0].mxu0 %v458
      %v716 = vpop.f32.mrb[0].mxu0
      %v717 = vadd.f32 0.0, %v716
      %v718 = vpop.f32.mrb[0].mxu0
      %v719 = vpop.f32.mrb[0].mxu0
      %v720 = vadd.f32 0.0, %v719
      %v721 = vpop.f32.mrb[0].mxu0
      %722 = vmatprep.mubr.bf16.mxu0 0
      %723 = vmatmul.mubr.bf16.gmra.mrb[0].mxu0 %v461
      %v724 = vpop.f32.mrb[0].mxu0
      %v725 = vadd.f32 0.0, %v724
      %v726 = vpop.f32.mrb[0].mxu0
      %v727 = vpop.f32.mrb[0].mxu0
      %v728 = vadd.f32 0.0, %v727
      %v729 = vpop.f32.mrb[0].mxu0
      %730 = vmatprep.mubr.bf16.mxu0 0
      %731 = vmatmul.mubr.bf16.gmra.mrb[0].mxu0 %v464
      %v732 = vpop.f32.mrb[0].mxu0
      %v733 = vadd.f32 0.0, %v732
      %v734 = vpop.f32.mrb[0].mxu0
      %v735 = vpop.f32.mrb[0].mxu0
      %v736 = vadd.f32 0.0, %v735
      %v737 = vpop.f32.mrb[0].mxu0
      %738 = vmatprep.mubr.bf16.mxu0 0
      %739 = vmatmul.mubr.bf16.gmra.mrb[0].mxu0 %v467
      %v740 = vpop.f32.mrb[0].mxu0
      %v741 = vadd.f32 0.0, %v740
      %v742 = vpop.f32.mrb[0].mxu0
      %v743 = vpop.f32.mrb[0].mxu0
      %v744 = vadd.f32 0.0, %v743
      %v745 = vpop.f32.mrb[0].mxu0
      %746 = vmatprep.mubr.bf16.mxu0 0
      %747 = vmatmul.mubr.bf16.gmra.mrb[0].mxu0 %v470
      %v748 = vpop.f32.mrb[0].mxu0
      %v749 = vadd.f32 0.0, %v748
      %v750 = vpop.f32.mrb[0].mxu0
      %v751 = vpop.f32.mrb[0].mxu0
      %v752 = vadd.f32 0.0, %v751
      %v753 = vpop.f32.mrb[0].mxu0
      %754 = vmatprep.mubr.bf16.mxu0 0
      %755 = vmatmul.mubr.bf16.gmra.mrb[0].mxu0 %v473
      %v756 = vpop.f32.mrb[0].mxu0
      %v757 = vadd.f32 0.0, %v756
      %v758 = vpop.f32.mrb[0].mxu0
      %v759 = vpop.f32.mrb[0].mxu0
      %v760 = vadd.f32 0.0, %v759
      %v761 = vpop.f32.mrb[0].mxu0
      %762 = vmatprep.mubr.bf16.mxu0 0
      %763 = vmatmul.mubr.bf16.gmra.mrb[0].mxu0 %v476
      %v764 = vpop.f32.mrb[0].mxu0
      %v765 = vadd.f32 0.0, %v764
      %v766 = vpop.f32.mrb[0].mxu0
      %v767 = vpop.f32.mrb[0].mxu0
      %v768 = vadd.f32 0.0, %v767
      %v769 = vpop.f32.mrb[0].mxu0
      %770 = vdwg.mxu0
      %v771 = vpack.c.bf16 %v520, %v517
      %v772 = vpack.c.bf16 %v528, %v525
      %v773 = vpack.c.bf16 %v536, %v533
      %v774 = vpack.c.bf16 %v544, %v541
      %v775 = vpack.c.bf16 %v552, %v549
      %v776 = vpack.c.bf16 %v560, %v557
      %v777 = vpack.c.bf16 %v568, %v565
      %v778 = vpack.c.bf16 %v576, %v573
      %v779 = vpack.c.bf16 %v584, %v581
      %v780 = vpack.c.bf16 %v592, %v589
      %v781 = vpack.c.bf16 %v600, %v597
      %v782 = vpack.c.bf16 %v608, %v605
      %v783 = vpack.c.bf16 %v616, %v613
      %v784 = vpack.c.bf16 %v624, %v621
      %v785 = vpack.c.bf16 %v632, %v629
      %v786 = vpack.c.bf16 %v640, %v637
      %v787 = vpack.c.bf16 %v648, %v645
      %v788 = vpack.c.bf16 %v656, %v653
      %v789 = vpack.c.bf16 %v664, %v661
      %v790 = vpack.c.bf16 %v672, %v669
      %v791 = vpack.c.bf16 %v680, %v677
      %v792 = vpack.c.bf16 %v688, %v685
      %v793 = vpack.c.bf16 %v696, %v693
      %v794 = vpack.c.bf16 %v704, %v701
      %v795 = vpack.c.bf16 %v712, %v709
      %v796 = vpack.c.bf16 %v720, %v717
      %v797 = vpack.c.bf16 %v728, %v725
      %v798 = vpack.c.bf16 %v736, %v733
      %v799 = vpack.c.bf16 %v744, %v741
      %v800 = vpack.c.bf16 %v752, %v749
      %v801 = vpack.c.bf16 %v760, %v757
      %v802 = vpack.c.bf16 %v768, %v765
      %v803 = vld [vmem:[%s4] sm:$0x1]
      %v805 = vpack.i.b16 %v803, %v803
      %v807 = vlaneseq
      %v808 = vshrl.u32 %v807, 7
      %v809 = vsub.s32 0, %v808
      %v810 = vrot.slane %v805, %v809
      %v811 = vadd.bf16 %v771, %v810
      %v812 = vadd.bf16 %v772, %v810
      %v813 = vadd.bf16 %v773, %v810
      %v814 = vadd.bf16 %v774, %v810
      %v815 = vadd.bf16 %v775, %v810
      %v816 = vadd.bf16 %v776, %v810
      %v817 = vadd.bf16 %v777, %v810
      %v818 = vadd.bf16 %v778, %v810
      %v819 = vadd.bf16 %v779, %v810
      %v820 = vadd.bf16 %v780, %v810
      %v821 = vadd.bf16 %v781, %v810
      %v822 = vadd.bf16 %v782, %v810
      %v823 = vadd.bf16 %v783, %v810
      %v824 = vadd.bf16 %v784, %v810
      %v825 = vadd.bf16 %v785, %v810
      %v826 = vadd.bf16 %v786, %v810
      %v827 = vadd.bf16 %v787, %v810
      %v828 = vadd.bf16 %v788, %v810
      %v829 = vadd.bf16 %v789, %v810
      %v830 = vadd.bf16 %v790, %v810
      %v831 = vadd.bf16 %v791, %v810
      %v832 = vadd.bf16 %v792, %v810
      %v833 = vadd.bf16 %v793, %v810
      %v834 = vadd.bf16 %v794, %v810
      %v835 = vadd.bf16 %v795, %v810
      %v836 = vadd.bf16 %v796, %v810
      %v837 = vadd.bf16 %v797, %v810
      %v838 = vadd.bf16 %v798, %v810
      %v839 = vadd.bf16 %v799, %v810
      %v840 = vadd.bf16 %v800, %v810
      %v841 = vadd.bf16 %v801, %v810
      %v842 = vadd.bf16 %v802, %v810
      %v843 = vmul.bf16 %v811, 1045249613
      %v844 = vmul.bf16 %v812, 1045249613
      %v845 = vmul.bf16 %v813, 1045249613
      %v846 = vmul.bf16 %v814, 1045249613
      %v847 = vmul.bf16 %v815, 1045249613
      %v848 = vmul.bf16 %v816, 1045249613
      %v849 = vmul.bf16 %v817, 1045249613
      %v850 = vmul.bf16 %v818, 1045249613
      %v851 = vmul.bf16 %v819, 1045249613
      %v852 = vmul.bf16 %v820, 1045249613
      %v853 = vmul.bf16 %v821, 1045249613
      %v854 = vmul.bf16 %v822, 1045249613
      %v855 = vmul.bf16 %v823, 1045249613
      %v856 = vmul.bf16 %v824, 1045249613
      %v857 = vmul.bf16 %v825, 1045249613
      %v858 = vmul.bf16 %v826, 1045249613
      %v859 = vmul.bf16 %v827, 1045249613
      %v860 = vmul.bf16 %v828, 1045249613
      %v861 = vmul.bf16 %v829, 1045249613
      %v862 = vmul.bf16 %v830, 1045249613
      %v863 = vmul.bf16 %v831, 1045249613
      %v864 = vmul.bf16 %v832, 1045249613
      %v865 = vmul.bf16 %v833, 1045249613
      %v866 = vmul.bf16 %v834, 1045249613
      %v867 = vmul.bf16 %v835, 1045249613
      %v868 = vmul.bf16 %v836, 1045249613
      %v869 = vmul.bf16 %v837, 1045249613
      %v870 = vmul.bf16 %v838, 1045249613
      %v871 = vmul.bf16 %v839, 1045249613
      %v872 = vmul.bf16 %v840, 1045249613
      %v873 = vmul.bf16 %v841, 1045249613
      %v874 = vmul.bf16 %v842, 1045249613
      %v875 = vmax.bf16 %v811, %v843
      %v876 = vmax.bf16 %v812, %v844
      %v877 = vmax.bf16 %v813, %v845
      %v878 = vmax.bf16 %v814, %v846
      %v879 = vmax.bf16 %v815, %v847
      %v880 = vmax.bf16 %v816, %v848
      %v881 = vmax.bf16 %v817, %v849
      %v882 = vmax.bf16 %v818, %v850
      %v883 = vmax.bf16 %v819, %v851
      %v884 = vmax.bf16 %v820, %v852
      %v885 = vmax.bf16 %v821, %v853
      %v886 = vmax.bf16 %v822, %v854
      %v887 = vmax.bf16 %v823, %v855
      %v888 = vmax.bf16 %v824, %v856
      %v889 = vmax.bf16 %v825, %v857
      %v890 = vmax.bf16 %v826, %v858
      %v891 = vmax.bf16 %v827, %v859
      %v892 = vmax.bf16 %v828, %v860
      %v893 = vmax.bf16 %v829, %v861
      %v894 = vmax.bf16 %v830, %v862
      %v895 = vmax.bf16 %v831, %v863
      %v896 = vmax.bf16 %v832, %v864
      %v897 = vmax.bf16 %v833, %v865
      %v898 = vmax.bf16 %v834, %v866
      %v899 = vmax.bf16 %v835, %v867
      %v900 = vmax.bf16 %v836, %v868
      %v901 = vmax.bf16 %v837, %v869
      %v902 = vmax.bf16 %v838, %v870
      %v903 = vmax.bf16 %v839, %v871
      %v904 = vmax.bf16 %v840, %v872
      %v905 = vmax.bf16 %v841, %v873
      %v906 = vmax.bf16 %v842, %v874
      %v907 = vld [vmem:[%s2] sm:$0xf]
      %v908 = vld [vmem:[%s2 + $0x4] sm:$0xf]
      %v909 = vld [vmem:[%s2 + $0x8] sm:$0xf]
      %v910 = vld [vmem:[%s2 + $0xc] sm:$0xf]
      %v911 = vld [vmem:[%s2 + $0x10] sm:$0xf]
      %v912 = vld [vmem:[%s2 + $0x14] sm:$0xf]
      %v913 = vld [vmem:[%s2 + $0x18] sm:$0xf]
      %v914 = vld [vmem:[%s2 + $0x1c] sm:$0xf]
      %v915 = vld [vmem:[%s2 + $0x20] sm:$0xf]
      %v916 = vld [vmem:[%s2 + $0x24] sm:$0xf]
      %v917 = vld [vmem:[%s2 + $0x28] sm:$0xf]
      %v918 = vld [vmem:[%s2 + $0x2c] sm:$0xf]
      %v919 = vld [vmem:[%s2 + $0x30] sm:$0xf]
      %v920 = vld [vmem:[%s2 + $0x34] sm:$0xf]
      %v921 = vld [vmem:[%s2 + $0x38] sm:$0xf]
      %v922 = vld [vmem:[%s2 + $0x3c] sm:$0xf]
      %v939 = vunpack.c.l.b16 %v907
      %v940 = vunpack.c.l.b16 %v908
      %v941 = vunpack.c.l.b16 %v909
      %v942 = vunpack.c.l.b16 %v910
      %v943 = vunpack.c.l.b16 %v911
      %v944 = vunpack.c.l.b16 %v912
      %v945 = vunpack.c.l.b16 %v913
      %v946 = vunpack.c.l.b16 %v914
      %v947 = vunpack.c.l.b16 %v915
      %v948 = vunpack.c.l.b16 %v916
      %v949 = vunpack.c.l.b16 %v917
      %v950 = vunpack.c.l.b16 %v918
      %v951 = vunpack.c.l.b16 %v919
      %v952 = vunpack.c.l.b16 %v920
      %v953 = vunpack.c.l.b16 %v921
      %v954 = vunpack.c.l.b16 %v922
      %v955 = vpack.c.b16 %v940, %v939
      %v956 = vpack.c.b16 %v942, %v941
      %v957 = vpack.c.b16 %v944, %v943
      %v958 = vpack.c.b16 %v946, %v945
      %v959 = vpack.c.b16 %v948, %v947
      %v960 = vpack.c.b16 %v950, %v949
      %v961 = vpack.c.b16 %v952, %v951
      %v962 = vpack.c.b16 %v954, %v953
      %971 = vmatprep.subr.bf16.mxu0 0
      %972 = vmatpush1.bf16.msra.mxu0 %v955
      %973 = vmatprep.subr.bf16.mxu0 0
      %974 = vmatpush1.bf16.msra.mxu0 %v956
      %975 = vmatprep.subr.bf16.mxu0 0
      %976 = vmatpush1.bf16.msra.mxu0 %v957
      %977 = vmatprep.subr.bf16.mxu0 0
      %978 = vmatpush1.bf16.msra.mxu0 %v958
      %979 = vmatprep.subr.bf16.mxu0 0
      %980 = vmatpush1.bf16.msra.mxu0 %v959
      %981 = vmatprep.subr.bf16.mxu0 0
      %982 = vmatpush1.bf16.msra.mxu0 %v960
      %983 = vmatprep.subr.bf16.mxu0 0
      %984 = vmatpush1.bf16.msra.mxu0 %v961
      %985 = vmatprep.subr.bf16.mxu0 0
      %986 = vmatpush1.bf16.msra.mxu0 %v962
      %987 = vmatprep.subr.bf16.mxu0 0
      %988 = vmatpush1.bf16.msra.mxu0 0
      %989 = vmatprep.subr.bf16.mxu0 0
      %990 = vmatpush1.bf16.msra.mxu0 0
      %991 = vmatprep.subr.bf16.mxu0 0
      %992 = vmatpush1.bf16.msra.mxu0 0
      %993 = vmatprep.subr.bf16.mxu0 0
      %994 = vmatpush1.bf16.msra.mxu0 0
      %995 = vmatprep.subr.bf16.mxu0 0
      %996 = vmatpush1.bf16.msra.mxu0 0
      %997 = vmatprep.subr.bf16.mxu0 0
      %998 = vmatpush1.bf16.msra.mxu0 0
      %999 = vmatprep.subr.bf16.mxu0 0
      %1000 = vmatpush1.bf16.msra.mxu0 0
      %1001 = vmatprep.subr.bf16.mxu0 0
      %1002 = vmatpush1.bf16.msra.mxu0 0
      %1003 = vmatprep.mubr.bf16.mxu0 0
      %1004 = vmatmul.mubr.bf16.gmra.mrb[0].mxu0 %v875
      %v1005 = vpop.f32.mrb[0].mxu0
      %v1006 = vadd.f32 0.0, %v1005
      %v1007 = vpop.f32.mrb[0].mxu0
      %v1008 = vpop.f32.mrb[0].mxu0
      %v1009 = vadd.f32 0.0, %v1008
      %v1010 = vpop.f32.mrb[0].mxu0
      %1011 = vmatprep.mubr.bf16.mxu0 0
      %1012 = vmatmul.mubr.bf16.gmra.mrb[0].mxu0 %v876
      %v1013 = vpop.f32.mrb[0].mxu0
      %v1014 = vadd.f32 0.0, %v1013
      %v1015 = vpop.f32.mrb[0].mxu0
      %v1016 = vpop.f32.mrb[0].mxu0
      %v1017 = vadd.f32 0.0, %v1016
      %v1018 = vpop.f32.mrb[0].mxu0
      %1019 = vmatprep.mubr.bf16.mxu0 0
      %1020 = vmatmul.mubr.bf16.gmra.mrb[0].mxu0 %v877
      %v1021 = vpop.f32.mrb[0].mxu0
      %v1022 = vadd.f32 0.0, %v1021
      %v1023 = vpop.f32.mrb[0].mxu0
      %v1024 = vpop.f32.mrb[0].mxu0
      %v1025 = vadd.f32 0.0, %v1024
      %v1026 = vpop.f32.mrb[0].mxu0
      %1027 = vmatprep.mubr.bf16.mxu0 0
      %1028 = vmatmul.mubr.bf16.gmra.mrb[0].mxu0 %v878
      %v1029 = vpop.f32.mrb[0].mxu0
      %v1030 = vadd.f32 0.0, %v1029
      %v1031 = vpop.f32.mrb[0].mxu0
      %v1032 = vpop.f32.mrb[0].mxu0
      %v1033 = vadd.f32 0.0, %v1032
      %v1034 = vpop.f32.mrb[0].mxu0
      %1035 = vmatprep.mubr.bf16.mxu0 0
      %1036 = vmatmul.mubr.bf16.gmra.mrb[0].mxu0 %v879
      %v1037 = vpop.f32.mrb[0].mxu0
      %v1038 = vadd.f32 0.0, %v1037
      %v1039 = vpop.f32.mrb[0].mxu0
      %v1040 = vpop.f32.mrb[0].mxu0
      %v1041 = vadd.f32 0.0, %v1040
      %v1042 = vpop.f32.mrb[0].mxu0
      %1043 = vmatprep.mubr.bf16.mxu0 0
      %1044 = vmatmul.mubr.bf16.gmra.mrb[0].mxu0 %v880
      %v1045 = vpop.f32.mrb[0].mxu0
      %v1046 = vadd.f32 0.0, %v1045
      %v1047 = vpop.f32.mrb[0].mxu0
      %v1048 = vpop.f32.mrb[0].mxu0
      %v1049 = vadd.f32 0.0, %v1048
      %v1050 = vpop.f32.mrb[0].mxu0
      %1051 = vmatprep.mubr.bf16.mxu0 0
      %1052 = vmatmul.mubr.bf16.gmra.mrb[0].mxu0 %v881
      %v1053 = vpop.f32.mrb[0].mxu0
      %v1054 = vadd.f32 0.0, %v1053
      %v1055 = vpop.f32.mrb[0].mxu0
      %v1056 = vpop.f32.mrb[0].mxu0
      %v1057 = vadd.f32 0.0, %v1056
      %v1058 = vpop.f32.mrb[0].mxu0
      %1059 = vmatprep.mubr.bf16.mxu0 0
      %1060 = vmatmul.mubr.bf16.gmra.mrb[0].mxu0 %v882
      %v1061 = vpop.f32.mrb[0].mxu0
      %v1062 = vadd.f32 0.0, %v1061
      %v1063 = vpop.f32.mrb[0].mxu0
      %v1064 = vpop.f32.mrb[0].mxu0
      %v1065 = vadd.f32 0.0, %v1064
      %v1066 = vpop.f32.mrb[0].mxu0
      %1067 = vmatprep.mubr.bf16.mxu0 0
      %1068 = vmatmul.mubr.bf16.gmra.mrb[0].mxu0 %v883
      %v1069 = vpop.f32.mrb[0].mxu0
      %v1070 = vadd.f32 0.0, %v1069
      %v1071 = vpop.f32.mrb[0].mxu0
      %v1072 = vpop.f32.mrb[0].mxu0
      %v1073 = vadd.f32 0.0, %v1072
      %v1074 = vpop.f32.mrb[0].mxu0
      %1075 = vmatprep.mubr.bf16.mxu0 0
      %1076 = vmatmul.mubr.bf16.gmra.mrb[0].mxu0 %v884
      %v1077 = vpop.f32.mrb[0].mxu0
      %v1078 = vadd.f32 0.0, %v1077
      %v1079 = vpop.f32.mrb[0].mxu0
      %v1080 = vpop.f32.mrb[0].mxu0
      %v1081 = vadd.f32 0.0, %v1080
      %v1082 = vpop.f32.mrb[0].mxu0
      %1083 = vmatprep.mubr.bf16.mxu0 0
      %1084 = vmatmul.mubr.bf16.gmra.mrb[0].mxu0 %v885
      %v1085 = vpop.f32.mrb[0].mxu0
      %v1086 = vadd.f32 0.0, %v1085
      %v1087 = vpop.f32.mrb[0].mxu0
      %v1088 = vpop.f32.mrb[0].mxu0
      %v1089 = vadd.f32 0.0, %v1088
      %v1090 = vpop.f32.mrb[0].mxu0
      %1091 = vmatprep.mubr.bf16.mxu0 0
      %1092 = vmatmul.mubr.bf16.gmra.mrb[0].mxu0 %v886
      %v1093 = vpop.f32.mrb[0].mxu0
      %v1094 = vadd.f32 0.0, %v1093
      %v1095 = vpop.f32.mrb[0].mxu0
      %v1096 = vpop.f32.mrb[0].mxu0
      %v1097 = vadd.f32 0.0, %v1096
      %v1098 = vpop.f32.mrb[0].mxu0
      %1099 = vmatprep.mubr.bf16.mxu0 0
      %1100 = vmatmul.mubr.bf16.gmra.mrb[0].mxu0 %v887
      %v1101 = vpop.f32.mrb[0].mxu0
      %v1102 = vadd.f32 0.0, %v1101
      %v1103 = vpop.f32.mrb[0].mxu0
      %v1104 = vpop.f32.mrb[0].mxu0
      %v1105 = vadd.f32 0.0, %v1104
      %v1106 = vpop.f32.mrb[0].mxu0
      %1107 = vmatprep.mubr.bf16.mxu0 0
      %1108 = vmatmul.mubr.bf16.gmra.mrb[0].mxu0 %v888
      %v1109 = vpop.f32.mrb[0].mxu0
      %v1110 = vadd.f32 0.0, %v1109
      %v1111 = vpop.f32.mrb[0].mxu0
      %v1112 = vpop.f32.mrb[0].mxu0
      %v1113 = vadd.f32 0.0, %v1112
      %v1114 = vpop.f32.mrb[0].mxu0
      %1115 = vmatprep.mubr.bf16.mxu0 0
      %1116 = vmatmul.mubr.bf16.gmra.mrb[0].mxu0 %v889
      %v1117 = vpop.f32.mrb[0].mxu0
      %v1118 = vadd.f32 0.0, %v1117
      %v1119 = vpop.f32.mrb[0].mxu0
      %v1120 = vpop.f32.mrb[0].mxu0
      %v1121 = vadd.f32 0.0, %v1120
      %v1122 = vpop.f32.mrb[0].mxu0
      %1123 = vmatprep.mubr.bf16.mxu0 0
      %1124 = vmatmul.mubr.bf16.gmra.mrb[0].mxu0 %v890
      %v1125 = vpop.f32.mrb[0].mxu0
      %v1126 = vadd.f32 0.0, %v1125
      %v1127 = vpop.f32.mrb[0].mxu0
      %v1128 = vpop.f32.mrb[0].mxu0
      %v1129 = vadd.f32 0.0, %v1128
      %v1130 = vpop.f32.mrb[0].mxu0
      %1131 = vmatprep.mubr.bf16.mxu0 0
      %1132 = vmatmul.mubr.bf16.gmra.mrb[0].mxu0 %v891
      %v1133 = vpop.f32.mrb[0].mxu0
      %v1134 = vadd.f32 0.0, %v1133
      %v1135 = vpop.f32.mrb[0].mxu0
      %v1136 = vpop.f32.mrb[0].mxu0
      %v1137 = vadd.f32 0.0, %v1136
      %v1138 = vpop.f32.mrb[0].mxu0
      %1139 = vmatprep.mubr.bf16.mxu0 0
      %1140 = vmatmul.mubr.bf16.gmra.mrb[0].mxu0 %v892
      %v1141 = vpop.f32.mrb[0].mxu0
      %v1142 = vadd.f32 0.0, %v1141
      %v1143 = vpop.f32.mrb[0].mxu0
      %v1144 = vpop.f32.mrb[0].mxu0
      %v1145 = vadd.f32 0.0, %v1144
      %v1146 = vpop.f32.mrb[0].mxu0
      %1147 = vmatprep.mubr.bf16.mxu0 0
      %1148 = vmatmul.mubr.bf16.gmra.mrb[0].mxu0 %v893
      %v1149 = vpop.f32.mrb[0].mxu0
      %v1150 = vadd.f32 0.0, %v1149
      %v1151 = vpop.f32.mrb[0].mxu0
      %v1152 = vpop.f32.mrb[0].mxu0
      %v1153 = vadd.f32 0.0, %v1152
      %v1154 = vpop.f32.mrb[0].mxu0
      %1155 = vmatprep.mubr.bf16.mxu0 0
      %1156 = vmatmul.mubr.bf16.gmra.mrb[0].mxu0 %v894
      %v1157 = vpop.f32.mrb[0].mxu0
      %v1158 = vadd.f32 0.0, %v1157
      %v1159 = vpop.f32.mrb[0].mxu0
      %v1160 = vpop.f32.mrb[0].mxu0
      %v1161 = vadd.f32 0.0, %v1160
      %v1162 = vpop.f32.mrb[0].mxu0
      %1163 = vmatprep.mubr.bf16.mxu0 0
      %1164 = vmatmul.mubr.bf16.gmra.mrb[0].mxu0 %v895
      %v1165 = vpop.f32.mrb[0].mxu0
      %v1166 = vadd.f32 0.0, %v1165
      %v1167 = vpop.f32.mrb[0].mxu0
      %v1168 = vpop.f32.mrb[0].mxu0
      %v1169 = vadd.f32 0.0, %v1168
      %v1170 = vpop.f32.mrb[0].mxu0
      %1171 = vmatprep.mubr.bf16.mxu0 0
      %1172 = vmatmul.mubr.bf16.gmra.mrb[0].mxu0 %v896
      %v1173 = vpop.f32.mrb[0].mxu0
      %v1174 = vadd.f32 0.0, %v1173
      %v1175 = vpop.f32.mrb[0].mxu0
      %v1176 = vpop.f32.mrb[0].mxu0
      %v1177 = vadd.f32 0.0, %v1176
      %v1178 = vpop.f32.mrb[0].mxu0
      %1179 = vmatprep.mubr.bf16.mxu0 0
      %1180 = vmatmul.mubr.bf16.gmra.mrb[0].mxu0 %v897
      %v1181 = vpop.f32.mrb[0].mxu0
      %v1182 = vadd.f32 0.0, %v1181
      %v1183 = vpop.f32.mrb[0].mxu0
      %v1184 = vpop.f32.mrb[0].mxu0
      %v1185 = vadd.f32 0.0, %v1184
      %v1186 = vpop.f32.mrb[0].mxu0
      %1187 = vmatprep.mubr.bf16.mxu0 0
      %1188 = vmatmul.mubr.bf16.gmra.mrb[0].mxu0 %v898
      %v1189 = vpop.f32.mrb[0].mxu0
      %v1190 = vadd.f32 0.0, %v1189
      %v1191 = vpop.f32.mrb[0].mxu0
      %v1192 = vpop.f32.mrb[0].mxu0
      %v1193 = vadd.f32 0.0, %v1192
      %v1194 = vpop.f32.mrb[0].mxu0
      %1195 = vmatprep.mubr.bf16.mxu0 0
      %1196 = vmatmul.mubr.bf16.gmra.mrb[0].mxu0 %v899
      %v1197 = vpop.f32.mrb[0].mxu0
      %v1198 = vadd.f32 0.0, %v1197
      %v1199 = vpop.f32.mrb[0].mxu0
      %v1200 = vpop.f32.mrb[0].mxu0
      %v1201 = vadd.f32 0.0, %v1200
      %v1202 = vpop.f32.mrb[0].mxu0
      %1203 = vmatprep.mubr.bf16.mxu0 0
      %1204 = vmatmul.mubr.bf16.gmra.mrb[0].mxu0 %v900
      %v1205 = vpop.f32.mrb[0].mxu0
      %v1206 = vadd.f32 0.0, %v1205
      %v1207 = vpop.f32.mrb[0].mxu0
      %v1208 = vpop.f32.mrb[0].mxu0
      %v1209 = vadd.f32 0.0, %v1208
      %v1210 = vpop.f32.mrb[0].mxu0
      %1211 = vmatprep.mubr.bf16.mxu0 0
      %1212 = vmatmul.mubr.bf16.gmra.mrb[0].mxu0 %v901
      %v1213 = vpop.f32.mrb[0].mxu0
      %v1214 = vadd.f32 0.0, %v1213
      %v1215 = vpop.f32.mrb[0].mxu0
      %v1216 = vpop.f32.mrb[0].mxu0
      %v1217 = vadd.f32 0.0, %v1216
      %v1218 = vpop.f32.mrb[0].mxu0
      %1219 = vmatprep.mubr.bf16.mxu0 0
      %1220 = vmatmul.mubr.bf16.gmra.mrb[0].mxu0 %v902
      %v1221 = vpop.f32.mrb[0].mxu0
      %v1222 = vadd.f32 0.0, %v1221
      %v1223 = vpop.f32.mrb[0].mxu0
      %v1224 = vpop.f32.mrb[0].mxu0
      %v1225 = vadd.f32 0.0, %v1224
      %v1226 = vpop.f32.mrb[0].mxu0
      %1227 = vmatprep.mubr.bf16.mxu0 0
      %1228 = vmatmul.mubr.bf16.gmra.mrb[0].mxu0 %v903
      %v1229 = vpop.f32.mrb[0].mxu0
      %v1230 = vadd.f32 0.0, %v1229
      %v1231 = vpop.f32.mrb[0].mxu0
      %v1232 = vpop.f32.mrb[0].mxu0
      %v1233 = vadd.f32 0.0, %v1232
      %v1234 = vpop.f32.mrb[0].mxu0
      %1235 = vmatprep.mubr.bf16.mxu0 0
      %1236 = vmatmul.mubr.bf16.gmra.mrb[0].mxu0 %v904
      %v1237 = vpop.f32.mrb[0].mxu0
      %v1238 = vadd.f32 0.0, %v1237
      %v1239 = vpop.f32.mrb[0].mxu0
      %v1240 = vpop.f32.mrb[0].mxu0
      %v1241 = vadd.f32 0.0, %v1240
      %v1242 = vpop.f32.mrb[0].mxu0
      %1243 = vmatprep.mubr.bf16.mxu0 0
      %1244 = vmatmul.mubr.bf16.gmra.mrb[0].mxu0 %v905
      %v1245 = vpop.f32.mrb[0].mxu0
      %v1246 = vadd.f32 0.0, %v1245
      %v1247 = vpop.f32.mrb[0].mxu0
      %v1248 = vpop.f32.mrb[0].mxu0
      %v1249 = vadd.f32 0.0, %v1248
      %v1250 = vpop.f32.mrb[0].mxu0
      %1251 = vmatprep.mubr.bf16.mxu0 0
      %1252 = vmatmul.mubr.bf16.gmra.mrb[0].mxu0 %v906
      %v1253 = vpop.f32.mrb[0].mxu0
      %v1254 = vadd.f32 0.0, %v1253
      %v1255 = vpop.f32.mrb[0].mxu0
      %v1256 = vpop.f32.mrb[0].mxu0
      %v1257 = vadd.f32 0.0, %v1256
      %v1258 = vpop.f32.mrb[0].mxu0
      %1259 = vdwg.mxu0
      %v1260 = vpack.c.bf16 %v1009, %v1006
      %v1261 = vpack.c.bf16 %v1017, %v1014
      %v1262 = vpack.c.bf16 %v1025, %v1022
      %v1263 = vpack.c.bf16 %v1033, %v1030
      %v1264 = vpack.c.bf16 %v1041, %v1038
      %v1265 = vpack.c.bf16 %v1049, %v1046
      %v1266 = vpack.c.bf16 %v1057, %v1054
      %v1267 = vpack.c.bf16 %v1065, %v1062
      %v1268 = vpack.c.bf16 %v1073, %v1070
      %v1269 = vpack.c.bf16 %v1081, %v1078
      %v1270 = vpack.c.bf16 %v1089, %v1086
      %v1271 = vpack.c.bf16 %v1097, %v1094
      %v1272 = vpack.c.bf16 %v1105, %v1102
      %v1273 = vpack.c.bf16 %v1113, %v1110
      %v1274 = vpack.c.bf16 %v1121, %v1118
      %v1275 = vpack.c.bf16 %v1129, %v1126
      %v1276 = vpack.c.bf16 %v1137, %v1134
      %v1277 = vpack.c.bf16 %v1145, %v1142
      %v1278 = vpack.c.bf16 %v1153, %v1150
      %v1279 = vpack.c.bf16 %v1161, %v1158
      %v1280 = vpack.c.bf16 %v1169, %v1166
      %v1281 = vpack.c.bf16 %v1177, %v1174
      %v1282 = vpack.c.bf16 %v1185, %v1182
      %v1283 = vpack.c.bf16 %v1193, %v1190
      %v1284 = vpack.c.bf16 %v1201, %v1198
      %v1285 = vpack.c.bf16 %v1209, %v1206
      %v1286 = vpack.c.bf16 %v1217, %v1214
      %v1287 = vpack.c.bf16 %v1225, %v1222
      %v1288 = vpack.c.bf16 %v1233, %v1230
      %v1289 = vpack.c.bf16 %v1241, %v1238
      %v1290 = vpack.c.bf16 %v1249, %v1246
      %v1291 = vpack.c.bf16 %v1257, %v1254
      %v1292 = vld [vmem:[%s5] sm:$0x1]
      %v1294 = vpack.i.b16 %v1292, %v1292
      %v1296 = vlaneseq
      %v1297 = vshrl.u32 %v1296, 7
      %v1298 = vsub.s32 0, %v1297
      %v1299 = vrot.slane %v1294, %v1298
      %v1300 = vadd.bf16 %v1260, %v1299
      %v1301 = vadd.bf16 %v1261, %v1299
      %v1302 = vadd.bf16 %v1262, %v1299
      %v1303 = vadd.bf16 %v1263, %v1299
      %v1304 = vadd.bf16 %v1264, %v1299
      %v1305 = vadd.bf16 %v1265, %v1299
      %v1306 = vadd.bf16 %v1266, %v1299
      %v1307 = vadd.bf16 %v1267, %v1299
      %v1308 = vadd.bf16 %v1268, %v1299
      %v1309 = vadd.bf16 %v1269, %v1299
      %v1310 = vadd.bf16 %v1270, %v1299
      %v1311 = vadd.bf16 %v1271, %v1299
      %v1312 = vadd.bf16 %v1272, %v1299
      %v1313 = vadd.bf16 %v1273, %v1299
      %v1314 = vadd.bf16 %v1274, %v1299
      %v1315 = vadd.bf16 %v1275, %v1299
      %v1316 = vadd.bf16 %v1276, %v1299
      %v1317 = vadd.bf16 %v1277, %v1299
      %v1318 = vadd.bf16 %v1278, %v1299
      %v1319 = vadd.bf16 %v1279, %v1299
      %v1320 = vadd.bf16 %v1280, %v1299
      %v1321 = vadd.bf16 %v1281, %v1299
      %v1322 = vadd.bf16 %v1282, %v1299
      %v1323 = vadd.bf16 %v1283, %v1299
      %v1324 = vadd.bf16 %v1284, %v1299
      %v1325 = vadd.bf16 %v1285, %v1299
      %v1326 = vadd.bf16 %v1286, %v1299
      %v1327 = vadd.bf16 %v1287, %v1299
      %v1328 = vadd.bf16 %v1288, %v1299
      %v1329 = vadd.bf16 %v1289, %v1299
      %v1330 = vadd.bf16 %v1290, %v1299
      %v1331 = vadd.bf16 %v1291, %v1299
      %v1332 = vmul.bf16 %v1300, 1045249613
      %v1333 = vmul.bf16 %v1301, 1045249613
      %v1334 = vmul.bf16 %v1302, 1045249613
      %v1335 = vmul.bf16 %v1303, 1045249613
      %v1336 = vmul.bf16 %v1304, 1045249613
      %v1337 = vmul.bf16 %v1305, 1045249613
      %v1338 = vmul.bf16 %v1306, 1045249613
      %v1339 = vmul.bf16 %v1307, 1045249613
      %v1340 = vmul.bf16 %v1308, 1045249613
      %v1341 = vmul.bf16 %v1309, 1045249613
      %v1342 = vmul.bf16 %v1310, 1045249613
      %v1343 = vmul.bf16 %v1311, 1045249613
      %v1344 = vmul.bf16 %v1312, 1045249613
      %v1345 = vmul.bf16 %v1313, 1045249613
      %v1346 = vmul.bf16 %v1314, 1045249613
      %v1347 = vmul.bf16 %v1315, 1045249613
      %v1348 = vmul.bf16 %v1316, 1045249613
      %v1349 = vmul.bf16 %v1317, 1045249613
      %v1350 = vmul.bf16 %v1318, 1045249613
      %v1351 = vmul.bf16 %v1319, 1045249613
      %v1352 = vmul.bf16 %v1320, 1045249613
      %v1353 = vmul.bf16 %v1321, 1045249613
      %v1354 = vmul.bf16 %v1322, 1045249613
      %v1355 = vmul.bf16 %v1323, 1045249613
      %v1356 = vmul.bf16 %v1324, 1045249613
      %v1357 = vmul.bf16 %v1325, 1045249613
      %v1358 = vmul.bf16 %v1326, 1045249613
      %v1359 = vmul.bf16 %v1327, 1045249613
      %v1360 = vmul.bf16 %v1328, 1045249613
      %v1361 = vmul.bf16 %v1329, 1045249613
      %v1362 = vmul.bf16 %v1330, 1045249613
      %v1363 = vmul.bf16 %v1331, 1045249613
      %v1364 = vmax.bf16 %v1300, %v1332
      %v1365 = vmax.bf16 %v1301, %v1333
      %v1366 = vmax.bf16 %v1302, %v1334
      %v1367 = vmax.bf16 %v1303, %v1335
      %v1368 = vmax.bf16 %v1304, %v1336
      %v1369 = vmax.bf16 %v1305, %v1337
      %v1370 = vmax.bf16 %v1306, %v1338
      %v1371 = vmax.bf16 %v1307, %v1339
      %v1372 = vmax.bf16 %v1308, %v1340
      %v1373 = vmax.bf16 %v1309, %v1341
      %v1374 = vmax.bf16 %v1310, %v1342
      %v1375 = vmax.bf16 %v1311, %v1343
      %v1376 = vmax.bf16 %v1312, %v1344
      %v1377 = vmax.bf16 %v1313, %v1345
      %v1378 = vmax.bf16 %v1314, %v1346
      %v1379 = vmax.bf16 %v1315, %v1347
      %v1380 = vmax.bf16 %v1316, %v1348
      %v1381 = vmax.bf16 %v1317, %v1349
      %v1382 = vmax.bf16 %v1318, %v1350
      %v1383 = vmax.bf16 %v1319, %v1351
      %v1384 = vmax.bf16 %v1320, %v1352
      %v1385 = vmax.bf16 %v1321, %v1353
      %v1386 = vmax.bf16 %v1322, %v1354
      %v1387 = vmax.bf16 %v1323, %v1355
      %v1388 = vmax.bf16 %v1324, %v1356
      %v1389 = vmax.bf16 %v1325, %v1357
      %v1390 = vmax.bf16 %v1326, %v1358
      %v1391 = vmax.bf16 %v1327, %v1359
      %v1392 = vmax.bf16 %v1328, %v1360
      %v1393 = vmax.bf16 %v1329, %v1361
      %v1394 = vmax.bf16 %v1330, %v1362
      %v1395 = vmax.bf16 %v1331, %v1363
      %s1396 = scalar_lea.vmem %s2, 64
      %v1397 = vld [vmem:[%s1396] sm:$0xf]
      %v1398 = vld [vmem:[%s1396 + $0x4] sm:$0xf]
      %v1399 = vld [vmem:[%s1396 + $0x8] sm:$0xf]
      %v1400 = vld [vmem:[%s1396 + $0xc] sm:$0xf]
      %v1401 = vld [vmem:[%s1396 + $0x10] sm:$0xf]
      %v1402 = vld [vmem:[%s1396 + $0x14] sm:$0xf]
      %v1403 = vld [vmem:[%s1396 + $0x18] sm:$0xf]
      %v1404 = vld [vmem:[%s1396 + $0x1c] sm:$0xf]
      %v1405 = vld [vmem:[%s1396 + $0x20] sm:$0xf]
      %v1406 = vld [vmem:[%s1396 + $0x24] sm:$0xf]
      %v1407 = vld [vmem:[%s1396 + $0x28] sm:$0xf]
      %v1408 = vld [vmem:[%s1396 + $0x2c] sm:$0xf]
      %v1409 = vld [vmem:[%s1396 + $0x30] sm:$0xf]
      %v1410 = vld [vmem:[%s1396 + $0x34] sm:$0xf]
      %v1411 = vld [vmem:[%s1396 + $0x38] sm:$0xf]
      %v1412 = vld [vmem:[%s1396 + $0x3c] sm:$0xf]
      %v1429 = vunpack.c.l.b16 %v1397
      %v1430 = vunpack.c.l.b16 %v1398
      %v1431 = vunpack.c.l.b16 %v1399
      %v1432 = vunpack.c.l.b16 %v1400
      %v1433 = vunpack.c.l.b16 %v1401
      %v1434 = vunpack.c.l.b16 %v1402
      %v1435 = vunpack.c.l.b16 %v1403
      %v1436 = vunpack.c.l.b16 %v1404
      %v1437 = vunpack.c.l.b16 %v1405
      %v1438 = vunpack.c.l.b16 %v1406
      %v1439 = vunpack.c.l.b16 %v1407
      %v1440 = vunpack.c.l.b16 %v1408
      %v1441 = vunpack.c.l.b16 %v1409
      %v1442 = vunpack.c.l.b16 %v1410
      %v1443 = vunpack.c.l.b16 %v1411
      %v1444 = vunpack.c.l.b16 %v1412
      %v1445 = vpack.c.b16 %v1430, %v1429
      %v1446 = vpack.c.b16 %v1432, %v1431
      %v1447 = vpack.c.b16 %v1434, %v1433
      %v1448 = vpack.c.b16 %v1436, %v1435
      %v1449 = vpack.c.b16 %v1438, %v1437
      %v1450 = vpack.c.b16 %v1440, %v1439
      %v1451 = vpack.c.b16 %v1442, %v1441
      %v1452 = vpack.c.b16 %v1444, %v1443
      %1461 = vmatprep.subr.bf16.mxu0 0
      %1462 = vmatpush1.bf16.msra.mxu0 %v1445
      %1463 = vmatprep.subr.bf16.mxu0 0
      %1464 = vmatpush1.bf16.msra.mxu0 %v1446
      %1465 = vmatprep.subr.bf16.mxu0 0
      %1466 = vmatpush1.bf16.msra.mxu0 %v1447
      %1467 = vmatprep.subr.bf16.mxu0 0
      %1468 = vmatpush1.bf16.msra.mxu0 %v1448
      %1469 = vmatprep.subr.bf16.mxu0 0
      %1470 = vmatpush1.bf16.msra.mxu0 %v1449
      %1471 = vmatprep.subr.bf16.mxu0 0
      %1472 = vmatpush1.bf16.msra.mxu0 %v1450
      %1473 = vmatprep.subr.bf16.mxu0 0
      %1474 = vmatpush1.bf16.msra.mxu0 %v1451
      %1475 = vmatprep.subr.bf16.mxu0 0
      %1476 = vmatpush1.bf16.msra.mxu0 %v1452
      %1477 = vmatprep.subr.bf16.mxu0 0
      %1478 = vmatpush1.bf16.msra.mxu0 0
      %1479 = vmatprep.subr.bf16.mxu0 0
      %1480 = vmatpush1.bf16.msra.mxu0 0
      %1481 = vmatprep.subr.bf16.mxu0 0
      %1482 = vmatpush1.bf16.msra.mxu0 0
      %1483 = vmatprep.subr.bf16.mxu0 0
      %1484 = vmatpush1.bf16.msra.mxu0 0
      %1485 = vmatprep.subr.bf16.mxu0 0
      %1486 = vmatpush1.bf16.msra.mxu0 0
      %1487 = vmatprep.subr.bf16.mxu0 0
      %1488 = vmatpush1.bf16.msra.mxu0 0
      %1489 = vmatprep.subr.bf16.mxu0 0
      %1490 = vmatpush1.bf16.msra.mxu0 0
      %1491 = vmatprep.subr.bf16.mxu0 0
      %1492 = vmatpush1.bf16.msra.mxu0 0
      %1493 = vmatprep.mubr.bf16.mxu0 0
      %1494 = vmatmul.mubr.bf16.gmra.mrb[0].mxu0 %v1364
      %v1495 = vpop.f32.mrb[0].mxu0
      %v1496 = vadd.f32 0.0, %v1495
      %v1497 = vpop.f32.mrb[0].mxu0
      %v1498 = vpop.f32.mrb[0].mxu0
      %v1499 = vadd.f32 0.0, %v1498
      %v1500 = vpop.f32.mrb[0].mxu0
      %1501 = vmatprep.mubr.bf16.mxu0 0
      %1502 = vmatmul.mubr.bf16.gmra.mrb[0].mxu0 %v1365
      %v1503 = vpop.f32.mrb[0].mxu0
      %v1504 = vadd.f32 0.0, %v1503
      %v1505 = vpop.f32.mrb[0].mxu0
      %v1506 = vpop.f32.mrb[0].mxu0
      %v1507 = vadd.f32 0.0, %v1506
      %v1508 = vpop.f32.mrb[0].mxu0
      %1509 = vmatprep.mubr.bf16.mxu0 0
      %1510 = vmatmul.mubr.bf16.gmra.mrb[0].mxu0 %v1366
      %v1511 = vpop.f32.mrb[0].mxu0
      %v1512 = vadd.f32 0.0, %v1511
      %v1513 = vpop.f32.mrb[0].mxu0
      %v1514 = vpop.f32.mrb[0].mxu0
      %v1515 = vadd.f32 0.0, %v1514
      %v1516 = vpop.f32.mrb[0].mxu0
      %1517 = vmatprep.mubr.bf16.mxu0 0
      %1518 = vmatmul.mubr.bf16.gmra.mrb[0].mxu0 %v1367
      %v1519 = vpop.f32.mrb[0].mxu0
      %v1520 = vadd.f32 0.0, %v1519
      %v1521 = vpop.f32.mrb[0].mxu0
      %v1522 = vpop.f32.mrb[0].mxu0
      %v1523 = vadd.f32 0.0, %v1522
      %v1524 = vpop.f32.mrb[0].mxu0
      %1525 = vmatprep.mubr.bf16.mxu0 0
      %1526 = vmatmul.mubr.bf16.gmra.mrb[0].mxu0 %v1368
      %v1527 = vpop.f32.mrb[0].mxu0
      %v1528 = vadd.f32 0.0, %v1527
      %v1529 = vpop.f32.mrb[0].mxu0
      %v1530 = vpop.f32.mrb[0].mxu0
      %v1531 = vadd.f32 0.0, %v1530
      %v1532 = vpop.f32.mrb[0].mxu0
      %1533 = vmatprep.mubr.bf16.mxu0 0
      %1534 = vmatmul.mubr.bf16.gmra.mrb[0].mxu0 %v1369
      %v1535 = vpop.f32.mrb[0].mxu0
      %v1536 = vadd.f32 0.0, %v1535
      %v1537 = vpop.f32.mrb[0].mxu0
      %v1538 = vpop.f32.mrb[0].mxu0
      %v1539 = vadd.f32 0.0, %v1538
      %v1540 = vpop.f32.mrb[0].mxu0
      %1541 = vmatprep.mubr.bf16.mxu0 0
      %1542 = vmatmul.mubr.bf16.gmra.mrb[0].mxu0 %v1370
      %v1543 = vpop.f32.mrb[0].mxu0
      %v1544 = vadd.f32 0.0, %v1543
      %v1545 = vpop.f32.mrb[0].mxu0
      %v1546 = vpop.f32.mrb[0].mxu0
      %v1547 = vadd.f32 0.0, %v1546
      %v1548 = vpop.f32.mrb[0].mxu0
      %1549 = vmatprep.mubr.bf16.mxu0 0
      %1550 = vmatmul.mubr.bf16.gmra.mrb[0].mxu0 %v1371
      %v1551 = vpop.f32.mrb[0].mxu0
      %v1552 = vadd.f32 0.0, %v1551
      %v1553 = vpop.f32.mrb[0].mxu0
      %v1554 = vpop.f32.mrb[0].mxu0
      %v1555 = vadd.f32 0.0, %v1554
      %v1556 = vpop.f32.mrb[0].mxu0
      %1557 = vmatprep.mubr.bf16.mxu0 0
      %1558 = vmatmul.mubr.bf16.gmra.mrb[0].mxu0 %v1372
      %v1559 = vpop.f32.mrb[0].mxu0
      %v1560 = vadd.f32 0.0, %v1559
      %v1561 = vpop.f32.mrb[0].mxu0
      %v1562 = vpop.f32.mrb[0].mxu0
      %v1563 = vadd.f32 0.0, %v1562
      %v1564 = vpop.f32.mrb[0].mxu0
      %1565 = vmatprep.mubr.bf16.mxu0 0
      %1566 = vmatmul.mubr.bf16.gmra.mrb[0].mxu0 %v1373
      %v1567 = vpop.f32.mrb[0].mxu0
      %v1568 = vadd.f32 0.0, %v1567
      %v1569 = vpop.f32.mrb[0].mxu0
      %v1570 = vpop.f32.mrb[0].mxu0
      %v1571 = vadd.f32 0.0, %v1570
      %v1572 = vpop.f32.mrb[0].mxu0
      %1573 = vmatprep.mubr.bf16.mxu0 0
      %1574 = vmatmul.mubr.bf16.gmra.mrb[0].mxu0 %v1374
      %v1575 = vpop.f32.mrb[0].mxu0
      %v1576 = vadd.f32 0.0, %v1575
      %v1577 = vpop.f32.mrb[0].mxu0
      %v1578 = vpop.f32.mrb[0].mxu0
      %v1579 = vadd.f32 0.0, %v1578
      %v1580 = vpop.f32.mrb[0].mxu0
      %1581 = vmatprep.mubr.bf16.mxu0 0
      %1582 = vmatmul.mubr.bf16.gmra.mrb[0].mxu0 %v1375
      %v1583 = vpop.f32.mrb[0].mxu0
      %v1584 = vadd.f32 0.0, %v1583
      %v1585 = vpop.f32.mrb[0].mxu0
      %v1586 = vpop.f32.mrb[0].mxu0
      %v1587 = vadd.f32 0.0, %v1586
      %v1588 = vpop.f32.mrb[0].mxu0
      %1589 = vmatprep.mubr.bf16.mxu0 0
      %1590 = vmatmul.mubr.bf16.gmra.mrb[0].mxu0 %v1376
      %v1591 = vpop.f32.mrb[0].mxu0
      %v1592 = vadd.f32 0.0, %v1591
      %v1593 = vpop.f32.mrb[0].mxu0
      %v1594 = vpop.f32.mrb[0].mxu0
      %v1595 = vadd.f32 0.0, %v1594
      %v1596 = vpop.f32.mrb[0].mxu0
      %1597 = vmatprep.mubr.bf16.mxu0 0
      %1598 = vmatmul.mubr.bf16.gmra.mrb[0].mxu0 %v1377
      %v1599 = vpop.f32.mrb[0].mxu0
      %v1600 = vadd.f32 0.0, %v1599
      %v1601 = vpop.f32.mrb[0].mxu0
      %v1602 = vpop.f32.mrb[0].mxu0
      %v1603 = vadd.f32 0.0, %v1602
      %v1604 = vpop.f32.mrb[0].mxu0
      %1605 = vmatprep.mubr.bf16.mxu0 0
      %1606 = vmatmul.mubr.bf16.gmra.mrb[0].mxu0 %v1378
      %v1607 = vpop.f32.mrb[0].mxu0
      %v1608 = vadd.f32 0.0, %v1607
      %v1609 = vpop.f32.mrb[0].mxu0
      %v1610 = vpop.f32.mrb[0].mxu0
      %v1611 = vadd.f32 0.0, %v1610
      %v1612 = vpop.f32.mrb[0].mxu0
      %1613 = vmatprep.mubr.bf16.mxu0 0
      %1614 = vmatmul.mubr.bf16.gmra.mrb[0].mxu0 %v1379
      %v1615 = vpop.f32.mrb[0].mxu0
      %v1616 = vadd.f32 0.0, %v1615
      %v1617 = vpop.f32.mrb[0].mxu0
      %v1618 = vpop.f32.mrb[0].mxu0
      %v1619 = vadd.f32 0.0, %v1618
      %v1620 = vpop.f32.mrb[0].mxu0
      %1621 = vmatprep.mubr.bf16.mxu0 0
      %1622 = vmatmul.mubr.bf16.gmra.mrb[0].mxu0 %v1380
      %v1623 = vpop.f32.mrb[0].mxu0
      %v1624 = vadd.f32 0.0, %v1623
      %v1625 = vpop.f32.mrb[0].mxu0
      %v1626 = vpop.f32.mrb[0].mxu0
      %v1627 = vadd.f32 0.0, %v1626
      %v1628 = vpop.f32.mrb[0].mxu0
      %1629 = vmatprep.mubr.bf16.mxu0 0
      %1630 = vmatmul.mubr.bf16.gmra.mrb[0].mxu0 %v1381
      %v1631 = vpop.f32.mrb[0].mxu0
      %v1632 = vadd.f32 0.0, %v1631
      %v1633 = vpop.f32.mrb[0].mxu0
      %v1634 = vpop.f32.mrb[0].mxu0
      %v1635 = vadd.f32 0.0, %v1634
      %v1636 = vpop.f32.mrb[0].mxu0
      %1637 = vmatprep.mubr.bf16.mxu0 0
      %1638 = vmatmul.mubr.bf16.gmra.mrb[0].mxu0 %v1382
      %v1639 = vpop.f32.mrb[0].mxu0
      %v1640 = vadd.f32 0.0, %v1639
      %v1641 = vpop.f32.mrb[0].mxu0
      %v1642 = vpop.f32.mrb[0].mxu0
      %v1643 = vadd.f32 0.0, %v1642
      %v1644 = vpop.f32.mrb[0].mxu0
      %1645 = vmatprep.mubr.bf16.mxu0 0
      %1646 = vmatmul.mubr.bf16.gmra.mrb[0].mxu0 %v1383
      %v1647 = vpop.f32.mrb[0].mxu0
      %v1648 = vadd.f32 0.0, %v1647
      %v1649 = vpop.f32.mrb[0].mxu0
      %v1650 = vpop.f32.mrb[0].mxu0
      %v1651 = vadd.f32 0.0, %v1650
      %v1652 = vpop.f32.mrb[0].mxu0
      %1653 = vmatprep.mubr.bf16.mxu0 0
      %1654 = vmatmul.mubr.bf16.gmra.mrb[0].mxu0 %v1384
      %v1655 = vpop.f32.mrb[0].mxu0
      %v1656 = vadd.f32 0.0, %v1655
      %v1657 = vpop.f32.mrb[0].mxu0
      %v1658 = vpop.f32.mrb[0].mxu0
      %v1659 = vadd.f32 0.0, %v1658
      %v1660 = vpop.f32.mrb[0].mxu0
      %1661 = vmatprep.mubr.bf16.mxu0 0
      %1662 = vmatmul.mubr.bf16.gmra.mrb[0].mxu0 %v1385
      %v1663 = vpop.f32.mrb[0].mxu0
      %v1664 = vadd.f32 0.0, %v1663
      %v1665 = vpop.f32.mrb[0].mxu0
      %v1666 = vpop.f32.mrb[0].mxu0
      %v1667 = vadd.f32 0.0, %v1666
      %v1668 = vpop.f32.mrb[0].mxu0
      %1669 = vmatprep.mubr.bf16.mxu0 0
      %1670 = vmatmul.mubr.bf16.gmra.mrb[0].mxu0 %v1386
      %v1671 = vpop.f32.mrb[0].mxu0
      %v1672 = vadd.f32 0.0, %v1671
      %v1673 = vpop.f32.mrb[0].mxu0
      %v1674 = vpop.f32.mrb[0].mxu0
      %v1675 = vadd.f32 0.0, %v1674
      %v1676 = vpop.f32.mrb[0].mxu0
      %1677 = vmatprep.mubr.bf16.mxu0 0
      %1678 = vmatmul.mubr.bf16.gmra.mrb[0].mxu0 %v1387
      %v1679 = vpop.f32.mrb[0].mxu0
      %v1680 = vadd.f32 0.0, %v1679
      %v1681 = vpop.f32.mrb[0].mxu0
      %v1682 = vpop.f32.mrb[0].mxu0
      %v1683 = vadd.f32 0.0, %v1682
      %v1684 = vpop.f32.mrb[0].mxu0
      %1685 = vmatprep.mubr.bf16.mxu0 0
      %1686 = vmatmul.mubr.bf16.gmra.mrb[0].mxu0 %v1388
      %v1687 = vpop.f32.mrb[0].mxu0
      %v1688 = vadd.f32 0.0, %v1687
      %v1689 = vpop.f32.mrb[0].mxu0
      %v1690 = vpop.f32.mrb[0].mxu0
      %v1691 = vadd.f32 0.0, %v1690
      %v1692 = vpop.f32.mrb[0].mxu0
      %1693 = vmatprep.mubr.bf16.mxu0 0
      %1694 = vmatmul.mubr.bf16.gmra.mrb[0].mxu0 %v1389
      %v1695 = vpop.f32.mrb[0].mxu0
      %v1696 = vadd.f32 0.0, %v1695
      %v1697 = vpop.f32.mrb[0].mxu0
      %v1698 = vpop.f32.mrb[0].mxu0
      %v1699 = vadd.f32 0.0, %v1698
      %v1700 = vpop.f32.mrb[0].mxu0
      %1701 = vmatprep.mubr.bf16.mxu0 0
      %1702 = vmatmul.mubr.bf16.gmra.mrb[0].mxu0 %v1390
      %v1703 = vpop.f32.mrb[0].mxu0
      %v1704 = vadd.f32 0.0, %v1703
      %v1705 = vpop.f32.mrb[0].mxu0
      %v1706 = vpop.f32.mrb[0].mxu0
      %v1707 = vadd.f32 0.0, %v1706
      %v1708 = vpop.f32.mrb[0].mxu0
      %1709 = vmatprep.mubr.bf16.mxu0 0
      %1710 = vmatmul.mubr.bf16.gmra.mrb[0].mxu0 %v1391
      %v1711 = vpop.f32.mrb[0].mxu0
      %v1712 = vadd.f32 0.0, %v1711
      %v1713 = vpop.f32.mrb[0].mxu0
      %v1714 = vpop.f32.mrb[0].mxu0
      %v1715 = vadd.f32 0.0, %v1714
      %v1716 = vpop.f32.mrb[0].mxu0
      %1717 = vmatprep.mubr.bf16.mxu0 0
      %1718 = vmatmul.mubr.bf16.gmra.mrb[0].mxu0 %v1392
      %v1719 = vpop.f32.mrb[0].mxu0
      %v1720 = vadd.f32 0.0, %v1719
      %v1721 = vpop.f32.mrb[0].mxu0
      %v1722 = vpop.f32.mrb[0].mxu0
      %v1723 = vadd.f32 0.0, %v1722
      %v1724 = vpop.f32.mrb[0].mxu0
      %1725 = vmatprep.mubr.bf16.mxu0 0
      %1726 = vmatmul.mubr.bf16.gmra.mrb[0].mxu0 %v1393
      %v1727 = vpop.f32.mrb[0].mxu0
      %v1728 = vadd.f32 0.0, %v1727
      %v1729 = vpop.f32.mrb[0].mxu0
      %v1730 = vpop.f32.mrb[0].mxu0
      %v1731 = vadd.f32 0.0, %v1730
      %v1732 = vpop.f32.mrb[0].mxu0
      %1733 = vmatprep.mubr.bf16.mxu0 0
      %1734 = vmatmul.mubr.bf16.gmra.mrb[0].mxu0 %v1394
      %v1735 = vpop.f32.mrb[0].mxu0
      %v1736 = vadd.f32 0.0, %v1735
      %v1737 = vpop.f32.mrb[0].mxu0
      %v1738 = vpop.f32.mrb[0].mxu0
      %v1739 = vadd.f32 0.0, %v1738
      %v1740 = vpop.f32.mrb[0].mxu0
      %1741 = vmatprep.mubr.bf16.mxu0 0
      %1742 = vmatmul.mubr.bf16.gmra.mrb[0].mxu0 %v1395
      %v1743 = vpop.f32.mrb[0].mxu0
      %v1744 = vadd.f32 0.0, %v1743
      %v1745 = vpop.f32.mrb[0].mxu0
      %v1746 = vpop.f32.mrb[0].mxu0
      %v1747 = vadd.f32 0.0, %v1746
      %v1748 = vpop.f32.mrb[0].mxu0
      %1749 = vdwg.mxu0
      %v1750 = vpack.c.bf16 %v1499, %v1496
      %v1751 = vpack.c.bf16 %v1507, %v1504
      %v1752 = vpack.c.bf16 %v1515, %v1512
      %v1753 = vpack.c.bf16 %v1523, %v1520
      %v1754 = vpack.c.bf16 %v1531, %v1528
      %v1755 = vpack.c.bf16 %v1539, %v1536
      %v1756 = vpack.c.bf16 %v1547, %v1544
      %v1757 = vpack.c.bf16 %v1555, %v1552
      %v1758 = vpack.c.bf16 %v1563, %v1560
      %v1759 = vpack.c.bf16 %v1571, %v1568
      %v1760 = vpack.c.bf16 %v1579, %v1576
      %v1761 = vpack.c.bf16 %v1587, %v1584
      %v1762 = vpack.c.bf16 %v1595, %v1592
      %v1763 = vpack.c.bf16 %v1603, %v1600
      %v1764 = vpack.c.bf16 %v1611, %v1608
      %v1765 = vpack.c.bf16 %v1619, %v1616
      %v1766 = vpack.c.bf16 %v1627, %v1624
      %v1767 = vpack.c.bf16 %v1635, %v1632
      %v1768 = vpack.c.bf16 %v1643, %v1640
      %v1769 = vpack.c.bf16 %v1651, %v1648
      %v1770 = vpack.c.bf16 %v1659, %v1656
      %v1771 = vpack.c.bf16 %v1667, %v1664
      %v1772 = vpack.c.bf16 %v1675, %v1672
      %v1773 = vpack.c.bf16 %v1683, %v1680
      %v1774 = vpack.c.bf16 %v1691, %v1688
      %v1775 = vpack.c.bf16 %v1699, %v1696
      %v1776 = vpack.c.bf16 %v1707, %v1704
      %v1777 = vpack.c.bf16 %v1715, %v1712
      %v1778 = vpack.c.bf16 %v1723, %v1720
      %v1779 = vpack.c.bf16 %v1731, %v1728
      %v1780 = vpack.c.bf16 %v1739, %v1736
      %v1781 = vpack.c.bf16 %v1747, %v1744
      %v1782 = vshrl.u32 %v1292, 16
      %v1783 = vpack.i.b16 %v1782, %v1782
      %v1785 = vlaneseq
      %v1786 = vshrl.u32 %v1785, 7
      %v1787 = vsub.s32 0, %v1786
      %v1788 = vrot.slane %v1783, %v1787
      %v1789 = vadd.bf16 %v1750, %v1788
      %v1790 = vadd.bf16 %v1751, %v1788
      %v1791 = vadd.bf16 %v1752, %v1788
      %v1792 = vadd.bf16 %v1753, %v1788
      %v1793 = vadd.bf16 %v1754, %v1788
      %v1794 = vadd.bf16 %v1755, %v1788
      %v1795 = vadd.bf16 %v1756, %v1788
      %v1796 = vadd.bf16 %v1757, %v1788
      %v1797 = vadd.bf16 %v1758, %v1788
      %v1798 = vadd.bf16 %v1759, %v1788
      %v1799 = vadd.bf16 %v1760, %v1788
      %v1800 = vadd.bf16 %v1761, %v1788
      %v1801 = vadd.bf16 %v1762, %v1788
      %v1802 = vadd.bf16 %v1763, %v1788
      %v1803 = vadd.bf16 %v1764, %v1788
      %v1804 = vadd.bf16 %v1765, %v1788
      %v1805 = vadd.bf16 %v1766, %v1788
      %v1806 = vadd.bf16 %v1767, %v1788
      %v1807 = vadd.bf16 %v1768, %v1788
      %v1808 = vadd.bf16 %v1769, %v1788
      %v1809 = vadd.bf16 %v1770, %v1788
      %v1810 = vadd.bf16 %v1771, %v1788
      %v1811 = vadd.bf16 %v1772, %v1788
      %v1812 = vadd.bf16 %v1773, %v1788
      %v1813 = vadd.bf16 %v1774, %v1788
      %v1814 = vadd.bf16 %v1775, %v1788
      %v1815 = vadd.bf16 %v1776, %v1788
      %v1816 = vadd.bf16 %v1777, %v1788
      %v1817 = vadd.bf16 %v1778, %v1788
      %v1818 = vadd.bf16 %v1779, %v1788
      %v1819 = vadd.bf16 %v1780, %v1788
      %v1820 = vadd.bf16 %v1781, %v1788
      %v1821 = vmul.bf16 %v1789, 1045249613
      %v1822 = vmul.bf16 %v1790, 1045249613
      %v1823 = vmul.bf16 %v1791, 1045249613
      %v1824 = vmul.bf16 %v1792, 1045249613
      %v1825 = vmul.bf16 %v1793, 1045249613
      %v1826 = vmul.bf16 %v1794, 1045249613
      %v1827 = vmul.bf16 %v1795, 1045249613
      %v1828 = vmul.bf16 %v1796, 1045249613
      %v1829 = vmul.bf16 %v1797, 1045249613
      %v1830 = vmul.bf16 %v1798, 1045249613
      %v1831 = vmul.bf16 %v1799, 1045249613
      %v1832 = vmul.bf16 %v1800, 1045249613
      %v1833 = vmul.bf16 %v1801, 1045249613
      %v1834 = vmul.bf16 %v1802, 1045249613
      %v1835 = vmul.bf16 %v1803, 1045249613
      %v1836 = vmul.bf16 %v1804, 1045249613
      %v1837 = vmul.bf16 %v1805, 1045249613
      %v1838 = vmul.bf16 %v1806, 1045249613
      %v1839 = vmul.bf16 %v1807, 1045249613
      %v1840 = vmul.bf16 %v1808, 1045249613
      %v1841 = vmul.bf16 %v1809, 1045249613
      %v1842 = vmul.bf16 %v1810, 1045249613
      %v1843 = vmul.bf16 %v1811, 1045249613
      %v1844 = vmul.bf16 %v1812, 1045249613
      %v1845 = vmul.bf16 %v1813, 1045249613
      %v1846 = vmul.bf16 %v1814, 1045249613
      %v1847 = vmul.bf16 %v1815, 1045249613
      %v1848 = vmul.bf16 %v1816, 1045249613
      %v1849 = vmul.bf16 %v1817, 1045249613
      %v1850 = vmul.bf16 %v1818, 1045249613
      %v1851 = vmul.bf16 %v1819, 1045249613
      %v1852 = vmul.bf16 %v1820, 1045249613
      %v1853 = vmax.bf16 %v1789, %v1821
      %v1854 = vmax.bf16 %v1790, %v1822
      %v1855 = vmax.bf16 %v1791, %v1823
      %v1856 = vmax.bf16 %v1792, %v1824
      %v1857 = vmax.bf16 %v1793, %v1825
      %v1858 = vmax.bf16 %v1794, %v1826
      %v1859 = vmax.bf16 %v1795, %v1827
      %v1860 = vmax.bf16 %v1796, %v1828
      %v1861 = vmax.bf16 %v1797, %v1829
      %v1862 = vmax.bf16 %v1798, %v1830
      %v1863 = vmax.bf16 %v1799, %v1831
      %v1864 = vmax.bf16 %v1800, %v1832
      %v1865 = vmax.bf16 %v1801, %v1833
      %v1866 = vmax.bf16 %v1802, %v1834
      %v1867 = vmax.bf16 %v1803, %v1835
      %v1868 = vmax.bf16 %v1804, %v1836
      %v1869 = vmax.bf16 %v1805, %v1837
      %v1870 = vmax.bf16 %v1806, %v1838
      %v1871 = vmax.bf16 %v1807, %v1839
      %v1872 = vmax.bf16 %v1808, %v1840
      %v1873 = vmax.bf16 %v1809, %v1841
      %v1874 = vmax.bf16 %v1810, %v1842
      %v1875 = vmax.bf16 %v1811, %v1843
      %v1876 = vmax.bf16 %v1812, %v1844
      %v1877 = vmax.bf16 %v1813, %v1845
      %v1878 = vmax.bf16 %v1814, %v1846
      %v1879 = vmax.bf16 %v1815, %v1847
      %v1880 = vmax.bf16 %v1816, %v1848
      %v1881 = vmax.bf16 %v1817, %v1849
      %v1882 = vmax.bf16 %v1818, %v1850
      %v1883 = vmax.bf16 %v1819, %v1851
      %v1884 = vmax.bf16 %v1820, %v1852
      %s1885 = scalar_lea.vmem %s2, 128
      %v1886 = vld [vmem:[%s1885] sm:$0xf]
      %v1887 = vld [vmem:[%s1885 + $0x4] sm:$0xf]
      %v1888 = vld [vmem:[%s1885 + $0x8] sm:$0xf]
      %v1889 = vld [vmem:[%s1885 + $0xc] sm:$0xf]
      %v1890 = vld [vmem:[%s1885 + $0x10] sm:$0xf]
      %v1891 = vld [vmem:[%s1885 + $0x14] sm:$0xf]
      %v1892 = vld [vmem:[%s1885 + $0x18] sm:$0xf]
      %v1893 = vld [vmem:[%s1885 + $0x1c] sm:$0xf]
      %v1894 = vld [vmem:[%s1885 + $0x20] sm:$0xf]
      %v1895 = vld [vmem:[%s1885 + $0x24] sm:$0xf]
      %v1896 = vld [vmem:[%s1885 + $0x28] sm:$0xf]
      %v1897 = vld [vmem:[%s1885 + $0x2c] sm:$0xf]
      %v1898 = vld [vmem:[%s1885 + $0x30] sm:$0xf]
      %v1899 = vld [vmem:[%s1885 + $0x34] sm:$0xf]
      %v1900 = vld [vmem:[%s1885 + $0x38] sm:$0xf]
      %v1901 = vld [vmem:[%s1885 + $0x3c] sm:$0xf]
      %v1918 = vunpack.c.l.b16 %v1886
      %v1919 = vunpack.c.l.b16 %v1887
      %v1920 = vunpack.c.l.b16 %v1888
      %v1921 = vunpack.c.l.b16 %v1889
      %v1922 = vunpack.c.l.b16 %v1890
      %v1923 = vunpack.c.l.b16 %v1891
      %v1924 = vunpack.c.l.b16 %v1892
      %v1925 = vunpack.c.l.b16 %v1893
      %v1926 = vunpack.c.l.b16 %v1894
      %v1927 = vunpack.c.l.b16 %v1895
      %v1928 = vunpack.c.l.b16 %v1896
      %v1929 = vunpack.c.l.b16 %v1897
      %v1930 = vunpack.c.l.b16 %v1898
      %v1931 = vunpack.c.l.b16 %v1899
      %v1932 = vunpack.c.l.b16 %v1900
      %v1933 = vunpack.c.l.b16 %v1901
      %v1934 = vpack.c.b16 %v1919, %v1918
      %v1935 = vpack.c.b16 %v1921, %v1920
      %v1936 = vpack.c.b16 %v1923, %v1922
      %v1937 = vpack.c.b16 %v1925, %v1924
      %v1938 = vpack.c.b16 %v1927, %v1926
      %v1939 = vpack.c.b16 %v1929, %v1928
      %v1940 = vpack.c.b16 %v1931, %v1930
      %v1941 = vpack.c.b16 %v1933, %v1932
      %1950 = vmatprep.subr.bf16.mxu0 0
      %1951 = vmatpush1.bf16.msra.mxu0 %v1934
      %1952 = vmatprep.subr.bf16.mxu0 0
      %1953 = vmatpush1.bf16.msra.mxu0 %v1935
      %1954 = vmatprep.subr.bf16.mxu0 0
      %1955 = vmatpush1.bf16.msra.mxu0 %v1936
      %1956 = vmatprep.subr.bf16.mxu0 0
      %1957 = vmatpush1.bf16.msra.mxu0 %v1937
      %1958 = vmatprep.subr.bf16.mxu0 0
      %1959 = vmatpush1.bf16.msra.mxu0 %v1938
      %1960 = vmatprep.subr.bf16.mxu0 0
      %1961 = vmatpush1.bf16.msra.mxu0 %v1939
      %1962 = vmatprep.subr.bf16.mxu0 0
      %1963 = vmatpush1.bf16.msra.mxu0 %v1940
      %1964 = vmatprep.subr.bf16.mxu0 0
      %1965 = vmatpush1.bf16.msra.mxu0 %v1941
      %1966 = vmatprep.subr.bf16.mxu0 0
      %1967 = vmatpush1.bf16.msra.mxu0 0
      %1968 = vmatprep.subr.bf16.mxu0 0
      %1969 = vmatpush1.bf16.msra.mxu0 0
      %1970 = vmatprep.subr.bf16.mxu0 0
      %1971 = vmatpush1.bf16.msra.mxu0 0
      %1972 = vmatprep.subr.bf16.mxu0 0
      %1973 = vmatpush1.bf16.msra.mxu0 0
      %1974 = vmatprep.subr.bf16.mxu0 0
      %1975 = vmatpush1.bf16.msra.mxu0 0
      %1976 = vmatprep.subr.bf16.mxu0 0
      %1977 = vmatpush1.bf16.msra.mxu0 0
      %1978 = vmatprep.subr.bf16.mxu0 0
      %1979 = vmatpush1.bf16.msra.mxu0 0
      %1980 = vmatprep.subr.bf16.mxu0 0
      %1981 = vmatpush1.bf16.msra.mxu0 0
      %1982 = vmatprep.mubr.bf16.mxu0 0
      %1983 = vmatmul.mubr.bf16.gmra.mrb[0].mxu0 %v1853
      %v1984 = vpop.f32.mrb[0].mxu0
      %v1985 = vadd.f32 0.0, %v1984
      %v1986 = vpop.f32.mrb[0].mxu0
      %v1987 = vpop.f32.mrb[0].mxu0
      %v1988 = vadd.f32 0.0, %v1987
      %v1989 = vpop.f32.mrb[0].mxu0
      %1990 = vmatprep.mubr.bf16.mxu0 0
      %1991 = vmatmul.mubr.bf16.gmra.mrb[0].mxu0 %v1854
      %v1992 = vpop.f32.mrb[0].mxu0
      %v1993 = vadd.f32 0.0, %v1992
      %v1994 = vpop.f32.mrb[0].mxu0
      %v1995 = vpop.f32.mrb[0].mxu0
      %v1996 = vadd.f32 0.0, %v1995
      %v1997 = vpop.f32.mrb[0].mxu0
      %1998 = vmatprep.mubr.bf16.mxu0 0
      %1999 = vmatmul.mubr.bf16.gmra.mrb[0].mxu0 %v1855
      %v2000 = vpop.f32.mrb[0].mxu0
      %v2001 = vadd.f32 0.0, %v2000
      %v2002 = vpop.f32.mrb[0].mxu0
      %v2003 = vpop.f32.mrb[0].mxu0
      %v2004 = vadd.f32 0.0, %v2003
      %v2005 = vpop.f32.mrb[0].mxu0
      %2006 = vmatprep.mubr.bf16.mxu0 0
      %2007 = vmatmul.mubr.bf16.gmra.mrb[0].mxu0 %v1856
      %v2008 = vpop.f32.mrb[0].mxu0
      %v2009 = vadd.f32 0.0, %v2008
      %v2010 = vpop.f32.mrb[0].mxu0
      %v2011 = vpop.f32.mrb[0].mxu0
      %v2012 = vadd.f32 0.0, %v2011
      %v2013 = vpop.f32.mrb[0].mxu0
      %2014 = vmatprep.mubr.bf16.mxu0 0
      %2015 = vmatmul.mubr.bf16.gmra.mrb[0].mxu0 %v1857
      %v2016 = vpop.f32.mrb[0].mxu0
      %v2017 = vadd.f32 0.0, %v2016
      %v2018 = vpop.f32.mrb[0].mxu0
      %v2019 = vpop.f32.mrb[0].mxu0
      %v2020 = vadd.f32 0.0, %v2019
      %v2021 = vpop.f32.mrb[0].mxu0
      %2022 = vmatprep.mubr.bf16.mxu0 0
      %2023 = vmatmul.mubr.bf16.gmra.mrb[0].mxu0 %v1858
      %v2024 = vpop.f32.mrb[0].mxu0
      %v2025 = vadd.f32 0.0, %v2024
      %v2026 = vpop.f32.mrb[0].mxu0
      %v2027 = vpop.f32.mrb[0].mxu0
      %v2028 = vadd.f32 0.0, %v2027
      %v2029 = vpop.f32.mrb[0].mxu0
      %2030 = vmatprep.mubr.bf16.mxu0 0
      %2031 = vmatmul.mubr.bf16.gmra.mrb[0].mxu0 %v1859
      %v2032 = vpop.f32.mrb[0].mxu0
      %v2033 = vadd.f32 0.0, %v2032
      %v2034 = vpop.f32.mrb[0].mxu0
      %v2035 = vpop.f32.mrb[0].mxu0
      %v2036 = vadd.f32 0.0, %v2035
      %v2037 = vpop.f32.mrb[0].mxu0
      %2038 = vmatprep.mubr.bf16.mxu0 0
      %2039 = vmatmul.mubr.bf16.gmra.mrb[0].mxu0 %v1860
      %v2040 = vpop.f32.mrb[0].mxu0
      %v2041 = vadd.f32 0.0, %v2040
      %v2042 = vpop.f32.mrb[0].mxu0
      %v2043 = vpop.f32.mrb[0].mxu0
      %v2044 = vadd.f32 0.0, %v2043
      %v2045 = vpop.f32.mrb[0].mxu0
      %2046 = vmatprep.mubr.bf16.mxu0 0
      %2047 = vmatmul.mubr.bf16.gmra.mrb[0].mxu0 %v1861
      %v2048 = vpop.f32.mrb[0].mxu0
      %v2049 = vadd.f32 0.0, %v2048
      %v2050 = vpop.f32.mrb[0].mxu0
      %v2051 = vpop.f32.mrb[0].mxu0
      %v2052 = vadd.f32 0.0, %v2051
      %v2053 = vpop.f32.mrb[0].mxu0
      %2054 = vmatprep.mubr.bf16.mxu0 0
      %2055 = vmatmul.mubr.bf16.gmra.mrb[0].mxu0 %v1862
      %v2056 = vpop.f32.mrb[0].mxu0
      %v2057 = vadd.f32 0.0, %v2056
      %v2058 = vpop.f32.mrb[0].mxu0
      %v2059 = vpop.f32.mrb[0].mxu0
      %v2060 = vadd.f32 0.0, %v2059
      %v2061 = vpop.f32.mrb[0].mxu0
      %2062 = vmatprep.mubr.bf16.mxu0 0
      %2063 = vmatmul.mubr.bf16.gmra.mrb[0].mxu0 %v1863
      %v2064 = vpop.f32.mrb[0].mxu0
      %v2065 = vadd.f32 0.0, %v2064
      %v2066 = vpop.f32.mrb[0].mxu0
      %v2067 = vpop.f32.mrb[0].mxu0
      %v2068 = vadd.f32 0.0, %v2067
      %v2069 = vpop.f32.mrb[0].mxu0
      %2070 = vmatprep.mubr.bf16.mxu0 0
      %2071 = vmatmul.mubr.bf16.gmra.mrb[0].mxu0 %v1864
      %v2072 = vpop.f32.mrb[0].mxu0
      %v2073 = vadd.f32 0.0, %v2072
      %v2074 = vpop.f32.mrb[0].mxu0
      %v2075 = vpop.f32.mrb[0].mxu0
      %v2076 = vadd.f32 0.0, %v2075
      %v2077 = vpop.f32.mrb[0].mxu0
      %2078 = vmatprep.mubr.bf16.mxu0 0
      %2079 = vmatmul.mubr.bf16.gmra.mrb[0].mxu0 %v1865
      %v2080 = vpop.f32.mrb[0].mxu0
      %v2081 = vadd.f32 0.0, %v2080
      %v2082 = vpop.f32.mrb[0].mxu0
      %v2083 = vpop.f32.mrb[0].mxu0
      %v2084 = vadd.f32 0.0, %v2083
      %v2085 = vpop.f32.mrb[0].mxu0
      %2086 = vmatprep.mubr.bf16.mxu0 0
      %2087 = vmatmul.mubr.bf16.gmra.mrb[0].mxu0 %v1866
      %v2088 = vpop.f32.mrb[0].mxu0
      %v2089 = vadd.f32 0.0, %v2088
      %v2090 = vpop.f32.mrb[0].mxu0
      %v2091 = vpop.f32.mrb[0].mxu0
      %v2092 = vadd.f32 0.0, %v2091
      %v2093 = vpop.f32.mrb[0].mxu0
      %2094 = vmatprep.mubr.bf16.mxu0 0
      %2095 = vmatmul.mubr.bf16.gmra.mrb[0].mxu0 %v1867
      %v2096 = vpop.f32.mrb[0].mxu0
      %v2097 = vadd.f32 0.0, %v2096
      %v2098 = vpop.f32.mrb[0].mxu0
      %v2099 = vpop.f32.mrb[0].mxu0
      %v2100 = vadd.f32 0.0, %v2099
      %v2101 = vpop.f32.mrb[0].mxu0
      %2102 = vmatprep.mubr.bf16.mxu0 0
      %2103 = vmatmul.mubr.bf16.gmra.mrb[0].mxu0 %v1868
      %v2104 = vpop.f32.mrb[0].mxu0
      %v2105 = vadd.f32 0.0, %v2104
      %v2106 = vpop.f32.mrb[0].mxu0
      %v2107 = vpop.f32.mrb[0].mxu0
      %v2108 = vadd.f32 0.0, %v2107
      %v2109 = vpop.f32.mrb[0].mxu0
      %2110 = vmatprep.mubr.bf16.mxu0 0
      %2111 = vmatmul.mubr.bf16.gmra.mrb[0].mxu0 %v1869
      %v2112 = vpop.f32.mrb[0].mxu0
      %v2113 = vadd.f32 0.0, %v2112
      %v2114 = vpop.f32.mrb[0].mxu0
      %v2115 = vpop.f32.mrb[0].mxu0
      %v2116 = vadd.f32 0.0, %v2115
      %v2117 = vpop.f32.mrb[0].mxu0
      %2118 = vmatprep.mubr.bf16.mxu0 0
      %2119 = vmatmul.mubr.bf16.gmra.mrb[0].mxu0 %v1870
      %v2120 = vpop.f32.mrb[0].mxu0
      %v2121 = vadd.f32 0.0, %v2120
      %v2122 = vpop.f32.mrb[0].mxu0
      %v2123 = vpop.f32.mrb[0].mxu0
      %v2124 = vadd.f32 0.0, %v2123
      %v2125 = vpop.f32.mrb[0].mxu0
      %2126 = vmatprep.mubr.bf16.mxu0 0
      %2127 = vmatmul.mubr.bf16.gmra.mrb[0].mxu0 %v1871
      %v2128 = vpop.f32.mrb[0].mxu0
      %v2129 = vadd.f32 0.0, %v2128
      %v2130 = vpop.f32.mrb[0].mxu0
      %v2131 = vpop.f32.mrb[0].mxu0
      %v2132 = vadd.f32 0.0, %v2131
      %v2133 = vpop.f32.mrb[0].mxu0
      %2134 = vmatprep.mubr.bf16.mxu0 0
      %2135 = vmatmul.mubr.bf16.gmra.mrb[0].mxu0 %v1872
      %v2136 = vpop.f32.mrb[0].mxu0
      %v2137 = vadd.f32 0.0, %v2136
      %v2138 = vpop.f32.mrb[0].mxu0
      %v2139 = vpop.f32.mrb[0].mxu0
      %v2140 = vadd.f32 0.0, %v2139
      %v2141 = vpop.f32.mrb[0].mxu0
      %2142 = vmatprep.mubr.bf16.mxu0 0
      %2143 = vmatmul.mubr.bf16.gmra.mrb[0].mxu0 %v1873
      %v2144 = vpop.f32.mrb[0].mxu0
      %v2145 = vadd.f32 0.0, %v2144
      %v2146 = vpop.f32.mrb[0].mxu0
      %v2147 = vpop.f32.mrb[0].mxu0
      %v2148 = vadd.f32 0.0, %v2147
      %v2149 = vpop.f32.mrb[0].mxu0
      %2150 = vmatprep.mubr.bf16.mxu0 0
      %2151 = vmatmul.mubr.bf16.gmra.mrb[0].mxu0 %v1874
      %v2152 = vpop.f32.mrb[0].mxu0
      %v2153 = vadd.f32 0.0, %v2152
      %v2154 = vpop.f32.mrb[0].mxu0
      %v2155 = vpop.f32.mrb[0].mxu0
      %v2156 = vadd.f32 0.0, %v2155
      %v2157 = vpop.f32.mrb[0].mxu0
      %2158 = vmatprep.mubr.bf16.mxu0 0
      %2159 = vmatmul.mubr.bf16.gmra.mrb[0].mxu0 %v1875
      %v2160 = vpop.f32.mrb[0].mxu0
      %v2161 = vadd.f32 0.0, %v2160
      %v2162 = vpop.f32.mrb[0].mxu0
      %v2163 = vpop.f32.mrb[0].mxu0
      %v2164 = vadd.f32 0.0, %v2163
      %v2165 = vpop.f32.mrb[0].mxu0
      %2166 = vmatprep.mubr.bf16.mxu0 0
      %2167 = vmatmul.mubr.bf16.gmra.mrb[0].mxu0 %v1876
      %v2168 = vpop.f32.mrb[0].mxu0
      %v2169 = vadd.f32 0.0, %v2168
      %v2170 = vpop.f32.mrb[0].mxu0
      %v2171 = vpop.f32.mrb[0].mxu0
      %v2172 = vadd.f32 0.0, %v2171
      %v2173 = vpop.f32.mrb[0].mxu0
      %2174 = vmatprep.mubr.bf16.mxu0 0
      %2175 = vmatmul.mubr.bf16.gmra.mrb[0].mxu0 %v1877
      %v2176 = vpop.f32.mrb[0].mxu0
      %v2177 = vadd.f32 0.0, %v2176
      %v2178 = vpop.f32.mrb[0].mxu0
      %v2179 = vpop.f32.mrb[0].mxu0
      %v2180 = vadd.f32 0.0, %v2179
      %v2181 = vpop.f32.mrb[0].mxu0
      %2182 = vmatprep.mubr.bf16.mxu0 0
      %2183 = vmatmul.mubr.bf16.gmra.mrb[0].mxu0 %v1878
      %v2184 = vpop.f32.mrb[0].mxu0
      %v2185 = vadd.f32 0.0, %v2184
      %v2186 = vpop.f32.mrb[0].mxu0
      %v2187 = vpop.f32.mrb[0].mxu0
      %v2188 = vadd.f32 0.0, %v2187
      %v2189 = vpop.f32.mrb[0].mxu0
      %2190 = vmatprep.mubr.bf16.mxu0 0
      %2191 = vmatmul.mubr.bf16.gmra.mrb[0].mxu0 %v1879
      %v2192 = vpop.f32.mrb[0].mxu0
      %v2193 = vadd.f32 0.0, %v2192
      %v2194 = vpop.f32.mrb[0].mxu0
      %v2195 = vpop.f32.mrb[0].mxu0
      %v2196 = vadd.f32 0.0, %v2195
      %v2197 = vpop.f32.mrb[0].mxu0
      %2198 = vmatprep.mubr.bf16.mxu0 0
      %2199 = vmatmul.mubr.bf16.gmra.mrb[0].mxu0 %v1880
      %v2200 = vpop.f32.mrb[0].mxu0
      %v2201 = vadd.f32 0.0, %v2200
      %v2202 = vpop.f32.mrb[0].mxu0
      %v2203 = vpop.f32.mrb[0].mxu0
      %v2204 = vadd.f32 0.0, %v2203
      %v2205 = vpop.f32.mrb[0].mxu0
      %2206 = vmatprep.mubr.bf16.mxu0 0
      %2207 = vmatmul.mubr.bf16.gmra.mrb[0].mxu0 %v1881
      %v2208 = vpop.f32.mrb[0].mxu0
      %v2209 = vadd.f32 0.0, %v2208
      %v2210 = vpop.f32.mrb[0].mxu0
      %v2211 = vpop.f32.mrb[0].mxu0
      %v2212 = vadd.f32 0.0, %v2211
      %v2213 = vpop.f32.mrb[0].mxu0
      %2214 = vmatprep.mubr.bf16.mxu0 0
      %2215 = vmatmul.mubr.bf16.gmra.mrb[0].mxu0 %v1882
      %v2216 = vpop.f32.mrb[0].mxu0
      %v2217 = vadd.f32 0.0, %v2216
      %v2218 = vpop.f32.mrb[0].mxu0
      %v2219 = vpop.f32.mrb[0].mxu0
      %v2220 = vadd.f32 0.0, %v2219
      %v2221 = vpop.f32.mrb[0].mxu0
      %2222 = vmatprep.mubr.bf16.mxu0 0
      %2223 = vmatmul.mubr.bf16.gmra.mrb[0].mxu0 %v1883
      %v2224 = vpop.f32.mrb[0].mxu0
      %v2225 = vadd.f32 0.0, %v2224
      %v2226 = vpop.f32.mrb[0].mxu0
      %v2227 = vpop.f32.mrb[0].mxu0
      %v2228 = vadd.f32 0.0, %v2227
      %v2229 = vpop.f32.mrb[0].mxu0
      %2230 = vmatprep.mubr.bf16.mxu0 0
      %2231 = vmatmul.mubr.bf16.gmra.mrb[0].mxu0 %v1884
      %v2232 = vpop.f32.mrb[0].mxu0
      %v2233 = vadd.f32 0.0, %v2232
      %v2234 = vpop.f32.mrb[0].mxu0
      %v2235 = vpop.f32.mrb[0].mxu0
      %v2236 = vadd.f32 0.0, %v2235
      %v2237 = vpop.f32.mrb[0].mxu0
      %2238 = vdwg.mxu0
      %v2239 = vpack.c.bf16 %v1988, %v1985
      %v2240 = vpack.c.bf16 %v1996, %v1993
      %v2241 = vpack.c.bf16 %v2004, %v2001
      %v2242 = vpack.c.bf16 %v2012, %v2009
      %v2243 = vpack.c.bf16 %v2020, %v2017
      %v2244 = vpack.c.bf16 %v2028, %v2025
      %v2245 = vpack.c.bf16 %v2036, %v2033
      %v2246 = vpack.c.bf16 %v2044, %v2041
      %v2247 = vpack.c.bf16 %v2052, %v2049
      %v2248 = vpack.c.bf16 %v2060, %v2057
      %v2249 = vpack.c.bf16 %v2068, %v2065
      %v2250 = vpack.c.bf16 %v2076, %v2073
      %v2251 = vpack.c.bf16 %v2084, %v2081
      %v2252 = vpack.c.bf16 %v2092, %v2089
      %v2253 = vpack.c.bf16 %v2100, %v2097
      %v2254 = vpack.c.bf16 %v2108, %v2105
      %v2255 = vpack.c.bf16 %v2116, %v2113
      %v2256 = vpack.c.bf16 %v2124, %v2121
      %v2257 = vpack.c.bf16 %v2132, %v2129
      %v2258 = vpack.c.bf16 %v2140, %v2137
      %v2259 = vpack.c.bf16 %v2148, %v2145
      %v2260 = vpack.c.bf16 %v2156, %v2153
      %v2261 = vpack.c.bf16 %v2164, %v2161
      %v2262 = vpack.c.bf16 %v2172, %v2169
      %v2263 = vpack.c.bf16 %v2180, %v2177
      %v2264 = vpack.c.bf16 %v2188, %v2185
      %v2265 = vpack.c.bf16 %v2196, %v2193
      %v2266 = vpack.c.bf16 %v2204, %v2201
      %v2267 = vpack.c.bf16 %v2212, %v2209
      %v2268 = vpack.c.bf16 %v2220, %v2217
      %v2269 = vpack.c.bf16 %v2228, %v2225
      %v2270 = vpack.c.bf16 %v2236, %v2233
      %v2271 = vld [vmem:[%s5] sm:$0x2]
      %v2273 = vpack.i.b16 %v2271, %v2271
      %v2275 = vlaneseq
      %v2276 = vshrl.u32 %v2275, 7
      %v2277 = vsub.s32 1, %v2276
      %v2278 = vrot.slane %v2273, %v2277
      %v2279 = vadd.bf16 %v2239, %v2278
      %v2280 = vadd.bf16 %v2240, %v2278
      %v2281 = vadd.bf16 %v2241, %v2278
      %v2282 = vadd.bf16 %v2242, %v2278
      %v2283 = vadd.bf16 %v2243, %v2278
      %v2284 = vadd.bf16 %v2244, %v2278
      %v2285 = vadd.bf16 %v2245, %v2278
      %v2286 = vadd.bf16 %v2246, %v2278
      %v2287 = vadd.bf16 %v2247, %v2278
      %v2288 = vadd.bf16 %v2248, %v2278
      %v2289 = vadd.bf16 %v2249, %v2278
      %v2290 = vadd.bf16 %v2250, %v2278
      %v2291 = vadd.bf16 %v2251, %v2278
      %v2292 = vadd.bf16 %v2252, %v2278
      %v2293 = vadd.bf16 %v2253, %v2278
      %v2294 = vadd.bf16 %v2254, %v2278
      %v2295 = vadd.bf16 %v2255, %v2278
      %v2296 = vadd.bf16 %v2256, %v2278
      %v2297 = vadd.bf16 %v2257, %v2278
      %v2298 = vadd.bf16 %v2258, %v2278
      %v2299 = vadd.bf16 %v2259, %v2278
      %v2300 = vadd.bf16 %v2260, %v2278
      %v2301 = vadd.bf16 %v2261, %v2278
      %v2302 = vadd.bf16 %v2262, %v2278
      %v2303 = vadd.bf16 %v2263, %v2278
      %v2304 = vadd.bf16 %v2264, %v2278
      %v2305 = vadd.bf16 %v2265, %v2278
      %v2306 = vadd.bf16 %v2266, %v2278
      %v2307 = vadd.bf16 %v2267, %v2278
      %v2308 = vadd.bf16 %v2268, %v2278
      %v2309 = vadd.bf16 %v2269, %v2278
      %v2310 = vadd.bf16 %v2270, %v2278
      %v2311 = vmul.bf16 %v2279, 1045249613
      %v2312 = vmul.bf16 %v2280, 1045249613
      %v2313 = vmul.bf16 %v2281, 1045249613
      %v2314 = vmul.bf16 %v2282, 1045249613
      %v2315 = vmul.bf16 %v2283, 1045249613
      %v2316 = vmul.bf16 %v2284, 1045249613
      %v2317 = vmul.bf16 %v2285, 1045249613
      %v2318 = vmul.bf16 %v2286, 1045249613
      %v2319 = vmul.bf16 %v2287, 1045249613
      %v2320 = vmul.bf16 %v2288, 1045249613
      %v2321 = vmul.bf16 %v2289, 1045249613
      %v2322 = vmul.bf16 %v2290, 1045249613
      %v2323 = vmul.bf16 %v2291, 1045249613
      %v2324 = vmul.bf16 %v2292, 1045249613
      %v2325 = vmul.bf16 %v2293, 1045249613
      %v2326 = vmul.bf16 %v2294, 1045249613
      %v2327 = vmul.bf16 %v2295, 1045249613
      %v2328 = vmul.bf16 %v2296, 1045249613
      %v2329 = vmul.bf16 %v2297, 1045249613
      %v2330 = vmul.bf16 %v2298, 1045249613
      %v2331 = vmul.bf16 %v2299, 1045249613
      %v2332 = vmul.bf16 %v2300, 1045249613
      %v2333 = vmul.bf16 %v2301, 1045249613
      %v2334 = vmul.bf16 %v2302, 1045249613
      %v2335 = vmul.bf16 %v2303, 1045249613
      %v2336 = vmul.bf16 %v2304, 1045249613
      %v2337 = vmul.bf16 %v2305, 1045249613
      %v2338 = vmul.bf16 %v2306, 1045249613
      %v2339 = vmul.bf16 %v2307, 1045249613
      %v2340 = vmul.bf16 %v2308, 1045249613
      %v2341 = vmul.bf16 %v2309, 1045249613
      %v2342 = vmul.bf16 %v2310, 1045249613
      %v2343 = vmax.bf16 %v2279, %v2311
      %v2344 = vmax.bf16 %v2280, %v2312
      %v2345 = vmax.bf16 %v2281, %v2313
      %v2346 = vmax.bf16 %v2282, %v2314
      %v2347 = vmax.bf16 %v2283, %v2315
      %v2348 = vmax.bf16 %v2284, %v2316
      %v2349 = vmax.bf16 %v2285, %v2317
      %v2350 = vmax.bf16 %v2286, %v2318
      %v2351 = vmax.bf16 %v2287, %v2319
      %v2352 = vmax.bf16 %v2288, %v2320
      %v2353 = vmax.bf16 %v2289, %v2321
      %v2354 = vmax.bf16 %v2290, %v2322
      %v2355 = vmax.bf16 %v2291, %v2323
      %v2356 = vmax.bf16 %v2292, %v2324
      %v2357 = vmax.bf16 %v2293, %v2325
      %v2358 = vmax.bf16 %v2294, %v2326
      %v2359 = vmax.bf16 %v2295, %v2327
      %v2360 = vmax.bf16 %v2296, %v2328
      %v2361 = vmax.bf16 %v2297, %v2329
      %v2362 = vmax.bf16 %v2298, %v2330
      %v2363 = vmax.bf16 %v2299, %v2331
      %v2364 = vmax.bf16 %v2300, %v2332
      %v2365 = vmax.bf16 %v2301, %v2333
      %v2366 = vmax.bf16 %v2302, %v2334
      %v2367 = vmax.bf16 %v2303, %v2335
      %v2368 = vmax.bf16 %v2304, %v2336
      %v2369 = vmax.bf16 %v2305, %v2337
      %v2370 = vmax.bf16 %v2306, %v2338
      %v2371 = vmax.bf16 %v2307, %v2339
      %v2372 = vmax.bf16 %v2308, %v2340
      %v2373 = vmax.bf16 %v2309, %v2341
      %v2374 = vmax.bf16 %v2310, %v2342
      %v2375 = vld [vmem:[%s3] sm:$0xf]
      %v2376 = vld [vmem:[%s3 + $0x4] sm:$0xf]
      %v2377 = vld [vmem:[%s3 + $0x8] sm:$0xf]
      %v2378 = vld [vmem:[%s3 + $0xc] sm:$0xf]
      %v2379 = vld [vmem:[%s3 + $0x10] sm:$0xf]
      %v2380 = vld [vmem:[%s3 + $0x14] sm:$0xf]
      %v2381 = vld [vmem:[%s3 + $0x18] sm:$0xf]
      %v2382 = vld [vmem:[%s3 + $0x1c] sm:$0xf]
      %v2383 = vld [vmem:[%s3 + $0x20] sm:$0xf]
      %v2384 = vld [vmem:[%s3 + $0x24] sm:$0xf]
      %v2385 = vld [vmem:[%s3 + $0x28] sm:$0xf]
      %v2386 = vld [vmem:[%s3 + $0x2c] sm:$0xf]
      %v2387 = vld [vmem:[%s3 + $0x30] sm:$0xf]
      %v2388 = vld [vmem:[%s3 + $0x34] sm:$0xf]
      %v2389 = vld [vmem:[%s3 + $0x38] sm:$0xf]
      %v2390 = vld [vmem:[%s3 + $0x3c] sm:$0xf]
      %v2391 = vld [vmem:[%s6] sm:$0x1]
      %v2392 = vlaneseq
      %v2393 = vshrl.u32 %v2392, 7
      %v2394 = vsub.s32 0, %v2393
      %v2395 = vrot.slane %v2391, %v2394
      %v2412 = vunpack.c.l.b16 %v2375
      %v2413 = vunpack.c.l.b16 %v2376
      %v2414 = vunpack.c.l.b16 %v2377
      %v2415 = vunpack.c.l.b16 %v2378
      %v2416 = vunpack.c.l.b16 %v2379
      %v2417 = vunpack.c.l.b16 %v2380
      %v2418 = vunpack.c.l.b16 %v2381
      %v2419 = vunpack.c.l.b16 %v2382
      %v2420 = vunpack.c.l.b16 %v2383
      %v2421 = vunpack.c.l.b16 %v2384
      %v2422 = vunpack.c.l.b16 %v2385
      %v2423 = vunpack.c.l.b16 %v2386
      %v2424 = vunpack.c.l.b16 %v2387
      %v2425 = vunpack.c.l.b16 %v2388
      %v2426 = vunpack.c.l.b16 %v2389
      %v2427 = vunpack.c.l.b16 %v2390
      %v2428 = vpack.c.b16 %v2413, %v2412
      %v2429 = vpack.c.b16 %v2415, %v2414
      %v2430 = vpack.c.b16 %v2417, %v2416
      %v2431 = vpack.c.b16 %v2419, %v2418
      %v2432 = vpack.c.b16 %v2421, %v2420
      %v2433 = vpack.c.b16 %v2423, %v2422
      %v2434 = vpack.c.b16 %v2425, %v2424
      %v2435 = vpack.c.b16 %v2427, %v2426
      %2444 = vmatprep.subr.bf16.mxu0 0
      %2445 = vmatpush1.bf16.msra.mxu0 %v2428
      %2446 = vmatprep.subr.bf16.mxu0 0
      %2447 = vmatpush1.bf16.msra.mxu0 %v2429
      %2448 = vmatprep.subr.bf16.mxu0 0
      %2449 = vmatpush1.bf16.msra.mxu0 %v2430
      %2450 = vmatprep.subr.bf16.mxu0 0
      %2451 = vmatpush1.bf16.msra.mxu0 %v2431
      %2452 = vmatprep.subr.bf16.mxu0 0
      %2453 = vmatpush1.bf16.msra.mxu0 %v2432
      %2454 = vmatprep.subr.bf16.mxu0 0
      %2455 = vmatpush1.bf16.msra.mxu0 %v2433
      %2456 = vmatprep.subr.bf16.mxu0 0
      %2457 = vmatpush1.bf16.msra.mxu0 %v2434
      %2458 = vmatprep.subr.bf16.mxu0 0
      %2459 = vmatpush1.bf16.msra.mxu0 %v2435
      %2460 = vmatprep.subr.bf16.mxu0 0
      %2461 = vmatpush1.bf16.msra.mxu0 0
      %2462 = vmatprep.subr.bf16.mxu0 0
      %2463 = vmatpush1.bf16.msra.mxu0 0
      %2464 = vmatprep.subr.bf16.mxu0 0
      %2465 = vmatpush1.bf16.msra.mxu0 0
      %2466 = vmatprep.subr.bf16.mxu0 0
      %2467 = vmatpush1.bf16.msra.mxu0 0
      %2468 = vmatprep.subr.bf16.mxu0 0
      %2469 = vmatpush1.bf16.msra.mxu0 0
      %2470 = vmatprep.subr.bf16.mxu0 0
      %2471 = vmatpush1.bf16.msra.mxu0 0
      %2472 = vmatprep.subr.bf16.mxu0 0
      %2473 = vmatpush1.bf16.msra.mxu0 0
      %2474 = vmatprep.subr.bf16.mxu0 0
      %2475 = vmatpush1.bf16.msra.mxu0 0
      %2476 = vmatprep.mubr.bf16.mxu0 0
      %2477 = vmatmul.mubr.bf16.gmra.mrb[0].mxu0 %v2343
      %v2478 = vpop.f32.mrb[0].mxu0
      %v2479 = vadd.f32 %v2395, %v2478
      %v2480 = vpop.f32.mrb[0].mxu0
      %v2481 = vpop.f32.mrb[0].mxu0
      %v2482 = vadd.f32 %v2395, %v2481
      %v2483 = vpop.f32.mrb[0].mxu0
      %2484 = vmatprep.mubr.bf16.mxu0 0
      %2485 = vmatmul.mubr.bf16.gmra.mrb[0].mxu0 %v2344
      %v2486 = vpop.f32.mrb[0].mxu0
      %v2487 = vadd.f32 %v2395, %v2486
      %v2488 = vpop.f32.mrb[0].mxu0
      %v2489 = vpop.f32.mrb[0].mxu0
      %v2490 = vadd.f32 %v2395, %v2489
      %v2491 = vpop.f32.mrb[0].mxu0
      %2492 = vmatprep.mubr.bf16.mxu0 0
      %2493 = vmatmul.mubr.bf16.gmra.mrb[0].mxu0 %v2345
      %v2494 = vpop.f32.mrb[0].mxu0
      %v2495 = vadd.f32 %v2395, %v2494
      %v2496 = vpop.f32.mrb[0].mxu0
      %v2497 = vpop.f32.mrb[0].mxu0
      %v2498 = vadd.f32 %v2395, %v2497
      %v2499 = vpop.f32.mrb[0].mxu0
      %2500 = vmatprep.mubr.bf16.mxu0 0
      %2501 = vmatmul.mubr.bf16.gmra.mrb[0].mxu0 %v2346
      %v2502 = vpop.f32.mrb[0].mxu0
      %v2503 = vadd.f32 %v2395, %v2502
      %v2504 = vpop.f32.mrb[0].mxu0
      %v2505 = vpop.f32.mrb[0].mxu0
      %v2506 = vadd.f32 %v2395, %v2505
      %v2507 = vpop.f32.mrb[0].mxu0
      %2508 = vmatprep.mubr.bf16.mxu0 0
      %2509 = vmatmul.mubr.bf16.gmra.mrb[0].mxu0 %v2347
      %v2510 = vpop.f32.mrb[0].mxu0
      %v2511 = vadd.f32 %v2395, %v2510
      %v2512 = vpop.f32.mrb[0].mxu0
      %v2513 = vpop.f32.mrb[0].mxu0
      %v2514 = vadd.f32 %v2395, %v2513
      %v2515 = vpop.f32.mrb[0].mxu0
      %2516 = vmatprep.mubr.bf16.mxu0 0
      %2517 = vmatmul.mubr.bf16.gmra.mrb[0].mxu0 %v2348
      %v2518 = vpop.f32.mrb[0].mxu0
      %v2519 = vadd.f32 %v2395, %v2518
      %v2520 = vpop.f32.mrb[0].mxu0
      %v2521 = vpop.f32.mrb[0].mxu0
      %v2522 = vadd.f32 %v2395, %v2521
      %v2523 = vpop.f32.mrb[0].mxu0
      %2524 = vmatprep.mubr.bf16.mxu0 0
      %2525 = vmatmul.mubr.bf16.gmra.mrb[0].mxu0 %v2349
      %v2526 = vpop.f32.mrb[0].mxu0
      %v2527 = vadd.f32 %v2395, %v2526
      %v2528 = vpop.f32.mrb[0].mxu0
      %v2529 = vpop.f32.mrb[0].mxu0
      %v2530 = vadd.f32 %v2395, %v2529
      %v2531 = vpop.f32.mrb[0].mxu0
      %2532 = vmatprep.mubr.bf16.mxu0 0
      %2533 = vmatmul.mubr.bf16.gmra.mrb[0].mxu0 %v2350
      %v2534 = vpop.f32.mrb[0].mxu0
      %v2535 = vadd.f32 %v2395, %v2534
      %v2536 = vpop.f32.mrb[0].mxu0
      %v2537 = vpop.f32.mrb[0].mxu0
      %v2538 = vadd.f32 %v2395, %v2537
      %v2539 = vpop.f32.mrb[0].mxu0
      %2540 = vmatprep.mubr.bf16.mxu0 0
      %2541 = vmatmul.mubr.bf16.gmra.mrb[0].mxu0 %v2351
      %v2542 = vpop.f32.mrb[0].mxu0
      %v2543 = vadd.f32 %v2395, %v2542
      %v2544 = vpop.f32.mrb[0].mxu0
      %v2545 = vpop.f32.mrb[0].mxu0
      %v2546 = vadd.f32 %v2395, %v2545
      %v2547 = vpop.f32.mrb[0].mxu0
      %2548 = vmatprep.mubr.bf16.mxu0 0
      %2549 = vmatmul.mubr.bf16.gmra.mrb[0].mxu0 %v2352
      %v2550 = vpop.f32.mrb[0].mxu0
      %v2551 = vadd.f32 %v2395, %v2550
      %v2552 = vpop.f32.mrb[0].mxu0
      %v2553 = vpop.f32.mrb[0].mxu0
      %v2554 = vadd.f32 %v2395, %v2553
      %v2555 = vpop.f32.mrb[0].mxu0
      %2556 = vmatprep.mubr.bf16.mxu0 0
      %2557 = vmatmul.mubr.bf16.gmra.mrb[0].mxu0 %v2353
      %v2558 = vpop.f32.mrb[0].mxu0
      %v2559 = vadd.f32 %v2395, %v2558
      %v2560 = vpop.f32.mrb[0].mxu0
      %v2561 = vpop.f32.mrb[0].mxu0
      %v2562 = vadd.f32 %v2395, %v2561
      %v2563 = vpop.f32.mrb[0].mxu0
      %2564 = vmatprep.mubr.bf16.mxu0 0
      %2565 = vmatmul.mubr.bf16.gmra.mrb[0].mxu0 %v2354
      %v2566 = vpop.f32.mrb[0].mxu0
      %v2567 = vadd.f32 %v2395, %v2566
      %v2568 = vpop.f32.mrb[0].mxu0
      %v2569 = vpop.f32.mrb[0].mxu0
      %v2570 = vadd.f32 %v2395, %v2569
      %v2571 = vpop.f32.mrb[0].mxu0
      %2572 = vmatprep.mubr.bf16.mxu0 0
      %2573 = vmatmul.mubr.bf16.gmra.mrb[0].mxu0 %v2355
      %v2574 = vpop.f32.mrb[0].mxu0
      %v2575 = vadd.f32 %v2395, %v2574
      %v2576 = vpop.f32.mrb[0].mxu0
      %v2577 = vpop.f32.mrb[0].mxu0
      %v2578 = vadd.f32 %v2395, %v2577
      %v2579 = vpop.f32.mrb[0].mxu0
      %2580 = vmatprep.mubr.bf16.mxu0 0
      %2581 = vmatmul.mubr.bf16.gmra.mrb[0].mxu0 %v2356
      %v2582 = vpop.f32.mrb[0].mxu0
      %v2583 = vadd.f32 %v2395, %v2582
      %v2584 = vpop.f32.mrb[0].mxu0
      %v2585 = vpop.f32.mrb[0].mxu0
      %v2586 = vadd.f32 %v2395, %v2585
      %v2587 = vpop.f32.mrb[0].mxu0
      %2588 = vmatprep.mubr.bf16.mxu0 0
      %2589 = vmatmul.mubr.bf16.gmra.mrb[0].mxu0 %v2357
      %v2590 = vpop.f32.mrb[0].mxu0
      %v2591 = vadd.f32 %v2395, %v2590
      %v2592 = vpop.f32.mrb[0].mxu0
      %v2593 = vpop.f32.mrb[0].mxu0
      %v2594 = vadd.f32 %v2395, %v2593
      %v2595 = vpop.f32.mrb[0].mxu0
      %2596 = vmatprep.mubr.bf16.mxu0 0
      %2597 = vmatmul.mubr.bf16.gmra.mrb[0].mxu0 %v2358
      %v2598 = vpop.f32.mrb[0].mxu0
      %v2599 = vadd.f32 %v2395, %v2598
      %v2600 = vpop.f32.mrb[0].mxu0
      %v2601 = vpop.f32.mrb[0].mxu0
      %v2602 = vadd.f32 %v2395, %v2601
      %v2603 = vpop.f32.mrb[0].mxu0
      %2604 = vmatprep.mubr.bf16.mxu0 0
      %2605 = vmatmul.mubr.bf16.gmra.mrb[0].mxu0 %v2359
      %v2606 = vpop.f32.mrb[0].mxu0
      %v2607 = vadd.f32 %v2395, %v2606
      %v2608 = vpop.f32.mrb[0].mxu0
      %v2609 = vpop.f32.mrb[0].mxu0
      %v2610 = vadd.f32 %v2395, %v2609
      %v2611 = vpop.f32.mrb[0].mxu0
      %2612 = vmatprep.mubr.bf16.mxu0 0
      %2613 = vmatmul.mubr.bf16.gmra.mrb[0].mxu0 %v2360
      %v2614 = vpop.f32.mrb[0].mxu0
      %v2615 = vadd.f32 %v2395, %v2614
      %v2616 = vpop.f32.mrb[0].mxu0
      %v2617 = vpop.f32.mrb[0].mxu0
      %v2618 = vadd.f32 %v2395, %v2617
      %v2619 = vpop.f32.mrb[0].mxu0
      %2620 = vmatprep.mubr.bf16.mxu0 0
      %2621 = vmatmul.mubr.bf16.gmra.mrb[0].mxu0 %v2361
      %v2622 = vpop.f32.mrb[0].mxu0
      %v2623 = vadd.f32 %v2395, %v2622
      %v2624 = vpop.f32.mrb[0].mxu0
      %v2625 = vpop.f32.mrb[0].mxu0
      %v2626 = vadd.f32 %v2395, %v2625
      %v2627 = vpop.f32.mrb[0].mxu0
      %2628 = vmatprep.mubr.bf16.mxu0 0
      %2629 = vmatmul.mubr.bf16.gmra.mrb[0].mxu0 %v2362
      %v2630 = vpop.f32.mrb[0].mxu0
      %v2631 = vadd.f32 %v2395, %v2630
      %v2632 = vpop.f32.mrb[0].mxu0
      %v2633 = vpop.f32.mrb[0].mxu0
      %v2634 = vadd.f32 %v2395, %v2633
      %v2635 = vpop.f32.mrb[0].mxu0
      %2636 = vmatprep.mubr.bf16.mxu0 0
      %2637 = vmatmul.mubr.bf16.gmra.mrb[0].mxu0 %v2363
      %v2638 = vpop.f32.mrb[0].mxu0
      %v2639 = vadd.f32 %v2395, %v2638
      %v2640 = vpop.f32.mrb[0].mxu0
      %v2641 = vpop.f32.mrb[0].mxu0
      %v2642 = vadd.f32 %v2395, %v2641
      %v2643 = vpop.f32.mrb[0].mxu0
      %2644 = vmatprep.mubr.bf16.mxu0 0
      %2645 = vmatmul.mubr.bf16.gmra.mrb[0].mxu0 %v2364
      %v2646 = vpop.f32.mrb[0].mxu0
      %v2647 = vadd.f32 %v2395, %v2646
      %v2648 = vpop.f32.mrb[0].mxu0
      %v2649 = vpop.f32.mrb[0].mxu0
      %v2650 = vadd.f32 %v2395, %v2649
      %v2651 = vpop.f32.mrb[0].mxu0
      %2652 = vmatprep.mubr.bf16.mxu0 0
      %2653 = vmatmul.mubr.bf16.gmra.mrb[0].mxu0 %v2365
      %v2654 = vpop.f32.mrb[0].mxu0
      %v2655 = vadd.f32 %v2395, %v2654
      %v2656 = vpop.f32.mrb[0].mxu0
      %v2657 = vpop.f32.mrb[0].mxu0
      %v2658 = vadd.f32 %v2395, %v2657
      %v2659 = vpop.f32.mrb[0].mxu0
      %2660 = vmatprep.mubr.bf16.mxu0 0
      %2661 = vmatmul.mubr.bf16.gmra.mrb[0].mxu0 %v2366
      %v2662 = vpop.f32.mrb[0].mxu0
      %v2663 = vadd.f32 %v2395, %v2662
      %v2664 = vpop.f32.mrb[0].mxu0
      %v2665 = vpop.f32.mrb[0].mxu0
      %v2666 = vadd.f32 %v2395, %v2665
      %v2667 = vpop.f32.mrb[0].mxu0
      %2668 = vmatprep.mubr.bf16.mxu0 0
      %2669 = vmatmul.mubr.bf16.gmra.mrb[0].mxu0 %v2367
      %v2670 = vpop.f32.mrb[0].mxu0
      %v2671 = vadd.f32 %v2395, %v2670
      %v2672 = vpop.f32.mrb[0].mxu0
      %v2673 = vpop.f32.mrb[0].mxu0
      %v2674 = vadd.f32 %v2395, %v2673
      %v2675 = vpop.f32.mrb[0].mxu0
      %2676 = vmatprep.mubr.bf16.mxu0 0
      %2677 = vmatmul.mubr.bf16.gmra.mrb[0].mxu0 %v2368
      %v2678 = vpop.f32.mrb[0].mxu0
      %v2679 = vadd.f32 %v2395, %v2678
      %v2680 = vpop.f32.mrb[0].mxu0
      %v2681 = vpop.f32.mrb[0].mxu0
      %v2682 = vadd.f32 %v2395, %v2681
      %v2683 = vpop.f32.mrb[0].mxu0
      %2684 = vmatprep.mubr.bf16.mxu0 0
      %2685 = vmatmul.mubr.bf16.gmra.mrb[0].mxu0 %v2369
      %v2686 = vpop.f32.mrb[0].mxu0
      %v2687 = vadd.f32 %v2395, %v2686
      %v2688 = vpop.f32.mrb[0].mxu0
      %v2689 = vpop.f32.mrb[0].mxu0
      %v2690 = vadd.f32 %v2395, %v2689
      %v2691 = vpop.f32.mrb[0].mxu0
      %2692 = vmatprep.mubr.bf16.mxu0 0
      %2693 = vmatmul.mubr.bf16.gmra.mrb[0].mxu0 %v2370
      %v2694 = vpop.f32.mrb[0].mxu0
      %v2695 = vadd.f32 %v2395, %v2694
      %v2696 = vpop.f32.mrb[0].mxu0
      %v2697 = vpop.f32.mrb[0].mxu0
      %v2698 = vadd.f32 %v2395, %v2697
      %v2699 = vpop.f32.mrb[0].mxu0
      %2700 = vmatprep.mubr.bf16.mxu0 0
      %2701 = vmatmul.mubr.bf16.gmra.mrb[0].mxu0 %v2371
      %v2702 = vpop.f32.mrb[0].mxu0
      %v2703 = vadd.f32 %v2395, %v2702
      %v2704 = vpop.f32.mrb[0].mxu0
      %v2705 = vpop.f32.mrb[0].mxu0
      %v2706 = vadd.f32 %v2395, %v2705
      %v2707 = vpop.f32.mrb[0].mxu0
      %2708 = vmatprep.mubr.bf16.mxu0 0
      %2709 = vmatmul.mubr.bf16.gmra.mrb[0].mxu0 %v2372
      %v2710 = vpop.f32.mrb[0].mxu0
      %v2711 = vadd.f32 %v2395, %v2710
      %v2712 = vpop.f32.mrb[0].mxu0
      %v2713 = vpop.f32.mrb[0].mxu0
      %v2714 = vadd.f32 %v2395, %v2713
      %v2715 = vpop.f32.mrb[0].mxu0
      %2716 = vmatprep.mubr.bf16.mxu0 0
      %2717 = vmatmul.mubr.bf16.gmra.mrb[0].mxu0 %v2373
      %v2718 = vpop.f32.mrb[0].mxu0
      %v2719 = vadd.f32 %v2395, %v2718
      %v2720 = vpop.f32.mrb[0].mxu0
      %v2721 = vpop.f32.mrb[0].mxu0
      %v2722 = vadd.f32 %v2395, %v2721
      %v2723 = vpop.f32.mrb[0].mxu0
      %2724 = vmatprep.mubr.bf16.mxu0 0
      %2725 = vmatmul.mubr.bf16.gmra.mrb[0].mxu0 %v2374
      %v2726 = vpop.f32.mrb[0].mxu0
      %v2727 = vadd.f32 %v2395, %v2726
      %v2728 = vpop.f32.mrb[0].mxu0
      %v2729 = vpop.f32.mrb[0].mxu0
      %v2730 = vadd.f32 %v2395, %v2729
      %v2731 = vpop.f32.mrb[0].mxu0
      %2732 = vdwg.mxu0
      %v2733 = vpack.c.bf16 %v2482, %v2479
      %v2734 = vpack.c.bf16 %v2490, %v2487
      %v2735 = vpack.c.bf16 %v2498, %v2495
      %v2736 = vpack.c.bf16 %v2506, %v2503
      %v2737 = vpack.c.bf16 %v2514, %v2511
      %v2738 = vpack.c.bf16 %v2522, %v2519
      %v2739 = vpack.c.bf16 %v2530, %v2527
      %v2740 = vpack.c.bf16 %v2538, %v2535
      %v2741 = vpack.c.bf16 %v2546, %v2543
      %v2742 = vpack.c.bf16 %v2554, %v2551
      %v2743 = vpack.c.bf16 %v2562, %v2559
      %v2744 = vpack.c.bf16 %v2570, %v2567
      %v2745 = vpack.c.bf16 %v2578, %v2575
      %v2746 = vpack.c.bf16 %v2586, %v2583
      %v2747 = vpack.c.bf16 %v2594, %v2591
      %v2748 = vpack.c.bf16 %v2602, %v2599
      %v2749 = vpack.c.bf16 %v2610, %v2607
      %v2750 = vpack.c.bf16 %v2618, %v2615
      %v2751 = vpack.c.bf16 %v2626, %v2623
      %v2752 = vpack.c.bf16 %v2634, %v2631
      %v2753 = vpack.c.bf16 %v2642, %v2639
      %v2754 = vpack.c.bf16 %v2650, %v2647
      %v2755 = vpack.c.bf16 %v2658, %v2655
      %v2756 = vpack.c.bf16 %v2666, %v2663
      %v2757 = vpack.c.bf16 %v2674, %v2671
      %v2758 = vpack.c.bf16 %v2682, %v2679
      %v2759 = vpack.c.bf16 %v2690, %v2687
      %v2760 = vpack.c.bf16 %v2698, %v2695
      %v2761 = vpack.c.bf16 %v2706, %v2703
      %v2762 = vpack.c.bf16 %v2714, %v2711
      %v2763 = vpack.c.bf16 %v2722, %v2719
      %v2764 = vpack.c.bf16 %v2730, %v2727
      %s2765 = scalar_lea.vmem %s1, 4
      %v2766 = vld [vmem:[%s2765] sm:$0xf]
      %v2768 = vsel %vm381, %v2733, 0
      %v2771 = vsel %vm381, %v2734, 0
      %v2774 = vsel %vm381, %v2735, 0
      %v2777 = vsel %vm381, %v2736, 0
      %v2780 = vsel %vm381, %v2737, 0
      %v2783 = vsel %vm381, %v2738, 0
      %v2786 = vsel %vm381, %v2739, 0
      %v2789 = vsel %vm381, %v2740, 0
      %v2792 = vsel %vm381, %v2741, 0
      %v2795 = vsel %vm381, %v2742, 0
      %v2798 = vsel %vm381, %v2743, 0
      %v2801 = vsel %vm381, %v2744, 0
      %v2804 = vsel %vm381, %v2745, 0
      %v2807 = vsel %vm381, %v2746, 0
      %v2810 = vsel %vm381, %v2747, 0
      %v2813 = vsel %vm381, %v2748, 0
      %v2816 = vsel %vm381, %v2749, 0
      %v2819 = vsel %vm381, %v2750, 0
      %v2822 = vsel %vm381, %v2751, 0
      %v2825 = vsel %vm381, %v2752, 0
      %v2828 = vsel %vm381, %v2753, 0
      %v2831 = vsel %vm381, %v2754, 0
      %v2834 = vsel %vm381, %v2755, 0
      %v2837 = vsel %vm381, %v2756, 0
      %v2840 = vsel %vm381, %v2757, 0
      %v2843 = vsel %vm381, %v2758, 0
      %v2846 = vsel %vm381, %v2759, 0
      %v2849 = vsel %vm381, %v2760, 0
      %v2852 = vsel %vm381, %v2761, 0
      %v2855 = vsel %vm381, %v2762, 0
      %v2858 = vsel %vm381, %v2763, 0
      %v2861 = vsel %vm381, %v2764, 0
      %v2864 = vsel %vm478, %v2766, 0
      %2866 = vmatprep.subr.bf16.mxu0 0
      %2867 = vmatpush1.bf16.msra.mxu0 %v2864
      %2868 = vmatprep.subr.bf16.mxu0 0
      %2869 = vmatpush1.bf16.msra.mxu0 0
      %2870 = vmatprep.subr.bf16.mxu0 0
      %2871 = vmatpush1.bf16.msra.mxu0 0
      %2872 = vmatprep.subr.bf16.mxu0 0
      %2873 = vmatpush1.bf16.msra.mxu0 0
      %2874 = vmatprep.subr.bf16.mxu0 0
      %2875 = vmatpush1.bf16.msra.mxu0 0
      %2876 = vmatprep.subr.bf16.mxu0 0
      %2877 = vmatpush1.bf16.msra.mxu0 0
      %2878 = vmatprep.subr.bf16.mxu0 0
      %2879 = vmatpush1.bf16.msra.mxu0 0
      %2880 = vmatprep.subr.bf16.mxu0 0
      %2881 = vmatpush1.bf16.msra.mxu0 0
      %2882 = vmatprep.subr.bf16.mxu0 0
      %2883 = vmatpush1.bf16.msra.mxu0 0
      %2884 = vmatprep.subr.bf16.mxu0 0
      %2885 = vmatpush1.bf16.msra.mxu0 0
      %2886 = vmatprep.subr.bf16.mxu0 0
      %2887 = vmatpush1.bf16.msra.mxu0 0
      %2888 = vmatprep.subr.bf16.mxu0 0
      %2889 = vmatpush1.bf16.msra.mxu0 0
      %2890 = vmatprep.subr.bf16.mxu0 0
      %2891 = vmatpush1.bf16.msra.mxu0 0
      %2892 = vmatprep.subr.bf16.mxu0 0
      %2893 = vmatpush1.bf16.msra.mxu0 0
      %2894 = vmatprep.subr.bf16.mxu0 0
      %2895 = vmatpush1.bf16.msra.mxu0 0
      %2896 = vmatprep.subr.bf16.mxu0 0
      %2897 = vmatpush1.bf16.msra.mxu0 0
      %2898 = vmatprep.mubr.bf16.mxu0 0
      %2899 = vmatmul.mubr.bf16.gmra.mrb[0].mxu0 %v2768
      %v2900 = vpop.f32.mrb[0].mxu0
      %v2901 = vadd.f32 0.0, %v2900
      %v2902 = vpop.f32.mrb[0].mxu0
      %v2903 = vpop.f32.mrb[0].mxu0
      %v2904 = vadd.f32 0.0, %v2903
      %v2905 = vpop.f32.mrb[0].mxu0
      %2906 = vmatprep.mubr.bf16.mxu0 0
      %2907 = vmatmul.mubr.bf16.gmra.mrb[0].mxu0 %v2771
      %v2908 = vpop.f32.mrb[0].mxu0
      %v2909 = vadd.f32 0.0, %v2908
      %v2910 = vpop.f32.mrb[0].mxu0
      %v2911 = vpop.f32.mrb[0].mxu0
      %v2912 = vadd.f32 0.0, %v2911
      %v2913 = vpop.f32.mrb[0].mxu0
      %2914 = vmatprep.mubr.bf16.mxu0 0
      %2915 = vmatmul.mubr.bf16.gmra.mrb[0].mxu0 %v2774
      %v2916 = vpop.f32.mrb[0].mxu0
      %v2917 = vadd.f32 0.0, %v2916
      %v2918 = vpop.f32.mrb[0].mxu0
      %v2919 = vpop.f32.mrb[0].mxu0
      %v2920 = vadd.f32 0.0, %v2919
      %v2921 = vpop.f32.mrb[0].mxu0
      %2922 = vmatprep.mubr.bf16.mxu0 0
      %2923 = vmatmul.mubr.bf16.gmra.mrb[0].mxu0 %v2777
      %v2924 = vpop.f32.mrb[0].mxu0
      %v2925 = vadd.f32 0.0, %v2924
      %v2926 = vpop.f32.mrb[0].mxu0
      %v2927 = vpop.f32.mrb[0].mxu0
      %v2928 = vadd.f32 0.0, %v2927
      %v2929 = vpop.f32.mrb[0].mxu0
      %2930 = vmatprep.mubr.bf16.mxu0 0
      %2931 = vmatmul.mubr.bf16.gmra.mrb[0].mxu0 %v2780
      %v2932 = vpop.f32.mrb[0].mxu0
      %v2933 = vadd.f32 0.0, %v2932
      %v2934 = vpop.f32.mrb[0].mxu0
      %v2935 = vpop.f32.mrb[0].mxu0
      %v2936 = vadd.f32 0.0, %v2935
      %v2937 = vpop.f32.mrb[0].mxu0
      %2938 = vmatprep.mubr.bf16.mxu0 0
      %2939 = vmatmul.mubr.bf16.gmra.mrb[0].mxu0 %v2783
      %v2940 = vpop.f32.mrb[0].mxu0
      %v2941 = vadd.f32 0.0, %v2940
      %v2942 = vpop.f32.mrb[0].mxu0
      %v2943 = vpop.f32.mrb[0].mxu0
      %v2944 = vadd.f32 0.0, %v2943
      %v2945 = vpop.f32.mrb[0].mxu0
      %2946 = vmatprep.mubr.bf16.mxu0 0
      %2947 = vmatmul.mubr.bf16.gmra.mrb[0].mxu0 %v2786
      %v2948 = vpop.f32.mrb[0].mxu0
      %v2949 = vadd.f32 0.0, %v2948
      %v2950 = vpop.f32.mrb[0].mxu0
      %v2951 = vpop.f32.mrb[0].mxu0
      %v2952 = vadd.f32 0.0, %v2951
      %v2953 = vpop.f32.mrb[0].mxu0
      %2954 = vmatprep.mubr.bf16.mxu0 0
      %2955 = vmatmul.mubr.bf16.gmra.mrb[0].mxu0 %v2789
      %v2956 = vpop.f32.mrb[0].mxu0
      %v2957 = vadd.f32 0.0, %v2956
      %v2958 = vpop.f32.mrb[0].mxu0
      %v2959 = vpop.f32.mrb[0].mxu0
      %v2960 = vadd.f32 0.0, %v2959
      %v2961 = vpop.f32.mrb[0].mxu0
      %2962 = vmatprep.mubr.bf16.mxu0 0
      %2963 = vmatmul.mubr.bf16.gmra.mrb[0].mxu0 %v2792
      %v2964 = vpop.f32.mrb[0].mxu0
      %v2965 = vadd.f32 0.0, %v2964
      %v2966 = vpop.f32.mrb[0].mxu0
      %v2967 = vpop.f32.mrb[0].mxu0
      %v2968 = vadd.f32 0.0, %v2967
      %v2969 = vpop.f32.mrb[0].mxu0
      %2970 = vmatprep.mubr.bf16.mxu0 0
      %2971 = vmatmul.mubr.bf16.gmra.mrb[0].mxu0 %v2795
      %v2972 = vpop.f32.mrb[0].mxu0
      %v2973 = vadd.f32 0.0, %v2972
      %v2974 = vpop.f32.mrb[0].mxu0
      %v2975 = vpop.f32.mrb[0].mxu0
      %v2976 = vadd.f32 0.0, %v2975
      %v2977 = vpop.f32.mrb[0].mxu0
      %2978 = vmatprep.mubr.bf16.mxu0 0
      %2979 = vmatmul.mubr.bf16.gmra.mrb[0].mxu0 %v2798
      %v2980 = vpop.f32.mrb[0].mxu0
      %v2981 = vadd.f32 0.0, %v2980
      %v2982 = vpop.f32.mrb[0].mxu0
      %v2983 = vpop.f32.mrb[0].mxu0
      %v2984 = vadd.f32 0.0, %v2983
      %v2985 = vpop.f32.mrb[0].mxu0
      %2986 = vmatprep.mubr.bf16.mxu0 0
      %2987 = vmatmul.mubr.bf16.gmra.mrb[0].mxu0 %v2801
      %v2988 = vpop.f32.mrb[0].mxu0
      %v2989 = vadd.f32 0.0, %v2988
      %v2990 = vpop.f32.mrb[0].mxu0
      %v2991 = vpop.f32.mrb[0].mxu0
      %v2992 = vadd.f32 0.0, %v2991
      %v2993 = vpop.f32.mrb[0].mxu0
      %2994 = vmatprep.mubr.bf16.mxu0 0
      %2995 = vmatmul.mubr.bf16.gmra.mrb[0].mxu0 %v2804
      %v2996 = vpop.f32.mrb[0].mxu0
      %v2997 = vadd.f32 0.0, %v2996
      %v2998 = vpop.f32.mrb[0].mxu0
      %v2999 = vpop.f32.mrb[0].mxu0
      %v3000 = vadd.f32 0.0, %v2999
      %v3001 = vpop.f32.mrb[0].mxu0
      %3002 = vmatprep.mubr.bf16.mxu0 0
      %3003 = vmatmul.mubr.bf16.gmra.mrb[0].mxu0 %v2807
      %v3004 = vpop.f32.mrb[0].mxu0
      %v3005 = vadd.f32 0.0, %v3004
      %v3006 = vpop.f32.mrb[0].mxu0
      %v3007 = vpop.f32.mrb[0].mxu0
      %v3008 = vadd.f32 0.0, %v3007
      %v3009 = vpop.f32.mrb[0].mxu0
      %3010 = vmatprep.mubr.bf16.mxu0 0
      %3011 = vmatmul.mubr.bf16.gmra.mrb[0].mxu0 %v2810
      %v3012 = vpop.f32.mrb[0].mxu0
      %v3013 = vadd.f32 0.0, %v3012
      %v3014 = vpop.f32.mrb[0].mxu0
      %v3015 = vpop.f32.mrb[0].mxu0
      %v3016 = vadd.f32 0.0, %v3015
      %v3017 = vpop.f32.mrb[0].mxu0
      %3018 = vmatprep.mubr.bf16.mxu0 0
      %3019 = vmatmul.mubr.bf16.gmra.mrb[0].mxu0 %v2813
      %v3020 = vpop.f32.mrb[0].mxu0
      %v3021 = vadd.f32 0.0, %v3020
      %v3022 = vpop.f32.mrb[0].mxu0
      %v3023 = vpop.f32.mrb[0].mxu0
      %v3024 = vadd.f32 0.0, %v3023
      %v3025 = vpop.f32.mrb[0].mxu0
      %3026 = vmatprep.mubr.bf16.mxu0 0
      %3027 = vmatmul.mubr.bf16.gmra.mrb[0].mxu0 %v2816
      %v3028 = vpop.f32.mrb[0].mxu0
      %v3029 = vadd.f32 0.0, %v3028
      %v3030 = vpop.f32.mrb[0].mxu0
      %v3031 = vpop.f32.mrb[0].mxu0
      %v3032 = vadd.f32 0.0, %v3031
      %v3033 = vpop.f32.mrb[0].mxu0
      %3034 = vmatprep.mubr.bf16.mxu0 0
      %3035 = vmatmul.mubr.bf16.gmra.mrb[0].mxu0 %v2819
      %v3036 = vpop.f32.mrb[0].mxu0
      %v3037 = vadd.f32 0.0, %v3036
      %v3038 = vpop.f32.mrb[0].mxu0
      %v3039 = vpop.f32.mrb[0].mxu0
      %v3040 = vadd.f32 0.0, %v3039
      %v3041 = vpop.f32.mrb[0].mxu0
      %3042 = vmatprep.mubr.bf16.mxu0 0
      %3043 = vmatmul.mubr.bf16.gmra.mrb[0].mxu0 %v2822
      %v3044 = vpop.f32.mrb[0].mxu0
      %v3045 = vadd.f32 0.0, %v3044
      %v3046 = vpop.f32.mrb[0].mxu0
      %v3047 = vpop.f32.mrb[0].mxu0
      %v3048 = vadd.f32 0.0, %v3047
      %v3049 = vpop.f32.mrb[0].mxu0
      %3050 = vmatprep.mubr.bf16.mxu0 0
      %3051 = vmatmul.mubr.bf16.gmra.mrb[0].mxu0 %v2825
      %v3052 = vpop.f32.mrb[0].mxu0
      %v3053 = vadd.f32 0.0, %v3052
      %v3054 = vpop.f32.mrb[0].mxu0
      %v3055 = vpop.f32.mrb[0].mxu0
      %v3056 = vadd.f32 0.0, %v3055
      %v3057 = vpop.f32.mrb[0].mxu0
      %3058 = vmatprep.mubr.bf16.mxu0 0
      %3059 = vmatmul.mubr.bf16.gmra.mrb[0].mxu0 %v2828
      %v3060 = vpop.f32.mrb[0].mxu0
      %v3061 = vadd.f32 0.0, %v3060
      %v3062 = vpop.f32.mrb[0].mxu0
      %v3063 = vpop.f32.mrb[0].mxu0
      %v3064 = vadd.f32 0.0, %v3063
      %v3065 = vpop.f32.mrb[0].mxu0
      %3066 = vmatprep.mubr.bf16.mxu0 0
      %3067 = vmatmul.mubr.bf16.gmra.mrb[0].mxu0 %v2831
      %v3068 = vpop.f32.mrb[0].mxu0
      %v3069 = vadd.f32 0.0, %v3068
      %v3070 = vpop.f32.mrb[0].mxu0
      %v3071 = vpop.f32.mrb[0].mxu0
      %v3072 = vadd.f32 0.0, %v3071
      %v3073 = vpop.f32.mrb[0].mxu0
      %3074 = vmatprep.mubr.bf16.mxu0 0
      %3075 = vmatmul.mubr.bf16.gmra.mrb[0].mxu0 %v2834
      %v3076 = vpop.f32.mrb[0].mxu0
      %v3077 = vadd.f32 0.0, %v3076
      %v3078 = vpop.f32.mrb[0].mxu0
      %v3079 = vpop.f32.mrb[0].mxu0
      %v3080 = vadd.f32 0.0, %v3079
      %v3081 = vpop.f32.mrb[0].mxu0
      %3082 = vmatprep.mubr.bf16.mxu0 0
      %3083 = vmatmul.mubr.bf16.gmra.mrb[0].mxu0 %v2837
      %v3084 = vpop.f32.mrb[0].mxu0
      %v3085 = vadd.f32 0.0, %v3084
      %v3086 = vpop.f32.mrb[0].mxu0
      %v3087 = vpop.f32.mrb[0].mxu0
      %v3088 = vadd.f32 0.0, %v3087
      %v3089 = vpop.f32.mrb[0].mxu0
      %3090 = vmatprep.mubr.bf16.mxu0 0
      %3091 = vmatmul.mubr.bf16.gmra.mrb[0].mxu0 %v2840
      %v3092 = vpop.f32.mrb[0].mxu0
      %v3093 = vadd.f32 0.0, %v3092
      %v3094 = vpop.f32.mrb[0].mxu0
      %v3095 = vpop.f32.mrb[0].mxu0
      %v3096 = vadd.f32 0.0, %v3095
      %v3097 = vpop.f32.mrb[0].mxu0
      %3098 = vmatprep.mubr.bf16.mxu0 0
      %3099 = vmatmul.mubr.bf16.gmra.mrb[0].mxu0 %v2843
      %v3100 = vpop.f32.mrb[0].mxu0
      %v3101 = vadd.f32 0.0, %v3100
      %v3102 = vpop.f32.mrb[0].mxu0
      %v3103 = vpop.f32.mrb[0].mxu0
      %v3104 = vadd.f32 0.0, %v3103
      %v3105 = vpop.f32.mrb[0].mxu0
      %3106 = vmatprep.mubr.bf16.mxu0 0
      %3107 = vmatmul.mubr.bf16.gmra.mrb[0].mxu0 %v2846
      %v3108 = vpop.f32.mrb[0].mxu0
      %v3109 = vadd.f32 0.0, %v3108
      %v3110 = vpop.f32.mrb[0].mxu0
      %v3111 = vpop.f32.mrb[0].mxu0
      %v3112 = vadd.f32 0.0, %v3111
      %v3113 = vpop.f32.mrb[0].mxu0
      %3114 = vmatprep.mubr.bf16.mxu0 0
      %3115 = vmatmul.mubr.bf16.gmra.mrb[0].mxu0 %v2849
      %v3116 = vpop.f32.mrb[0].mxu0
      %v3117 = vadd.f32 0.0, %v3116
      %v3118 = vpop.f32.mrb[0].mxu0
      %v3119 = vpop.f32.mrb[0].mxu0
      %v3120 = vadd.f32 0.0, %v3119
      %v3121 = vpop.f32.mrb[0].mxu0
      %3122 = vmatprep.mubr.bf16.mxu0 0
      %3123 = vmatmul.mubr.bf16.gmra.mrb[0].mxu0 %v2852
      %v3124 = vpop.f32.mrb[0].mxu0
      %v3125 = vadd.f32 0.0, %v3124
      %v3126 = vpop.f32.mrb[0].mxu0
      %v3127 = vpop.f32.mrb[0].mxu0
      %v3128 = vadd.f32 0.0, %v3127
      %v3129 = vpop.f32.mrb[0].mxu0
      %3130 = vmatprep.mubr.bf16.mxu0 0
      %3131 = vmatmul.mubr.bf16.gmra.mrb[0].mxu0 %v2855
      %v3132 = vpop.f32.mrb[0].mxu0
      %v3133 = vadd.f32 0.0, %v3132
      %v3134 = vpop.f32.mrb[0].mxu0
      %v3135 = vpop.f32.mrb[0].mxu0
      %v3136 = vadd.f32 0.0, %v3135
      %v3137 = vpop.f32.mrb[0].mxu0
      %3138 = vmatprep.mubr.bf16.mxu0 0
      %3139 = vmatmul.mubr.bf16.gmra.mrb[0].mxu0 %v2858
      %v3140 = vpop.f32.mrb[0].mxu0
      %v3141 = vadd.f32 0.0, %v3140
      %v3142 = vpop.f32.mrb[0].mxu0
      %v3143 = vpop.f32.mrb[0].mxu0
      %v3144 = vadd.f32 0.0, %v3143
      %v3145 = vpop.f32.mrb[0].mxu0
      %3146 = vmatprep.mubr.bf16.mxu0 0
      %3147 = vmatmul.mubr.bf16.gmra.mrb[0].mxu0 %v2861
      %v3148 = vpop.f32.mrb[0].mxu0
      %v3149 = vadd.f32 0.0, %v3148
      %v3150 = vpop.f32.mrb[0].mxu0
      %v3151 = vpop.f32.mrb[0].mxu0
      %v3152 = vadd.f32 0.0, %v3151
      %v3153 = vpop.f32.mrb[0].mxu0
      %3154 = vdwg.mxu0
      %v3155 = vpack.c.bf16 %v2904, %v2901
      %v3156 = vpack.c.bf16 %v2912, %v2909
      %v3157 = vpack.c.bf16 %v2920, %v2917
      %v3158 = vpack.c.bf16 %v2928, %v2925
      %v3159 = vpack.c.bf16 %v2936, %v2933
      %v3160 = vpack.c.bf16 %v2944, %v2941
      %v3161 = vpack.c.bf16 %v2952, %v2949
      %v3162 = vpack.c.bf16 %v2960, %v2957
      %v3163 = vpack.c.bf16 %v2968, %v2965
      %v3164 = vpack.c.bf16 %v2976, %v2973
      %v3165 = vpack.c.bf16 %v2984, %v2981
      %v3166 = vpack.c.bf16 %v2992, %v2989
      %v3167 = vpack.c.bf16 %v3000, %v2997
      %v3168 = vpack.c.bf16 %v3008, %v3005
      %v3169 = vpack.c.bf16 %v3016, %v3013
      %v3170 = vpack.c.bf16 %v3024, %v3021
      %v3171 = vpack.c.bf16 %v3032, %v3029
      %v3172 = vpack.c.bf16 %v3040, %v3037
      %v3173 = vpack.c.bf16 %v3048, %v3045
      %v3174 = vpack.c.bf16 %v3056, %v3053
      %v3175 = vpack.c.bf16 %v3064, %v3061
      %v3176 = vpack.c.bf16 %v3072, %v3069
      %v3177 = vpack.c.bf16 %v3080, %v3077
      %v3178 = vpack.c.bf16 %v3088, %v3085
      %v3179 = vpack.c.bf16 %v3096, %v3093
      %v3180 = vpack.c.bf16 %v3104, %v3101
      %v3181 = vpack.c.bf16 %v3112, %v3109
      %v3182 = vpack.c.bf16 %v3120, %v3117
      %v3183 = vpack.c.bf16 %v3128, %v3125
      %v3184 = vpack.c.bf16 %v3136, %v3133
      %v3185 = vpack.c.bf16 %v3144, %v3141
      %v3186 = vpack.c.bf16 %v3152, %v3149
      %v3187 = vshrl.u32 %v803, 16
      %v3188 = vpack.i.b16 %v3187, %v3187
      %v3190 = vlaneseq
      %v3191 = vshrl.u32 %v3190, 7
      %v3192 = vsub.s32 0, %v3191
      %v3193 = vrot.slane %v3188, %v3192
      %v3194 = vadd.bf16 %v3155, %v3193
      %v3195 = vadd.bf16 %v3156, %v3193
      %v3196 = vadd.bf16 %v3157, %v3193
      %v3197 = vadd.bf16 %v3158, %v3193
      %v3198 = vadd.bf16 %v3159, %v3193
      %v3199 = vadd.bf16 %v3160, %v3193
      %v3200 = vadd.bf16 %v3161, %v3193
      %v3201 = vadd.bf16 %v3162, %v3193
      %v3202 = vadd.bf16 %v3163, %v3193
      %v3203 = vadd.bf16 %v3164, %v3193
      %v3204 = vadd.bf16 %v3165, %v3193
      %v3205 = vadd.bf16 %v3166, %v3193
      %v3206 = vadd.bf16 %v3167, %v3193
      %v3207 = vadd.bf16 %v3168, %v3193
      %v3208 = vadd.bf16 %v3169, %v3193
      %v3209 = vadd.bf16 %v3170, %v3193
      %v3210 = vadd.bf16 %v3171, %v3193
      %v3211 = vadd.bf16 %v3172, %v3193
      %v3212 = vadd.bf16 %v3173, %v3193
      %v3213 = vadd.bf16 %v3174, %v3193
      %v3214 = vadd.bf16 %v3175, %v3193
      %v3215 = vadd.bf16 %v3176, %v3193
      %v3216 = vadd.bf16 %v3177, %v3193
      %v3217 = vadd.bf16 %v3178, %v3193
      %v3218 = vadd.bf16 %v3179, %v3193
      %v3219 = vadd.bf16 %v3180, %v3193
      %v3220 = vadd.bf16 %v3181, %v3193
      %v3221 = vadd.bf16 %v3182, %v3193
      %v3222 = vadd.bf16 %v3183, %v3193
      %v3223 = vadd.bf16 %v3184, %v3193
      %v3224 = vadd.bf16 %v3185, %v3193
      %v3225 = vadd.bf16 %v3186, %v3193
      %v3226 = vmul.bf16 %v3194, 1045249613
      %v3227 = vmul.bf16 %v3195, 1045249613
      %v3228 = vmul.bf16 %v3196, 1045249613
      %v3229 = vmul.bf16 %v3197, 1045249613
      %v3230 = vmul.bf16 %v3198, 1045249613
      %v3231 = vmul.bf16 %v3199, 1045249613
      %v3232 = vmul.bf16 %v3200, 1045249613
      %v3233 = vmul.bf16 %v3201, 1045249613
      %v3234 = vmul.bf16 %v3202, 1045249613
      %v3235 = vmul.bf16 %v3203, 1045249613
      %v3236 = vmul.bf16 %v3204, 1045249613
      %v3237 = vmul.bf16 %v3205, 1045249613
      %v3238 = vmul.bf16 %v3206, 1045249613
      %v3239 = vmul.bf16 %v3207, 1045249613
      %v3240 = vmul.bf16 %v3208, 1045249613
      %v3241 = vmul.bf16 %v3209, 1045249613
      %v3242 = vmul.bf16 %v3210, 1045249613
      %v3243 = vmul.bf16 %v3211, 1045249613
      %v3244 = vmul.bf16 %v3212, 1045249613
      %v3245 = vmul.bf16 %v3213, 1045249613
      %v3246 = vmul.bf16 %v3214, 1045249613
      %v3247 = vmul.bf16 %v3215, 1045249613
      %v3248 = vmul.bf16 %v3216, 1045249613
      %v3249 = vmul.bf16 %v3217, 1045249613
      %v3250 = vmul.bf16 %v3218, 1045249613
      %v3251 = vmul.bf16 %v3219, 1045249613
      %v3252 = vmul.bf16 %v3220, 1045249613
      %v3253 = vmul.bf16 %v3221, 1045249613
      %v3254 = vmul.bf16 %v3222, 1045249613
      %v3255 = vmul.bf16 %v3223, 1045249613
      %v3256 = vmul.bf16 %v3224, 1045249613
      %v3257 = vmul.bf16 %v3225, 1045249613
      %v3258 = vmax.bf16 %v3194, %v3226
      %v3259 = vmax.bf16 %v3195, %v3227
      %v3260 = vmax.bf16 %v3196, %v3228
      %v3261 = vmax.bf16 %v3197, %v3229
      %v3262 = vmax.bf16 %v3198, %v3230
      %v3263 = vmax.bf16 %v3199, %v3231
      %v3264 = vmax.bf16 %v3200, %v3232
      %v3265 = vmax.bf16 %v3201, %v3233
      %v3266 = vmax.bf16 %v3202, %v3234
      %v3267 = vmax.bf16 %v3203, %v3235
      %v3268 = vmax.bf16 %v3204, %v3236
      %v3269 = vmax.bf16 %v3205, %v3237
      %v3270 = vmax.bf16 %v3206, %v3238
      %v3271 = vmax.bf16 %v3207, %v3239
      %v3272 = vmax.bf16 %v3208, %v3240
      %v3273 = vmax.bf16 %v3209, %v3241
      %v3274 = vmax.bf16 %v3210, %v3242
      %v3275 = vmax.bf16 %v3211, %v3243
      %v3276 = vmax.bf16 %v3212, %v3244
      %v3277 = vmax.bf16 %v3213, %v3245
      %v3278 = vmax.bf16 %v3214, %v3246
      %v3279 = vmax.bf16 %v3215, %v3247
      %v3280 = vmax.bf16 %v3216, %v3248
      %v3281 = vmax.bf16 %v3217, %v3249
      %v3282 = vmax.bf16 %v3218, %v3250
      %v3283 = vmax.bf16 %v3219, %v3251
      %v3284 = vmax.bf16 %v3220, %v3252
      %v3285 = vmax.bf16 %v3221, %v3253
      %v3286 = vmax.bf16 %v3222, %v3254
      %v3287 = vmax.bf16 %v3223, %v3255
      %v3288 = vmax.bf16 %v3224, %v3256
      %v3289 = vmax.bf16 %v3225, %v3257
      %s3290 = scalar_lea.vmem %s2, 192
      %v3291 = vld [vmem:[%s3290] sm:$0xf]
      %v3292 = vld [vmem:[%s3290 + $0x4] sm:$0xf]
      %v3293 = vld [vmem:[%s3290 + $0x8] sm:$0xf]
      %v3294 = vld [vmem:[%s3290 + $0xc] sm:$0xf]
      %v3295 = vld [vmem:[%s3290 + $0x10] sm:$0xf]
      %v3296 = vld [vmem:[%s3290 + $0x14] sm:$0xf]
      %v3297 = vld [vmem:[%s3290 + $0x18] sm:$0xf]
      %v3298 = vld [vmem:[%s3290 + $0x1c] sm:$0xf]
      %v3299 = vld [vmem:[%s3290 + $0x20] sm:$0xf]
      %v3300 = vld [vmem:[%s3290 + $0x24] sm:$0xf]
      %v3301 = vld [vmem:[%s3290 + $0x28] sm:$0xf]
      %v3302 = vld [vmem:[%s3290 + $0x2c] sm:$0xf]
      %v3303 = vld [vmem:[%s3290 + $0x30] sm:$0xf]
      %v3304 = vld [vmem:[%s3290 + $0x34] sm:$0xf]
      %v3305 = vld [vmem:[%s3290 + $0x38] sm:$0xf]
      %v3306 = vld [vmem:[%s3290 + $0x3c] sm:$0xf]
      %v3323 = vunpack.c.l.b16 %v3291
      %v3324 = vunpack.c.l.b16 %v3292
      %v3325 = vunpack.c.l.b16 %v3293
      %v3326 = vunpack.c.l.b16 %v3294
      %v3327 = vunpack.c.l.b16 %v3295
      %v3328 = vunpack.c.l.b16 %v3296
      %v3329 = vunpack.c.l.b16 %v3297
      %v3330 = vunpack.c.l.b16 %v3298
      %v3331 = vunpack.c.l.b16 %v3299
      %v3332 = vunpack.c.l.b16 %v3300
      %v3333 = vunpack.c.l.b16 %v3301
      %v3334 = vunpack.c.l.b16 %v3302
      %v3335 = vunpack.c.l.b16 %v3303
      %v3336 = vunpack.c.l.b16 %v3304
      %v3337 = vunpack.c.l.b16 %v3305
      %v3338 = vunpack.c.l.b16 %v3306
      %v3339 = vpack.c.b16 %v3324, %v3323
      %v3340 = vpack.c.b16 %v3326, %v3325
      %v3341 = vpack.c.b16 %v3328, %v3327
      %v3342 = vpack.c.b16 %v3330, %v3329
      %v3343 = vpack.c.b16 %v3332, %v3331
      %v3344 = vpack.c.b16 %v3334, %v3333
      %v3345 = vpack.c.b16 %v3336, %v3335
      %v3346 = vpack.c.b16 %v3338, %v3337
      %3355 = vmatprep.subr.bf16.mxu0 0
      %3356 = vmatpush1.bf16.msra.mxu0 %v3339
      %3357 = vmatprep.subr.bf16.mxu0 0
      %3358 = vmatpush1.bf16.msra.mxu0 %v3340
      %3359 = vmatprep.subr.bf16.mxu0 0
      %3360 = vmatpush1.bf16.msra.mxu0 %v3341
      %3361 = vmatprep.subr.bf16.mxu0 0
      %3362 = vmatpush1.bf16.msra.mxu0 %v3342
      %3363 = vmatprep.subr.bf16.mxu0 0
      %3364 = vmatpush1.bf16.msra.mxu0 %v3343
      %3365 = vmatprep.subr.bf16.mxu0 0
      %3366 = vmatpush1.bf16.msra.mxu0 %v3344
      %3367 = vmatprep.subr.bf16.mxu0 0
      %3368 = vmatpush1.bf16.msra.mxu0 %v3345
      %3369 = vmatprep.subr.bf16.mxu0 0
      %3370 = vmatpush1.bf16.msra.mxu0 %v3346
      %3371 = vmatprep.subr.bf16.mxu0 0
      %3372 = vmatpush1.bf16.msra.mxu0 0
      %3373 = vmatprep.subr.bf16.mxu0 0
      %3374 = vmatpush1.bf16.msra.mxu0 0
      %3375 = vmatprep.subr.bf16.mxu0 0
      %3376 = vmatpush1.bf16.msra.mxu0 0
      %3377 = vmatprep.subr.bf16.mxu0 0
      %3378 = vmatpush1.bf16.msra.mxu0 0
      %3379 = vmatprep.subr.bf16.mxu0 0
      %3380 = vmatpush1.bf16.msra.mxu0 0
      %3381 = vmatprep.subr.bf16.mxu0 0
      %3382 = vmatpush1.bf16.msra.mxu0 0
      %3383 = vmatprep.subr.bf16.mxu0 0
      %3384 = vmatpush1.bf16.msra.mxu0 0
      %3385 = vmatprep.subr.bf16.mxu0 0
      %3386 = vmatpush1.bf16.msra.mxu0 0
      %3387 = vmatprep.mubr.bf16.mxu0 0
      %3388 = vmatmul.mubr.bf16.gmra.mrb[0].mxu0 %v3258
      %v3389 = vpop.f32.mrb[0].mxu0
      %v3390 = vadd.f32 0.0, %v3389
      %v3391 = vpop.f32.mrb[0].mxu0
      %v3392 = vpop.f32.mrb[0].mxu0
      %v3393 = vadd.f32 0.0, %v3392
      %v3394 = vpop.f32.mrb[0].mxu0
      %3395 = vmatprep.mubr.bf16.mxu0 0
      %3396 = vmatmul.mubr.bf16.gmra.mrb[0].mxu0 %v3259
      %v3397 = vpop.f32.mrb[0].mxu0
      %v3398 = vadd.f32 0.0, %v3397
      %v3399 = vpop.f32.mrb[0].mxu0
      %v3400 = vpop.f32.mrb[0].mxu0
      %v3401 = vadd.f32 0.0, %v3400
      %v3402 = vpop.f32.mrb[0].mxu0
      %3403 = vmatprep.mubr.bf16.mxu0 0
      %3404 = vmatmul.mubr.bf16.gmra.mrb[0].mxu0 %v3260
      %v3405 = vpop.f32.mrb[0].mxu0
      %v3406 = vadd.f32 0.0, %v3405
      %v3407 = vpop.f32.mrb[0].mxu0
      %v3408 = vpop.f32.mrb[0].mxu0
      %v3409 = vadd.f32 0.0, %v3408
      %v3410 = vpop.f32.mrb[0].mxu0
      %3411 = vmatprep.mubr.bf16.mxu0 0
      %3412 = vmatmul.mubr.bf16.gmra.mrb[0].mxu0 %v3261
      %v3413 = vpop.f32.mrb[0].mxu0
      %v3414 = vadd.f32 0.0, %v3413
      %v3415 = vpop.f32.mrb[0].mxu0
      %v3416 = vpop.f32.mrb[0].mxu0
      %v3417 = vadd.f32 0.0, %v3416
      %v3418 = vpop.f32.mrb[0].mxu0
      %3419 = vmatprep.mubr.bf16.mxu0 0
      %3420 = vmatmul.mubr.bf16.gmra.mrb[0].mxu0 %v3262
      %v3421 = vpop.f32.mrb[0].mxu0
      %v3422 = vadd.f32 0.0, %v3421
      %v3423 = vpop.f32.mrb[0].mxu0
      %v3424 = vpop.f32.mrb[0].mxu0
      %v3425 = vadd.f32 0.0, %v3424
      %v3426 = vpop.f32.mrb[0].mxu0
      %3427 = vmatprep.mubr.bf16.mxu0 0
      %3428 = vmatmul.mubr.bf16.gmra.mrb[0].mxu0 %v3263
      %v3429 = vpop.f32.mrb[0].mxu0
      %v3430 = vadd.f32 0.0, %v3429
      %v3431 = vpop.f32.mrb[0].mxu0
      %v3432 = vpop.f32.mrb[0].mxu0
      %v3433 = vadd.f32 0.0, %v3432
      %v3434 = vpop.f32.mrb[0].mxu0
      %3435 = vmatprep.mubr.bf16.mxu0 0
      %3436 = vmatmul.mubr.bf16.gmra.mrb[0].mxu0 %v3264
      %v3437 = vpop.f32.mrb[0].mxu0
      %v3438 = vadd.f32 0.0, %v3437
      %v3439 = vpop.f32.mrb[0].mxu0
      %v3440 = vpop.f32.mrb[0].mxu0
      %v3441 = vadd.f32 0.0, %v3440
      %v3442 = vpop.f32.mrb[0].mxu0
      %3443 = vmatprep.mubr.bf16.mxu0 0
      %3444 = vmatmul.mubr.bf16.gmra.mrb[0].mxu0 %v3265
      %v3445 = vpop.f32.mrb[0].mxu0
      %v3446 = vadd.f32 0.0, %v3445
      %v3447 = vpop.f32.mrb[0].mxu0
      %v3448 = vpop.f32.mrb[0].mxu0
      %v3449 = vadd.f32 0.0, %v3448
      %v3450 = vpop.f32.mrb[0].mxu0
      %3451 = vmatprep.mubr.bf16.mxu0 0
      %3452 = vmatmul.mubr.bf16.gmra.mrb[0].mxu0 %v3266
      %v3453 = vpop.f32.mrb[0].mxu0
      %v3454 = vadd.f32 0.0, %v3453
      %v3455 = vpop.f32.mrb[0].mxu0
      %v3456 = vpop.f32.mrb[0].mxu0
      %v3457 = vadd.f32 0.0, %v3456
      %v3458 = vpop.f32.mrb[0].mxu0
      %3459 = vmatprep.mubr.bf16.mxu0 0
      %3460 = vmatmul.mubr.bf16.gmra.mrb[0].mxu0 %v3267
      %v3461 = vpop.f32.mrb[0].mxu0
      %v3462 = vadd.f32 0.0, %v3461
      %v3463 = vpop.f32.mrb[0].mxu0
      %v3464 = vpop.f32.mrb[0].mxu0
      %v3465 = vadd.f32 0.0, %v3464
      %v3466 = vpop.f32.mrb[0].mxu0
      %3467 = vmatprep.mubr.bf16.mxu0 0
      %3468 = vmatmul.mubr.bf16.gmra.mrb[0].mxu0 %v3268
      %v3469 = vpop.f32.mrb[0].mxu0
      %v3470 = vadd.f32 0.0, %v3469
      %v3471 = vpop.f32.mrb[0].mxu0
      %v3472 = vpop.f32.mrb[0].mxu0
      %v3473 = vadd.f32 0.0, %v3472
      %v3474 = vpop.f32.mrb[0].mxu0
      %3475 = vmatprep.mubr.bf16.mxu0 0
      %3476 = vmatmul.mubr.bf16.gmra.mrb[0].mxu0 %v3269
      %v3477 = vpop.f32.mrb[0].mxu0
      %v3478 = vadd.f32 0.0, %v3477
      %v3479 = vpop.f32.mrb[0].mxu0
      %v3480 = vpop.f32.mrb[0].mxu0
      %v3481 = vadd.f32 0.0, %v3480
      %v3482 = vpop.f32.mrb[0].mxu0
      %3483 = vmatprep.mubr.bf16.mxu0 0
      %3484 = vmatmul.mubr.bf16.gmra.mrb[0].mxu0 %v3270
      %v3485 = vpop.f32.mrb[0].mxu0
      %v3486 = vadd.f32 0.0, %v3485
      %v3487 = vpop.f32.mrb[0].mxu0
      %v3488 = vpop.f32.mrb[0].mxu0
      %v3489 = vadd.f32 0.0, %v3488
      %v3490 = vpop.f32.mrb[0].mxu0
      %3491 = vmatprep.mubr.bf16.mxu0 0
      %3492 = vmatmul.mubr.bf16.gmra.mrb[0].mxu0 %v3271
      %v3493 = vpop.f32.mrb[0].mxu0
      %v3494 = vadd.f32 0.0, %v3493
      %v3495 = vpop.f32.mrb[0].mxu0
      %v3496 = vpop.f32.mrb[0].mxu0
      %v3497 = vadd.f32 0.0, %v3496
      %v3498 = vpop.f32.mrb[0].mxu0
      %3499 = vmatprep.mubr.bf16.mxu0 0
      %3500 = vmatmul.mubr.bf16.gmra.mrb[0].mxu0 %v3272
      %v3501 = vpop.f32.mrb[0].mxu0
      %v3502 = vadd.f32 0.0, %v3501
      %v3503 = vpop.f32.mrb[0].mxu0
      %v3504 = vpop.f32.mrb[0].mxu0
      %v3505 = vadd.f32 0.0, %v3504
      %v3506 = vpop.f32.mrb[0].mxu0
      %3507 = vmatprep.mubr.bf16.mxu0 0
      %3508 = vmatmul.mubr.bf16.gmra.mrb[0].mxu0 %v3273
      %v3509 = vpop.f32.mrb[0].mxu0
      %v3510 = vadd.f32 0.0, %v3509
      %v3511 = vpop.f32.mrb[0].mxu0
      %v3512 = vpop.f32.mrb[0].mxu0
      %v3513 = vadd.f32 0.0, %v3512
      %v3514 = vpop.f32.mrb[0].mxu0
      %3515 = vmatprep.mubr.bf16.mxu0 0
      %3516 = vmatmul.mubr.bf16.gmra.mrb[0].mxu0 %v3274
      %v3517 = vpop.f32.mrb[0].mxu0
      %v3518 = vadd.f32 0.0, %v3517
      %v3519 = vpop.f32.mrb[0].mxu0
      %v3520 = vpop.f32.mrb[0].mxu0
      %v3521 = vadd.f32 0.0, %v3520
      %v3522 = vpop.f32.mrb[0].mxu0
      %3523 = vmatprep.mubr.bf16.mxu0 0
      %3524 = vmatmul.mubr.bf16.gmra.mrb[0].mxu0 %v3275
      %v3525 = vpop.f32.mrb[0].mxu0
      %v3526 = vadd.f32 0.0, %v3525
      %v3527 = vpop.f32.mrb[0].mxu0
      %v3528 = vpop.f32.mrb[0].mxu0
      %v3529 = vadd.f32 0.0, %v3528
      %v3530 = vpop.f32.mrb[0].mxu0
      %3531 = vmatprep.mubr.bf16.mxu0 0
      %3532 = vmatmul.mubr.bf16.gmra.mrb[0].mxu0 %v3276
      %v3533 = vpop.f32.mrb[0].mxu0
      %v3534 = vadd.f32 0.0, %v3533
      %v3535 = vpop.f32.mrb[0].mxu0
      %v3536 = vpop.f32.mrb[0].mxu0
      %v3537 = vadd.f32 0.0, %v3536
      %v3538 = vpop.f32.mrb[0].mxu0
      %3539 = vmatprep.mubr.bf16.mxu0 0
      %3540 = vmatmul.mubr.bf16.gmra.mrb[0].mxu0 %v3277
      %v3541 = vpop.f32.mrb[0].mxu0
      %v3542 = vadd.f32 0.0, %v3541
      %v3543 = vpop.f32.mrb[0].mxu0
      %v3544 = vpop.f32.mrb[0].mxu0
      %v3545 = vadd.f32 0.0, %v3544
      %v3546 = vpop.f32.mrb[0].mxu0
      %3547 = vmatprep.mubr.bf16.mxu0 0
      %3548 = vmatmul.mubr.bf16.gmra.mrb[0].mxu0 %v3278
      %v3549 = vpop.f32.mrb[0].mxu0
      %v3550 = vadd.f32 0.0, %v3549
      %v3551 = vpop.f32.mrb[0].mxu0
      %v3552 = vpop.f32.mrb[0].mxu0
      %v3553 = vadd.f32 0.0, %v3552
      %v3554 = vpop.f32.mrb[0].mxu0
      %3555 = vmatprep.mubr.bf16.mxu0 0
      %3556 = vmatmul.mubr.bf16.gmra.mrb[0].mxu0 %v3279
      %v3557 = vpop.f32.mrb[0].mxu0
      %v3558 = vadd.f32 0.0, %v3557
      %v3559 = vpop.f32.mrb[0].mxu0
      %v3560 = vpop.f32.mrb[0].mxu0
      %v3561 = vadd.f32 0.0, %v3560
      %v3562 = vpop.f32.mrb[0].mxu0
      %3563 = vmatprep.mubr.bf16.mxu0 0
      %3564 = vmatmul.mubr.bf16.gmra.mrb[0].mxu0 %v3280
      %v3565 = vpop.f32.mrb[0].mxu0
      %v3566 = vadd.f32 0.0, %v3565
      %v3567 = vpop.f32.mrb[0].mxu0
      %v3568 = vpop.f32.mrb[0].mxu0
      %v3569 = vadd.f32 0.0, %v3568
      %v3570 = vpop.f32.mrb[0].mxu0
      %3571 = vmatprep.mubr.bf16.mxu0 0
      %3572 = vmatmul.mubr.bf16.gmra.mrb[0].mxu0 %v3281
      %v3573 = vpop.f32.mrb[0].mxu0
      %v3574 = vadd.f32 0.0, %v3573
      %v3575 = vpop.f32.mrb[0].mxu0
      %v3576 = vpop.f32.mrb[0].mxu0
      %v3577 = vadd.f32 0.0, %v3576
      %v3578 = vpop.f32.mrb[0].mxu0
      %3579 = vmatprep.mubr.bf16.mxu0 0
      %3580 = vmatmul.mubr.bf16.gmra.mrb[0].mxu0 %v3282
      %v3581 = vpop.f32.mrb[0].mxu0
      %v3582 = vadd.f32 0.0, %v3581
      %v3583 = vpop.f32.mrb[0].mxu0
      %v3584 = vpop.f32.mrb[0].mxu0
      %v3585 = vadd.f32 0.0, %v3584
      %v3586 = vpop.f32.mrb[0].mxu0
      %3587 = vmatprep.mubr.bf16.mxu0 0
      %3588 = vmatmul.mubr.bf16.gmra.mrb[0].mxu0 %v3283
      %v3589 = vpop.f32.mrb[0].mxu0
      %v3590 = vadd.f32 0.0, %v3589
      %v3591 = vpop.f32.mrb[0].mxu0
      %v3592 = vpop.f32.mrb[0].mxu0
      %v3593 = vadd.f32 0.0, %v3592
      %v3594 = vpop.f32.mrb[0].mxu0
      %3595 = vmatprep.mubr.bf16.mxu0 0
      %3596 = vmatmul.mubr.bf16.gmra.mrb[0].mxu0 %v3284
      %v3597 = vpop.f32.mrb[0].mxu0
      %v3598 = vadd.f32 0.0, %v3597
      %v3599 = vpop.f32.mrb[0].mxu0
      %v3600 = vpop.f32.mrb[0].mxu0
      %v3601 = vadd.f32 0.0, %v3600
      %v3602 = vpop.f32.mrb[0].mxu0
      %3603 = vmatprep.mubr.bf16.mxu0 0
      %3604 = vmatmul.mubr.bf16.gmra.mrb[0].mxu0 %v3285
      %v3605 = vpop.f32.mrb[0].mxu0
      %v3606 = vadd.f32 0.0, %v3605
      %v3607 = vpop.f32.mrb[0].mxu0
      %v3608 = vpop.f32.mrb[0].mxu0
      %v3609 = vadd.f32 0.0, %v3608
      %v3610 = vpop.f32.mrb[0].mxu0
      %3611 = vmatprep.mubr.bf16.mxu0 0
      %3612 = vmatmul.mubr.bf16.gmra.mrb[0].mxu0 %v3286
      %v3613 = vpop.f32.mrb[0].mxu0
      %v3614 = vadd.f32 0.0, %v3613
      %v3615 = vpop.f32.mrb[0].mxu0
      %v3616 = vpop.f32.mrb[0].mxu0
      %v3617 = vadd.f32 0.0, %v3616
      %v3618 = vpop.f32.mrb[0].mxu0
      %3619 = vmatprep.mubr.bf16.mxu0 0
      %3620 = vmatmul.mubr.bf16.gmra.mrb[0].mxu0 %v3287
      %v3621 = vpop.f32.mrb[0].mxu0
      %v3622 = vadd.f32 0.0, %v3621
      %v3623 = vpop.f32.mrb[0].mxu0
      %v3624 = vpop.f32.mrb[0].mxu0
      %v3625 = vadd.f32 0.0, %v3624
      %v3626 = vpop.f32.mrb[0].mxu0
      %3627 = vmatprep.mubr.bf16.mxu0 0
      %3628 = vmatmul.mubr.bf16.gmra.mrb[0].mxu0 %v3288
      %v3629 = vpop.f32.mrb[0].mxu0
      %v3630 = vadd.f32 0.0, %v3629
      %v3631 = vpop.f32.mrb[0].mxu0
      %v3632 = vpop.f32.mrb[0].mxu0
      %v3633 = vadd.f32 0.0, %v3632
      %v3634 = vpop.f32.mrb[0].mxu0
      %3635 = vmatprep.mubr.bf16.mxu0 0
      %3636 = vmatmul.mubr.bf16.gmra.mrb[0].mxu0 %v3289
      %v3637 = vpop.f32.mrb[0].mxu0
      %v3638 = vadd.f32 0.0, %v3637
      %v3639 = vpop.f32.mrb[0].mxu0
      %v3640 = vpop.f32.mrb[0].mxu0
      %v3641 = vadd.f32 0.0, %v3640
      %v3642 = vpop.f32.mrb[0].mxu0
      %3643 = vdwg.mxu0
      %v3644 = vpack.c.bf16 %v3393, %v3390
      %v3645 = vpack.c.bf16 %v3401, %v3398
      %v3646 = vpack.c.bf16 %v3409, %v3406
      %v3647 = vpack.c.bf16 %v3417, %v3414
      %v3648 = vpack.c.bf16 %v3425, %v3422
      %v3649 = vpack.c.bf16 %v3433, %v3430
      %v3650 = vpack.c.bf16 %v3441, %v3438
      %v3651 = vpack.c.bf16 %v3449, %v3446
      %v3652 = vpack.c.bf16 %v3457, %v3454
      %v3653 = vpack.c.bf16 %v3465, %v3462
      %v3654 = vpack.c.bf16 %v3473, %v3470
      %v3655 = vpack.c.bf16 %v3481, %v3478
      %v3656 = vpack.c.bf16 %v3489, %v3486
      %v3657 = vpack.c.bf16 %v3497, %v3494
      %v3658 = vpack.c.bf16 %v3505, %v3502
      %v3659 = vpack.c.bf16 %v3513, %v3510
      %v3660 = vpack.c.bf16 %v3521, %v3518
      %v3661 = vpack.c.bf16 %v3529, %v3526
      %v3662 = vpack.c.bf16 %v3537, %v3534
      %v3663 = vpack.c.bf16 %v3545, %v3542
      %v3664 = vpack.c.bf16 %v3553, %v3550
      %v3665 = vpack.c.bf16 %v3561, %v3558
      %v3666 = vpack.c.bf16 %v3569, %v3566
      %v3667 = vpack.c.bf16 %v3577, %v3574
      %v3668 = vpack.c.bf16 %v3585, %v3582
      %v3669 = vpack.c.bf16 %v3593, %v3590
      %v3670 = vpack.c.bf16 %v3601, %v3598
      %v3671 = vpack.c.bf16 %v3609, %v3606
      %v3672 = vpack.c.bf16 %v3617, %v3614
      %v3673 = vpack.c.bf16 %v3625, %v3622
      %v3674 = vpack.c.bf16 %v3633, %v3630
      %v3675 = vpack.c.bf16 %v3641, %v3638
      %v3676 = vshrl.u32 %v2271, 16
      %v3677 = vpack.i.b16 %v3676, %v3676
      %v3679 = vlaneseq
      %v3680 = vshrl.u32 %v3679, 7
      %v3681 = vsub.s32 1, %v3680
      %v3682 = vrot.slane %v3677, %v3681
      %v3683 = vadd.bf16 %v3644, %v3682
      %v3684 = vadd.bf16 %v3645, %v3682
      %v3685 = vadd.bf16 %v3646, %v3682
      %v3686 = vadd.bf16 %v3647, %v3682
      %v3687 = vadd.bf16 %v3648, %v3682
      %v3688 = vadd.bf16 %v3649, %v3682
      %v3689 = vadd.bf16 %v3650, %v3682
      %v3690 = vadd.bf16 %v3651, %v3682
      %v3691 = vadd.bf16 %v3652, %v3682
      %v3692 = vadd.bf16 %v3653, %v3682
      %v3693 = vadd.bf16 %v3654, %v3682
      %v3694 = vadd.bf16 %v3655, %v3682
      %v3695 = vadd.bf16 %v3656, %v3682
      %v3696 = vadd.bf16 %v3657, %v3682
      %v3697 = vadd.bf16 %v3658, %v3682
      %v3698 = vadd.bf16 %v3659, %v3682
      %v3699 = vadd.bf16 %v3660, %v3682
      %v3700 = vadd.bf16 %v3661, %v3682
      %v3701 = vadd.bf16 %v3662, %v3682
      %v3702 = vadd.bf16 %v3663, %v3682
      %v3703 = vadd.bf16 %v3664, %v3682
      %v3704 = vadd.bf16 %v3665, %v3682
      %v3705 = vadd.bf16 %v3666, %v3682
      %v3706 = vadd.bf16 %v3667, %v3682
      %v3707 = vadd.bf16 %v3668, %v3682
      %v3708 = vadd.bf16 %v3669, %v3682
      %v3709 = vadd.bf16 %v3670, %v3682
      %v3710 = vadd.bf16 %v3671, %v3682
      %v3711 = vadd.bf16 %v3672, %v3682
      %v3712 = vadd.bf16 %v3673, %v3682
      %v3713 = vadd.bf16 %v3674, %v3682
      %v3714 = vadd.bf16 %v3675, %v3682
      %v3715 = vmul.bf16 %v3683, 1045249613
      %v3716 = vmul.bf16 %v3684, 1045249613
      %v3717 = vmul.bf16 %v3685, 1045249613
      %v3718 = vmul.bf16 %v3686, 1045249613
      %v3719 = vmul.bf16 %v3687, 1045249613
      %v3720 = vmul.bf16 %v3688, 1045249613
      %v3721 = vmul.bf16 %v3689, 1045249613
      %v3722 = vmul.bf16 %v3690, 1045249613
      %v3723 = vmul.bf16 %v3691, 1045249613
      %v3724 = vmul.bf16 %v3692, 1045249613
      %v3725 = vmul.bf16 %v3693, 1045249613
      %v3726 = vmul.bf16 %v3694, 1045249613
      %v3727 = vmul.bf16 %v3695, 1045249613
      %v3728 = vmul.bf16 %v3696, 1045249613
      %v3729 = vmul.bf16 %v3697, 1045249613
      %v3730 = vmul.bf16 %v3698, 1045249613
      %v3731 = vmul.bf16 %v3699, 1045249613
      %v3732 = vmul.bf16 %v3700, 1045249613
      %v3733 = vmul.bf16 %v3701, 1045249613
      %v3734 = vmul.bf16 %v3702, 1045249613
      %v3735 = vmul.bf16 %v3703, 1045249613
      %v3736 = vmul.bf16 %v3704, 1045249613
      %v3737 = vmul.bf16 %v3705, 1045249613
      %v3738 = vmul.bf16 %v3706, 1045249613
      %v3739 = vmul.bf16 %v3707, 1045249613
      %v3740 = vmul.bf16 %v3708, 1045249613
      %v3741 = vmul.bf16 %v3709, 1045249613
      %v3742 = vmul.bf16 %v3710, 1045249613
      %v3743 = vmul.bf16 %v3711, 1045249613
      %v3744 = vmul.bf16 %v3712, 1045249613
      %v3745 = vmul.bf16 %v3713, 1045249613
      %v3746 = vmul.bf16 %v3714, 1045249613
      %v3747 = vmax.bf16 %v3683, %v3715
      %v3748 = vmax.bf16 %v3684, %v3716
      %v3749 = vmax.bf16 %v3685, %v3717
      %v3750 = vmax.bf16 %v3686, %v3718
      %v3751 = vmax.bf16 %v3687, %v3719
      %v3752 = vmax.bf16 %v3688, %v3720
      %v3753 = vmax.bf16 %v3689, %v3721
      %v3754 = vmax.bf16 %v3690, %v3722
      %v3755 = vmax.bf16 %v3691, %v3723
      %v3756 = vmax.bf16 %v3692, %v3724
      %v3757 = vmax.bf16 %v3693, %v3725
      %v3758 = vmax.bf16 %v3694, %v3726
      %v3759 = vmax.bf16 %v3695, %v3727
      %v3760 = vmax.bf16 %v3696, %v3728
      %v3761 = vmax.bf16 %v3697, %v3729
      %v3762 = vmax.bf16 %v3698, %v3730
      %v3763 = vmax.bf16 %v3699, %v3731
      %v3764 = vmax.bf16 %v3700, %v3732
      %v3765 = vmax.bf16 %v3701, %v3733
      %v3766 = vmax.bf16 %v3702, %v3734
      %v3767 = vmax.bf16 %v3703, %v3735
      %v3768 = vmax.bf16 %v3704, %v3736
      %v3769 = vmax.bf16 %v3705, %v3737
      %v3770 = vmax.bf16 %v3706, %v3738
      %v3771 = vmax.bf16 %v3707, %v3739
      %v3772 = vmax.bf16 %v3708, %v3740
      %v3773 = vmax.bf16 %v3709, %v3741
      %v3774 = vmax.bf16 %v3710, %v3742
      %v3775 = vmax.bf16 %v3711, %v3743
      %v3776 = vmax.bf16 %v3712, %v3744
      %v3777 = vmax.bf16 %v3713, %v3745
      %v3778 = vmax.bf16 %v3714, %v3746
      %s3779 = scalar_lea.vmem %s2, 256
      %v3780 = vld [vmem:[%s3779] sm:$0xf]
      %v3781 = vld [vmem:[%s3779 + $0x4] sm:$0xf]
      %v3782 = vld [vmem:[%s3779 + $0x8] sm:$0xf]
      %v3783 = vld [vmem:[%s3779 + $0xc] sm:$0xf]
      %v3784 = vld [vmem:[%s3779 + $0x10] sm:$0xf]
      %v3785 = vld [vmem:[%s3779 + $0x14] sm:$0xf]
      %v3786 = vld [vmem:[%s3779 + $0x18] sm:$0xf]
      %v3787 = vld [vmem:[%s3779 + $0x1c] sm:$0xf]
      %v3788 = vld [vmem:[%s3779 + $0x20] sm:$0xf]
      %v3789 = vld [vmem:[%s3779 + $0x24] sm:$0xf]
      %v3790 = vld [vmem:[%s3779 + $0x28] sm:$0xf]
      %v3791 = vld [vmem:[%s3779 + $0x2c] sm:$0xf]
      %v3792 = vld [vmem:[%s3779 + $0x30] sm:$0xf]
      %v3793 = vld [vmem:[%s3779 + $0x34] sm:$0xf]
      %v3794 = vld [vmem:[%s3779 + $0x38] sm:$0xf]
      %v3795 = vld [vmem:[%s3779 + $0x3c] sm:$0xf]
      %v3812 = vunpack.c.l.b16 %v3780
      %v3813 = vunpack.c.l.b16 %v3781
      %v3814 = vunpack.c.l.b16 %v3782
      %v3815 = vunpack.c.l.b16 %v3783
      %v3816 = vunpack.c.l.b16 %v3784
      %v3817 = vunpack.c.l.b16 %v3785
      %v3818 = vunpack.c.l.b16 %v3786
      %v3819 = vunpack.c.l.b16 %v3787
      %v3820 = vunpack.c.l.b16 %v3788
      %v3821 = vunpack.c.l.b16 %v3789
      %v3822 = vunpack.c.l.b16 %v3790
      %v3823 = vunpack.c.l.b16 %v3791
      %v3824 = vunpack.c.l.b16 %v3792
      %v3825 = vunpack.c.l.b16 %v3793
      %v3826 = vunpack.c.l.b16 %v3794
      %v3827 = vunpack.c.l.b16 %v3795
      %v3828 = vpack.c.b16 %v3813, %v3812
      %v3829 = vpack.c.b16 %v3815, %v3814
      %v3830 = vpack.c.b16 %v3817, %v3816
      %v3831 = vpack.c.b16 %v3819, %v3818
      %v3832 = vpack.c.b16 %v3821, %v3820
      %v3833 = vpack.c.b16 %v3823, %v3822
      %v3834 = vpack.c.b16 %v3825, %v3824
      %v3835 = vpack.c.b16 %v3827, %v3826
      %3844 = vmatprep.subr.bf16.mxu0 0
      %3845 = vmatpush1.bf16.msra.mxu0 %v3828
      %3846 = vmatprep.subr.bf16.mxu0 0
      %3847 = vmatpush1.bf16.msra.mxu0 %v3829
      %3848 = vmatprep.subr.bf16.mxu0 0
      %3849 = vmatpush1.bf16.msra.mxu0 %v3830
      %3850 = vmatprep.subr.bf16.mxu0 0
      %3851 = vmatpush1.bf16.msra.mxu0 %v3831
      %3852 = vmatprep.subr.bf16.mxu0 0
      %3853 = vmatpush1.bf16.msra.mxu0 %v3832
      %3854 = vmatprep.subr.bf16.mxu0 0
      %3855 = vmatpush1.bf16.msra.mxu0 %v3833
      %3856 = vmatprep.subr.bf16.mxu0 0
      %3857 = vmatpush1.bf16.msra.mxu0 %v3834
      %3858 = vmatprep.subr.bf16.mxu0 0
      %3859 = vmatpush1.bf16.msra.mxu0 %v3835
      %3860 = vmatprep.subr.bf16.mxu0 0
      %3861 = vmatpush1.bf16.msra.mxu0 0
      %3862 = vmatprep.subr.bf16.mxu0 0
      %3863 = vmatpush1.bf16.msra.mxu0 0
      %3864 = vmatprep.subr.bf16.mxu0 0
      %3865 = vmatpush1.bf16.msra.mxu0 0
      %3866 = vmatprep.subr.bf16.mxu0 0
      %3867 = vmatpush1.bf16.msra.mxu0 0
      %3868 = vmatprep.subr.bf16.mxu0 0
      %3869 = vmatpush1.bf16.msra.mxu0 0
      %3870 = vmatprep.subr.bf16.mxu0 0
      %3871 = vmatpush1.bf16.msra.mxu0 0
      %3872 = vmatprep.subr.bf16.mxu0 0
      %3873 = vmatpush1.bf16.msra.mxu0 0
      %3874 = vmatprep.subr.bf16.mxu0 0
      %3875 = vmatpush1.bf16.msra.mxu0 0
      %3876 = vmatprep.mubr.bf16.mxu0 0
      %3877 = vmatmul.mubr.bf16.gmra.mrb[0].mxu0 %v3747
      %v3878 = vpop.f32.mrb[0].mxu0
      %v3879 = vadd.f32 0.0, %v3878
      %v3880 = vpop.f32.mrb[0].mxu0
      %v3881 = vpop.f32.mrb[0].mxu0
      %v3882 = vadd.f32 0.0, %v3881
      %v3883 = vpop.f32.mrb[0].mxu0
      %3884 = vmatprep.mubr.bf16.mxu0 0
      %3885 = vmatmul.mubr.bf16.gmra.mrb[0].mxu0 %v3748
      %v3886 = vpop.f32.mrb[0].mxu0
      %v3887 = vadd.f32 0.0, %v3886
      %v3888 = vpop.f32.mrb[0].mxu0
      %v3889 = vpop.f32.mrb[0].mxu0
      %v3890 = vadd.f32 0.0, %v3889
      %v3891 = vpop.f32.mrb[0].mxu0
      %3892 = vmatprep.mubr.bf16.mxu0 0
      %3893 = vmatmul.mubr.bf16.gmra.mrb[0].mxu0 %v3749
      %v3894 = vpop.f32.mrb[0].mxu0
      %v3895 = vadd.f32 0.0, %v3894
      %v3896 = vpop.f32.mrb[0].mxu0
      %v3897 = vpop.f32.mrb[0].mxu0
      %v3898 = vadd.f32 0.0, %v3897
      %v3899 = vpop.f32.mrb[0].mxu0
      %3900 = vmatprep.mubr.bf16.mxu0 0
      %3901 = vmatmul.mubr.bf16.gmra.mrb[0].mxu0 %v3750
      %v3902 = vpop.f32.mrb[0].mxu0
      %v3903 = vadd.f32 0.0, %v3902
      %v3904 = vpop.f32.mrb[0].mxu0
      %v3905 = vpop.f32.mrb[0].mxu0
      %v3906 = vadd.f32 0.0, %v3905
      %v3907 = vpop.f32.mrb[0].mxu0
      %3908 = vmatprep.mubr.bf16.mxu0 0
      %3909 = vmatmul.mubr.bf16.gmra.mrb[0].mxu0 %v3751
      %v3910 = vpop.f32.mrb[0].mxu0
      %v3911 = vadd.f32 0.0, %v3910
      %v3912 = vpop.f32.mrb[0].mxu0
      %v3913 = vpop.f32.mrb[0].mxu0
      %v3914 = vadd.f32 0.0, %v3913
      %v3915 = vpop.f32.mrb[0].mxu0
      %3916 = vmatprep.mubr.bf16.mxu0 0
      %3917 = vmatmul.mubr.bf16.gmra.mrb[0].mxu0 %v3752
      %v3918 = vpop.f32.mrb[0].mxu0
      %v3919 = vadd.f32 0.0, %v3918
      %v3920 = vpop.f32.mrb[0].mxu0
      %v3921 = vpop.f32.mrb[0].mxu0
      %v3922 = vadd.f32 0.0, %v3921
      %v3923 = vpop.f32.mrb[0].mxu0
      %3924 = vmatprep.mubr.bf16.mxu0 0
      %3925 = vmatmul.mubr.bf16.gmra.mrb[0].mxu0 %v3753
      %v3926 = vpop.f32.mrb[0].mxu0
      %v3927 = vadd.f32 0.0, %v3926
      %v3928 = vpop.f32.mrb[0].mxu0
      %v3929 = vpop.f32.mrb[0].mxu0
      %v3930 = vadd.f32 0.0, %v3929
      %v3931 = vpop.f32.mrb[0].mxu0
      %3932 = vmatprep.mubr.bf16.mxu0 0
      %3933 = vmatmul.mubr.bf16.gmra.mrb[0].mxu0 %v3754
      %v3934 = vpop.f32.mrb[0].mxu0
      %v3935 = vadd.f32 0.0, %v3934
      %v3936 = vpop.f32.mrb[0].mxu0
      %v3937 = vpop.f32.mrb[0].mxu0
      %v3938 = vadd.f32 0.0, %v3937
      %v3939 = vpop.f32.mrb[0].mxu0
      %3940 = vmatprep.mubr.bf16.mxu0 0
      %3941 = vmatmul.mubr.bf16.gmra.mrb[0].mxu0 %v3755
      %v3942 = vpop.f32.mrb[0].mxu0
      %v3943 = vadd.f32 0.0, %v3942
      %v3944 = vpop.f32.mrb[0].mxu0
      %v3945 = vpop.f32.mrb[0].mxu0
      %v3946 = vadd.f32 0.0, %v3945
      %v3947 = vpop.f32.mrb[0].mxu0
      %3948 = vmatprep.mubr.bf16.mxu0 0
      %3949 = vmatmul.mubr.bf16.gmra.mrb[0].mxu0 %v3756
      %v3950 = vpop.f32.mrb[0].mxu0
      %v3951 = vadd.f32 0.0, %v3950
      %v3952 = vpop.f32.mrb[0].mxu0
      %v3953 = vpop.f32.mrb[0].mxu0
      %v3954 = vadd.f32 0.0, %v3953
      %v3955 = vpop.f32.mrb[0].mxu0
      %3956 = vmatprep.mubr.bf16.mxu0 0
      %3957 = vmatmul.mubr.bf16.gmra.mrb[0].mxu0 %v3757
      %v3958 = vpop.f32.mrb[0].mxu0
      %v3959 = vadd.f32 0.0, %v3958
      %v3960 = vpop.f32.mrb[0].mxu0
      %v3961 = vpop.f32.mrb[0].mxu0
      %v3962 = vadd.f32 0.0, %v3961
      %v3963 = vpop.f32.mrb[0].mxu0
      %3964 = vmatprep.mubr.bf16.mxu0 0
      %3965 = vmatmul.mubr.bf16.gmra.mrb[0].mxu0 %v3758
      %v3966 = vpop.f32.mrb[0].mxu0
      %v3967 = vadd.f32 0.0, %v3966
      %v3968 = vpop.f32.mrb[0].mxu0
      %v3969 = vpop.f32.mrb[0].mxu0
      %v3970 = vadd.f32 0.0, %v3969
      %v3971 = vpop.f32.mrb[0].mxu0
      %3972 = vmatprep.mubr.bf16.mxu0 0
      %3973 = vmatmul.mubr.bf16.gmra.mrb[0].mxu0 %v3759
      %v3974 = vpop.f32.mrb[0].mxu0
      %v3975 = vadd.f32 0.0, %v3974
      %v3976 = vpop.f32.mrb[0].mxu0
      %v3977 = vpop.f32.mrb[0].mxu0
      %v3978 = vadd.f32 0.0, %v3977
      %v3979 = vpop.f32.mrb[0].mxu0
      %3980 = vmatprep.mubr.bf16.mxu0 0
      %3981 = vmatmul.mubr.bf16.gmra.mrb[0].mxu0 %v3760
      %v3982 = vpop.f32.mrb[0].mxu0
      %v3983 = vadd.f32 0.0, %v3982
      %v3984 = vpop.f32.mrb[0].mxu0
      %v3985 = vpop.f32.mrb[0].mxu0
      %v3986 = vadd.f32 0.0, %v3985
      %v3987 = vpop.f32.mrb[0].mxu0
      %3988 = vmatprep.mubr.bf16.mxu0 0
      %3989 = vmatmul.mubr.bf16.gmra.mrb[0].mxu0 %v3761
      %v3990 = vpop.f32.mrb[0].mxu0
      %v3991 = vadd.f32 0.0, %v3990
      %v3992 = vpop.f32.mrb[0].mxu0
      %v3993 = vpop.f32.mrb[0].mxu0
      %v3994 = vadd.f32 0.0, %v3993
      %v3995 = vpop.f32.mrb[0].mxu0
      %3996 = vmatprep.mubr.bf16.mxu0 0
      %3997 = vmatmul.mubr.bf16.gmra.mrb[0].mxu0 %v3762
      %v3998 = vpop.f32.mrb[0].mxu0
      %v3999 = vadd.f32 0.0, %v3998
      %v4000 = vpop.f32.mrb[0].mxu0
      %v4001 = vpop.f32.mrb[0].mxu0
      %v4002 = vadd.f32 0.0, %v4001
      %v4003 = vpop.f32.mrb[0].mxu0
      %4004 = vmatprep.mubr.bf16.mxu0 0
      %4005 = vmatmul.mubr.bf16.gmra.mrb[0].mxu0 %v3763
      %v4006 = vpop.f32.mrb[0].mxu0
      %v4007 = vadd.f32 0.0, %v4006
      %v4008 = vpop.f32.mrb[0].mxu0
      %v4009 = vpop.f32.mrb[0].mxu0
      %v4010 = vadd.f32 0.0, %v4009
      %v4011 = vpop.f32.mrb[0].mxu0
      %4012 = vmatprep.mubr.bf16.mxu0 0
      %4013 = vmatmul.mubr.bf16.gmra.mrb[0].mxu0 %v3764
      %v4014 = vpop.f32.mrb[0].mxu0
      %v4015 = vadd.f32 0.0, %v4014
      %v4016 = vpop.f32.mrb[0].mxu0
      %v4017 = vpop.f32.mrb[0].mxu0
      %v4018 = vadd.f32 0.0, %v4017
      %v4019 = vpop.f32.mrb[0].mxu0
      %4020 = vmatprep.mubr.bf16.mxu0 0
      %4021 = vmatmul.mubr.bf16.gmra.mrb[0].mxu0 %v3765
      %v4022 = vpop.f32.mrb[0].mxu0
      %v4023 = vadd.f32 0.0, %v4022
      %v4024 = vpop.f32.mrb[0].mxu0
      %v4025 = vpop.f32.mrb[0].mxu0
      %v4026 = vadd.f32 0.0, %v4025
      %v4027 = vpop.f32.mrb[0].mxu0
      %4028 = vmatprep.mubr.bf16.mxu0 0
      %4029 = vmatmul.mubr.bf16.gmra.mrb[0].mxu0 %v3766
      %v4030 = vpop.f32.mrb[0].mxu0
      %v4031 = vadd.f32 0.0, %v4030
      %v4032 = vpop.f32.mrb[0].mxu0
      %v4033 = vpop.f32.mrb[0].mxu0
      %v4034 = vadd.f32 0.0, %v4033
      %v4035 = vpop.f32.mrb[0].mxu0
      %4036 = vmatprep.mubr.bf16.mxu0 0
      %4037 = vmatmul.mubr.bf16.gmra.mrb[0].mxu0 %v3767
      %v4038 = vpop.f32.mrb[0].mxu0
      %v4039 = vadd.f32 0.0, %v4038
      %v4040 = vpop.f32.mrb[0].mxu0
      %v4041 = vpop.f32.mrb[0].mxu0
      %v4042 = vadd.f32 0.0, %v4041
      %v4043 = vpop.f32.mrb[0].mxu0
      %4044 = vmatprep.mubr.bf16.mxu0 0
      %4045 = vmatmul.mubr.bf16.gmra.mrb[0].mxu0 %v3768
      %v4046 = vpop.f32.mrb[0].mxu0
      %v4047 = vadd.f32 0.0, %v4046
      %v4048 = vpop.f32.mrb[0].mxu0
      %v4049 = vpop.f32.mrb[0].mxu0
      %v4050 = vadd.f32 0.0, %v4049
      %v4051 = vpop.f32.mrb[0].mxu0
      %4052 = vmatprep.mubr.bf16.mxu0 0
      %4053 = vmatmul.mubr.bf16.gmra.mrb[0].mxu0 %v3769
      %v4054 = vpop.f32.mrb[0].mxu0
      %v4055 = vadd.f32 0.0, %v4054
      %v4056 = vpop.f32.mrb[0].mxu0
      %v4057 = vpop.f32.mrb[0].mxu0
      %v4058 = vadd.f32 0.0, %v4057
      %v4059 = vpop.f32.mrb[0].mxu0
      %4060 = vmatprep.mubr.bf16.mxu0 0
      %4061 = vmatmul.mubr.bf16.gmra.mrb[0].mxu0 %v3770
      %v4062 = vpop.f32.mrb[0].mxu0
      %v4063 = vadd.f32 0.0, %v4062
      %v4064 = vpop.f32.mrb[0].mxu0
      %v4065 = vpop.f32.mrb[0].mxu0
      %v4066 = vadd.f32 0.0, %v4065
      %v4067 = vpop.f32.mrb[0].mxu0
      %4068 = vmatprep.mubr.bf16.mxu0 0
      %4069 = vmatmul.mubr.bf16.gmra.mrb[0].mxu0 %v3771
      %v4070 = vpop.f32.mrb[0].mxu0
      %v4071 = vadd.f32 0.0, %v4070
      %v4072 = vpop.f32.mrb[0].mxu0
      %v4073 = vpop.f32.mrb[0].mxu0
      %v4074 = vadd.f32 0.0, %v4073
      %v4075 = vpop.f32.mrb[0].mxu0
      %4076 = vmatprep.mubr.bf16.mxu0 0
      %4077 = vmatmul.mubr.bf16.gmra.mrb[0].mxu0 %v3772
      %v4078 = vpop.f32.mrb[0].mxu0
      %v4079 = vadd.f32 0.0, %v4078
      %v4080 = vpop.f32.mrb[0].mxu0
      %v4081 = vpop.f32.mrb[0].mxu0
      %v4082 = vadd.f32 0.0, %v4081
      %v4083 = vpop.f32.mrb[0].mxu0
      %4084 = vmatprep.mubr.bf16.mxu0 0
      %4085 = vmatmul.mubr.bf16.gmra.mrb[0].mxu0 %v3773
      %v4086 = vpop.f32.mrb[0].mxu0
      %v4087 = vadd.f32 0.0, %v4086
      %v4088 = vpop.f32.mrb[0].mxu0
      %v4089 = vpop.f32.mrb[0].mxu0
      %v4090 = vadd.f32 0.0, %v4089
      %v4091 = vpop.f32.mrb[0].mxu0
      %4092 = vmatprep.mubr.bf16.mxu0 0
      %4093 = vmatmul.mubr.bf16.gmra.mrb[0].mxu0 %v3774
      %v4094 = vpop.f32.mrb[0].mxu0
      %v4095 = vadd.f32 0.0, %v4094
      %v4096 = vpop.f32.mrb[0].mxu0
      %v4097 = vpop.f32.mrb[0].mxu0
      %v4098 = vadd.f32 0.0, %v4097
      %v4099 = vpop.f32.mrb[0].mxu0
      %4100 = vmatprep.mubr.bf16.mxu0 0
      %4101 = vmatmul.mubr.bf16.gmra.mrb[0].mxu0 %v3775
      %v4102 = vpop.f32.mrb[0].mxu0
      %v4103 = vadd.f32 0.0, %v4102
      %v4104 = vpop.f32.mrb[0].mxu0
      %v4105 = vpop.f32.mrb[0].mxu0
      %v4106 = vadd.f32 0.0, %v4105
      %v4107 = vpop.f32.mrb[0].mxu0
      %4108 = vmatprep.mubr.bf16.mxu0 0
      %4109 = vmatmul.mubr.bf16.gmra.mrb[0].mxu0 %v3776
      %v4110 = vpop.f32.mrb[0].mxu0
      %v4111 = vadd.f32 0.0, %v4110
      %v4112 = vpop.f32.mrb[0].mxu0
      %v4113 = vpop.f32.mrb[0].mxu0
      %v4114 = vadd.f32 0.0, %v4113
      %v4115 = vpop.f32.mrb[0].mxu0
      %4116 = vmatprep.mubr.bf16.mxu0 0
      %4117 = vmatmul.mubr.bf16.gmra.mrb[0].mxu0 %v3777
      %v4118 = vpop.f32.mrb[0].mxu0
      %v4119 = vadd.f32 0.0, %v4118
      %v4120 = vpop.f32.mrb[0].mxu0
      %v4121 = vpop.f32.mrb[0].mxu0
      %v4122 = vadd.f32 0.0, %v4121
      %v4123 = vpop.f32.mrb[0].mxu0
      %4124 = vmatprep.mubr.bf16.mxu0 0
      %4125 = vmatmul.mubr.bf16.gmra.mrb[0].mxu0 %v3778
      %v4126 = vpop.f32.mrb[0].mxu0
      %v4127 = vadd.f32 0.0, %v4126
      %v4128 = vpop.f32.mrb[0].mxu0
      %v4129 = vpop.f32.mrb[0].mxu0
      %v4130 = vadd.f32 0.0, %v4129
      %v4131 = vpop.f32.mrb[0].mxu0
      %4132 = vdwg.mxu0
      %v4133 = vpack.c.bf16 %v3882, %v3879
      %v4134 = vpack.c.bf16 %v3890, %v3887
      %v4135 = vpack.c.bf16 %v3898, %v3895
      %v4136 = vpack.c.bf16 %v3906, %v3903
      %v4137 = vpack.c.bf16 %v3914, %v3911
      %v4138 = vpack.c.bf16 %v3922, %v3919
      %v4139 = vpack.c.bf16 %v3930, %v3927
      %v4140 = vpack.c.bf16 %v3938, %v3935
      %v4141 = vpack.c.bf16 %v3946, %v3943
      %v4142 = vpack.c.bf16 %v3954, %v3951
      %v4143 = vpack.c.bf16 %v3962, %v3959
      %v4144 = vpack.c.bf16 %v3970, %v3967
      %v4145 = vpack.c.bf16 %v3978, %v3975
      %v4146 = vpack.c.bf16 %v3986, %v3983
      %v4147 = vpack.c.bf16 %v3994, %v3991
      %v4148 = vpack.c.bf16 %v4002, %v3999
      %v4149 = vpack.c.bf16 %v4010, %v4007
      %v4150 = vpack.c.bf16 %v4018, %v4015
      %v4151 = vpack.c.bf16 %v4026, %v4023
      %v4152 = vpack.c.bf16 %v4034, %v4031
      %v4153 = vpack.c.bf16 %v4042, %v4039
      %v4154 = vpack.c.bf16 %v4050, %v4047
      %v4155 = vpack.c.bf16 %v4058, %v4055
      %v4156 = vpack.c.bf16 %v4066, %v4063
      %v4157 = vpack.c.bf16 %v4074, %v4071
      %v4158 = vpack.c.bf16 %v4082, %v4079
      %v4159 = vpack.c.bf16 %v4090, %v4087
      %v4160 = vpack.c.bf16 %v4098, %v4095
      %v4161 = vpack.c.bf16 %v4106, %v4103
      %v4162 = vpack.c.bf16 %v4114, %v4111
      %v4163 = vpack.c.bf16 %v4122, %v4119
      %v4164 = vpack.c.bf16 %v4130, %v4127
      %v4165 = vld [vmem:[%s5] sm:$0x4]
      %v4167 = vpack.i.b16 %v4165, %v4165
      %v4169 = vlaneseq
      %v4170 = vshrl.u32 %v4169, 7
      %v4171 = vsub.s32 2, %v4170
      %v4172 = vrot.slane %v4167, %v4171
      %v4173 = vadd.bf16 %v4133, %v4172
      %v4174 = vadd.bf16 %v4134, %v4172
      %v4175 = vadd.bf16 %v4135, %v4172
      %v4176 = vadd.bf16 %v4136, %v4172
      %v4177 = vadd.bf16 %v4137, %v4172
      %v4178 = vadd.bf16 %v4138, %v4172
      %v4179 = vadd.bf16 %v4139, %v4172
      %v4180 = vadd.bf16 %v4140, %v4172
      %v4181 = vadd.bf16 %v4141, %v4172
      %v4182 = vadd.bf16 %v4142, %v4172
      %v4183 = vadd.bf16 %v4143, %v4172
      %v4184 = vadd.bf16 %v4144, %v4172
      %v4185 = vadd.bf16 %v4145, %v4172
      %v4186 = vadd.bf16 %v4146, %v4172
      %v4187 = vadd.bf16 %v4147, %v4172
      %v4188 = vadd.bf16 %v4148, %v4172
      %v4189 = vadd.bf16 %v4149, %v4172
      %v4190 = vadd.bf16 %v4150, %v4172
      %v4191 = vadd.bf16 %v4151, %v4172
      %v4192 = vadd.bf16 %v4152, %v4172
      %v4193 = vadd.bf16 %v4153, %v4172
      %v4194 = vadd.bf16 %v4154, %v4172
      %v4195 = vadd.bf16 %v4155, %v4172
      %v4196 = vadd.bf16 %v4156, %v4172
      %v4197 = vadd.bf16 %v4157, %v4172
      %v4198 = vadd.bf16 %v4158, %v4172
      %v4199 = vadd.bf16 %v4159, %v4172
      %v4200 = vadd.bf16 %v4160, %v4172
      %v4201 = vadd.bf16 %v4161, %v4172
      %v4202 = vadd.bf16 %v4162, %v4172
      %v4203 = vadd.bf16 %v4163, %v4172
      %v4204 = vadd.bf16 %v4164, %v4172
      %v4205 = vmul.bf16 %v4173, 1045249613
      %v4206 = vmul.bf16 %v4174, 1045249613
      %v4207 = vmul.bf16 %v4175, 1045249613
      %v4208 = vmul.bf16 %v4176, 1045249613
      %v4209 = vmul.bf16 %v4177, 1045249613
      %v4210 = vmul.bf16 %v4178, 1045249613
      %v4211 = vmul.bf16 %v4179, 1045249613
      %v4212 = vmul.bf16 %v4180, 1045249613
      %v4213 = vmul.bf16 %v4181, 1045249613
      %v4214 = vmul.bf16 %v4182, 1045249613
      %v4215 = vmul.bf16 %v4183, 1045249613
      %v4216 = vmul.bf16 %v4184, 1045249613
      %v4217 = vmul.bf16 %v4185, 1045249613
      %v4218 = vmul.bf16 %v4186, 1045249613
      %v4219 = vmul.bf16 %v4187, 1045249613
      %v4220 = vmul.bf16 %v4188, 1045249613
      %v4221 = vmul.bf16 %v4189, 1045249613
      %v4222 = vmul.bf16 %v4190, 1045249613
      %v4223 = vmul.bf16 %v4191, 1045249613
      %v4224 = vmul.bf16 %v4192, 1045249613
      %v4225 = vmul.bf16 %v4193, 1045249613
      %v4226 = vmul.bf16 %v4194, 1045249613
      %v4227 = vmul.bf16 %v4195, 1045249613
      %v4228 = vmul.bf16 %v4196, 1045249613
      %v4229 = vmul.bf16 %v4197, 1045249613
      %v4230 = vmul.bf16 %v4198, 1045249613
      %v4231 = vmul.bf16 %v4199, 1045249613
      %v4232 = vmul.bf16 %v4200, 1045249613
      %v4233 = vmul.bf16 %v4201, 1045249613
      %v4234 = vmul.bf16 %v4202, 1045249613
      %v4235 = vmul.bf16 %v4203, 1045249613
      %v4236 = vmul.bf16 %v4204, 1045249613
      %v4237 = vmax.bf16 %v4173, %v4205
      %v4238 = vmax.bf16 %v4174, %v4206
      %v4239 = vmax.bf16 %v4175, %v4207
      %v4240 = vmax.bf16 %v4176, %v4208
      %v4241 = vmax.bf16 %v4177, %v4209
      %v4242 = vmax.bf16 %v4178, %v4210
      %v4243 = vmax.bf16 %v4179, %v4211
      %v4244 = vmax.bf16 %v4180, %v4212
      %v4245 = vmax.bf16 %v4181, %v4213
      %v4246 = vmax.bf16 %v4182, %v4214
      %v4247 = vmax.bf16 %v4183, %v4215
      %v4248 = vmax.bf16 %v4184, %v4216
      %v4249 = vmax.bf16 %v4185, %v4217
      %v4250 = vmax.bf16 %v4186, %v4218
      %v4251 = vmax.bf16 %v4187, %v4219
      %v4252 = vmax.bf16 %v4188, %v4220
      %v4253 = vmax.bf16 %v4189, %v4221
      %v4254 = vmax.bf16 %v4190, %v4222
      %v4255 = vmax.bf16 %v4191, %v4223
      %v4256 = vmax.bf16 %v4192, %v4224
      %v4257 = vmax.bf16 %v4193, %v4225
      %v4258 = vmax.bf16 %v4194, %v4226
      %v4259 = vmax.bf16 %v4195, %v4227
      %v4260 = vmax.bf16 %v4196, %v4228
      %v4261 = vmax.bf16 %v4197, %v4229
      %v4262 = vmax.bf16 %v4198, %v4230
      %v4263 = vmax.bf16 %v4199, %v4231
      %v4264 = vmax.bf16 %v4200, %v4232
      %v4265 = vmax.bf16 %v4201, %v4233
      %v4266 = vmax.bf16 %v4202, %v4234
      %v4267 = vmax.bf16 %v4203, %v4235
      %v4268 = vmax.bf16 %v4204, %v4236
      %s4269 = scalar_lea.vmem %s2, 320
      %v4270 = vld [vmem:[%s4269] sm:$0xf]
      %v4271 = vld [vmem:[%s4269 + $0x4] sm:$0xf]
      %v4272 = vld [vmem:[%s4269 + $0x8] sm:$0xf]
      %v4273 = vld [vmem:[%s4269 + $0xc] sm:$0xf]
      %v4274 = vld [vmem:[%s4269 + $0x10] sm:$0xf]
      %v4275 = vld [vmem:[%s4269 + $0x14] sm:$0xf]
      %v4276 = vld [vmem:[%s4269 + $0x18] sm:$0xf]
      %v4277 = vld [vmem:[%s4269 + $0x1c] sm:$0xf]
      %v4278 = vld [vmem:[%s4269 + $0x20] sm:$0xf]
      %v4279 = vld [vmem:[%s4269 + $0x24] sm:$0xf]
      %v4280 = vld [vmem:[%s4269 + $0x28] sm:$0xf]
      %v4281 = vld [vmem:[%s4269 + $0x2c] sm:$0xf]
      %v4282 = vld [vmem:[%s4269 + $0x30] sm:$0xf]
      %v4283 = vld [vmem:[%s4269 + $0x34] sm:$0xf]
      %v4284 = vld [vmem:[%s4269 + $0x38] sm:$0xf]
      %v4285 = vld [vmem:[%s4269 + $0x3c] sm:$0xf]
      %v4302 = vunpack.c.l.b16 %v4270
      %v4303 = vunpack.c.l.b16 %v4271
      %v4304 = vunpack.c.l.b16 %v4272
      %v4305 = vunpack.c.l.b16 %v4273
      %v4306 = vunpack.c.l.b16 %v4274
      %v4307 = vunpack.c.l.b16 %v4275
      %v4308 = vunpack.c.l.b16 %v4276
      %v4309 = vunpack.c.l.b16 %v4277
      %v4310 = vunpack.c.l.b16 %v4278
      %v4311 = vunpack.c.l.b16 %v4279
      %v4312 = vunpack.c.l.b16 %v4280
      %v4313 = vunpack.c.l.b16 %v4281
      %v4314 = vunpack.c.l.b16 %v4282
      %v4315 = vunpack.c.l.b16 %v4283
      %v4316 = vunpack.c.l.b16 %v4284
      %v4317 = vunpack.c.l.b16 %v4285
      %v4318 = vpack.c.b16 %v4303, %v4302
      %v4319 = vpack.c.b16 %v4305, %v4304
      %v4320 = vpack.c.b16 %v4307, %v4306
      %v4321 = vpack.c.b16 %v4309, %v4308
      %v4322 = vpack.c.b16 %v4311, %v4310
      %v4323 = vpack.c.b16 %v4313, %v4312
      %v4324 = vpack.c.b16 %v4315, %v4314
      %v4325 = vpack.c.b16 %v4317, %v4316
      %4334 = vmatprep.subr.bf16.mxu0 0
      %4335 = vmatpush1.bf16.msra.mxu0 %v4318
      %4336 = vmatprep.subr.bf16.mxu0 0
      %4337 = vmatpush1.bf16.msra.mxu0 %v4319
      %4338 = vmatprep.subr.bf16.mxu0 0
      %4339 = vmatpush1.bf16.msra.mxu0 %v4320
      %4340 = vmatprep.subr.bf16.mxu0 0
      %4341 = vmatpush1.bf16.msra.mxu0 %v4321
      %4342 = vmatprep.subr.bf16.mxu0 0
      %4343 = vmatpush1.bf16.msra.mxu0 %v4322
      %4344 = vmatprep.subr.bf16.mxu0 0
      %4345 = vmatpush1.bf16.msra.mxu0 %v4323
      %4346 = vmatprep.subr.bf16.mxu0 0
      %4347 = vmatpush1.bf16.msra.mxu0 %v4324
      %4348 = vmatprep.subr.bf16.mxu0 0
      %4349 = vmatpush1.bf16.msra.mxu0 %v4325
      %4350 = vmatprep.subr.bf16.mxu0 0
      %4351 = vmatpush1.bf16.msra.mxu0 0
      %4352 = vmatprep.subr.bf16.mxu0 0
      %4353 = vmatpush1.bf16.msra.mxu0 0
      %4354 = vmatprep.subr.bf16.mxu0 0
      %4355 = vmatpush1.bf16.msra.mxu0 0
      %4356 = vmatprep.subr.bf16.mxu0 0
      %4357 = vmatpush1.bf16.msra.mxu0 0
      %4358 = vmatprep.subr.bf16.mxu0 0
      %4359 = vmatpush1.bf16.msra.mxu0 0
      %4360 = vmatprep.subr.bf16.mxu0 0
      %4361 = vmatpush1.bf16.msra.mxu0 0
      %4362 = vmatprep.subr.bf16.mxu0 0
      %4363 = vmatpush1.bf16.msra.mxu0 0
      %4364 = vmatprep.subr.bf16.mxu0 0
      %4365 = vmatpush1.bf16.msra.mxu0 0
      %4366 = vmatprep.mubr.bf16.mxu0 0
      %4367 = vmatmul.mubr.bf16.gmra.mrb[0].mxu0 %v4237
      %v4368 = vpop.f32.mrb[0].mxu0
      %v4369 = vadd.f32 0.0, %v4368
      %v4370 = vpop.f32.mrb[0].mxu0
      %v4371 = vpop.f32.mrb[0].mxu0
      %v4372 = vadd.f32 0.0, %v4371
      %v4373 = vpop.f32.mrb[0].mxu0
      %4374 = vmatprep.mubr.bf16.mxu0 0
      %4375 = vmatmul.mubr.bf16.gmra.mrb[0].mxu0 %v4238
      %v4376 = vpop.f32.mrb[0].mxu0
      %v4377 = vadd.f32 0.0, %v4376
      %v4378 = vpop.f32.mrb[0].mxu0
      %v4379 = vpop.f32.mrb[0].mxu0
      %v4380 = vadd.f32 0.0, %v4379
      %v4381 = vpop.f32.mrb[0].mxu0
      %4382 = vmatprep.mubr.bf16.mxu0 0
      %4383 = vmatmul.mubr.bf16.gmra.mrb[0].mxu0 %v4239
      %v4384 = vpop.f32.mrb[0].mxu0
      %v4385 = vadd.f32 0.0, %v4384
      %v4386 = vpop.f32.mrb[0].mxu0
      %v4387 = vpop.f32.mrb[0].mxu0
      %v4388 = vadd.f32 0.0, %v4387
      %v4389 = vpop.f32.mrb[0].mxu0
      %4390 = vmatprep.mubr.bf16.mxu0 0
      %4391 = vmatmul.mubr.bf16.gmra.mrb[0].mxu0 %v4240
      %v4392 = vpop.f32.mrb[0].mxu0
      %v4393 = vadd.f32 0.0, %v4392
      %v4394 = vpop.f32.mrb[0].mxu0
      %v4395 = vpop.f32.mrb[0].mxu0
      %v4396 = vadd.f32 0.0, %v4395
      %v4397 = vpop.f32.mrb[0].mxu0
      %4398 = vmatprep.mubr.bf16.mxu0 0
      %4399 = vmatmul.mubr.bf16.gmra.mrb[0].mxu0 %v4241
      %v4400 = vpop.f32.mrb[0].mxu0
      %v4401 = vadd.f32 0.0, %v4400
      %v4402 = vpop.f32.mrb[0].mxu0
      %v4403 = vpop.f32.mrb[0].mxu0
      %v4404 = vadd.f32 0.0, %v4403
      %v4405 = vpop.f32.mrb[0].mxu0
      %4406 = vmatprep.mubr.bf16.mxu0 0
      %4407 = vmatmul.mubr.bf16.gmra.mrb[0].mxu0 %v4242
      %v4408 = vpop.f32.mrb[0].mxu0
      %v4409 = vadd.f32 0.0, %v4408
      %v4410 = vpop.f32.mrb[0].mxu0
      %v4411 = vpop.f32.mrb[0].mxu0
      %v4412 = vadd.f32 0.0, %v4411
      %v4413 = vpop.f32.mrb[0].mxu0
      %4414 = vmatprep.mubr.bf16.mxu0 0
      %4415 = vmatmul.mubr.bf16.gmra.mrb[0].mxu0 %v4243
      %v4416 = vpop.f32.mrb[0].mxu0
      %v4417 = vadd.f32 0.0, %v4416
      %v4418 = vpop.f32.mrb[0].mxu0
      %v4419 = vpop.f32.mrb[0].mxu0
      %v4420 = vadd.f32 0.0, %v4419
      %v4421 = vpop.f32.mrb[0].mxu0
      %4422 = vmatprep.mubr.bf16.mxu0 0
      %4423 = vmatmul.mubr.bf16.gmra.mrb[0].mxu0 %v4244
      %v4424 = vpop.f32.mrb[0].mxu0
      %v4425 = vadd.f32 0.0, %v4424
      %v4426 = vpop.f32.mrb[0].mxu0
      %v4427 = vpop.f32.mrb[0].mxu0
      %v4428 = vadd.f32 0.0, %v4427
      %v4429 = vpop.f32.mrb[0].mxu0
      %4430 = vmatprep.mubr.bf16.mxu0 0
      %4431 = vmatmul.mubr.bf16.gmra.mrb[0].mxu0 %v4245
      %v4432 = vpop.f32.mrb[0].mxu0
      %v4433 = vadd.f32 0.0, %v4432
      %v4434 = vpop.f32.mrb[0].mxu0
      %v4435 = vpop.f32.mrb[0].mxu0
      %v4436 = vadd.f32 0.0, %v4435
      %v4437 = vpop.f32.mrb[0].mxu0
      %4438 = vmatprep.mubr.bf16.mxu0 0
      %4439 = vmatmul.mubr.bf16.gmra.mrb[0].mxu0 %v4246
      %v4440 = vpop.f32.mrb[0].mxu0
      %v4441 = vadd.f32 0.0, %v4440
      %v4442 = vpop.f32.mrb[0].mxu0
      %v4443 = vpop.f32.mrb[0].mxu0
      %v4444 = vadd.f32 0.0, %v4443
      %v4445 = vpop.f32.mrb[0].mxu0
      %4446 = vmatprep.mubr.bf16.mxu0 0
      %4447 = vmatmul.mubr.bf16.gmra.mrb[0].mxu0 %v4247
      %v4448 = vpop.f32.mrb[0].mxu0
      %v4449 = vadd.f32 0.0, %v4448
      %v4450 = vpop.f32.mrb[0].mxu0
      %v4451 = vpop.f32.mrb[0].mxu0
      %v4452 = vadd.f32 0.0, %v4451
      %v4453 = vpop.f32.mrb[0].mxu0
      %4454 = vmatprep.mubr.bf16.mxu0 0
      %4455 = vmatmul.mubr.bf16.gmra.mrb[0].mxu0 %v4248
      %v4456 = vpop.f32.mrb[0].mxu0
      %v4457 = vadd.f32 0.0, %v4456
      %v4458 = vpop.f32.mrb[0].mxu0
      %v4459 = vpop.f32.mrb[0].mxu0
      %v4460 = vadd.f32 0.0, %v4459
      %v4461 = vpop.f32.mrb[0].mxu0
      %4462 = vmatprep.mubr.bf16.mxu0 0
      %4463 = vmatmul.mubr.bf16.gmra.mrb[0].mxu0 %v4249
      %v4464 = vpop.f32.mrb[0].mxu0
      %v4465 = vadd.f32 0.0, %v4464
      %v4466 = vpop.f32.mrb[0].mxu0
      %v4467 = vpop.f32.mrb[0].mxu0
      %v4468 = vadd.f32 0.0, %v4467
      %v4469 = vpop.f32.mrb[0].mxu0
      %4470 = vmatprep.mubr.bf16.mxu0 0
      %4471 = vmatmul.mubr.bf16.gmra.mrb[0].mxu0 %v4250
      %v4472 = vpop.f32.mrb[0].mxu0
      %v4473 = vadd.f32 0.0, %v4472
      %v4474 = vpop.f32.mrb[0].mxu0
      %v4475 = vpop.f32.mrb[0].mxu0
      %v4476 = vadd.f32 0.0, %v4475
      %v4477 = vpop.f32.mrb[0].mxu0
      %4478 = vmatprep.mubr.bf16.mxu0 0
      %4479 = vmatmul.mubr.bf16.gmra.mrb[0].mxu0 %v4251
      %v4480 = vpop.f32.mrb[0].mxu0
      %v4481 = vadd.f32 0.0, %v4480
      %v4482 = vpop.f32.mrb[0].mxu0
      %v4483 = vpop.f32.mrb[0].mxu0
      %v4484 = vadd.f32 0.0, %v4483
      %v4485 = vpop.f32.mrb[0].mxu0
      %4486 = vmatprep.mubr.bf16.mxu0 0
      %4487 = vmatmul.mubr.bf16.gmra.mrb[0].mxu0 %v4252
      %v4488 = vpop.f32.mrb[0].mxu0
      %v4489 = vadd.f32 0.0, %v4488
      %v4490 = vpop.f32.mrb[0].mxu0
      %v4491 = vpop.f32.mrb[0].mxu0
      %v4492 = vadd.f32 0.0, %v4491
      %v4493 = vpop.f32.mrb[0].mxu0
      %4494 = vmatprep.mubr.bf16.mxu0 0
      %4495 = vmatmul.mubr.bf16.gmra.mrb[0].mxu0 %v4253
      %v4496 = vpop.f32.mrb[0].mxu0
      %v4497 = vadd.f32 0.0, %v4496
      %v4498 = vpop.f32.mrb[0].mxu0
      %v4499 = vpop.f32.mrb[0].mxu0
      %v4500 = vadd.f32 0.0, %v4499
      %v4501 = vpop.f32.mrb[0].mxu0
      %4502 = vmatprep.mubr.bf16.mxu0 0
      %4503 = vmatmul.mubr.bf16.gmra.mrb[0].mxu0 %v4254
      %v4504 = vpop.f32.mrb[0].mxu0
      %v4505 = vadd.f32 0.0, %v4504
      %v4506 = vpop.f32.mrb[0].mxu0
      %v4507 = vpop.f32.mrb[0].mxu0
      %v4508 = vadd.f32 0.0, %v4507
      %v4509 = vpop.f32.mrb[0].mxu0
      %4510 = vmatprep.mubr.bf16.mxu0 0
      %4511 = vmatmul.mubr.bf16.gmra.mrb[0].mxu0 %v4255
      %v4512 = vpop.f32.mrb[0].mxu0
      %v4513 = vadd.f32 0.0, %v4512
      %v4514 = vpop.f32.mrb[0].mxu0
      %v4515 = vpop.f32.mrb[0].mxu0
      %v4516 = vadd.f32 0.0, %v4515
      %v4517 = vpop.f32.mrb[0].mxu0
      %4518 = vmatprep.mubr.bf16.mxu0 0
      %4519 = vmatmul.mubr.bf16.gmra.mrb[0].mxu0 %v4256
      %v4520 = vpop.f32.mrb[0].mxu0
      %v4521 = vadd.f32 0.0, %v4520
      %v4522 = vpop.f32.mrb[0].mxu0
      %v4523 = vpop.f32.mrb[0].mxu0
      %v4524 = vadd.f32 0.0, %v4523
      %v4525 = vpop.f32.mrb[0].mxu0
      %4526 = vmatprep.mubr.bf16.mxu0 0
      %4527 = vmatmul.mubr.bf16.gmra.mrb[0].mxu0 %v4257
      %v4528 = vpop.f32.mrb[0].mxu0
      %v4529 = vadd.f32 0.0, %v4528
      %v4530 = vpop.f32.mrb[0].mxu0
      %v4531 = vpop.f32.mrb[0].mxu0
      %v4532 = vadd.f32 0.0, %v4531
      %v4533 = vpop.f32.mrb[0].mxu0
      %4534 = vmatprep.mubr.bf16.mxu0 0
      %4535 = vmatmul.mubr.bf16.gmra.mrb[0].mxu0 %v4258
      %v4536 = vpop.f32.mrb[0].mxu0
      %v4537 = vadd.f32 0.0, %v4536
      %v4538 = vpop.f32.mrb[0].mxu0
      %v4539 = vpop.f32.mrb[0].mxu0
      %v4540 = vadd.f32 0.0, %v4539
      %v4541 = vpop.f32.mrb[0].mxu0
      %4542 = vmatprep.mubr.bf16.mxu0 0
      %4543 = vmatmul.mubr.bf16.gmra.mrb[0].mxu0 %v4259
      %v4544 = vpop.f32.mrb[0].mxu0
      %v4545 = vadd.f32 0.0, %v4544
      %v4546 = vpop.f32.mrb[0].mxu0
      %v4547 = vpop.f32.mrb[0].mxu0
      %v4548 = vadd.f32 0.0, %v4547
      %v4549 = vpop.f32.mrb[0].mxu0
      %4550 = vmatprep.mubr.bf16.mxu0 0
      %4551 = vmatmul.mubr.bf16.gmra.mrb[0].mxu0 %v4260
      %v4552 = vpop.f32.mrb[0].mxu0
      %v4553 = vadd.f32 0.0, %v4552
      %v4554 = vpop.f32.mrb[0].mxu0
      %v4555 = vpop.f32.mrb[0].mxu0
      %v4556 = vadd.f32 0.0, %v4555
      %v4557 = vpop.f32.mrb[0].mxu0
      %4558 = vmatprep.mubr.bf16.mxu0 0
      %4559 = vmatmul.mubr.bf16.gmra.mrb[0].mxu0 %v4261
      %v4560 = vpop.f32.mrb[0].mxu0
      %v4561 = vadd.f32 0.0, %v4560
      %v4562 = vpop.f32.mrb[0].mxu0
      %v4563 = vpop.f32.mrb[0].mxu0
      %v4564 = vadd.f32 0.0, %v4563
      %v4565 = vpop.f32.mrb[0].mxu0
      %4566 = vmatprep.mubr.bf16.mxu0 0
      %4567 = vmatmul.mubr.bf16.gmra.mrb[0].mxu0 %v4262
      %v4568 = vpop.f32.mrb[0].mxu0
      %v4569 = vadd.f32 0.0, %v4568
      %v4570 = vpop.f32.mrb[0].mxu0
      %v4571 = vpop.f32.mrb[0].mxu0
      %v4572 = vadd.f32 0.0, %v4571
      %v4573 = vpop.f32.mrb[0].mxu0
      %4574 = vmatprep.mubr.bf16.mxu0 0
      %4575 = vmatmul.mubr.bf16.gmra.mrb[0].mxu0 %v4263
      %v4576 = vpop.f32.mrb[0].mxu0
      %v4577 = vadd.f32 0.0, %v4576
      %v4578 = vpop.f32.mrb[0].mxu0
      %v4579 = vpop.f32.mrb[0].mxu0
      %v4580 = vadd.f32 0.0, %v4579
      %v4581 = vpop.f32.mrb[0].mxu0
      %4582 = vmatprep.mubr.bf16.mxu0 0
      %4583 = vmatmul.mubr.bf16.gmra.mrb[0].mxu0 %v4264
      %v4584 = vpop.f32.mrb[0].mxu0
      %v4585 = vadd.f32 0.0, %v4584
      %v4586 = vpop.f32.mrb[0].mxu0
      %v4587 = vpop.f32.mrb[0].mxu0
      %v4588 = vadd.f32 0.0, %v4587
      %v4589 = vpop.f32.mrb[0].mxu0
      %4590 = vmatprep.mubr.bf16.mxu0 0
      %4591 = vmatmul.mubr.bf16.gmra.mrb[0].mxu0 %v4265
      %v4592 = vpop.f32.mrb[0].mxu0
      %v4593 = vadd.f32 0.0, %v4592
      %v4594 = vpop.f32.mrb[0].mxu0
      %v4595 = vpop.f32.mrb[0].mxu0
      %v4596 = vadd.f32 0.0, %v4595
      %v4597 = vpop.f32.mrb[0].mxu0
      %4598 = vmatprep.mubr.bf16.mxu0 0
      %4599 = vmatmul.mubr.bf16.gmra.mrb[0].mxu0 %v4266
      %v4600 = vpop.f32.mrb[0].mxu0
      %v4601 = vadd.f32 0.0, %v4600
      %v4602 = vpop.f32.mrb[0].mxu0
      %v4603 = vpop.f32.mrb[0].mxu0
      %v4604 = vadd.f32 0.0, %v4603
      %v4605 = vpop.f32.mrb[0].mxu0
      %4606 = vmatprep.mubr.bf16.mxu0 0
      %4607 = vmatmul.mubr.bf16.gmra.mrb[0].mxu0 %v4267
      %v4608 = vpop.f32.mrb[0].mxu0
      %v4609 = vadd.f32 0.0, %v4608
      %v4610 = vpop.f32.mrb[0].mxu0
      %v4611 = vpop.f32.mrb[0].mxu0
      %v4612 = vadd.f32 0.0, %v4611
      %v4613 = vpop.f32.mrb[0].mxu0
      %4614 = vmatprep.mubr.bf16.mxu0 0
      %4615 = vmatmul.mubr.bf16.gmra.mrb[0].mxu0 %v4268
      %v4616 = vpop.f32.mrb[0].mxu0
      %v4617 = vadd.f32 0.0, %v4616
      %v4618 = vpop.f32.mrb[0].mxu0
      %v4619 = vpop.f32.mrb[0].mxu0
      %v4620 = vadd.f32 0.0, %v4619
      %v4621 = vpop.f32.mrb[0].mxu0
      %4622 = vdwg.mxu0
      %v4623 = vpack.c.bf16 %v4372, %v4369
      %v4624 = vpack.c.bf16 %v4380, %v4377
      %v4625 = vpack.c.bf16 %v4388, %v4385
      %v4626 = vpack.c.bf16 %v4396, %v4393
      %v4627 = vpack.c.bf16 %v4404, %v4401
      %v4628 = vpack.c.bf16 %v4412, %v4409
      %v4629 = vpack.c.bf16 %v4420, %v4417
      %v4630 = vpack.c.bf16 %v4428, %v4425
      %v4631 = vpack.c.bf16 %v4436, %v4433
      %v4632 = vpack.c.bf16 %v4444, %v4441
      %v4633 = vpack.c.bf16 %v4452, %v4449
      %v4634 = vpack.c.bf16 %v4460, %v4457
      %v4635 = vpack.c.bf16 %v4468, %v4465
      %v4636 = vpack.c.bf16 %v4476, %v4473
      %v4637 = vpack.c.bf16 %v4484, %v4481
      %v4638 = vpack.c.bf16 %v4492, %v4489
      %v4639 = vpack.c.bf16 %v4500, %v4497
      %v4640 = vpack.c.bf16 %v4508, %v4505
      %v4641 = vpack.c.bf16 %v4516, %v4513
      %v4642 = vpack.c.bf16 %v4524, %v4521
      %v4643 = vpack.c.bf16 %v4532, %v4529
      %v4644 = vpack.c.bf16 %v4540, %v4537
      %v4645 = vpack.c.bf16 %v4548, %v4545
      %v4646 = vpack.c.bf16 %v4556, %v4553
      %v4647 = vpack.c.bf16 %v4564, %v4561
      %v4648 = vpack.c.bf16 %v4572, %v4569
      %v4649 = vpack.c.bf16 %v4580, %v4577
      %v4650 = vpack.c.bf16 %v4588, %v4585
      %v4651 = vpack.c.bf16 %v4596, %v4593
      %v4652 = vpack.c.bf16 %v4604, %v4601
      %v4653 = vpack.c.bf16 %v4612, %v4609
      %v4654 = vpack.c.bf16 %v4620, %v4617
      %v4655 = vshrl.u32 %v4165, 16
      %v4656 = vpack.i.b16 %v4655, %v4655
      %v4658 = vlaneseq
      %v4659 = vshrl.u32 %v4658, 7
      %v4660 = vsub.s32 2, %v4659
      %v4661 = vrot.slane %v4656, %v4660
      %v4662 = vadd.bf16 %v4623, %v4661
      %v4663 = vadd.bf16 %v4624, %v4661
      %v4664 = vadd.bf16 %v4625, %v4661
      %v4665 = vadd.bf16 %v4626, %v4661
      %v4666 = vadd.bf16 %v4627, %v4661
      %v4667 = vadd.bf16 %v4628, %v4661
      %v4668 = vadd.bf16 %v4629, %v4661
      %v4669 = vadd.bf16 %v4630, %v4661
      %v4670 = vadd.bf16 %v4631, %v4661
      %v4671 = vadd.bf16 %v4632, %v4661
      %v4672 = vadd.bf16 %v4633, %v4661
      %v4673 = vadd.bf16 %v4634, %v4661
      %v4674 = vadd.bf16 %v4635, %v4661
      %v4675 = vadd.bf16 %v4636, %v4661
      %v4676 = vadd.bf16 %v4637, %v4661
      %v4677 = vadd.bf16 %v4638, %v4661
      %v4678 = vadd.bf16 %v4639, %v4661
      %v4679 = vadd.bf16 %v4640, %v4661
      %v4680 = vadd.bf16 %v4641, %v4661
      %v4681 = vadd.bf16 %v4642, %v4661
      %v4682 = vadd.bf16 %v4643, %v4661
      %v4683 = vadd.bf16 %v4644, %v4661
      %v4684 = vadd.bf16 %v4645, %v4661
      %v4685 = vadd.bf16 %v4646, %v4661
      %v4686 = vadd.bf16 %v4647, %v4661
      %v4687 = vadd.bf16 %v4648, %v4661
      %v4688 = vadd.bf16 %v4649, %v4661
      %v4689 = vadd.bf16 %v4650, %v4661
      %v4690 = vadd.bf16 %v4651, %v4661
      %v4691 = vadd.bf16 %v4652, %v4661
      %v4692 = vadd.bf16 %v4653, %v4661
      %v4693 = vadd.bf16 %v4654, %v4661
      %v4694 = vmul.bf16 %v4662, 1045249613
      %v4695 = vmul.bf16 %v4663, 1045249613
      %v4696 = vmul.bf16 %v4664, 1045249613
      %v4697 = vmul.bf16 %v4665, 1045249613
      %v4698 = vmul.bf16 %v4666, 1045249613
      %v4699 = vmul.bf16 %v4667, 1045249613
      %v4700 = vmul.bf16 %v4668, 1045249613
      %v4701 = vmul.bf16 %v4669, 1045249613
      %v4702 = vmul.bf16 %v4670, 1045249613
      %v4703 = vmul.bf16 %v4671, 1045249613
      %v4704 = vmul.bf16 %v4672, 1045249613
      %v4705 = vmul.bf16 %v4673, 1045249613
      %v4706 = vmul.bf16 %v4674, 1045249613
      %v4707 = vmul.bf16 %v4675, 1045249613
      %v4708 = vmul.bf16 %v4676, 1045249613
      %v4709 = vmul.bf16 %v4677, 1045249613
      %v4710 = vmul.bf16 %v4678, 1045249613
      %v4711 = vmul.bf16 %v4679, 1045249613
      %v4712 = vmul.bf16 %v4680, 1045249613
      %v4713 = vmul.bf16 %v4681, 1045249613
      %v4714 = vmul.bf16 %v4682, 1045249613
      %v4715 = vmul.bf16 %v4683, 1045249613
      %v4716 = vmul.bf16 %v4684, 1045249613
      %v4717 = vmul.bf16 %v4685, 1045249613
      %v4718 = vmul.bf16 %v4686, 1045249613
      %v4719 = vmul.bf16 %v4687, 1045249613
      %v4720 = vmul.bf16 %v4688, 1045249613
      %v4721 = vmul.bf16 %v4689, 1045249613
      %v4722 = vmul.bf16 %v4690, 1045249613
      %v4723 = vmul.bf16 %v4691, 1045249613
      %v4724 = vmul.bf16 %v4692, 1045249613
      %v4725 = vmul.bf16 %v4693, 1045249613
      %v4726 = vmax.bf16 %v4662, %v4694
      %v4727 = vmax.bf16 %v4663, %v4695
      %v4728 = vmax.bf16 %v4664, %v4696
      %v4729 = vmax.bf16 %v4665, %v4697
      %v4730 = vmax.bf16 %v4666, %v4698
      %v4731 = vmax.bf16 %v4667, %v4699
      %v4732 = vmax.bf16 %v4668, %v4700
      %v4733 = vmax.bf16 %v4669, %v4701
      %v4734 = vmax.bf16 %v4670, %v4702
      %v4735 = vmax.bf16 %v4671, %v4703
      %v4736 = vmax.bf16 %v4672, %v4704
      %v4737 = vmax.bf16 %v4673, %v4705
      %v4738 = vmax.bf16 %v4674, %v4706
      %v4739 = vmax.bf16 %v4675, %v4707
      %v4740 = vmax.bf16 %v4676, %v4708
      %v4741 = vmax.bf16 %v4677, %v4709
      %v4742 = vmax.bf16 %v4678, %v4710
      %v4743 = vmax.bf16 %v4679, %v4711
      %v4744 = vmax.bf16 %v4680, %v4712
      %v4745 = vmax.bf16 %v4681, %v4713
      %v4746 = vmax.bf16 %v4682, %v4714
      %v4747 = vmax.bf16 %v4683, %v4715
      %v4748 = vmax.bf16 %v4684, %v4716
      %v4749 = vmax.bf16 %v4685, %v4717
      %v4750 = vmax.bf16 %v4686, %v4718
      %v4751 = vmax.bf16 %v4687, %v4719
      %v4752 = vmax.bf16 %v4688, %v4720
      %v4753 = vmax.bf16 %v4689, %v4721
      %v4754 = vmax.bf16 %v4690, %v4722
      %v4755 = vmax.bf16 %v4691, %v4723
      %v4756 = vmax.bf16 %v4692, %v4724
      %v4757 = vmax.bf16 %v4693, %v4725
      %s4758 = scalar_lea.vmem %s3, 64
      %v4759 = vld [vmem:[%s4758] sm:$0xf]
      %v4760 = vld [vmem:[%s4758 + $0x4] sm:$0xf]
      %v4761 = vld [vmem:[%s4758 + $0x8] sm:$0xf]
      %v4762 = vld [vmem:[%s4758 + $0xc] sm:$0xf]
      %v4763 = vld [vmem:[%s4758 + $0x10] sm:$0xf]
      %v4764 = vld [vmem:[%s4758 + $0x14] sm:$0xf]
      %v4765 = vld [vmem:[%s4758 + $0x18] sm:$0xf]
      %v4766 = vld [vmem:[%s4758 + $0x1c] sm:$0xf]
      %v4767 = vld [vmem:[%s4758 + $0x20] sm:$0xf]
      %v4768 = vld [vmem:[%s4758 + $0x24] sm:$0xf]
      %v4769 = vld [vmem:[%s4758 + $0x28] sm:$0xf]
      %v4770 = vld [vmem:[%s4758 + $0x2c] sm:$0xf]
      %v4771 = vld [vmem:[%s4758 + $0x30] sm:$0xf]
      %v4772 = vld [vmem:[%s4758 + $0x34] sm:$0xf]
      %v4773 = vld [vmem:[%s4758 + $0x38] sm:$0xf]
      %v4774 = vld [vmem:[%s4758 + $0x3c] sm:$0xf]
      %v4775 = vld [vmem:[%s6 + $0x1] sm:$0x1]
      %v4776 = vlaneseq
      %v4777 = vshrl.u32 %v4776, 7
      %v4778 = vsub.s32 0, %v4777
      %v4779 = vrot.slane %v4775, %v4778
      %v4796 = vunpack.c.l.b16 %v4759
      %v4797 = vunpack.c.l.b16 %v4760
      %v4798 = vunpack.c.l.b16 %v4761
      %v4799 = vunpack.c.l.b16 %v4762
      %v4800 = vunpack.c.l.b16 %v4763
      %v4801 = vunpack.c.l.b16 %v4764
      %v4802 = vunpack.c.l.b16 %v4765
      %v4803 = vunpack.c.l.b16 %v4766
      %v4804 = vunpack.c.l.b16 %v4767
      %v4805 = vunpack.c.l.b16 %v4768
      %v4806 = vunpack.c.l.b16 %v4769
      %v4807 = vunpack.c.l.b16 %v4770
      %v4808 = vunpack.c.l.b16 %v4771
      %v4809 = vunpack.c.l.b16 %v4772
      %v4810 = vunpack.c.l.b16 %v4773
      %v4811 = vunpack.c.l.b16 %v4774
      %v4812 = vpack.c.b16 %v4797, %v4796
      %v4813 = vpack.c.b16 %v4799, %v4798
      %v4814 = vpack.c.b16 %v4801, %v4800
      %v4815 = vpack.c.b16 %v4803, %v4802
      %v4816 = vpack.c.b16 %v4805, %v4804
      %v4817 = vpack.c.b16 %v4807, %v4806
      %v4818 = vpack.c.b16 %v4809, %v4808
      %v4819 = vpack.c.b16 %v4811, %v4810
      %4828 = vmatprep.subr.bf16.mxu0 0
      %4829 = vmatpush1.bf16.msra.mxu0 %v4812
      %4830 = vmatprep.subr.bf16.mxu0 0
      %4831 = vmatpush1.bf16.msra.mxu0 %v4813
      %4832 = vmatprep.subr.bf16.mxu0 0
      %4833 = vmatpush1.bf16.msra.mxu0 %v4814
      %4834 = vmatprep.subr.bf16.mxu0 0
      %4835 = vmatpush1.bf16.msra.mxu0 %v4815
      %4836 = vmatprep.subr.bf16.mxu0 0
      %4837 = vmatpush1.bf16.msra.mxu0 %v4816
      %4838 = vmatprep.subr.bf16.mxu0 0
      %4839 = vmatpush1.bf16.msra.mxu0 %v4817
      %4840 = vmatprep.subr.bf16.mxu0 0
      %4841 = vmatpush1.bf16.msra.mxu0 %v4818
      %4842 = vmatprep.subr.bf16.mxu0 0
      %4843 = vmatpush1.bf16.msra.mxu0 %v4819
      %4844 = vmatprep.subr.bf16.mxu0 0
      %4845 = vmatpush1.bf16.msra.mxu0 0
      %4846 = vmatprep.subr.bf16.mxu0 0
      %4847 = vmatpush1.bf16.msra.mxu0 0
      %4848 = vmatprep.subr.bf16.mxu0 0
      %4849 = vmatpush1.bf16.msra.mxu0 0
      %4850 = vmatprep.subr.bf16.mxu0 0
      %4851 = vmatpush1.bf16.msra.mxu0 0
      %4852 = vmatprep.subr.bf16.mxu0 0
      %4853 = vmatpush1.bf16.msra.mxu0 0
      %4854 = vmatprep.subr.bf16.mxu0 0
      %4855 = vmatpush1.bf16.msra.mxu0 0
      %4856 = vmatprep.subr.bf16.mxu0 0
      %4857 = vmatpush1.bf16.msra.mxu0 0
      %4858 = vmatprep.subr.bf16.mxu0 0
      %4859 = vmatpush1.bf16.msra.mxu0 0
      %4860 = vmatprep.mubr.bf16.mxu0 0
      %4861 = vmatmul.mubr.bf16.gmra.mrb[0].mxu0 %v4726
      %v4862 = vpop.f32.mrb[0].mxu0
      %v4863 = vadd.f32 %v4779, %v4862
      %v4864 = vpop.f32.mrb[0].mxu0
      %v4865 = vpop.f32.mrb[0].mxu0
      %v4866 = vadd.f32 %v4779, %v4865
      %v4867 = vpop.f32.mrb[0].mxu0
      %4868 = vmatprep.mubr.bf16.mxu0 0
      %4869 = vmatmul.mubr.bf16.gmra.mrb[0].mxu0 %v4727
      %v4870 = vpop.f32.mrb[0].mxu0
      %v4871 = vadd.f32 %v4779, %v4870
      %v4872 = vpop.f32.mrb[0].mxu0
      %v4873 = vpop.f32.mrb[0].mxu0
      %v4874 = vadd.f32 %v4779, %v4873
      %v4875 = vpop.f32.mrb[0].mxu0
      %4876 = vmatprep.mubr.bf16.mxu0 0
      %4877 = vmatmul.mubr.bf16.gmra.mrb[0].mxu0 %v4728
      %v4878 = vpop.f32.mrb[0].mxu0
      %v4879 = vadd.f32 %v4779, %v4878
      %v4880 = vpop.f32.mrb[0].mxu0
      %v4881 = vpop.f32.mrb[0].mxu0
      %v4882 = vadd.f32 %v4779, %v4881
      %v4883 = vpop.f32.mrb[0].mxu0
      %4884 = vmatprep.mubr.bf16.mxu0 0
      %4885 = vmatmul.mubr.bf16.gmra.mrb[0].mxu0 %v4729
      %v4886 = vpop.f32.mrb[0].mxu0
      %v4887 = vadd.f32 %v4779, %v4886
      %v4888 = vpop.f32.mrb[0].mxu0
      %v4889 = vpop.f32.mrb[0].mxu0
      %v4890 = vadd.f32 %v4779, %v4889
      %v4891 = vpop.f32.mrb[0].mxu0
      %4892 = vmatprep.mubr.bf16.mxu0 0
      %4893 = vmatmul.mubr.bf16.gmra.mrb[0].mxu0 %v4730
      %v4894 = vpop.f32.mrb[0].mxu0
      %v4895 = vadd.f32 %v4779, %v4894
      %v4896 = vpop.f32.mrb[0].mxu0
      %v4897 = vpop.f32.mrb[0].mxu0
      %v4898 = vadd.f32 %v4779, %v4897
      %v4899 = vpop.f32.mrb[0].mxu0
      %4900 = vmatprep.mubr.bf16.mxu0 0
      %4901 = vmatmul.mubr.bf16.gmra.mrb[0].mxu0 %v4731
      %v4902 = vpop.f32.mrb[0].mxu0
      %v4903 = vadd.f32 %v4779, %v4902
      %v4904 = vpop.f32.mrb[0].mxu0
      %v4905 = vpop.f32.mrb[0].mxu0
      %v4906 = vadd.f32 %v4779, %v4905
      %v4907 = vpop.f32.mrb[0].mxu0
      %4908 = vmatprep.mubr.bf16.mxu0 0
      %4909 = vmatmul.mubr.bf16.gmra.mrb[0].mxu0 %v4732
      %v4910 = vpop.f32.mrb[0].mxu0
      %v4911 = vadd.f32 %v4779, %v4910
      %v4912 = vpop.f32.mrb[0].mxu0
      %v4913 = vpop.f32.mrb[0].mxu0
      %v4914 = vadd.f32 %v4779, %v4913
      %v4915 = vpop.f32.mrb[0].mxu0
      %4916 = vmatprep.mubr.bf16.mxu0 0
      %4917 = vmatmul.mubr.bf16.gmra.mrb[0].mxu0 %v4733
      %v4918 = vpop.f32.mrb[0].mxu0
      %v4919 = vadd.f32 %v4779, %v4918
      %v4920 = vpop.f32.mrb[0].mxu0
      %v4921 = vpop.f32.mrb[0].mxu0
      %v4922 = vadd.f32 %v4779, %v4921
      %v4923 = vpop.f32.mrb[0].mxu0
      %4924 = vmatprep.mubr.bf16.mxu0 0
      %4925 = vmatmul.mubr.bf16.gmra.mrb[0].mxu0 %v4734
      %v4926 = vpop.f32.mrb[0].mxu0
      %v4927 = vadd.f32 %v4779, %v4926
      %v4928 = vpop.f32.mrb[0].mxu0
      %v4929 = vpop.f32.mrb[0].mxu0
      %v4930 = vadd.f32 %v4779, %v4929
      %v4931 = vpop.f32.mrb[0].mxu0
      %4932 = vmatprep.mubr.bf16.mxu0 0
      %4933 = vmatmul.mubr.bf16.gmra.mrb[0].mxu0 %v4735
      %v4934 = vpop.f32.mrb[0].mxu0
      %v4935 = vadd.f32 %v4779, %v4934
      %v4936 = vpop.f32.mrb[0].mxu0
      %v4937 = vpop.f32.mrb[0].mxu0
      %v4938 = vadd.f32 %v4779, %v4937
      %v4939 = vpop.f32.mrb[0].mxu0
      %4940 = vmatprep.mubr.bf16.mxu0 0
      %4941 = vmatmul.mubr.bf16.gmra.mrb[0].mxu0 %v4736
      %v4942 = vpop.f32.mrb[0].mxu0
      %v4943 = vadd.f32 %v4779, %v4942
      %v4944 = vpop.f32.mrb[0].mxu0
      %v4945 = vpop.f32.mrb[0].mxu0
      %v4946 = vadd.f32 %v4779, %v4945
      %v4947 = vpop.f32.mrb[0].mxu0
      %4948 = vmatprep.mubr.bf16.mxu0 0
      %4949 = vmatmul.mubr.bf16.gmra.mrb[0].mxu0 %v4737
      %v4950 = vpop.f32.mrb[0].mxu0
      %v4951 = vadd.f32 %v4779, %v4950
      %v4952 = vpop.f32.mrb[0].mxu0
      %v4953 = vpop.f32.mrb[0].mxu0
      %v4954 = vadd.f32 %v4779, %v4953
      %v4955 = vpop.f32.mrb[0].mxu0
      %4956 = vmatprep.mubr.bf16.mxu0 0
      %4957 = vmatmul.mubr.bf16.gmra.mrb[0].mxu0 %v4738
      %v4958 = vpop.f32.mrb[0].mxu0
      %v4959 = vadd.f32 %v4779, %v4958
      %v4960 = vpop.f32.mrb[0].mxu0
      %v4961 = vpop.f32.mrb[0].mxu0
      %v4962 = vadd.f32 %v4779, %v4961
      %v4963 = vpop.f32.mrb[0].mxu0
      %4964 = vmatprep.mubr.bf16.mxu0 0
      %4965 = vmatmul.mubr.bf16.gmra.mrb[0].mxu0 %v4739
      %v4966 = vpop.f32.mrb[0].mxu0
      %v4967 = vadd.f32 %v4779, %v4966
      %v4968 = vpop.f32.mrb[0].mxu0
      %v4969 = vpop.f32.mrb[0].mxu0
      %v4970 = vadd.f32 %v4779, %v4969
      %v4971 = vpop.f32.mrb[0].mxu0
      %4972 = vmatprep.mubr.bf16.mxu0 0
      %4973 = vmatmul.mubr.bf16.gmra.mrb[0].mxu0 %v4740
      %v4974 = vpop.f32.mrb[0].mxu0
      %v4975 = vadd.f32 %v4779, %v4974
      %v4976 = vpop.f32.mrb[0].mxu0
      %v4977 = vpop.f32.mrb[0].mxu0
      %v4978 = vadd.f32 %v4779, %v4977
      %v4979 = vpop.f32.mrb[0].mxu0
      %4980 = vmatprep.mubr.bf16.mxu0 0
      %4981 = vmatmul.mubr.bf16.gmra.mrb[0].mxu0 %v4741
      %v4982 = vpop.f32.mrb[0].mxu0
      %v4983 = vadd.f32 %v4779, %v4982
      %v4984 = vpop.f32.mrb[0].mxu0
      %v4985 = vpop.f32.mrb[0].mxu0
      %v4986 = vadd.f32 %v4779, %v4985
      %v4987 = vpop.f32.mrb[0].mxu0
      %4988 = vmatprep.mubr.bf16.mxu0 0
      %4989 = vmatmul.mubr.bf16.gmra.mrb[0].mxu0 %v4742
      %v4990 = vpop.f32.mrb[0].mxu0
      %v4991 = vadd.f32 %v4779, %v4990
      %v4992 = vpop.f32.mrb[0].mxu0
      %v4993 = vpop.f32.mrb[0].mxu0
      %v4994 = vadd.f32 %v4779, %v4993
      %v4995 = vpop.f32.mrb[0].mxu0
      %4996 = vmatprep.mubr.bf16.mxu0 0
      %4997 = vmatmul.mubr.bf16.gmra.mrb[0].mxu0 %v4743
      %v4998 = vpop.f32.mrb[0].mxu0
      %v4999 = vadd.f32 %v4779, %v4998
      %v5000 = vpop.f32.mrb[0].mxu0
      %v5001 = vpop.f32.mrb[0].mxu0
      %v5002 = vadd.f32 %v4779, %v5001
      %v5003 = vpop.f32.mrb[0].mxu0
      %5004 = vmatprep.mubr.bf16.mxu0 0
      %5005 = vmatmul.mubr.bf16.gmra.mrb[0].mxu0 %v4744
      %v5006 = vpop.f32.mrb[0].mxu0
      %v5007 = vadd.f32 %v4779, %v5006
      %v5008 = vpop.f32.mrb[0].mxu0
      %v5009 = vpop.f32.mrb[0].mxu0
      %v5010 = vadd.f32 %v4779, %v5009
      %v5011 = vpop.f32.mrb[0].mxu0
      %5012 = vmatprep.mubr.bf16.mxu0 0
      %5013 = vmatmul.mubr.bf16.gmra.mrb[0].mxu0 %v4745
      %v5014 = vpop.f32.mrb[0].mxu0
      %v5015 = vadd.f32 %v4779, %v5014
      %v5016 = vpop.f32.mrb[0].mxu0
      %v5017 = vpop.f32.mrb[0].mxu0
      %v5018 = vadd.f32 %v4779, %v5017
      %v5019 = vpop.f32.mrb[0].mxu0
      %5020 = vmatprep.mubr.bf16.mxu0 0
      %5021 = vmatmul.mubr.bf16.gmra.mrb[0].mxu0 %v4746
      %v5022 = vpop.f32.mrb[0].mxu0
      %v5023 = vadd.f32 %v4779, %v5022
      %v5024 = vpop.f32.mrb[0].mxu0
      %v5025 = vpop.f32.mrb[0].mxu0
      %v5026 = vadd.f32 %v4779, %v5025
      %v5027 = vpop.f32.mrb[0].mxu0
      %5028 = vmatprep.mubr.bf16.mxu0 0
      %5029 = vmatmul.mubr.bf16.gmra.mrb[0].mxu0 %v4747
      %v5030 = vpop.f32.mrb[0].mxu0
      %v5031 = vadd.f32 %v4779, %v5030
      %v5032 = vpop.f32.mrb[0].mxu0
      %v5033 = vpop.f32.mrb[0].mxu0
      %v5034 = vadd.f32 %v4779, %v5033
      %v5035 = vpop.f32.mrb[0].mxu0
      %5036 = vmatprep.mubr.bf16.mxu0 0
      %5037 = vmatmul.mubr.bf16.gmra.mrb[0].mxu0 %v4748
      %v5038 = vpop.f32.mrb[0].mxu0
      %v5039 = vadd.f32 %v4779, %v5038
      %v5040 = vpop.f32.mrb[0].mxu0
      %v5041 = vpop.f32.mrb[0].mxu0
      %v5042 = vadd.f32 %v4779, %v5041
      %v5043 = vpop.f32.mrb[0].mxu0
      %5044 = vmatprep.mubr.bf16.mxu0 0
      %5045 = vmatmul.mubr.bf16.gmra.mrb[0].mxu0 %v4749
      %v5046 = vpop.f32.mrb[0].mxu0
      %v5047 = vadd.f32 %v4779, %v5046
      %v5048 = vpop.f32.mrb[0].mxu0
      %v5049 = vpop.f32.mrb[0].mxu0
      %v5050 = vadd.f32 %v4779, %v5049
      %v5051 = vpop.f32.mrb[0].mxu0
      %5052 = vmatprep.mubr.bf16.mxu0 0
      %5053 = vmatmul.mubr.bf16.gmra.mrb[0].mxu0 %v4750
      %v5054 = vpop.f32.mrb[0].mxu0
      %v5055 = vadd.f32 %v4779, %v5054
      %v5056 = vpop.f32.mrb[0].mxu0
      %v5057 = vpop.f32.mrb[0].mxu0
      %v5058 = vadd.f32 %v4779, %v5057
      %v5059 = vpop.f32.mrb[0].mxu0
      %5060 = vmatprep.mubr.bf16.mxu0 0
      %5061 = vmatmul.mubr.bf16.gmra.mrb[0].mxu0 %v4751
      %v5062 = vpop.f32.mrb[0].mxu0
      %v5063 = vadd.f32 %v4779, %v5062
      %v5064 = vpop.f32.mrb[0].mxu0
      %v5065 = vpop.f32.mrb[0].mxu0
      %v5066 = vadd.f32 %v4779, %v5065
      %v5067 = vpop.f32.mrb[0].mxu0
      %5068 = vmatprep.mubr.bf16.mxu0 0
      %5069 = vmatmul.mubr.bf16.gmra.mrb[0].mxu0 %v4752
      %v5070 = vpop.f32.mrb[0].mxu0
      %v5071 = vadd.f32 %v4779, %v5070
      %v5072 = vpop.f32.mrb[0].mxu0
      %v5073 = vpop.f32.mrb[0].mxu0
      %v5074 = vadd.f32 %v4779, %v5073
      %v5075 = vpop.f32.mrb[0].mxu0
      %5076 = vmatprep.mubr.bf16.mxu0 0
      %5077 = vmatmul.mubr.bf16.gmra.mrb[0].mxu0 %v4753
      %v5078 = vpop.f32.mrb[0].mxu0
      %v5079 = vadd.f32 %v4779, %v5078
      %v5080 = vpop.f32.mrb[0].mxu0
      %v5081 = vpop.f32.mrb[0].mxu0
      %v5082 = vadd.f32 %v4779, %v5081
      %v5083 = vpop.f32.mrb[0].mxu0
      %5084 = vmatprep.mubr.bf16.mxu0 0
      %5085 = vmatmul.mubr.bf16.gmra.mrb[0].mxu0 %v4754
      %v5086 = vpop.f32.mrb[0].mxu0
      %v5087 = vadd.f32 %v4779, %v5086
      %v5088 = vpop.f32.mrb[0].mxu0
      %v5089 = vpop.f32.mrb[0].mxu0
      %v5090 = vadd.f32 %v4779, %v5089
      %v5091 = vpop.f32.mrb[0].mxu0
      %5092 = vmatprep.mubr.bf16.mxu0 0
      %5093 = vmatmul.mubr.bf16.gmra.mrb[0].mxu0 %v4755
      %v5094 = vpop.f32.mrb[0].mxu0
      %v5095 = vadd.f32 %v4779, %v5094
      %v5096 = vpop.f32.mrb[0].mxu0
      %v5097 = vpop.f32.mrb[0].mxu0
      %v5098 = vadd.f32 %v4779, %v5097
      %v5099 = vpop.f32.mrb[0].mxu0
      %5100 = vmatprep.mubr.bf16.mxu0 0
      %5101 = vmatmul.mubr.bf16.gmra.mrb[0].mxu0 %v4756
      %v5102 = vpop.f32.mrb[0].mxu0
      %v5103 = vadd.f32 %v4779, %v5102
      %v5104 = vpop.f32.mrb[0].mxu0
      %v5105 = vpop.f32.mrb[0].mxu0
      %v5106 = vadd.f32 %v4779, %v5105
      %v5107 = vpop.f32.mrb[0].mxu0
      %5108 = vmatprep.mubr.bf16.mxu0 0
      %5109 = vmatmul.mubr.bf16.gmra.mrb[0].mxu0 %v4757
      %v5110 = vpop.f32.mrb[0].mxu0
      %v5111 = vadd.f32 %v4779, %v5110
      %v5112 = vpop.f32.mrb[0].mxu0
      %v5113 = vpop.f32.mrb[0].mxu0
      %v5114 = vadd.f32 %v4779, %v5113
      %v5115 = vpop.f32.mrb[0].mxu0
      %5116 = vdwg.mxu0
      %v5117 = vpack.c.bf16 %v4866, %v4863
      %v5118 = vpack.c.bf16 %v4874, %v4871
      %v5119 = vpack.c.bf16 %v4882, %v4879
      %v5120 = vpack.c.bf16 %v4890, %v4887
      %v5121 = vpack.c.bf16 %v4898, %v4895
      %v5122 = vpack.c.bf16 %v4906, %v4903
      %v5123 = vpack.c.bf16 %v4914, %v4911
      %v5124 = vpack.c.bf16 %v4922, %v4919
      %v5125 = vpack.c.bf16 %v4930, %v4927
      %v5126 = vpack.c.bf16 %v4938, %v4935
      %v5127 = vpack.c.bf16 %v4946, %v4943
      %v5128 = vpack.c.bf16 %v4954, %v4951
      %v5129 = vpack.c.bf16 %v4962, %v4959
      %v5130 = vpack.c.bf16 %v4970, %v4967
      %v5131 = vpack.c.bf16 %v4978, %v4975
      %v5132 = vpack.c.bf16 %v4986, %v4983
      %v5133 = vpack.c.bf16 %v4994, %v4991
      %v5134 = vpack.c.bf16 %v5002, %v4999
      %v5135 = vpack.c.bf16 %v5010, %v5007
      %v5136 = vpack.c.bf16 %v5018, %v5015
      %v5137 = vpack.c.bf16 %v5026, %v5023
      %v5138 = vpack.c.bf16 %v5034, %v5031
      %v5139 = vpack.c.bf16 %v5042, %v5039
      %v5140 = vpack.c.bf16 %v5050, %v5047
      %v5141 = vpack.c.bf16 %v5058, %v5055
      %v5142 = vpack.c.bf16 %v5066, %v5063
      %v5143 = vpack.c.bf16 %v5074, %v5071
      %v5144 = vpack.c.bf16 %v5082, %v5079
      %v5145 = vpack.c.bf16 %v5090, %v5087
      %v5146 = vpack.c.bf16 %v5098, %v5095
      %v5147 = vpack.c.bf16 %v5106, %v5103
      %v5148 = vpack.c.bf16 %v5114, %v5111
      %s5149 = scalar_lea.vmem %s1, 8
      %v5150 = vld [vmem:[%s5149] sm:$0xf]
      %v5152 = vsel %vm381, %v5117, 0
      %v5155 = vsel %vm381, %v5118, 0
      %v5158 = vsel %vm381, %v5119, 0
      %v5161 = vsel %vm381, %v5120, 0
      %v5164 = vsel %vm381, %v5121, 0
      %v5167 = vsel %vm381, %v5122, 0
      %v5170 = vsel %vm381, %v5123, 0
      %v5173 = vsel %vm381, %v5124, 0
      %v5176 = vsel %vm381, %v5125, 0
      %v5179 = vsel %vm381, %v5126, 0
      %v5182 = vsel %vm381, %v5127, 0
      %v5185 = vsel %vm381, %v5128, 0
      %v5188 = vsel %vm381, %v5129, 0
      %v5191 = vsel %vm381, %v5130, 0
      %v5194 = vsel %vm381, %v5131, 0
      %v5197 = vsel %vm381, %v5132, 0
      %v5200 = vsel %vm381, %v5133, 0
      %v5203 = vsel %vm381, %v5134, 0
      %v5206 = vsel %vm381, %v5135, 0
      %v5209 = vsel %vm381, %v5136, 0
      %v5212 = vsel %vm381, %v5137, 0
      %v5215 = vsel %vm381, %v5138, 0
      %v5218 = vsel %vm381, %v5139, 0
      %v5221 = vsel %vm381, %v5140, 0
      %v5224 = vsel %vm381, %v5141, 0
      %v5227 = vsel %vm381, %v5142, 0
      %v5230 = vsel %vm381, %v5143, 0
      %v5233 = vsel %vm381, %v5144, 0
      %v5236 = vsel %vm381, %v5145, 0
      %v5239 = vsel %vm381, %v5146, 0
      %v5242 = vsel %vm381, %v5147, 0
      %v5245 = vsel %vm381, %v5148, 0
      %v5248 = vsel %vm478, %v5150, 0
      %5250 = vmatprep.subr.bf16.mxu0 0
      %5251 = vmatpush1.bf16.msra.mxu0 %v5248
      %5252 = vmatprep.subr.bf16.mxu0 0
      %5253 = vmatpush1.bf16.msra.mxu0 0
      %5254 = vmatprep.subr.bf16.mxu0 0
      %5255 = vmatpush1.bf16.msra.mxu0 0
      %5256 = vmatprep.subr.bf16.mxu0 0
      %5257 = vmatpush1.bf16.msra.mxu0 0
      %5258 = vmatprep.subr.bf16.mxu0 0
      %5259 = vmatpush1.bf16.msra.mxu0 0
      %5260 = vmatprep.subr.bf16.mxu0 0
      %5261 = vmatpush1.bf16.msra.mxu0 0
      %5262 = vmatprep.subr.bf16.mxu0 0
      %5263 = vmatpush1.bf16.msra.mxu0 0
      %5264 = vmatprep.subr.bf16.mxu0 0
      %5265 = vmatpush1.bf16.msra.mxu0 0
      %5266 = vmatprep.subr.bf16.mxu0 0
      %5267 = vmatpush1.bf16.msra.mxu0 0
      %5268 = vmatprep.subr.bf16.mxu0 0
      %5269 = vmatpush1.bf16.msra.mxu0 0
      %5270 = vmatprep.subr.bf16.mxu0 0
      %5271 = vmatpush1.bf16.msra.mxu0 0
      %5272 = vmatprep.subr.bf16.mxu0 0
      %5273 = vmatpush1.bf16.msra.mxu0 0
      %5274 = vmatprep.subr.bf16.mxu0 0
      %5275 = vmatpush1.bf16.msra.mxu0 0
      %5276 = vmatprep.subr.bf16.mxu0 0
      %5277 = vmatpush1.bf16.msra.mxu0 0
      %5278 = vmatprep.subr.bf16.mxu0 0
      %5279 = vmatpush1.bf16.msra.mxu0 0
      %5280 = vmatprep.subr.bf16.mxu0 0
      %5281 = vmatpush1.bf16.msra.mxu0 0
      %5282 = vmatprep.mubr.bf16.mxu0 0
      %5283 = vmatmul.mubr.bf16.gmra.mrb[0].mxu0 %v5152
      %v5284 = vpop.f32.mrb[0].mxu0
      %v5285 = vadd.f32 0.0, %v5284
      %v5286 = vpop.f32.mrb[0].mxu0
      %v5287 = vpop.f32.mrb[0].mxu0
      %v5288 = vadd.f32 0.0, %v5287
      %v5289 = vpop.f32.mrb[0].mxu0
      %5290 = vmatprep.mubr.bf16.mxu0 0
      %5291 = vmatmul.mubr.bf16.gmra.mrb[0].mxu0 %v5155
      %v5292 = vpop.f32.mrb[0].mxu0
      %v5293 = vadd.f32 0.0, %v5292
      %v5294 = vpop.f32.mrb[0].mxu0
      %v5295 = vpop.f32.mrb[0].mxu0
      %v5296 = vadd.f32 0.0, %v5295
      %v5297 = vpop.f32.mrb[0].mxu0
      %5298 = vmatprep.mubr.bf16.mxu0 0
      %5299 = vmatmul.mubr.bf16.gmra.mrb[0].mxu0 %v5158
      %v5300 = vpop.f32.mrb[0].mxu0
      %v5301 = vadd.f32 0.0, %v5300
      %v5302 = vpop.f32.mrb[0].mxu0
      %v5303 = vpop.f32.mrb[0].mxu0
      %v5304 = vadd.f32 0.0, %v5303
      %v5305 = vpop.f32.mrb[0].mxu0
      %5306 = vmatprep.mubr.bf16.mxu0 0
      %5307 = vmatmul.mubr.bf16.gmra.mrb[0].mxu0 %v5161
      %v5308 = vpop.f32.mrb[0].mxu0
      %v5309 = vadd.f32 0.0, %v5308
      %v5310 = vpop.f32.mrb[0].mxu0
      %v5311 = vpop.f32.mrb[0].mxu0
      %v5312 = vadd.f32 0.0, %v5311
      %v5313 = vpop.f32.mrb[0].mxu0
      %5314 = vmatprep.mubr.bf16.mxu0 0
      %5315 = vmatmul.mubr.bf16.gmra.mrb[0].mxu0 %v5164
      %v5316 = vpop.f32.mrb[0].mxu0
      %v5317 = vadd.f32 0.0, %v5316
      %v5318 = vpop.f32.mrb[0].mxu0
      %v5319 = vpop.f32.mrb[0].mxu0
      %v5320 = vadd.f32 0.0, %v5319
      %v5321 = vpop.f32.mrb[0].mxu0
      %5322 = vmatprep.mubr.bf16.mxu0 0
      %5323 = vmatmul.mubr.bf16.gmra.mrb[0].mxu0 %v5167
      %v5324 = vpop.f32.mrb[0].mxu0
      %v5325 = vadd.f32 0.0, %v5324
      %v5326 = vpop.f32.mrb[0].mxu0
      %v5327 = vpop.f32.mrb[0].mxu0
      %v5328 = vadd.f32 0.0, %v5327
      %v5329 = vpop.f32.mrb[0].mxu0
      %5330 = vmatprep.mubr.bf16.mxu0 0
      %5331 = vmatmul.mubr.bf16.gmra.mrb[0].mxu0 %v5170
      %v5332 = vpop.f32.mrb[0].mxu0
      %v5333 = vadd.f32 0.0, %v5332
      %v5334 = vpop.f32.mrb[0].mxu0
      %v5335 = vpop.f32.mrb[0].mxu0
      %v5336 = vadd.f32 0.0, %v5335
      %v5337 = vpop.f32.mrb[0].mxu0
      %5338 = vmatprep.mubr.bf16.mxu0 0
      %5339 = vmatmul.mubr.bf16.gmra.mrb[0].mxu0 %v5173
      %v5340 = vpop.f32.mrb[0].mxu0
      %v5341 = vadd.f32 0.0, %v5340
      %v5342 = vpop.f32.mrb[0].mxu0
      %v5343 = vpop.f32.mrb[0].mxu0
      %v5344 = vadd.f32 0.0, %v5343
      %v5345 = vpop.f32.mrb[0].mxu0
      %5346 = vmatprep.mubr.bf16.mxu0 0
      %5347 = vmatmul.mubr.bf16.gmra.mrb[0].mxu0 %v5176
      %v5348 = vpop.f32.mrb[0].mxu0
      %v5349 = vadd.f32 0.0, %v5348
      %v5350 = vpop.f32.mrb[0].mxu0
      %v5351 = vpop.f32.mrb[0].mxu0
      %v5352 = vadd.f32 0.0, %v5351
      %v5353 = vpop.f32.mrb[0].mxu0
      %5354 = vmatprep.mubr.bf16.mxu0 0
      %5355 = vmatmul.mubr.bf16.gmra.mrb[0].mxu0 %v5179
      %v5356 = vpop.f32.mrb[0].mxu0
      %v5357 = vadd.f32 0.0, %v5356
      %v5358 = vpop.f32.mrb[0].mxu0
      %v5359 = vpop.f32.mrb[0].mxu0
      %v5360 = vadd.f32 0.0, %v5359
      %v5361 = vpop.f32.mrb[0].mxu0
      %5362 = vmatprep.mubr.bf16.mxu0 0
      %5363 = vmatmul.mubr.bf16.gmra.mrb[0].mxu0 %v5182
      %v5364 = vpop.f32.mrb[0].mxu0
      %v5365 = vadd.f32 0.0, %v5364
      %v5366 = vpop.f32.mrb[0].mxu0
      %v5367 = vpop.f32.mrb[0].mxu0
      %v5368 = vadd.f32 0.0, %v5367
      %v5369 = vpop.f32.mrb[0].mxu0
      %5370 = vmatprep.mubr.bf16.mxu0 0
      %5371 = vmatmul.mubr.bf16.gmra.mrb[0].mxu0 %v5185
      %v5372 = vpop.f32.mrb[0].mxu0
      %v5373 = vadd.f32 0.0, %v5372
      %v5374 = vpop.f32.mrb[0].mxu0
      %v5375 = vpop.f32.mrb[0].mxu0
      %v5376 = vadd.f32 0.0, %v5375
      %v5377 = vpop.f32.mrb[0].mxu0
      %5378 = vmatprep.mubr.bf16.mxu0 0
      %5379 = vmatmul.mubr.bf16.gmra.mrb[0].mxu0 %v5188
      %v5380 = vpop.f32.mrb[0].mxu0
      %v5381 = vadd.f32 0.0, %v5380
      %v5382 = vpop.f32.mrb[0].mxu0
      %v5383 = vpop.f32.mrb[0].mxu0
      %v5384 = vadd.f32 0.0, %v5383
      %v5385 = vpop.f32.mrb[0].mxu0
      %5386 = vmatprep.mubr.bf16.mxu0 0
      %5387 = vmatmul.mubr.bf16.gmra.mrb[0].mxu0 %v5191
      %v5388 = vpop.f32.mrb[0].mxu0
      %v5389 = vadd.f32 0.0, %v5388
      %v5390 = vpop.f32.mrb[0].mxu0
      %v5391 = vpop.f32.mrb[0].mxu0
      %v5392 = vadd.f32 0.0, %v5391
      %v5393 = vpop.f32.mrb[0].mxu0
      %5394 = vmatprep.mubr.bf16.mxu0 0
      %5395 = vmatmul.mubr.bf16.gmra.mrb[0].mxu0 %v5194
      %v5396 = vpop.f32.mrb[0].mxu0
      %v5397 = vadd.f32 0.0, %v5396
      %v5398 = vpop.f32.mrb[0].mxu0
      %v5399 = vpop.f32.mrb[0].mxu0
      %v5400 = vadd.f32 0.0, %v5399
      %v5401 = vpop.f32.mrb[0].mxu0
      %5402 = vmatprep.mubr.bf16.mxu0 0
      %5403 = vmatmul.mubr.bf16.gmra.mrb[0].mxu0 %v5197
      %v5404 = vpop.f32.mrb[0].mxu0
      %v5405 = vadd.f32 0.0, %v5404
      %v5406 = vpop.f32.mrb[0].mxu0
      %v5407 = vpop.f32.mrb[0].mxu0
      %v5408 = vadd.f32 0.0, %v5407
      %v5409 = vpop.f32.mrb[0].mxu0
      %5410 = vmatprep.mubr.bf16.mxu0 0
      %5411 = vmatmul.mubr.bf16.gmra.mrb[0].mxu0 %v5200
      %v5412 = vpop.f32.mrb[0].mxu0
      %v5413 = vadd.f32 0.0, %v5412
      %v5414 = vpop.f32.mrb[0].mxu0
      %v5415 = vpop.f32.mrb[0].mxu0
      %v5416 = vadd.f32 0.0, %v5415
      %v5417 = vpop.f32.mrb[0].mxu0
      %5418 = vmatprep.mubr.bf16.mxu0 0
      %5419 = vmatmul.mubr.bf16.gmra.mrb[0].mxu0 %v5203
      %v5420 = vpop.f32.mrb[0].mxu0
      %v5421 = vadd.f32 0.0, %v5420
      %v5422 = vpop.f32.mrb[0].mxu0
      %v5423 = vpop.f32.mrb[0].mxu0
      %v5424 = vadd.f32 0.0, %v5423
      %v5425 = vpop.f32.mrb[0].mxu0
      %5426 = vmatprep.mubr.bf16.mxu0 0
      %5427 = vmatmul.mubr.bf16.gmra.mrb[0].mxu0 %v5206
      %v5428 = vpop.f32.mrb[0].mxu0
      %v5429 = vadd.f32 0.0, %v5428
      %v5430 = vpop.f32.mrb[0].mxu0
      %v5431 = vpop.f32.mrb[0].mxu0
      %v5432 = vadd.f32 0.0, %v5431
      %v5433 = vpop.f32.mrb[0].mxu0
      %5434 = vmatprep.mubr.bf16.mxu0 0
      %5435 = vmatmul.mubr.bf16.gmra.mrb[0].mxu0 %v5209
      %v5436 = vpop.f32.mrb[0].mxu0
      %v5437 = vadd.f32 0.0, %v5436
      %v5438 = vpop.f32.mrb[0].mxu0
      %v5439 = vpop.f32.mrb[0].mxu0
      %v5440 = vadd.f32 0.0, %v5439
      %v5441 = vpop.f32.mrb[0].mxu0
      %5442 = vmatprep.mubr.bf16.mxu0 0
      %5443 = vmatmul.mubr.bf16.gmra.mrb[0].mxu0 %v5212
      %v5444 = vpop.f32.mrb[0].mxu0
      %v5445 = vadd.f32 0.0, %v5444
      %v5446 = vpop.f32.mrb[0].mxu0
      %v5447 = vpop.f32.mrb[0].mxu0
      %v5448 = vadd.f32 0.0, %v5447
      %v5449 = vpop.f32.mrb[0].mxu0
      %5450 = vmatprep.mubr.bf16.mxu0 0
      %5451 = vmatmul.mubr.bf16.gmra.mrb[0].mxu0 %v5215
      %v5452 = vpop.f32.mrb[0].mxu0
      %v5453 = vadd.f32 0.0, %v5452
      %v5454 = vpop.f32.mrb[0].mxu0
      %v5455 = vpop.f32.mrb[0].mxu0
      %v5456 = vadd.f32 0.0, %v5455
      %v5457 = vpop.f32.mrb[0].mxu0
      %5458 = vmatprep.mubr.bf16.mxu0 0
      %5459 = vmatmul.mubr.bf16.gmra.mrb[0].mxu0 %v5218
      %v5460 = vpop.f32.mrb[0].mxu0
      %v5461 = vadd.f32 0.0, %v5460
      %v5462 = vpop.f32.mrb[0].mxu0
      %v5463 = vpop.f32.mrb[0].mxu0
      %v5464 = vadd.f32 0.0, %v5463
      %v5465 = vpop.f32.mrb[0].mxu0
      %5466 = vmatprep.mubr.bf16.mxu0 0
      %5467 = vmatmul.mubr.bf16.gmra.mrb[0].mxu0 %v5221
      %v5468 = vpop.f32.mrb[0].mxu0
      %v5469 = vadd.f32 0.0, %v5468
      %v5470 = vpop.f32.mrb[0].mxu0
      %v5471 = vpop.f32.mrb[0].mxu0
      %v5472 = vadd.f32 0.0, %v5471
      %v5473 = vpop.f32.mrb[0].mxu0
      %5474 = vmatprep.mubr.bf16.mxu0 0
      %5475 = vmatmul.mubr.bf16.gmra.mrb[0].mxu0 %v5224
      %v5476 = vpop.f32.mrb[0].mxu0
      %v5477 = vadd.f32 0.0, %v5476
      %v5478 = vpop.f32.mrb[0].mxu0
      %v5479 = vpop.f32.mrb[0].mxu0
      %v5480 = vadd.f32 0.0, %v5479
      %v5481 = vpop.f32.mrb[0].mxu0
      %5482 = vmatprep.mubr.bf16.mxu0 0
      %5483 = vmatmul.mubr.bf16.gmra.mrb[0].mxu0 %v5227
      %v5484 = vpop.f32.mrb[0].mxu0
      %v5485 = vadd.f32 0.0, %v5484
      %v5486 = vpop.f32.mrb[0].mxu0
      %v5487 = vpop.f32.mrb[0].mxu0
      %v5488 = vadd.f32 0.0, %v5487
      %v5489 = vpop.f32.mrb[0].mxu0
      %5490 = vmatprep.mubr.bf16.mxu0 0
      %5491 = vmatmul.mubr.bf16.gmra.mrb[0].mxu0 %v5230
      %v5492 = vpop.f32.mrb[0].mxu0
      %v5493 = vadd.f32 0.0, %v5492
      %v5494 = vpop.f32.mrb[0].mxu0
      %v5495 = vpop.f32.mrb[0].mxu0
      %v5496 = vadd.f32 0.0, %v5495
      %v5497 = vpop.f32.mrb[0].mxu0
      %5498 = vmatprep.mubr.bf16.mxu0 0
      %5499 = vmatmul.mubr.bf16.gmra.mrb[0].mxu0 %v5233
      %v5500 = vpop.f32.mrb[0].mxu0
      %v5501 = vadd.f32 0.0, %v5500
      %v5502 = vpop.f32.mrb[0].mxu0
      %v5503 = vpop.f32.mrb[0].mxu0
      %v5504 = vadd.f32 0.0, %v5503
      %v5505 = vpop.f32.mrb[0].mxu0
      %5506 = vmatprep.mubr.bf16.mxu0 0
      %5507 = vmatmul.mubr.bf16.gmra.mrb[0].mxu0 %v5236
      %v5508 = vpop.f32.mrb[0].mxu0
      %v5509 = vadd.f32 0.0, %v5508
      %v5510 = vpop.f32.mrb[0].mxu0
      %v5511 = vpop.f32.mrb[0].mxu0
      %v5512 = vadd.f32 0.0, %v5511
      %v5513 = vpop.f32.mrb[0].mxu0
      %5514 = vmatprep.mubr.bf16.mxu0 0
      %5515 = vmatmul.mubr.bf16.gmra.mrb[0].mxu0 %v5239
      %v5516 = vpop.f32.mrb[0].mxu0
      %v5517 = vadd.f32 0.0, %v5516
      %v5518 = vpop.f32.mrb[0].mxu0
      %v5519 = vpop.f32.mrb[0].mxu0
      %v5520 = vadd.f32 0.0, %v5519
      %v5521 = vpop.f32.mrb[0].mxu0
      %5522 = vmatprep.mubr.bf16.mxu0 0
      %5523 = vmatmul.mubr.bf16.gmra.mrb[0].mxu0 %v5242
      %v5524 = vpop.f32.mrb[0].mxu0
      %v5525 = vadd.f32 0.0, %v5524
      %v5526 = vpop.f32.mrb[0].mxu0
      %v5527 = vpop.f32.mrb[0].mxu0
      %v5528 = vadd.f32 0.0, %v5527
      %v5529 = vpop.f32.mrb[0].mxu0
      %5530 = vmatprep.mubr.bf16.mxu0 0
      %5531 = vmatmul.mubr.bf16.gmra.mrb[0].mxu0 %v5245
      %v5532 = vpop.f32.mrb[0].mxu0
      %v5533 = vadd.f32 0.0, %v5532
      %v5534 = vpop.f32.mrb[0].mxu0
      %v5535 = vpop.f32.mrb[0].mxu0
      %v5536 = vadd.f32 0.0, %v5535
      %v5537 = vpop.f32.mrb[0].mxu0
      %5538 = vdwg.mxu0
      %v5539 = vpack.c.bf16 %v5288, %v5285
      %v5540 = vpack.c.bf16 %v5296, %v5293
      %v5541 = vpack.c.bf16 %v5304, %v5301
      %v5542 = vpack.c.bf16 %v5312, %v5309
      %v5543 = vpack.c.bf16 %v5320, %v5317
      %v5544 = vpack.c.bf16 %v5328, %v5325
      %v5545 = vpack.c.bf16 %v5336, %v5333
      %v5546 = vpack.c.bf16 %v5344, %v5341
      %v5547 = vpack.c.bf16 %v5352, %v5349
      %v5548 = vpack.c.bf16 %v5360, %v5357
      %v5549 = vpack.c.bf16 %v5368, %v5365
      %v5550 = vpack.c.bf16 %v5376, %v5373
      %v5551 = vpack.c.bf16 %v5384, %v5381
      %v5552 = vpack.c.bf16 %v5392, %v5389
      %v5553 = vpack.c.bf16 %v5400, %v5397
      %v5554 = vpack.c.bf16 %v5408, %v5405
      %v5555 = vpack.c.bf16 %v5416, %v5413
      %v5556 = vpack.c.bf16 %v5424, %v5421
      %v5557 = vpack.c.bf16 %v5432, %v5429
      %v5558 = vpack.c.bf16 %v5440, %v5437
      %v5559 = vpack.c.bf16 %v5448, %v5445
      %v5560 = vpack.c.bf16 %v5456, %v5453
      %v5561 = vpack.c.bf16 %v5464, %v5461
      %v5562 = vpack.c.bf16 %v5472, %v5469
      %v5563 = vpack.c.bf16 %v5480, %v5477
      %v5564 = vpack.c.bf16 %v5488, %v5485
      %v5565 = vpack.c.bf16 %v5496, %v5493
      %v5566 = vpack.c.bf16 %v5504, %v5501
      %v5567 = vpack.c.bf16 %v5512, %v5509
      %v5568 = vpack.c.bf16 %v5520, %v5517
      %v5569 = vpack.c.bf16 %v5528, %v5525
      %v5570 = vpack.c.bf16 %v5536, %v5533
      %v5571 = vld [vmem:[%s4] sm:$0x2]
      %v5573 = vpack.i.b16 %v5571, %v5571
      %v5575 = vlaneseq
      %v5576 = vshrl.u32 %v5575, 7
      %v5577 = vsub.s32 1, %v5576
      %v5578 = vrot.slane %v5573, %v5577
      %v5579 = vadd.bf16 %v5539, %v5578
      %v5580 = vadd.bf16 %v5540, %v5578
      %v5581 = vadd.bf16 %v5541, %v5578
      %v5582 = vadd.bf16 %v5542, %v5578
      %v5583 = vadd.bf16 %v5543, %v5578
      %v5584 = vadd.bf16 %v5544, %v5578
      %v5585 = vadd.bf16 %v5545, %v5578
      %v5586 = vadd.bf16 %v5546, %v5578
      %v5587 = vadd.bf16 %v5547, %v5578
      %v5588 = vadd.bf16 %v5548, %v5578
      %v5589 = vadd.bf16 %v5549, %v5578
      %v5590 = vadd.bf16 %v5550, %v5578
      %v5591 = vadd.bf16 %v5551, %v5578
      %v5592 = vadd.bf16 %v5552, %v5578
      %v5593 = vadd.bf16 %v5553, %v5578
      %v5594 = vadd.bf16 %v5554, %v5578
      %v5595 = vadd.bf16 %v5555, %v5578
      %v5596 = vadd.bf16 %v5556, %v5578
      %v5597 = vadd.bf16 %v5557, %v5578
      %v5598 = vadd.bf16 %v5558, %v5578
      %v5599 = vadd.bf16 %v5559, %v5578
      %v5600 = vadd.bf16 %v5560, %v5578
      %v5601 = vadd.bf16 %v5561, %v5578
      %v5602 = vadd.bf16 %v5562, %v5578
      %v5603 = vadd.bf16 %v5563, %v5578
      %v5604 = vadd.bf16 %v5564, %v5578
      %v5605 = vadd.bf16 %v5565, %v5578
      %v5606 = vadd.bf16 %v5566, %v5578
      %v5607 = vadd.bf16 %v5567, %v5578
      %v5608 = vadd.bf16 %v5568, %v5578
      %v5609 = vadd.bf16 %v5569, %v5578
      %v5610 = vadd.bf16 %v5570, %v5578
      %v5611 = vmul.bf16 %v5579, 1045249613
      %v5612 = vmul.bf16 %v5580, 1045249613
      %v5613 = vmul.bf16 %v5581, 1045249613
      %v5614 = vmul.bf16 %v5582, 1045249613
      %v5615 = vmul.bf16 %v5583, 1045249613
      %v5616 = vmul.bf16 %v5584, 1045249613
      %v5617 = vmul.bf16 %v5585, 1045249613
      %v5618 = vmul.bf16 %v5586, 1045249613
      %v5619 = vmul.bf16 %v5587, 1045249613
      %v5620 = vmul.bf16 %v5588, 1045249613
      %v5621 = vmul.bf16 %v5589, 1045249613
      %v5622 = vmul.bf16 %v5590, 1045249613
      %v5623 = vmul.bf16 %v5591, 1045249613
      %v5624 = vmul.bf16 %v5592, 1045249613
      %v5625 = vmul.bf16 %v5593, 1045249613
      %v5626 = vmul.bf16 %v5594, 1045249613
      %v5627 = vmul.bf16 %v5595, 1045249613
      %v5628 = vmul.bf16 %v5596, 1045249613
      %v5629 = vmul.bf16 %v5597, 1045249613
      %v5630 = vmul.bf16 %v5598, 1045249613
      %v5631 = vmul.bf16 %v5599, 1045249613
      %v5632 = vmul.bf16 %v5600, 1045249613
      %v5633 = vmul.bf16 %v5601, 1045249613
      %v5634 = vmul.bf16 %v5602, 1045249613
      %v5635 = vmul.bf16 %v5603, 1045249613
      %v5636 = vmul.bf16 %v5604, 1045249613
      %v5637 = vmul.bf16 %v5605, 1045249613
      %v5638 = vmul.bf16 %v5606, 1045249613
      %v5639 = vmul.bf16 %v5607, 1045249613
      %v5640 = vmul.bf16 %v5608, 1045249613
      %v5641 = vmul.bf16 %v5609, 1045249613
      %v5642 = vmul.bf16 %v5610, 1045249613
      %v5643 = vmax.bf16 %v5579, %v5611
      %v5644 = vmax.bf16 %v5580, %v5612
      %v5645 = vmax.bf16 %v5581, %v5613
      %v5646 = vmax.bf16 %v5582, %v5614
      %v5647 = vmax.bf16 %v5583, %v5615
      %v5648 = vmax.bf16 %v5584, %v5616
      %v5649 = vmax.bf16 %v5585, %v5617
      %v5650 = vmax.bf16 %v5586, %v5618
      %v5651 = vmax.bf16 %v5587, %v5619
      %v5652 = vmax.bf16 %v5588, %v5620
      %v5653 = vmax.bf16 %v5589, %v5621
      %v5654 = vmax.bf16 %v5590, %v5622
      %v5655 = vmax.bf16 %v5591, %v5623
      %v5656 = vmax.bf16 %v5592, %v5624
      %v5657 = vmax.bf16 %v5593, %v5625
      %v5658 = vmax.bf16 %v5594, %v5626
      %v5659 = vmax.bf16 %v5595, %v5627
      %v5660 = vmax.bf16 %v5596, %v5628
      %v5661 = vmax.bf16 %v5597, %v5629
      %v5662 = vmax.bf16 %v5598, %v5630
      %v5663 = vmax.bf16 %v5599, %v5631
      %v5664 = vmax.bf16 %v5600, %v5632
      %v5665 = vmax.bf16 %v5601, %v5633
      %v5666 = vmax.bf16 %v5602, %v5634
      %v5667 = vmax.bf16 %v5603, %v5635
      %v5668 = vmax.bf16 %v5604, %v5636
      %v5669 = vmax.bf16 %v5605, %v5637
      %v5670 = vmax.bf16 %v5606, %v5638
      %v5671 = vmax.bf16 %v5607, %v5639
      %v5672 = vmax.bf16 %v5608, %v5640
      %v5673 = vmax.bf16 %v5609, %v5641
      %v5674 = vmax.bf16 %v5610, %v5642
      %s5675 = scalar_lea.vmem %s2, 384
      %v5676 = vld [vmem:[%s5675] sm:$0xf]
      %v5677 = vld [vmem:[%s5675 + $0x4] sm:$0xf]
      %v5678 = vld [vmem:[%s5675 + $0x8] sm:$0xf]
      %v5679 = vld [vmem:[%s5675 + $0xc] sm:$0xf]
      %v5680 = vld [vmem:[%s5675 + $0x10] sm:$0xf]
      %v5681 = vld [vmem:[%s5675 + $0x14] sm:$0xf]
      %v5682 = vld [vmem:[%s5675 + $0x18] sm:$0xf]
      %v5683 = vld [vmem:[%s5675 + $0x1c] sm:$0xf]
      %v5684 = vld [vmem:[%s5675 + $0x20] sm:$0xf]
      %v5685 = vld [vmem:[%s5675 + $0x24] sm:$0xf]
      %v5686 = vld [vmem:[%s5675 + $0x28] sm:$0xf]
      %v5687 = vld [vmem:[%s5675 + $0x2c] sm:$0xf]
      %v5688 = vld [vmem:[%s5675 + $0x30] sm:$0xf]
      %v5689 = vld [vmem:[%s5675 + $0x34] sm:$0xf]
      %v5690 = vld [vmem:[%s5675 + $0x38] sm:$0xf]
      %v5691 = vld [vmem:[%s5675 + $0x3c] sm:$0xf]
      %v5708 = vunpack.c.l.b16 %v5676
      %v5709 = vunpack.c.l.b16 %v5677
      %v5710 = vunpack.c.l.b16 %v5678
      %v5711 = vunpack.c.l.b16 %v5679
      %v5712 = vunpack.c.l.b16 %v5680
      %v5713 = vunpack.c.l.b16 %v5681
      %v5714 = vunpack.c.l.b16 %v5682
      %v5715 = vunpack.c.l.b16 %v5683
      %v5716 = vunpack.c.l.b16 %v5684
      %v5717 = vunpack.c.l.b16 %v5685
      %v5718 = vunpack.c.l.b16 %v5686
      %v5719 = vunpack.c.l.b16 %v5687
      %v5720 = vunpack.c.l.b16 %v5688
      %v5721 = vunpack.c.l.b16 %v5689
      %v5722 = vunpack.c.l.b16 %v5690
      %v5723 = vunpack.c.l.b16 %v5691
      %v5724 = vpack.c.b16 %v5709, %v5708
      %v5725 = vpack.c.b16 %v5711, %v5710
      %v5726 = vpack.c.b16 %v5713, %v5712
      %v5727 = vpack.c.b16 %v5715, %v5714
      %v5728 = vpack.c.b16 %v5717, %v5716
      %v5729 = vpack.c.b16 %v5719, %v5718
      %v5730 = vpack.c.b16 %v5721, %v5720
      %v5731 = vpack.c.b16 %v5723, %v5722
      %5740 = vmatprep.subr.bf16.mxu0 0
      %5741 = vmatpush1.bf16.msra.mxu0 %v5724
      %5742 = vmatprep.subr.bf16.mxu0 0
      %5743 = vmatpush1.bf16.msra.mxu0 %v5725
      %5744 = vmatprep.subr.bf16.mxu0 0
      %5745 = vmatpush1.bf16.msra.mxu0 %v5726
      %5746 = vmatprep.subr.bf16.mxu0 0
      %5747 = vmatpush1.bf16.msra.mxu0 %v5727
      %5748 = vmatprep.subr.bf16.mxu0 0
      %5749 = vmatpush1.bf16.msra.mxu0 %v5728
      %5750 = vmatprep.subr.bf16.mxu0 0
      %5751 = vmatpush1.bf16.msra.mxu0 %v5729
      %5752 = vmatprep.subr.bf16.mxu0 0
      %5753 = vmatpush1.bf16.msra.mxu0 %v5730
      %5754 = vmatprep.subr.bf16.mxu0 0
      %5755 = vmatpush1.bf16.msra.mxu0 %v5731
      %5756 = vmatprep.subr.bf16.mxu0 0
      %5757 = vmatpush1.bf16.msra.mxu0 0
      %5758 = vmatprep.subr.bf16.mxu0 0
      %5759 = vmatpush1.bf16.msra.mxu0 0
      %5760 = vmatprep.subr.bf16.mxu0 0
      %5761 = vmatpush1.bf16.msra.mxu0 0
      %5762 = vmatprep.subr.bf16.mxu0 0
      %5763 = vmatpush1.bf16.msra.mxu0 0
      %5764 = vmatprep.subr.bf16.mxu0 0
      %5765 = vmatpush1.bf16.msra.mxu0 0
      %5766 = vmatprep.subr.bf16.mxu0 0
      %5767 = vmatpush1.bf16.msra.mxu0 0
      %5768 = vmatprep.subr.bf16.mxu0 0
      %5769 = vmatpush1.bf16.msra.mxu0 0
      %5770 = vmatprep.subr.bf16.mxu0 0
      %5771 = vmatpush1.bf16.msra.mxu0 0
      %5772 = vmatprep.mubr.bf16.mxu0 0
      %5773 = vmatmul.mubr.bf16.gmra.mrb[0].mxu0 %v5643
      %v5774 = vpop.f32.mrb[0].mxu0
      %v5775 = vadd.f32 0.0, %v5774
      %v5776 = vpop.f32.mrb[0].mxu0
      %v5777 = vpop.f32.mrb[0].mxu0
      %v5778 = vadd.f32 0.0, %v5777
      %v5779 = vpop.f32.mrb[0].mxu0
      %5780 = vmatprep.mubr.bf16.mxu0 0
      %5781 = vmatmul.mubr.bf16.gmra.mrb[0].mxu0 %v5644
      %v5782 = vpop.f32.mrb[0].mxu0
      %v5783 = vadd.f32 0.0, %v5782
      %v5784 = vpop.f32.mrb[0].mxu0
      %v5785 = vpop.f32.mrb[0].mxu0
      %v5786 = vadd.f32 0.0, %v5785
      %v5787 = vpop.f32.mrb[0].mxu0
      %5788 = vmatprep.mubr.bf16.mxu0 0
      %5789 = vmatmul.mubr.bf16.gmra.mrb[0].mxu0 %v5645
      %v5790 = vpop.f32.mrb[0].mxu0
      %v5791 = vadd.f32 0.0, %v5790
      %v5792 = vpop.f32.mrb[0].mxu0
      %v5793 = vpop.f32.mrb[0].mxu0
      %v5794 = vadd.f32 0.0, %v5793
      %v5795 = vpop.f32.mrb[0].mxu0
      %5796 = vmatprep.mubr.bf16.mxu0 0
      %5797 = vmatmul.mubr.bf16.gmra.mrb[0].mxu0 %v5646
      %v5798 = vpop.f32.mrb[0].mxu0
      %v5799 = vadd.f32 0.0, %v5798
      %v5800 = vpop.f32.mrb[0].mxu0
      %v5801 = vpop.f32.mrb[0].mxu0
      %v5802 = vadd.f32 0.0, %v5801
      %v5803 = vpop.f32.mrb[0].mxu0
      %5804 = vmatprep.mubr.bf16.mxu0 0
      %5805 = vmatmul.mubr.bf16.gmra.mrb[0].mxu0 %v5647
      %v5806 = vpop.f32.mrb[0].mxu0
      %v5807 = vadd.f32 0.0, %v5806
      %v5808 = vpop.f32.mrb[0].mxu0
      %v5809 = vpop.f32.mrb[0].mxu0
      %v5810 = vadd.f32 0.0, %v5809
      %v5811 = vpop.f32.mrb[0].mxu0
      %5812 = vmatprep.mubr.bf16.mxu0 0
      %5813 = vmatmul.mubr.bf16.gmra.mrb[0].mxu0 %v5648
      %v5814 = vpop.f32.mrb[0].mxu0
      %v5815 = vadd.f32 0.0, %v5814
      %v5816 = vpop.f32.mrb[0].mxu0
      %v5817 = vpop.f32.mrb[0].mxu0
      %v5818 = vadd.f32 0.0, %v5817
      %v5819 = vpop.f32.mrb[0].mxu0
      %5820 = vmatprep.mubr.bf16.mxu0 0
      %5821 = vmatmul.mubr.bf16.gmra.mrb[0].mxu0 %v5649
      %v5822 = vpop.f32.mrb[0].mxu0
      %v5823 = vadd.f32 0.0, %v5822
      %v5824 = vpop.f32.mrb[0].mxu0
      %v5825 = vpop.f32.mrb[0].mxu0
      %v5826 = vadd.f32 0.0, %v5825
      %v5827 = vpop.f32.mrb[0].mxu0
      %5828 = vmatprep.mubr.bf16.mxu0 0
      %5829 = vmatmul.mubr.bf16.gmra.mrb[0].mxu0 %v5650
      %v5830 = vpop.f32.mrb[0].mxu0
      %v5831 = vadd.f32 0.0, %v5830
      %v5832 = vpop.f32.mrb[0].mxu0
      %v5833 = vpop.f32.mrb[0].mxu0
      %v5834 = vadd.f32 0.0, %v5833
      %v5835 = vpop.f32.mrb[0].mxu0
      %5836 = vmatprep.mubr.bf16.mxu0 0
      %5837 = vmatmul.mubr.bf16.gmra.mrb[0].mxu0 %v5651
      %v5838 = vpop.f32.mrb[0].mxu0
      %v5839 = vadd.f32 0.0, %v5838
      %v5840 = vpop.f32.mrb[0].mxu0
      %v5841 = vpop.f32.mrb[0].mxu0
      %v5842 = vadd.f32 0.0, %v5841
      %v5843 = vpop.f32.mrb[0].mxu0
      %5844 = vmatprep.mubr.bf16.mxu0 0
      %5845 = vmatmul.mubr.bf16.gmra.mrb[0].mxu0 %v5652
      %v5846 = vpop.f32.mrb[0].mxu0
      %v5847 = vadd.f32 0.0, %v5846
      %v5848 = vpop.f32.mrb[0].mxu0
      %v5849 = vpop.f32.mrb[0].mxu0
      %v5850 = vadd.f32 0.0, %v5849
      %v5851 = vpop.f32.mrb[0].mxu0
      %5852 = vmatprep.mubr.bf16.mxu0 0
      %5853 = vmatmul.mubr.bf16.gmra.mrb[0].mxu0 %v5653
      %v5854 = vpop.f32.mrb[0].mxu0
      %v5855 = vadd.f32 0.0, %v5854
      %v5856 = vpop.f32.mrb[0].mxu0
      %v5857 = vpop.f32.mrb[0].mxu0
      %v5858 = vadd.f32 0.0, %v5857
      %v5859 = vpop.f32.mrb[0].mxu0
      %5860 = vmatprep.mubr.bf16.mxu0 0
      %5861 = vmatmul.mubr.bf16.gmra.mrb[0].mxu0 %v5654
      %v5862 = vpop.f32.mrb[0].mxu0
      %v5863 = vadd.f32 0.0, %v5862
      %v5864 = vpop.f32.mrb[0].mxu0
      %v5865 = vpop.f32.mrb[0].mxu0
      %v5866 = vadd.f32 0.0, %v5865
      %v5867 = vpop.f32.mrb[0].mxu0
      %5868 = vmatprep.mubr.bf16.mxu0 0
      %5869 = vmatmul.mubr.bf16.gmra.mrb[0].mxu0 %v5655
      %v5870 = vpop.f32.mrb[0].mxu0
      %v5871 = vadd.f32 0.0, %v5870
      %v5872 = vpop.f32.mrb[0].mxu0
      %v5873 = vpop.f32.mrb[0].mxu0
      %v5874 = vadd.f32 0.0, %v5873
      %v5875 = vpop.f32.mrb[0].mxu0
      %5876 = vmatprep.mubr.bf16.mxu0 0
      %5877 = vmatmul.mubr.bf16.gmra.mrb[0].mxu0 %v5656
      %v5878 = vpop.f32.mrb[0].mxu0
      %v5879 = vadd.f32 0.0, %v5878
      %v5880 = vpop.f32.mrb[0].mxu0
      %v5881 = vpop.f32.mrb[0].mxu0
      %v5882 = vadd.f32 0.0, %v5881
      %v5883 = vpop.f32.mrb[0].mxu0
      %5884 = vmatprep.mubr.bf16.mxu0 0
      %5885 = vmatmul.mubr.bf16.gmra.mrb[0].mxu0 %v5657
      %v5886 = vpop.f32.mrb[0].mxu0
      %v5887 = vadd.f32 0.0, %v5886
      %v5888 = vpop.f32.mrb[0].mxu0
      %v5889 = vpop.f32.mrb[0].mxu0
      %v5890 = vadd.f32 0.0, %v5889
      %v5891 = vpop.f32.mrb[0].mxu0
      %5892 = vmatprep.mubr.bf16.mxu0 0
      %5893 = vmatmul.mubr.bf16.gmra.mrb[0].mxu0 %v5658
      %v5894 = vpop.f32.mrb[0].mxu0
      %v5895 = vadd.f32 0.0, %v5894
      %v5896 = vpop.f32.mrb[0].mxu0
      %v5897 = vpop.f32.mrb[0].mxu0
      %v5898 = vadd.f32 0.0, %v5897
      %v5899 = vpop.f32.mrb[0].mxu0
      %5900 = vmatprep.mubr.bf16.mxu0 0
      %5901 = vmatmul.mubr.bf16.gmra.mrb[0].mxu0 %v5659
      %v5902 = vpop.f32.mrb[0].mxu0
      %v5903 = vadd.f32 0.0, %v5902
      %v5904 = vpop.f32.mrb[0].mxu0
      %v5905 = vpop.f32.mrb[0].mxu0
      %v5906 = vadd.f32 0.0, %v5905
      %v5907 = vpop.f32.mrb[0].mxu0
      %5908 = vmatprep.mubr.bf16.mxu0 0
      %5909 = vmatmul.mubr.bf16.gmra.mrb[0].mxu0 %v5660
      %v5910 = vpop.f32.mrb[0].mxu0
      %v5911 = vadd.f32 0.0, %v5910
      %v5912 = vpop.f32.mrb[0].mxu0
      %v5913 = vpop.f32.mrb[0].mxu0
      %v5914 = vadd.f32 0.0, %v5913
      %v5915 = vpop.f32.mrb[0].mxu0
      %5916 = vmatprep.mubr.bf16.mxu0 0
      %5917 = vmatmul.mubr.bf16.gmra.mrb[0].mxu0 %v5661
      %v5918 = vpop.f32.mrb[0].mxu0
      %v5919 = vadd.f32 0.0, %v5918
      %v5920 = vpop.f32.mrb[0].mxu0
      %v5921 = vpop.f32.mrb[0].mxu0
      %v5922 = vadd.f32 0.0, %v5921
      %v5923 = vpop.f32.mrb[0].mxu0
      %5924 = vmatprep.mubr.bf16.mxu0 0
      %5925 = vmatmul.mubr.bf16.gmra.mrb[0].mxu0 %v5662
      %v5926 = vpop.f32.mrb[0].mxu0
      %v5927 = vadd.f32 0.0, %v5926
      %v5928 = vpop.f32.mrb[0].mxu0
      %v5929 = vpop.f32.mrb[0].mxu0
      %v5930 = vadd.f32 0.0, %v5929
      %v5931 = vpop.f32.mrb[0].mxu0
      %5932 = vmatprep.mubr.bf16.mxu0 0
      %5933 = vmatmul.mubr.bf16.gmra.mrb[0].mxu0 %v5663
      %v5934 = vpop.f32.mrb[0].mxu0
      %v5935 = vadd.f32 0.0, %v5934
      %v5936 = vpop.f32.mrb[0].mxu0
      %v5937 = vpop.f32.mrb[0].mxu0
      %v5938 = vadd.f32 0.0, %v5937
      %v5939 = vpop.f32.mrb[0].mxu0
      %5940 = vmatprep.mubr.bf16.mxu0 0
      %5941 = vmatmul.mubr.bf16.gmra.mrb[0].mxu0 %v5664
      %v5942 = vpop.f32.mrb[0].mxu0
      %v5943 = vadd.f32 0.0, %v5942
      %v5944 = vpop.f32.mrb[0].mxu0
      %v5945 = vpop.f32.mrb[0].mxu0
      %v5946 = vadd.f32 0.0, %v5945
      %v5947 = vpop.f32.mrb[0].mxu0
      %5948 = vmatprep.mubr.bf16.mxu0 0
      %5949 = vmatmul.mubr.bf16.gmra.mrb[0].mxu0 %v5665
      %v5950 = vpop.f32.mrb[0].mxu0
      %v5951 = vadd.f32 0.0, %v5950
      %v5952 = vpop.f32.mrb[0].mxu0
      %v5953 = vpop.f32.mrb[0].mxu0
      %v5954 = vadd.f32 0.0, %v5953
      %v5955 = vpop.f32.mrb[0].mxu0
      %5956 = vmatprep.mubr.bf16.mxu0 0
      %5957 = vmatmul.mubr.bf16.gmra.mrb[0].mxu0 %v5666
      %v5958 = vpop.f32.mrb[0].mxu0
      %v5959 = vadd.f32 0.0, %v5958
      %v5960 = vpop.f32.mrb[0].mxu0
      %v5961 = vpop.f32.mrb[0].mxu0
      %v5962 = vadd.f32 0.0, %v5961
      %v5963 = vpop.f32.mrb[0].mxu0
      %5964 = vmatprep.mubr.bf16.mxu0 0
      %5965 = vmatmul.mubr.bf16.gmra.mrb[0].mxu0 %v5667
      %v5966 = vpop.f32.mrb[0].mxu0
      %v5967 = vadd.f32 0.0, %v5966
      %v5968 = vpop.f32.mrb[0].mxu0
      %v5969 = vpop.f32.mrb[0].mxu0
      %v5970 = vadd.f32 0.0, %v5969
      %v5971 = vpop.f32.mrb[0].mxu0
      %5972 = vmatprep.mubr.bf16.mxu0 0
      %5973 = vmatmul.mubr.bf16.gmra.mrb[0].mxu0 %v5668
      %v5974 = vpop.f32.mrb[0].mxu0
      %v5975 = vadd.f32 0.0, %v5974
      %v5976 = vpop.f32.mrb[0].mxu0
      %v5977 = vpop.f32.mrb[0].mxu0
      %v5978 = vadd.f32 0.0, %v5977
      %v5979 = vpop.f32.mrb[0].mxu0
      %5980 = vmatprep.mubr.bf16.mxu0 0
      %5981 = vmatmul.mubr.bf16.gmra.mrb[0].mxu0 %v5669
      %v5982 = vpop.f32.mrb[0].mxu0
      %v5983 = vadd.f32 0.0, %v5982
      %v5984 = vpop.f32.mrb[0].mxu0
      %v5985 = vpop.f32.mrb[0].mxu0
      %v5986 = vadd.f32 0.0, %v5985
      %v5987 = vpop.f32.mrb[0].mxu0
      %5988 = vmatprep.mubr.bf16.mxu0 0
      %5989 = vmatmul.mubr.bf16.gmra.mrb[0].mxu0 %v5670
      %v5990 = vpop.f32.mrb[0].mxu0
      %v5991 = vadd.f32 0.0, %v5990
      %v5992 = vpop.f32.mrb[0].mxu0
      %v5993 = vpop.f32.mrb[0].mxu0
      %v5994 = vadd.f32 0.0, %v5993
      %v5995 = vpop.f32.mrb[0].mxu0
      %5996 = vmatprep.mubr.bf16.mxu0 0
      %5997 = vmatmul.mubr.bf16.gmra.mrb[0].mxu0 %v5671
      %v5998 = vpop.f32.mrb[0].mxu0
      %v5999 = vadd.f32 0.0, %v5998
      %v6000 = vpop.f32.mrb[0].mxu0
      %v6001 = vpop.f32.mrb[0].mxu0
      %v6002 = vadd.f32 0.0, %v6001
      %v6003 = vpop.f32.mrb[0].mxu0
      %6004 = vmatprep.mubr.bf16.mxu0 0
      %6005 = vmatmul.mubr.bf16.gmra.mrb[0].mxu0 %v5672
      %v6006 = vpop.f32.mrb[0].mxu0
      %v6007 = vadd.f32 0.0, %v6006
      %v6008 = vpop.f32.mrb[0].mxu0
      %v6009 = vpop.f32.mrb[0].mxu0
      %v6010 = vadd.f32 0.0, %v6009
      %v6011 = vpop.f32.mrb[0].mxu0
      %6012 = vmatprep.mubr.bf16.mxu0 0
      %6013 = vmatmul.mubr.bf16.gmra.mrb[0].mxu0 %v5673
      %v6014 = vpop.f32.mrb[0].mxu0
      %v6015 = vadd.f32 0.0, %v6014
      %v6016 = vpop.f32.mrb[0].mxu0
      %v6017 = vpop.f32.mrb[0].mxu0
      %v6018 = vadd.f32 0.0, %v6017
      %v6019 = vpop.f32.mrb[0].mxu0
      %6020 = vmatprep.mubr.bf16.mxu0 0
      %6021 = vmatmul.mubr.bf16.gmra.mrb[0].mxu0 %v5674
      %v6022 = vpop.f32.mrb[0].mxu0
      %v6023 = vadd.f32 0.0, %v6022
      %v6024 = vpop.f32.mrb[0].mxu0
      %v6025 = vpop.f32.mrb[0].mxu0
      %v6026 = vadd.f32 0.0, %v6025
      %v6027 = vpop.f32.mrb[0].mxu0
      %6028 = vdwg.mxu0
      %v6029 = vpack.c.bf16 %v5778, %v5775
      %v6030 = vpack.c.bf16 %v5786, %v5783
      %v6031 = vpack.c.bf16 %v5794, %v5791
      %v6032 = vpack.c.bf16 %v5802, %v5799
      %v6033 = vpack.c.bf16 %v5810, %v5807
      %v6034 = vpack.c.bf16 %v5818, %v5815
      %v6035 = vpack.c.bf16 %v5826, %v5823
      %v6036 = vpack.c.bf16 %v5834, %v5831
      %v6037 = vpack.c.bf16 %v5842, %v5839
      %v6038 = vpack.c.bf16 %v5850, %v5847
      %v6039 = vpack.c.bf16 %v5858, %v5855
      %v6040 = vpack.c.bf16 %v5866, %v5863
      %v6041 = vpack.c.bf16 %v5874, %v5871
      %v6042 = vpack.c.bf16 %v5882, %v5879
      %v6043 = vpack.c.bf16 %v5890, %v5887
      %v6044 = vpack.c.bf16 %v5898, %v5895
      %v6045 = vpack.c.bf16 %v5906, %v5903
      %v6046 = vpack.c.bf16 %v5914, %v5911
      %v6047 = vpack.c.bf16 %v5922, %v5919
      %v6048 = vpack.c.bf16 %v5930, %v5927
      %v6049 = vpack.c.bf16 %v5938, %v5935
      %v6050 = vpack.c.bf16 %v5946, %v5943
      %v6051 = vpack.c.bf16 %v5954, %v5951
      %v6052 = vpack.c.bf16 %v5962, %v5959
      %v6053 = vpack.c.bf16 %v5970, %v5967
      %v6054 = vpack.c.bf16 %v5978, %v5975
      %v6055 = vpack.c.bf16 %v5986, %v5983
      %v6056 = vpack.c.bf16 %v5994, %v5991
      %v6057 = vpack.c.bf16 %v6002, %v5999
      %v6058 = vpack.c.bf16 %v6010, %v6007
      %v6059 = vpack.c.bf16 %v6018, %v6015
      %v6060 = vpack.c.bf16 %v6026, %v6023
      %v6061 = vld [vmem:[%s5] sm:$0x8]
      %v6063 = vpack.i.b16 %v6061, %v6061
      %v6065 = vlaneseq
      %v6066 = vshrl.u32 %v6065, 7
      %v6067 = vsub.s32 3, %v6066
      %v6068 = vrot.slane %v6063, %v6067
      %v6069 = vadd.bf16 %v6029, %v6068
      %v6070 = vadd.bf16 %v6030, %v6068
      %v6071 = vadd.bf16 %v6031, %v6068
      %v6072 = vadd.bf16 %v6032, %v6068
      %v6073 = vadd.bf16 %v6033, %v6068
      %v6074 = vadd.bf16 %v6034, %v6068
      %v6075 = vadd.bf16 %v6035, %v6068
      %v6076 = vadd.bf16 %v6036, %v6068
      %v6077 = vadd.bf16 %v6037, %v6068
      %v6078 = vadd.bf16 %v6038, %v6068
      %v6079 = vadd.bf16 %v6039, %v6068
      %v6080 = vadd.bf16 %v6040, %v6068
      %v6081 = vadd.bf16 %v6041, %v6068
      %v6082 = vadd.bf16 %v6042, %v6068
      %v6083 = vadd.bf16 %v6043, %v6068
      %v6084 = vadd.bf16 %v6044, %v6068
      %v6085 = vadd.bf16 %v6045, %v6068
      %v6086 = vadd.bf16 %v6046, %v6068
      %v6087 = vadd.bf16 %v6047, %v6068
      %v6088 = vadd.bf16 %v6048, %v6068
      %v6089 = vadd.bf16 %v6049, %v6068
      %v6090 = vadd.bf16 %v6050, %v6068
      %v6091 = vadd.bf16 %v6051, %v6068
      %v6092 = vadd.bf16 %v6052, %v6068
      %v6093 = vadd.bf16 %v6053, %v6068
      %v6094 = vadd.bf16 %v6054, %v6068
      %v6095 = vadd.bf16 %v6055, %v6068
      %v6096 = vadd.bf16 %v6056, %v6068
      %v6097 = vadd.bf16 %v6057, %v6068
      %v6098 = vadd.bf16 %v6058, %v6068
      %v6099 = vadd.bf16 %v6059, %v6068
      %v6100 = vadd.bf16 %v6060, %v6068
      %v6101 = vmul.bf16 %v6069, 1045249613
      %v6102 = vmul.bf16 %v6070, 1045249613
      %v6103 = vmul.bf16 %v6071, 1045249613
      %v6104 = vmul.bf16 %v6072, 1045249613
      %v6105 = vmul.bf16 %v6073, 1045249613
      %v6106 = vmul.bf16 %v6074, 1045249613
      %v6107 = vmul.bf16 %v6075, 1045249613
      %v6108 = vmul.bf16 %v6076, 1045249613
      %v6109 = vmul.bf16 %v6077, 1045249613
      %v6110 = vmul.bf16 %v6078, 1045249613
      %v6111 = vmul.bf16 %v6079, 1045249613
      %v6112 = vmul.bf16 %v6080, 1045249613
      %v6113 = vmul.bf16 %v6081, 1045249613
      %v6114 = vmul.bf16 %v6082, 1045249613
      %v6115 = vmul.bf16 %v6083, 1045249613
      %v6116 = vmul.bf16 %v6084, 1045249613
      %v6117 = vmul.bf16 %v6085, 1045249613
      %v6118 = vmul.bf16 %v6086, 1045249613
      %v6119 = vmul.bf16 %v6087, 1045249613
      %v6120 = vmul.bf16 %v6088, 1045249613
      %v6121 = vmul.bf16 %v6089, 1045249613
      %v6122 = vmul.bf16 %v6090, 1045249613
      %v6123 = vmul.bf16 %v6091, 1045249613
      %v6124 = vmul.bf16 %v6092, 1045249613
      %v6125 = vmul.bf16 %v6093, 1045249613
      %v6126 = vmul.bf16 %v6094, 1045249613
      %v6127 = vmul.bf16 %v6095, 1045249613
      %v6128 = vmul.bf16 %v6096, 1045249613
      %v6129 = vmul.bf16 %v6097, 1045249613
      %v6130 = vmul.bf16 %v6098, 1045249613
      %v6131 = vmul.bf16 %v6099, 1045249613
      %v6132 = vmul.bf16 %v6100, 1045249613
      %v6133 = vmax.bf16 %v6069, %v6101
      %v6134 = vmax.bf16 %v6070, %v6102
      %v6135 = vmax.bf16 %v6071, %v6103
      %v6136 = vmax.bf16 %v6072, %v6104
      %v6137 = vmax.bf16 %v6073, %v6105
      %v6138 = vmax.bf16 %v6074, %v6106
      %v6139 = vmax.bf16 %v6075, %v6107
      %v6140 = vmax.bf16 %v6076, %v6108
      %v6141 = vmax.bf16 %v6077, %v6109
      %v6142 = vmax.bf16 %v6078, %v6110
      %v6143 = vmax.bf16 %v6079, %v6111
      %v6144 = vmax.bf16 %v6080, %v6112
      %v6145 = vmax.bf16 %v6081, %v6113
      %v6146 = vmax.bf16 %v6082, %v6114
      %v6147 = vmax.bf16 %v6083, %v6115
      %v6148 = vmax.bf16 %v6084, %v6116
      %v6149 = vmax.bf16 %v6085, %v6117
      %v6150 = vmax.bf16 %v6086, %v6118
      %v6151 = vmax.bf16 %v6087, %v6119
      %v6152 = vmax.bf16 %v6088, %v6120
      %v6153 = vmax.bf16 %v6089, %v6121
      %v6154 = vmax.bf16 %v6090, %v6122
      %v6155 = vmax.bf16 %v6091, %v6123
      %v6156 = vmax.bf16 %v6092, %v6124
      %v6157 = vmax.bf16 %v6093, %v6125
      %v6158 = vmax.bf16 %v6094, %v6126
      %v6159 = vmax.bf16 %v6095, %v6127
      %v6160 = vmax.bf16 %v6096, %v6128
      %v6161 = vmax.bf16 %v6097, %v6129
      %v6162 = vmax.bf16 %v6098, %v6130
      %v6163 = vmax.bf16 %v6099, %v6131
      %v6164 = vmax.bf16 %v6100, %v6132
      %s6165 = scalar_lea.vmem %s2, 448
      %v6166 = vld [vmem:[%s6165] sm:$0xf]
      %v6167 = vld [vmem:[%s6165 + $0x4] sm:$0xf]
      %v6168 = vld [vmem:[%s6165 + $0x8] sm:$0xf]
      %v6169 = vld [vmem:[%s6165 + $0xc] sm:$0xf]
      %v6170 = vld [vmem:[%s6165 + $0x10] sm:$0xf]
      %v6171 = vld [vmem:[%s6165 + $0x14] sm:$0xf]
      %v6172 = vld [vmem:[%s6165 + $0x18] sm:$0xf]
      %v6173 = vld [vmem:[%s6165 + $0x1c] sm:$0xf]
      %v6174 = vld [vmem:[%s6165 + $0x20] sm:$0xf]
      %v6175 = vld [vmem:[%s6165 + $0x24] sm:$0xf]
      %v6176 = vld [vmem:[%s6165 + $0x28] sm:$0xf]
      %v6177 = vld [vmem:[%s6165 + $0x2c] sm:$0xf]
      %v6178 = vld [vmem:[%s6165 + $0x30] sm:$0xf]
      %v6179 = vld [vmem:[%s6165 + $0x34] sm:$0xf]
      %v6180 = vld [vmem:[%s6165 + $0x38] sm:$0xf]
      %v6181 = vld [vmem:[%s6165 + $0x3c] sm:$0xf]
      %v6198 = vunpack.c.l.b16 %v6166
      %v6199 = vunpack.c.l.b16 %v6167
      %v6200 = vunpack.c.l.b16 %v6168
      %v6201 = vunpack.c.l.b16 %v6169
      %v6202 = vunpack.c.l.b16 %v6170
      %v6203 = vunpack.c.l.b16 %v6171
      %v6204 = vunpack.c.l.b16 %v6172
      %v6205 = vunpack.c.l.b16 %v6173
      %v6206 = vunpack.c.l.b16 %v6174
      %v6207 = vunpack.c.l.b16 %v6175
      %v6208 = vunpack.c.l.b16 %v6176
      %v6209 = vunpack.c.l.b16 %v6177
      %v6210 = vunpack.c.l.b16 %v6178
      %v6211 = vunpack.c.l.b16 %v6179
      %v6212 = vunpack.c.l.b16 %v6180
      %v6213 = vunpack.c.l.b16 %v6181
      %v6214 = vpack.c.b16 %v6199, %v6198
      %v6215 = vpack.c.b16 %v6201, %v6200
      %v6216 = vpack.c.b16 %v6203, %v6202
      %v6217 = vpack.c.b16 %v6205, %v6204
      %v6218 = vpack.c.b16 %v6207, %v6206
      %v6219 = vpack.c.b16 %v6209, %v6208
      %v6220 = vpack.c.b16 %v6211, %v6210
      %v6221 = vpack.c.b16 %v6213, %v6212
      %6230 = vmatprep.subr.bf16.mxu0 0
      %6231 = vmatpush1.bf16.msra.mxu0 %v6214
      %6232 = vmatprep.subr.bf16.mxu0 0
      %6233 = vmatpush1.bf16.msra.mxu0 %v6215
      %6234 = vmatprep.subr.bf16.mxu0 0
      %6235 = vmatpush1.bf16.msra.mxu0 %v6216
      %6236 = vmatprep.subr.bf16.mxu0 0
      %6237 = vmatpush1.bf16.msra.mxu0 %v6217
      %6238 = vmatprep.subr.bf16.mxu0 0
      %6239 = vmatpush1.bf16.msra.mxu0 %v6218
      %6240 = vmatprep.subr.bf16.mxu0 0
      %6241 = vmatpush1.bf16.msra.mxu0 %v6219
      %6242 = vmatprep.subr.bf16.mxu0 0
      %6243 = vmatpush1.bf16.msra.mxu0 %v6220
      %6244 = vmatprep.subr.bf16.mxu0 0
      %6245 = vmatpush1.bf16.msra.mxu0 %v6221
      %6246 = vmatprep.subr.bf16.mxu0 0
      %6247 = vmatpush1.bf16.msra.mxu0 0
      %6248 = vmatprep.subr.bf16.mxu0 0
      %6249 = vmatpush1.bf16.msra.mxu0 0
      %6250 = vmatprep.subr.bf16.mxu0 0
      %6251 = vmatpush1.bf16.msra.mxu0 0
      %6252 = vmatprep.subr.bf16.mxu0 0
      %6253 = vmatpush1.bf16.msra.mxu0 0
      %6254 = vmatprep.subr.bf16.mxu0 0
      %6255 = vmatpush1.bf16.msra.mxu0 0
      %6256 = vmatprep.subr.bf16.mxu0 0
      %6257 = vmatpush1.bf16.msra.mxu0 0
      %6258 = vmatprep.subr.bf16.mxu0 0
      %6259 = vmatpush1.bf16.msra.mxu0 0
      %6260 = vmatprep.subr.bf16.mxu0 0
      %6261 = vmatpush1.bf16.msra.mxu0 0
      %6262 = vmatprep.mubr.bf16.mxu0 0
      %6263 = vmatmul.mubr.bf16.gmra.mrb[0].mxu0 %v6133
      %v6264 = vpop.f32.mrb[0].mxu0
      %v6265 = vadd.f32 0.0, %v6264
      %v6266 = vpop.f32.mrb[0].mxu0
      %v6267 = vpop.f32.mrb[0].mxu0
      %v6268 = vadd.f32 0.0, %v6267
      %v6269 = vpop.f32.mrb[0].mxu0
      %6270 = vmatprep.mubr.bf16.mxu0 0
      %6271 = vmatmul.mubr.bf16.gmra.mrb[0].mxu0 %v6134
      %v6272 = vpop.f32.mrb[0].mxu0
      %v6273 = vadd.f32 0.0, %v6272
      %v6274 = vpop.f32.mrb[0].mxu0
      %v6275 = vpop.f32.mrb[0].mxu0
      %v6276 = vadd.f32 0.0, %v6275
      %v6277 = vpop.f32.mrb[0].mxu0
      %6278 = vmatprep.mubr.bf16.mxu0 0
      %6279 = vmatmul.mubr.bf16.gmra.mrb[0].mxu0 %v6135
      %v6280 = vpop.f32.mrb[0].mxu0
      %v6281 = vadd.f32 0.0, %v6280
      %v6282 = vpop.f32.mrb[0].mxu0
      %v6283 = vpop.f32.mrb[0].mxu0
      %v6284 = vadd.f32 0.0, %v6283
      %v6285 = vpop.f32.mrb[0].mxu0
      %6286 = vmatprep.mubr.bf16.mxu0 0
      %6287 = vmatmul.mubr.bf16.gmra.mrb[0].mxu0 %v6136
      %v6288 = vpop.f32.mrb[0].mxu0
      %v6289 = vadd.f32 0.0, %v6288
      %v6290 = vpop.f32.mrb[0].mxu0
      %v6291 = vpop.f32.mrb[0].mxu0
      %v6292 = vadd.f32 0.0, %v6291
      %v6293 = vpop.f32.mrb[0].mxu0
      %6294 = vmatprep.mubr.bf16.mxu0 0
      %6295 = vmatmul.mubr.bf16.gmra.mrb[0].mxu0 %v6137
      %v6296 = vpop.f32.mrb[0].mxu0
      %v6297 = vadd.f32 0.0, %v6296
      %v6298 = vpop.f32.mrb[0].mxu0
      %v6299 = vpop.f32.mrb[0].mxu0
      %v6300 = vadd.f32 0.0, %v6299
      %v6301 = vpop.f32.mrb[0].mxu0
      %6302 = vmatprep.mubr.bf16.mxu0 0
      %6303 = vmatmul.mubr.bf16.gmra.mrb[0].mxu0 %v6138
      %v6304 = vpop.f32.mrb[0].mxu0
      %v6305 = vadd.f32 0.0, %v6304
      %v6306 = vpop.f32.mrb[0].mxu0
      %v6307 = vpop.f32.mrb[0].mxu0
      %v6308 = vadd.f32 0.0, %v6307
      %v6309 = vpop.f32.mrb[0].mxu0
      %6310 = vmatprep.mubr.bf16.mxu0 0
      %6311 = vmatmul.mubr.bf16.gmra.mrb[0].mxu0 %v6139
      %v6312 = vpop.f32.mrb[0].mxu0
      %v6313 = vadd.f32 0.0, %v6312
      %v6314 = vpop.f32.mrb[0].mxu0
      %v6315 = vpop.f32.mrb[0].mxu0
      %v6316 = vadd.f32 0.0, %v6315
      %v6317 = vpop.f32.mrb[0].mxu0
      %6318 = vmatprep.mubr.bf16.mxu0 0
      %6319 = vmatmul.mubr.bf16.gmra.mrb[0].mxu0 %v6140
      %v6320 = vpop.f32.mrb[0].mxu0
      %v6321 = vadd.f32 0.0, %v6320
      %v6322 = vpop.f32.mrb[0].mxu0
      %v6323 = vpop.f32.mrb[0].mxu0
      %v6324 = vadd.f32 0.0, %v6323
      %v6325 = vpop.f32.mrb[0].mxu0
      %6326 = vmatprep.mubr.bf16.mxu0 0
      %6327 = vmatmul.mubr.bf16.gmra.mrb[0].mxu0 %v6141
      %v6328 = vpop.f32.mrb[0].mxu0
      %v6329 = vadd.f32 0.0, %v6328
      %v6330 = vpop.f32.mrb[0].mxu0
      %v6331 = vpop.f32.mrb[0].mxu0
      %v6332 = vadd.f32 0.0, %v6331
      %v6333 = vpop.f32.mrb[0].mxu0
      %6334 = vmatprep.mubr.bf16.mxu0 0
      %6335 = vmatmul.mubr.bf16.gmra.mrb[0].mxu0 %v6142
      %v6336 = vpop.f32.mrb[0].mxu0
      %v6337 = vadd.f32 0.0, %v6336
      %v6338 = vpop.f32.mrb[0].mxu0
      %v6339 = vpop.f32.mrb[0].mxu0
      %v6340 = vadd.f32 0.0, %v6339
      %v6341 = vpop.f32.mrb[0].mxu0
      %6342 = vmatprep.mubr.bf16.mxu0 0
      %6343 = vmatmul.mubr.bf16.gmra.mrb[0].mxu0 %v6143
      %v6344 = vpop.f32.mrb[0].mxu0
      %v6345 = vadd.f32 0.0, %v6344
      %v6346 = vpop.f32.mrb[0].mxu0
      %v6347 = vpop.f32.mrb[0].mxu0
      %v6348 = vadd.f32 0.0, %v6347
      %v6349 = vpop.f32.mrb[0].mxu0
      %6350 = vmatprep.mubr.bf16.mxu0 0
      %6351 = vmatmul.mubr.bf16.gmra.mrb[0].mxu0 %v6144
      %v6352 = vpop.f32.mrb[0].mxu0
      %v6353 = vadd.f32 0.0, %v6352
      %v6354 = vpop.f32.mrb[0].mxu0
      %v6355 = vpop.f32.mrb[0].mxu0
      %v6356 = vadd.f32 0.0, %v6355
      %v6357 = vpop.f32.mrb[0].mxu0
      %6358 = vmatprep.mubr.bf16.mxu0 0
      %6359 = vmatmul.mubr.bf16.gmra.mrb[0].mxu0 %v6145
      %v6360 = vpop.f32.mrb[0].mxu0
      %v6361 = vadd.f32 0.0, %v6360
      %v6362 = vpop.f32.mrb[0].mxu0
      %v6363 = vpop.f32.mrb[0].mxu0
      %v6364 = vadd.f32 0.0, %v6363
      %v6365 = vpop.f32.mrb[0].mxu0
      %6366 = vmatprep.mubr.bf16.mxu0 0
      %6367 = vmatmul.mubr.bf16.gmra.mrb[0].mxu0 %v6146
      %v6368 = vpop.f32.mrb[0].mxu0
      %v6369 = vadd.f32 0.0, %v6368
      %v6370 = vpop.f32.mrb[0].mxu0
      %v6371 = vpop.f32.mrb[0].mxu0
      %v6372 = vadd.f32 0.0, %v6371
      %v6373 = vpop.f32.mrb[0].mxu0
      %6374 = vmatprep.mubr.bf16.mxu0 0
      %6375 = vmatmul.mubr.bf16.gmra.mrb[0].mxu0 %v6147
      %v6376 = vpop.f32.mrb[0].mxu0
      %v6377 = vadd.f32 0.0, %v6376
      %v6378 = vpop.f32.mrb[0].mxu0
      %v6379 = vpop.f32.mrb[0].mxu0
      %v6380 = vadd.f32 0.0, %v6379
      %v6381 = vpop.f32.mrb[0].mxu0
      %6382 = vmatprep.mubr.bf16.mxu0 0
      %6383 = vmatmul.mubr.bf16.gmra.mrb[0].mxu0 %v6148
      %v6384 = vpop.f32.mrb[0].mxu0
      %v6385 = vadd.f32 0.0, %v6384
      %v6386 = vpop.f32.mrb[0].mxu0
      %v6387 = vpop.f32.mrb[0].mxu0
      %v6388 = vadd.f32 0.0, %v6387
      %v6389 = vpop.f32.mrb[0].mxu0
      %6390 = vmatprep.mubr.bf16.mxu0 0
      %6391 = vmatmul.mubr.bf16.gmra.mrb[0].mxu0 %v6149
      %v6392 = vpop.f32.mrb[0].mxu0
      %v6393 = vadd.f32 0.0, %v6392
      %v6394 = vpop.f32.mrb[0].mxu0
      %v6395 = vpop.f32.mrb[0].mxu0
      %v6396 = vadd.f32 0.0, %v6395
      %v6397 = vpop.f32.mrb[0].mxu0
      %6398 = vmatprep.mubr.bf16.mxu0 0
      %6399 = vmatmul.mubr.bf16.gmra.mrb[0].mxu0 %v6150
      %v6400 = vpop.f32.mrb[0].mxu0
      %v6401 = vadd.f32 0.0, %v6400
      %v6402 = vpop.f32.mrb[0].mxu0
      %v6403 = vpop.f32.mrb[0].mxu0
      %v6404 = vadd.f32 0.0, %v6403
      %v6405 = vpop.f32.mrb[0].mxu0
      %6406 = vmatprep.mubr.bf16.mxu0 0
      %6407 = vmatmul.mubr.bf16.gmra.mrb[0].mxu0 %v6151
      %v6408 = vpop.f32.mrb[0].mxu0
      %v6409 = vadd.f32 0.0, %v6408
      %v6410 = vpop.f32.mrb[0].mxu0
      %v6411 = vpop.f32.mrb[0].mxu0
      %v6412 = vadd.f32 0.0, %v6411
      %v6413 = vpop.f32.mrb[0].mxu0
      %6414 = vmatprep.mubr.bf16.mxu0 0
      %6415 = vmatmul.mubr.bf16.gmra.mrb[0].mxu0 %v6152
      %v6416 = vpop.f32.mrb[0].mxu0
      %v6417 = vadd.f32 0.0, %v6416
      %v6418 = vpop.f32.mrb[0].mxu0
      %v6419 = vpop.f32.mrb[0].mxu0
      %v6420 = vadd.f32 0.0, %v6419
      %v6421 = vpop.f32.mrb[0].mxu0
      %6422 = vmatprep.mubr.bf16.mxu0 0
      %6423 = vmatmul.mubr.bf16.gmra.mrb[0].mxu0 %v6153
      %v6424 = vpop.f32.mrb[0].mxu0
      %v6425 = vadd.f32 0.0, %v6424
      %v6426 = vpop.f32.mrb[0].mxu0
      %v6427 = vpop.f32.mrb[0].mxu0
      %v6428 = vadd.f32 0.0, %v6427
      %v6429 = vpop.f32.mrb[0].mxu0
      %6430 = vmatprep.mubr.bf16.mxu0 0
      %6431 = vmatmul.mubr.bf16.gmra.mrb[0].mxu0 %v6154
      %v6432 = vpop.f32.mrb[0].mxu0
      %v6433 = vadd.f32 0.0, %v6432
      %v6434 = vpop.f32.mrb[0].mxu0
      %v6435 = vpop.f32.mrb[0].mxu0
      %v6436 = vadd.f32 0.0, %v6435
      %v6437 = vpop.f32.mrb[0].mxu0
      %6438 = vmatprep.mubr.bf16.mxu0 0
      %6439 = vmatmul.mubr.bf16.gmra.mrb[0].mxu0 %v6155
      %v6440 = vpop.f32.mrb[0].mxu0
      %v6441 = vadd.f32 0.0, %v6440
      %v6442 = vpop.f32.mrb[0].mxu0
      %v6443 = vpop.f32.mrb[0].mxu0
      %v6444 = vadd.f32 0.0, %v6443
      %v6445 = vpop.f32.mrb[0].mxu0
      %6446 = vmatprep.mubr.bf16.mxu0 0
      %6447 = vmatmul.mubr.bf16.gmra.mrb[0].mxu0 %v6156
      %v6448 = vpop.f32.mrb[0].mxu0
      %v6449 = vadd.f32 0.0, %v6448
      %v6450 = vpop.f32.mrb[0].mxu0
      %v6451 = vpop.f32.mrb[0].mxu0
      %v6452 = vadd.f32 0.0, %v6451
      %v6453 = vpop.f32.mrb[0].mxu0
      %6454 = vmatprep.mubr.bf16.mxu0 0
      %6455 = vmatmul.mubr.bf16.gmra.mrb[0].mxu0 %v6157
      %v6456 = vpop.f32.mrb[0].mxu0
      %v6457 = vadd.f32 0.0, %v6456
      %v6458 = vpop.f32.mrb[0].mxu0
      %v6459 = vpop.f32.mrb[0].mxu0
      %v6460 = vadd.f32 0.0, %v6459
      %v6461 = vpop.f32.mrb[0].mxu0
      %6462 = vmatprep.mubr.bf16.mxu0 0
      %6463 = vmatmul.mubr.bf16.gmra.mrb[0].mxu0 %v6158
      %v6464 = vpop.f32.mrb[0].mxu0
      %v6465 = vadd.f32 0.0, %v6464
      %v6466 = vpop.f32.mrb[0].mxu0
      %v6467 = vpop.f32.mrb[0].mxu0
      %v6468 = vadd.f32 0.0, %v6467
      %v6469 = vpop.f32.mrb[0].mxu0
      %6470 = vmatprep.mubr.bf16.mxu0 0
      %6471 = vmatmul.mubr.bf16.gmra.mrb[0].mxu0 %v6159
      %v6472 = vpop.f32.mrb[0].mxu0
      %v6473 = vadd.f32 0.0, %v6472
      %v6474 = vpop.f32.mrb[0].mxu0
      %v6475 = vpop.f32.mrb[0].mxu0
      %v6476 = vadd.f32 0.0, %v6475
      %v6477 = vpop.f32.mrb[0].mxu0
      %6478 = vmatprep.mubr.bf16.mxu0 0
      %6479 = vmatmul.mubr.bf16.gmra.mrb[0].mxu0 %v6160
      %v6480 = vpop.f32.mrb[0].mxu0
      %v6481 = vadd.f32 0.0, %v6480
      %v6482 = vpop.f32.mrb[0].mxu0
      %v6483 = vpop.f32.mrb[0].mxu0
      %v6484 = vadd.f32 0.0, %v6483
      %v6485 = vpop.f32.mrb[0].mxu0
      %6486 = vmatprep.mubr.bf16.mxu0 0
      %6487 = vmatmul.mubr.bf16.gmra.mrb[0].mxu0 %v6161
      %v6488 = vpop.f32.mrb[0].mxu0
      %v6489 = vadd.f32 0.0, %v6488
      %v6490 = vpop.f32.mrb[0].mxu0
      %v6491 = vpop.f32.mrb[0].mxu0
      %v6492 = vadd.f32 0.0, %v6491
      %v6493 = vpop.f32.mrb[0].mxu0
      %6494 = vmatprep.mubr.bf16.mxu0 0
      %6495 = vmatmul.mubr.bf16.gmra.mrb[0].mxu0 %v6162
      %v6496 = vpop.f32.mrb[0].mxu0
      %v6497 = vadd.f32 0.0, %v6496
      %v6498 = vpop.f32.mrb[0].mxu0
      %v6499 = vpop.f32.mrb[0].mxu0
      %v6500 = vadd.f32 0.0, %v6499
      %v6501 = vpop.f32.mrb[0].mxu0
      %6502 = vmatprep.mubr.bf16.mxu0 0
      %6503 = vmatmul.mubr.bf16.gmra.mrb[0].mxu0 %v6163
      %v6504 = vpop.f32.mrb[0].mxu0
      %v6505 = vadd.f32 0.0, %v6504
      %v6506 = vpop.f32.mrb[0].mxu0
      %v6507 = vpop.f32.mrb[0].mxu0
      %v6508 = vadd.f32 0.0, %v6507
      %v6509 = vpop.f32.mrb[0].mxu0
      %6510 = vmatprep.mubr.bf16.mxu0 0
      %6511 = vmatmul.mubr.bf16.gmra.mrb[0].mxu0 %v6164
      %v6512 = vpop.f32.mrb[0].mxu0
      %v6513 = vadd.f32 0.0, %v6512
      %v6514 = vpop.f32.mrb[0].mxu0
      %v6515 = vpop.f32.mrb[0].mxu0
      %v6516 = vadd.f32 0.0, %v6515
      %v6517 = vpop.f32.mrb[0].mxu0
      %6518 = vdwg.mxu0
      %v6519 = vpack.c.bf16 %v6268, %v6265
      %v6520 = vpack.c.bf16 %v6276, %v6273
      %v6521 = vpack.c.bf16 %v6284, %v6281
      %v6522 = vpack.c.bf16 %v6292, %v6289
      %v6523 = vpack.c.bf16 %v6300, %v6297
      %v6524 = vpack.c.bf16 %v6308, %v6305
      %v6525 = vpack.c.bf16 %v6316, %v6313
      %v6526 = vpack.c.bf16 %v6324, %v6321
      %v6527 = vpack.c.bf16 %v6332, %v6329
      %v6528 = vpack.c.bf16 %v6340, %v6337
      %v6529 = vpack.c.bf16 %v6348, %v6345
      %v6530 = vpack.c.bf16 %v6356, %v6353
      %v6531 = vpack.c.bf16 %v6364, %v6361
      %v6532 = vpack.c.bf16 %v6372, %v6369
      %v6533 = vpack.c.bf16 %v6380, %v6377
      %v6534 = vpack.c.bf16 %v6388, %v6385
      %v6535 = vpack.c.bf16 %v6396, %v6393
      %v6536 = vpack.c.bf16 %v6404, %v6401
      %v6537 = vpack.c.bf16 %v6412, %v6409
      %v6538 = vpack.c.bf16 %v6420, %v6417
      %v6539 = vpack.c.bf16 %v6428, %v6425
      %v6540 = vpack.c.bf16 %v6436, %v6433
      %v6541 = vpack.c.bf16 %v6444, %v6441
      %v6542 = vpack.c.bf16 %v6452, %v6449
      %v6543 = vpack.c.bf16 %v6460, %v6457
      %v6544 = vpack.c.bf16 %v6468, %v6465
      %v6545 = vpack.c.bf16 %v6476, %v6473
      %v6546 = vpack.c.bf16 %v6484, %v6481
      %v6547 = vpack.c.bf16 %v6492, %v6489
      %v6548 = vpack.c.bf16 %v6500, %v6497
      %v6549 = vpack.c.bf16 %v6508, %v6505
      %v6550 = vpack.c.bf16 %v6516, %v6513
      %v6551 = vshrl.u32 %v6061, 16
      %v6552 = vpack.i.b16 %v6551, %v6551
      %v6554 = vlaneseq
      %v6555 = vshrl.u32 %v6554, 7
      %v6556 = vsub.s32 3, %v6555
      %v6557 = vrot.slane %v6552, %v6556
      %v6558 = vadd.bf16 %v6519, %v6557
      %v6559 = vadd.bf16 %v6520, %v6557
      %v6560 = vadd.bf16 %v6521, %v6557
      %v6561 = vadd.bf16 %v6522, %v6557
      %v6562 = vadd.bf16 %v6523, %v6557
      %v6563 = vadd.bf16 %v6524, %v6557
      %v6564 = vadd.bf16 %v6525, %v6557
      %v6565 = vadd.bf16 %v6526, %v6557
      %v6566 = vadd.bf16 %v6527, %v6557
      %v6567 = vadd.bf16 %v6528, %v6557
      %v6568 = vadd.bf16 %v6529, %v6557
      %v6569 = vadd.bf16 %v6530, %v6557
      %v6570 = vadd.bf16 %v6531, %v6557
      %v6571 = vadd.bf16 %v6532, %v6557
      %v6572 = vadd.bf16 %v6533, %v6557
      %v6573 = vadd.bf16 %v6534, %v6557
      %v6574 = vadd.bf16 %v6535, %v6557
      %v6575 = vadd.bf16 %v6536, %v6557
      %v6576 = vadd.bf16 %v6537, %v6557
      %v6577 = vadd.bf16 %v6538, %v6557
      %v6578 = vadd.bf16 %v6539, %v6557
      %v6579 = vadd.bf16 %v6540, %v6557
      %v6580 = vadd.bf16 %v6541, %v6557
      %v6581 = vadd.bf16 %v6542, %v6557
      %v6582 = vadd.bf16 %v6543, %v6557
      %v6583 = vadd.bf16 %v6544, %v6557
      %v6584 = vadd.bf16 %v6545, %v6557
      %v6585 = vadd.bf16 %v6546, %v6557
      %v6586 = vadd.bf16 %v6547, %v6557
      %v6587 = vadd.bf16 %v6548, %v6557
      %v6588 = vadd.bf16 %v6549, %v6557
      %v6589 = vadd.bf16 %v6550, %v6557
      %v6590 = vmul.bf16 %v6558, 1045249613
      %v6591 = vmul.bf16 %v6559, 1045249613
      %v6592 = vmul.bf16 %v6560, 1045249613
      %v6593 = vmul.bf16 %v6561, 1045249613
      %v6594 = vmul.bf16 %v6562, 1045249613
      %v6595 = vmul.bf16 %v6563, 1045249613
      %v6596 = vmul.bf16 %v6564, 1045249613
      %v6597 = vmul.bf16 %v6565, 1045249613
      %v6598 = vmul.bf16 %v6566, 1045249613
      %v6599 = vmul.bf16 %v6567, 1045249613
      %v6600 = vmul.bf16 %v6568, 1045249613
      %v6601 = vmul.bf16 %v6569, 1045249613
      %v6602 = vmul.bf16 %v6570, 1045249613
      %v6603 = vmul.bf16 %v6571, 1045249613
      %v6604 = vmul.bf16 %v6572, 1045249613
      %v6605 = vmul.bf16 %v6573, 1045249613
      %v6606 = vmul.bf16 %v6574, 1045249613
      %v6607 = vmul.bf16 %v6575, 1045249613
      %v6608 = vmul.bf16 %v6576, 1045249613
      %v6609 = vmul.bf16 %v6577, 1045249613
      %v6610 = vmul.bf16 %v6578, 1045249613
      %v6611 = vmul.bf16 %v6579, 1045249613
      %v6612 = vmul.bf16 %v6580, 1045249613
      %v6613 = vmul.bf16 %v6581, 1045249613
      %v6614 = vmul.bf16 %v6582, 1045249613
      %v6615 = vmul.bf16 %v6583, 1045249613
      %v6616 = vmul.bf16 %v6584, 1045249613
      %v6617 = vmul.bf16 %v6585, 1045249613
      %v6618 = vmul.bf16 %v6586, 1045249613
      %v6619 = vmul.bf16 %v6587, 1045249613
      %v6620 = vmul.bf16 %v6588, 1045249613
      %v6621 = vmul.bf16 %v6589, 1045249613
      %v6622 = vmax.bf16 %v6558, %v6590
      %v6623 = vmax.bf16 %v6559, %v6591
      %v6624 = vmax.bf16 %v6560, %v6592
      %v6625 = vmax.bf16 %v6561, %v6593
      %v6626 = vmax.bf16 %v6562, %v6594
      %v6627 = vmax.bf16 %v6563, %v6595
      %v6628 = vmax.bf16 %v6564, %v6596
      %v6629 = vmax.bf16 %v6565, %v6597
      %v6630 = vmax.bf16 %v6566, %v6598
      %v6631 = vmax.bf16 %v6567, %v6599
      %v6632 = vmax.bf16 %v6568, %v6600
      %v6633 = vmax.bf16 %v6569, %v6601
      %v6634 = vmax.bf16 %v6570, %v6602
      %v6635 = vmax.bf16 %v6571, %v6603
      %v6636 = vmax.bf16 %v6572, %v6604
      %v6637 = vmax.bf16 %v6573, %v6605
      %v6638 = vmax.bf16 %v6574, %v6606
      %v6639 = vmax.bf16 %v6575, %v6607
      %v6640 = vmax.bf16 %v6576, %v6608
      %v6641 = vmax.bf16 %v6577, %v6609
      %v6642 = vmax.bf16 %v6578, %v6610
      %v6643 = vmax.bf16 %v6579, %v6611
      %v6644 = vmax.bf16 %v6580, %v6612
      %v6645 = vmax.bf16 %v6581, %v6613
      %v6646 = vmax.bf16 %v6582, %v6614
      %v6647 = vmax.bf16 %v6583, %v6615
      %v6648 = vmax.bf16 %v6584, %v6616
      %v6649 = vmax.bf16 %v6585, %v6617
      %v6650 = vmax.bf16 %v6586, %v6618
      %v6651 = vmax.bf16 %v6587, %v6619
      %v6652 = vmax.bf16 %v6588, %v6620
      %v6653 = vmax.bf16 %v6589, %v6621
      %s6654 = scalar_lea.vmem %s2, 512
      %v6655 = vld [vmem:[%s6654] sm:$0xf]
      %v6656 = vld [vmem:[%s6654 + $0x4] sm:$0xf]
      %v6657 = vld [vmem:[%s6654 + $0x8] sm:$0xf]
      %v6658 = vld [vmem:[%s6654 + $0xc] sm:$0xf]
      %v6659 = vld [vmem:[%s6654 + $0x10] sm:$0xf]
      %v6660 = vld [vmem:[%s6654 + $0x14] sm:$0xf]
      %v6661 = vld [vmem:[%s6654 + $0x18] sm:$0xf]
      %v6662 = vld [vmem:[%s6654 + $0x1c] sm:$0xf]
      %v6663 = vld [vmem:[%s6654 + $0x20] sm:$0xf]
      %v6664 = vld [vmem:[%s6654 + $0x24] sm:$0xf]
      %v6665 = vld [vmem:[%s6654 + $0x28] sm:$0xf]
      %v6666 = vld [vmem:[%s6654 + $0x2c] sm:$0xf]
      %v6667 = vld [vmem:[%s6654 + $0x30] sm:$0xf]
      %v6668 = vld [vmem:[%s6654 + $0x34] sm:$0xf]
      %v6669 = vld [vmem:[%s6654 + $0x38] sm:$0xf]
      %v6670 = vld [vmem:[%s6654 + $0x3c] sm:$0xf]
      %v6687 = vunpack.c.l.b16 %v6655
      %v6688 = vunpack.c.l.b16 %v6656
      %v6689 = vunpack.c.l.b16 %v6657
      %v6690 = vunpack.c.l.b16 %v6658
      %v6691 = vunpack.c.l.b16 %v6659
      %v6692 = vunpack.c.l.b16 %v6660
      %v6693 = vunpack.c.l.b16 %v6661
      %v6694 = vunpack.c.l.b16 %v6662
      %v6695 = vunpack.c.l.b16 %v6663
      %v6696 = vunpack.c.l.b16 %v6664
      %v6697 = vunpack.c.l.b16 %v6665
      %v6698 = vunpack.c.l.b16 %v6666
      %v6699 = vunpack.c.l.b16 %v6667
      %v6700 = vunpack.c.l.b16 %v6668
      %v6701 = vunpack.c.l.b16 %v6669
      %v6702 = vunpack.c.l.b16 %v6670
      %v6703 = vpack.c.b16 %v6688, %v6687
      %v6704 = vpack.c.b16 %v6690, %v6689
      %v6705 = vpack.c.b16 %v6692, %v6691
      %v6706 = vpack.c.b16 %v6694, %v6693
      %v6707 = vpack.c.b16 %v6696, %v6695
      %v6708 = vpack.c.b16 %v6698, %v6697
      %v6709 = vpack.c.b16 %v6700, %v6699
      %v6710 = vpack.c.b16 %v6702, %v6701
      %6719 = vmatprep.subr.bf16.mxu0 0
      %6720 = vmatpush1.bf16.msra.mxu0 %v6703
      %6721 = vmatprep.subr.bf16.mxu0 0
      %6722 = vmatpush1.bf16.msra.mxu0 %v6704
      %6723 = vmatprep.subr.bf16.mxu0 0
      %6724 = vmatpush1.bf16.msra.mxu0 %v6705
      %6725 = vmatprep.subr.bf16.mxu0 0
      %6726 = vmatpush1.bf16.msra.mxu0 %v6706
      %6727 = vmatprep.subr.bf16.mxu0 0
      %6728 = vmatpush1.bf16.msra.mxu0 %v6707
      %6729 = vmatprep.subr.bf16.mxu0 0
      %6730 = vmatpush1.bf16.msra.mxu0 %v6708
      %6731 = vmatprep.subr.bf16.mxu0 0
      %6732 = vmatpush1.bf16.msra.mxu0 %v6709
      %6733 = vmatprep.subr.bf16.mxu0 0
      %6734 = vmatpush1.bf16.msra.mxu0 %v6710
      %6735 = vmatprep.subr.bf16.mxu0 0
      %6736 = vmatpush1.bf16.msra.mxu0 0
      %6737 = vmatprep.subr.bf16.mxu0 0
      %6738 = vmatpush1.bf16.msra.mxu0 0
      %6739 = vmatprep.subr.bf16.mxu0 0
      %6740 = vmatpush1.bf16.msra.mxu0 0
      %6741 = vmatprep.subr.bf16.mxu0 0
      %6742 = vmatpush1.bf16.msra.mxu0 0
      %6743 = vmatprep.subr.bf16.mxu0 0
      %6744 = vmatpush1.bf16.msra.mxu0 0
      %6745 = vmatprep.subr.bf16.mxu0 0
      %6746 = vmatpush1.bf16.msra.mxu0 0
      %6747 = vmatprep.subr.bf16.mxu0 0
      %6748 = vmatpush1.bf16.msra.mxu0 0
      %6749 = vmatprep.subr.bf16.mxu0 0
      %6750 = vmatpush1.bf16.msra.mxu0 0
      %6751 = vmatprep.mubr.bf16.mxu0 0
      %6752 = vmatmul.mubr.bf16.gmra.mrb[0].mxu0 %v6622
      %v6753 = vpop.f32.mrb[0].mxu0
      %v6754 = vadd.f32 0.0, %v6753
      %v6755 = vpop.f32.mrb[0].mxu0
      %v6756 = vpop.f32.mrb[0].mxu0
      %v6757 = vadd.f32 0.0, %v6756
      %v6758 = vpop.f32.mrb[0].mxu0
      %6759 = vmatprep.mubr.bf16.mxu0 0
      %6760 = vmatmul.mubr.bf16.gmra.mrb[0].mxu0 %v6623
      %v6761 = vpop.f32.mrb[0].mxu0
      %v6762 = vadd.f32 0.0, %v6761
      %v6763 = vpop.f32.mrb[0].mxu0
      %v6764 = vpop.f32.mrb[0].mxu0
      %v6765 = vadd.f32 0.0, %v6764
      %v6766 = vpop.f32.mrb[0].mxu0
      %6767 = vmatprep.mubr.bf16.mxu0 0
      %6768 = vmatmul.mubr.bf16.gmra.mrb[0].mxu0 %v6624
      %v6769 = vpop.f32.mrb[0].mxu0
      %v6770 = vadd.f32 0.0, %v6769
      %v6771 = vpop.f32.mrb[0].mxu0
      %v6772 = vpop.f32.mrb[0].mxu0
      %v6773 = vadd.f32 0.0, %v6772
      %v6774 = vpop.f32.mrb[0].mxu0
      %6775 = vmatprep.mubr.bf16.mxu0 0
      %6776 = vmatmul.mubr.bf16.gmra.mrb[0].mxu0 %v6625
      %v6777 = vpop.f32.mrb[0].mxu0
      %v6778 = vadd.f32 0.0, %v6777
      %v6779 = vpop.f32.mrb[0].mxu0
      %v6780 = vpop.f32.mrb[0].mxu0
      %v6781 = vadd.f32 0.0, %v6780
      %v6782 = vpop.f32.mrb[0].mxu0
      %6783 = vmatprep.mubr.bf16.mxu0 0
      %6784 = vmatmul.mubr.bf16.gmra.mrb[0].mxu0 %v6626
      %v6785 = vpop.f32.mrb[0].mxu0
      %v6786 = vadd.f32 0.0, %v6785
      %v6787 = vpop.f32.mrb[0].mxu0
      %v6788 = vpop.f32.mrb[0].mxu0
      %v6789 = vadd.f32 0.0, %v6788
      %v6790 = vpop.f32.mrb[0].mxu0
      %6791 = vmatprep.mubr.bf16.mxu0 0
      %6792 = vmatmul.mubr.bf16.gmra.mrb[0].mxu0 %v6627
      %v6793 = vpop.f32.mrb[0].mxu0
      %v6794 = vadd.f32 0.0, %v6793
      %v6795 = vpop.f32.mrb[0].mxu0
      %v6796 = vpop.f32.mrb[0].mxu0
      %v6797 = vadd.f32 0.0, %v6796
      %v6798 = vpop.f32.mrb[0].mxu0
      %6799 = vmatprep.mubr.bf16.mxu0 0
      %6800 = vmatmul.mubr.bf16.gmra.mrb[0].mxu0 %v6628
      %v6801 = vpop.f32.mrb[0].mxu0
      %v6802 = vadd.f32 0.0, %v6801
      %v6803 = vpop.f32.mrb[0].mxu0
      %v6804 = vpop.f32.mrb[0].mxu0
      %v6805 = vadd.f32 0.0, %v6804
      %v6806 = vpop.f32.mrb[0].mxu0
      %6807 = vmatprep.mubr.bf16.mxu0 0
      %6808 = vmatmul.mubr.bf16.gmra.mrb[0].mxu0 %v6629
      %v6809 = vpop.f32.mrb[0].mxu0
      %v6810 = vadd.f32 0.0, %v6809
      %v6811 = vpop.f32.mrb[0].mxu0
      %v6812 = vpop.f32.mrb[0].mxu0
      %v6813 = vadd.f32 0.0, %v6812
      %v6814 = vpop.f32.mrb[0].mxu0
      %6815 = vmatprep.mubr.bf16.mxu0 0
      %6816 = vmatmul.mubr.bf16.gmra.mrb[0].mxu0 %v6630
      %v6817 = vpop.f32.mrb[0].mxu0
      %v6818 = vadd.f32 0.0, %v6817
      %v6819 = vpop.f32.mrb[0].mxu0
      %v6820 = vpop.f32.mrb[0].mxu0
      %v6821 = vadd.f32 0.0, %v6820
      %v6822 = vpop.f32.mrb[0].mxu0
      %6823 = vmatprep.mubr.bf16.mxu0 0
      %6824 = vmatmul.mubr.bf16.gmra.mrb[0].mxu0 %v6631
      %v6825 = vpop.f32.mrb[0].mxu0
      %v6826 = vadd.f32 0.0, %v6825
      %v6827 = vpop.f32.mrb[0].mxu0
      %v6828 = vpop.f32.mrb[0].mxu0
      %v6829 = vadd.f32 0.0, %v6828
      %v6830 = vpop.f32.mrb[0].mxu0
      %6831 = vmatprep.mubr.bf16.mxu0 0
      %6832 = vmatmul.mubr.bf16.gmra.mrb[0].mxu0 %v6632
      %v6833 = vpop.f32.mrb[0].mxu0
      %v6834 = vadd.f32 0.0, %v6833
      %v6835 = vpop.f32.mrb[0].mxu0
      %v6836 = vpop.f32.mrb[0].mxu0
      %v6837 = vadd.f32 0.0, %v6836
      %v6838 = vpop.f32.mrb[0].mxu0
      %6839 = vmatprep.mubr.bf16.mxu0 0
      %6840 = vmatmul.mubr.bf16.gmra.mrb[0].mxu0 %v6633
      %v6841 = vpop.f32.mrb[0].mxu0
      %v6842 = vadd.f32 0.0, %v6841
      %v6843 = vpop.f32.mrb[0].mxu0
      %v6844 = vpop.f32.mrb[0].mxu0
      %v6845 = vadd.f32 0.0, %v6844
      %v6846 = vpop.f32.mrb[0].mxu0
      %6847 = vmatprep.mubr.bf16.mxu0 0
      %6848 = vmatmul.mubr.bf16.gmra.mrb[0].mxu0 %v6634
      %v6849 = vpop.f32.mrb[0].mxu0
      %v6850 = vadd.f32 0.0, %v6849
      %v6851 = vpop.f32.mrb[0].mxu0
      %v6852 = vpop.f32.mrb[0].mxu0
      %v6853 = vadd.f32 0.0, %v6852
      %v6854 = vpop.f32.mrb[0].mxu0
      %6855 = vmatprep.mubr.bf16.mxu0 0
      %6856 = vmatmul.mubr.bf16.gmra.mrb[0].mxu0 %v6635
      %v6857 = vpop.f32.mrb[0].mxu0
      %v6858 = vadd.f32 0.0, %v6857
      %v6859 = vpop.f32.mrb[0].mxu0
      %v6860 = vpop.f32.mrb[0].mxu0
      %v6861 = vadd.f32 0.0, %v6860
      %v6862 = vpop.f32.mrb[0].mxu0
      %6863 = vmatprep.mubr.bf16.mxu0 0
      %6864 = vmatmul.mubr.bf16.gmra.mrb[0].mxu0 %v6636
      %v6865 = vpop.f32.mrb[0].mxu0
      %v6866 = vadd.f32 0.0, %v6865
      %v6867 = vpop.f32.mrb[0].mxu0
      %v6868 = vpop.f32.mrb[0].mxu0
      %v6869 = vadd.f32 0.0, %v6868
      %v6870 = vpop.f32.mrb[0].mxu0
      %6871 = vmatprep.mubr.bf16.mxu0 0
      %6872 = vmatmul.mubr.bf16.gmra.mrb[0].mxu0 %v6637
      %v6873 = vpop.f32.mrb[0].mxu0
      %v6874 = vadd.f32 0.0, %v6873
      %v6875 = vpop.f32.mrb[0].mxu0
      %v6876 = vpop.f32.mrb[0].mxu0
      %v6877 = vadd.f32 0.0, %v6876
      %v6878 = vpop.f32.mrb[0].mxu0
      %6879 = vmatprep.mubr.bf16.mxu0 0
      %6880 = vmatmul.mubr.bf16.gmra.mrb[0].mxu0 %v6638
      %v6881 = vpop.f32.mrb[0].mxu0
      %v6882 = vadd.f32 0.0, %v6881
      %v6883 = vpop.f32.mrb[0].mxu0
      %v6884 = vpop.f32.mrb[0].mxu0
      %v6885 = vadd.f32 0.0, %v6884
      %v6886 = vpop.f32.mrb[0].mxu0
      %6887 = vmatprep.mubr.bf16.mxu0 0
      %6888 = vmatmul.mubr.bf16.gmra.mrb[0].mxu0 %v6639
      %v6889 = vpop.f32.mrb[0].mxu0
      %v6890 = vadd.f32 0.0, %v6889
      %v6891 = vpop.f32.mrb[0].mxu0
      %v6892 = vpop.f32.mrb[0].mxu0
      %v6893 = vadd.f32 0.0, %v6892
      %v6894 = vpop.f32.mrb[0].mxu0
      %6895 = vmatprep.mubr.bf16.mxu0 0
      %6896 = vmatmul.mubr.bf16.gmra.mrb[0].mxu0 %v6640
      %v6897 = vpop.f32.mrb[0].mxu0
      %v6898 = vadd.f32 0.0, %v6897
      %v6899 = vpop.f32.mrb[0].mxu0
      %v6900 = vpop.f32.mrb[0].mxu0
      %v6901 = vadd.f32 0.0, %v6900
      %v6902 = vpop.f32.mrb[0].mxu0
      %6903 = vmatprep.mubr.bf16.mxu0 0
      %6904 = vmatmul.mubr.bf16.gmra.mrb[0].mxu0 %v6641
      %v6905 = vpop.f32.mrb[0].mxu0
      %v6906 = vadd.f32 0.0, %v6905
      %v6907 = vpop.f32.mrb[0].mxu0
      %v6908 = vpop.f32.mrb[0].mxu0
      %v6909 = vadd.f32 0.0, %v6908
      %v6910 = vpop.f32.mrb[0].mxu0
      %6911 = vmatprep.mubr.bf16.mxu0 0
      %6912 = vmatmul.mubr.bf16.gmra.mrb[0].mxu0 %v6642
      %v6913 = vpop.f32.mrb[0].mxu0
      %v6914 = vadd.f32 0.0, %v6913
      %v6915 = vpop.f32.mrb[0].mxu0
      %v6916 = vpop.f32.mrb[0].mxu0
      %v6917 = vadd.f32 0.0, %v6916
      %v6918 = vpop.f32.mrb[0].mxu0
      %6919 = vmatprep.mubr.bf16.mxu0 0
      %6920 = vmatmul.mubr.bf16.gmra.mrb[0].mxu0 %v6643
      %v6921 = vpop.f32.mrb[0].mxu0
      %v6922 = vadd.f32 0.0, %v6921
      %v6923 = vpop.f32.mrb[0].mxu0
      %v6924 = vpop.f32.mrb[0].mxu0
      %v6925 = vadd.f32 0.0, %v6924
      %v6926 = vpop.f32.mrb[0].mxu0
      %6927 = vmatprep.mubr.bf16.mxu0 0
      %6928 = vmatmul.mubr.bf16.gmra.mrb[0].mxu0 %v6644
      %v6929 = vpop.f32.mrb[0].mxu0
      %v6930 = vadd.f32 0.0, %v6929
      %v6931 = vpop.f32.mrb[0].mxu0
      %v6932 = vpop.f32.mrb[0].mxu0
      %v6933 = vadd.f32 0.0, %v6932
      %v6934 = vpop.f32.mrb[0].mxu0
      %6935 = vmatprep.mubr.bf16.mxu0 0
      %6936 = vmatmul.mubr.bf16.gmra.mrb[0].mxu0 %v6645
      %v6937 = vpop.f32.mrb[0].mxu0
      %v6938 = vadd.f32 0.0, %v6937
      %v6939 = vpop.f32.mrb[0].mxu0
      %v6940 = vpop.f32.mrb[0].mxu0
      %v6941 = vadd.f32 0.0, %v6940
      %v6942 = vpop.f32.mrb[0].mxu0
      %6943 = vmatprep.mubr.bf16.mxu0 0
      %6944 = vmatmul.mubr.bf16.gmra.mrb[0].mxu0 %v6646
      %v6945 = vpop.f32.mrb[0].mxu0
      %v6946 = vadd.f32 0.0, %v6945
      %v6947 = vpop.f32.mrb[0].mxu0
      %v6948 = vpop.f32.mrb[0].mxu0
      %v6949 = vadd.f32 0.0, %v6948
      %v6950 = vpop.f32.mrb[0].mxu0
      %6951 = vmatprep.mubr.bf16.mxu0 0
      %6952 = vmatmul.mubr.bf16.gmra.mrb[0].mxu0 %v6647
      %v6953 = vpop.f32.mrb[0].mxu0
      %v6954 = vadd.f32 0.0, %v6953
      %v6955 = vpop.f32.mrb[0].mxu0
      %v6956 = vpop.f32.mrb[0].mxu0
      %v6957 = vadd.f32 0.0, %v6956
      %v6958 = vpop.f32.mrb[0].mxu0
      %6959 = vmatprep.mubr.bf16.mxu0 0
      %6960 = vmatmul.mubr.bf16.gmra.mrb[0].mxu0 %v6648
      %v6961 = vpop.f32.mrb[0].mxu0
      %v6962 = vadd.f32 0.0, %v6961
      %v6963 = vpop.f32.mrb[0].mxu0
      %v6964 = vpop.f32.mrb[0].mxu0
      %v6965 = vadd.f32 0.0, %v6964
      %v6966 = vpop.f32.mrb[0].mxu0
      %6967 = vmatprep.mubr.bf16.mxu0 0
      %6968 = vmatmul.mubr.bf16.gmra.mrb[0].mxu0 %v6649
      %v6969 = vpop.f32.mrb[0].mxu0
      %v6970 = vadd.f32 0.0, %v6969
      %v6971 = vpop.f32.mrb[0].mxu0
      %v6972 = vpop.f32.mrb[0].mxu0
      %v6973 = vadd.f32 0.0, %v6972
      %v6974 = vpop.f32.mrb[0].mxu0
      %6975 = vmatprep.mubr.bf16.mxu0 0
      %6976 = vmatmul.mubr.bf16.gmra.mrb[0].mxu0 %v6650
      %v6977 = vpop.f32.mrb[0].mxu0
      %v6978 = vadd.f32 0.0, %v6977
      %v6979 = vpop.f32.mrb[0].mxu0
      %v6980 = vpop.f32.mrb[0].mxu0
      %v6981 = vadd.f32 0.0, %v6980
      %v6982 = vpop.f32.mrb[0].mxu0
      %6983 = vmatprep.mubr.bf16.mxu0 0
      %6984 = vmatmul.mubr.bf16.gmra.mrb[0].mxu0 %v6651
      %v6985 = vpop.f32.mrb[0].mxu0
      %v6986 = vadd.f32 0.0, %v6985
      %v6987 = vpop.f32.mrb[0].mxu0
      %v6988 = vpop.f32.mrb[0].mxu0
      %v6989 = vadd.f32 0.0, %v6988
      %v6990 = vpop.f32.mrb[0].mxu0
      %6991 = vmatprep.mubr.bf16.mxu0 0
      %6992 = vmatmul.mubr.bf16.gmra.mrb[0].mxu0 %v6652
      %v6993 = vpop.f32.mrb[0].mxu0
      %v6994 = vadd.f32 0.0, %v6993
      %v6995 = vpop.f32.mrb[0].mxu0
      %v6996 = vpop.f32.mrb[0].mxu0
      %v6997 = vadd.f32 0.0, %v6996
      %v6998 = vpop.f32.mrb[0].mxu0
      %6999 = vmatprep.mubr.bf16.mxu0 0
      %7000 = vmatmul.mubr.bf16.gmra.mrb[0].mxu0 %v6653
      %v7001 = vpop.f32.mrb[0].mxu0
      %v7002 = vadd.f32 0.0, %v7001
      %v7003 = vpop.f32.mrb[0].mxu0
      %v7004 = vpop.f32.mrb[0].mxu0
      %v7005 = vadd.f32 0.0, %v7004
      %v7006 = vpop.f32.mrb[0].mxu0
      %7007 = vdwg.mxu0
      %v7008 = vpack.c.bf16 %v6757, %v6754
      %v7009 = vpack.c.bf16 %v6765, %v6762
      %v7010 = vpack.c.bf16 %v6773, %v6770
      %v7011 = vpack.c.bf16 %v6781, %v6778
      %v7012 = vpack.c.bf16 %v6789, %v6786
      %v7013 = vpack.c.bf16 %v6797, %v6794
      %v7014 = vpack.c.bf16 %v6805, %v6802
      %v7015 = vpack.c.bf16 %v6813, %v6810
      %v7016 = vpack.c.bf16 %v6821, %v6818
      %v7017 = vpack.c.bf16 %v6829, %v6826
      %v7018 = vpack.c.bf16 %v6837, %v6834
      %v7019 = vpack.c.bf16 %v6845, %v6842
      %v7020 = vpack.c.bf16 %v6853, %v6850
      %v7021 = vpack.c.bf16 %v6861, %v6858
      %v7022 = vpack.c.bf16 %v6869, %v6866
      %v7023 = vpack.c.bf16 %v6877, %v6874
      %v7024 = vpack.c.bf16 %v6885, %v6882
      %v7025 = vpack.c.bf16 %v6893, %v6890
      %v7026 = vpack.c.bf16 %v6901, %v6898
      %v7027 = vpack.c.bf16 %v6909, %v6906
      %v7028 = vpack.c.bf16 %v6917, %v6914
      %v7029 = vpack.c.bf16 %v6925, %v6922
      %v7030 = vpack.c.bf16 %v6933, %v6930
      %v7031 = vpack.c.bf16 %v6941, %v6938
      %v7032 = vpack.c.bf16 %v6949, %v6946
      %v7033 = vpack.c.bf16 %v6957, %v6954
      %v7034 = vpack.c.bf16 %v6965, %v6962
      %v7035 = vpack.c.bf16 %v6973, %v6970
      %v7036 = vpack.c.bf16 %v6981, %v6978
      %v7037 = vpack.c.bf16 %v6989, %v6986
      %v7038 = vpack.c.bf16 %v6997, %v6994
      %v7039 = vpack.c.bf16 %v7005, %v7002
      %v7040 = vld [vmem:[%s5 + $0x4] sm:$0x1]
      %v7042 = vpack.i.b16 %v7040, %v7040
      %v7044 = vlaneseq
      %v7045 = vshrl.u32 %v7044, 7
      %v7046 = vsub.s32 0, %v7045
      %v7047 = vrot.slane %v7042, %v7046
      %v7048 = vadd.bf16 %v7008, %v7047
      %v7049 = vadd.bf16 %v7009, %v7047
      %v7050 = vadd.bf16 %v7010, %v7047
      %v7051 = vadd.bf16 %v7011, %v7047
      %v7052 = vadd.bf16 %v7012, %v7047
      %v7053 = vadd.bf16 %v7013, %v7047
      %v7054 = vadd.bf16 %v7014, %v7047
      %v7055 = vadd.bf16 %v7015, %v7047
      %v7056 = vadd.bf16 %v7016, %v7047
      %v7057 = vadd.bf16 %v7017, %v7047
      %v7058 = vadd.bf16 %v7018, %v7047
      %v7059 = vadd.bf16 %v7019, %v7047
      %v7060 = vadd.bf16 %v7020, %v7047
      %v7061 = vadd.bf16 %v7021, %v7047
      %v7062 = vadd.bf16 %v7022, %v7047
      %v7063 = vadd.bf16 %v7023, %v7047
      %v7064 = vadd.bf16 %v7024, %v7047
      %v7065 = vadd.bf16 %v7025, %v7047
      %v7066 = vadd.bf16 %v7026, %v7047
      %v7067 = vadd.bf16 %v7027, %v7047
      %v7068 = vadd.bf16 %v7028, %v7047
      %v7069 = vadd.bf16 %v7029, %v7047
      %v7070 = vadd.bf16 %v7030, %v7047
      %v7071 = vadd.bf16 %v7031, %v7047
      %v7072 = vadd.bf16 %v7032, %v7047
      %v7073 = vadd.bf16 %v7033, %v7047
      %v7074 = vadd.bf16 %v7034, %v7047
      %v7075 = vadd.bf16 %v7035, %v7047
      %v7076 = vadd.bf16 %v7036, %v7047
      %v7077 = vadd.bf16 %v7037, %v7047
      %v7078 = vadd.bf16 %v7038, %v7047
      %v7079 = vadd.bf16 %v7039, %v7047
      %v7080 = vmul.bf16 %v7048, 1045249613
      %v7081 = vmul.bf16 %v7049, 1045249613
      %v7082 = vmul.bf16 %v7050, 1045249613
      %v7083 = vmul.bf16 %v7051, 1045249613
      %v7084 = vmul.bf16 %v7052, 1045249613
      %v7085 = vmul.bf16 %v7053, 1045249613
      %v7086 = vmul.bf16 %v7054, 1045249613
      %v7087 = vmul.bf16 %v7055, 1045249613
      %v7088 = vmul.bf16 %v7056, 1045249613
      %v7089 = vmul.bf16 %v7057, 1045249613
      %v7090 = vmul.bf16 %v7058, 1045249613
      %v7091 = vmul.bf16 %v7059, 1045249613
      %v7092 = vmul.bf16 %v7060, 1045249613
      %v7093 = vmul.bf16 %v7061, 1045249613
      %v7094 = vmul.bf16 %v7062, 1045249613
      %v7095 = vmul.bf16 %v7063, 1045249613
      %v7096 = vmul.bf16 %v7064, 1045249613
      %v7097 = vmul.bf16 %v7065, 1045249613
      %v7098 = vmul.bf16 %v7066, 1045249613
      %v7099 = vmul.bf16 %v7067, 1045249613
      %v7100 = vmul.bf16 %v7068, 1045249613
      %v7101 = vmul.bf16 %v7069, 1045249613
      %v7102 = vmul.bf16 %v7070, 1045249613
      %v7103 = vmul.bf16 %v7071, 1045249613
      %v7104 = vmul.bf16 %v7072, 1045249613
      %v7105 = vmul.bf16 %v7073, 1045249613
      %v7106 = vmul.bf16 %v7074, 1045249613
      %v7107 = vmul.bf16 %v7075, 1045249613
      %v7108 = vmul.bf16 %v7076, 1045249613
      %v7109 = vmul.bf16 %v7077, 1045249613
      %v7110 = vmul.bf16 %v7078, 1045249613
      %v7111 = vmul.bf16 %v7079, 1045249613
      %v7112 = vmax.bf16 %v7048, %v7080
      %v7113 = vmax.bf16 %v7049, %v7081
      %v7114 = vmax.bf16 %v7050, %v7082
      %v7115 = vmax.bf16 %v7051, %v7083
      %v7116 = vmax.bf16 %v7052, %v7084
      %v7117 = vmax.bf16 %v7053, %v7085
      %v7118 = vmax.bf16 %v7054, %v7086
      %v7119 = vmax.bf16 %v7055, %v7087
      %v7120 = vmax.bf16 %v7056, %v7088
      %v7121 = vmax.bf16 %v7057, %v7089
      %v7122 = vmax.bf16 %v7058, %v7090
      %v7123 = vmax.bf16 %v7059, %v7091
      %v7124 = vmax.bf16 %v7060, %v7092
      %v7125 = vmax.bf16 %v7061, %v7093
      %v7126 = vmax.bf16 %v7062, %v7094
      %v7127 = vmax.bf16 %v7063, %v7095
      %v7128 = vmax.bf16 %v7064, %v7096
      %v7129 = vmax.bf16 %v7065, %v7097
      %v7130 = vmax.bf16 %v7066, %v7098
      %v7131 = vmax.bf16 %v7067, %v7099
      %v7132 = vmax.bf16 %v7068, %v7100
      %v7133 = vmax.bf16 %v7069, %v7101
      %v7134 = vmax.bf16 %v7070, %v7102
      %v7135 = vmax.bf16 %v7071, %v7103
      %v7136 = vmax.bf16 %v7072, %v7104
      %v7137 = vmax.bf16 %v7073, %v7105
      %v7138 = vmax.bf16 %v7074, %v7106
      %v7139 = vmax.bf16 %v7075, %v7107
      %v7140 = vmax.bf16 %v7076, %v7108
      %v7141 = vmax.bf16 %v7077, %v7109
      %v7142 = vmax.bf16 %v7078, %v7110
      %v7143 = vmax.bf16 %v7079, %v7111
      %s7144 = scalar_lea.vmem %s3, 128
      %v7145 = vld [vmem:[%s7144] sm:$0xf]
      %v7146 = vld [vmem:[%s7144 + $0x4] sm:$0xf]
      %v7147 = vld [vmem:[%s7144 + $0x8] sm:$0xf]
      %v7148 = vld [vmem:[%s7144 + $0xc] sm:$0xf]
      %v7149 = vld [vmem:[%s7144 + $0x10] sm:$0xf]
      %v7150 = vld [vmem:[%s7144 + $0x14] sm:$0xf]
      %v7151 = vld [vmem:[%s7144 + $0x18] sm:$0xf]
      %v7152 = vld [vmem:[%s7144 + $0x1c] sm:$0xf]
      %v7153 = vld [vmem:[%s7144 + $0x20] sm:$0xf]
      %v7154 = vld [vmem:[%s7144 + $0x24] sm:$0xf]
      %v7155 = vld [vmem:[%s7144 + $0x28] sm:$0xf]
      %v7156 = vld [vmem:[%s7144 + $0x2c] sm:$0xf]
      %v7157 = vld [vmem:[%s7144 + $0x30] sm:$0xf]
      %v7158 = vld [vmem:[%s7144 + $0x34] sm:$0xf]
      %v7159 = vld [vmem:[%s7144 + $0x38] sm:$0xf]
      %v7160 = vld [vmem:[%s7144 + $0x3c] sm:$0xf]
      %v7161 = vld [vmem:[%s6 + $0x2] sm:$0x1]
      %v7162 = vlaneseq
      %v7163 = vshrl.u32 %v7162, 7
      %v7164 = vsub.s32 0, %v7163
      %v7165 = vrot.slane %v7161, %v7164
      %v7182 = vunpack.c.l.b16 %v7145
      %v7183 = vunpack.c.l.b16 %v7146
      %v7184 = vunpack.c.l.b16 %v7147
      %v7185 = vunpack.c.l.b16 %v7148
      %v7186 = vunpack.c.l.b16 %v7149
      %v7187 = vunpack.c.l.b16 %v7150
      %v7188 = vunpack.c.l.b16 %v7151
      %v7189 = vunpack.c.l.b16 %v7152
      %v7190 = vunpack.c.l.b16 %v7153
      %v7191 = vunpack.c.l.b16 %v7154
      %v7192 = vunpack.c.l.b16 %v7155
      %v7193 = vunpack.c.l.b16 %v7156
      %v7194 = vunpack.c.l.b16 %v7157
      %v7195 = vunpack.c.l.b16 %v7158
      %v7196 = vunpack.c.l.b16 %v7159
      %v7197 = vunpack.c.l.b16 %v7160
      %v7198 = vpack.c.b16 %v7183, %v7182
      %v7199 = vpack.c.b16 %v7185, %v7184
      %v7200 = vpack.c.b16 %v7187, %v7186
      %v7201 = vpack.c.b16 %v7189, %v7188
      %v7202 = vpack.c.b16 %v7191, %v7190
      %v7203 = vpack.c.b16 %v7193, %v7192
      %v7204 = vpack.c.b16 %v7195, %v7194
      %v7205 = vpack.c.b16 %v7197, %v7196
      %7214 = vmatprep.subr.bf16.mxu0 0
      %7215 = vmatpush1.bf16.msra.mxu0 %v7198
      %7216 = vmatprep.subr.bf16.mxu0 0
      %7217 = vmatpush1.bf16.msra.mxu0 %v7199
      %7218 = vmatprep.subr.bf16.mxu0 0
      %7219 = vmatpush1.bf16.msra.mxu0 %v7200
      %7220 = vmatprep.subr.bf16.mxu0 0
      %7221 = vmatpush1.bf16.msra.mxu0 %v7201
      %7222 = vmatprep.subr.bf16.mxu0 0
      %7223 = vmatpush1.bf16.msra.mxu0 %v7202
      %7224 = vmatprep.subr.bf16.mxu0 0
      %7225 = vmatpush1.bf16.msra.mxu0 %v7203
      %7226 = vmatprep.subr.bf16.mxu0 0
      %7227 = vmatpush1.bf16.msra.mxu0 %v7204
      %7228 = vmatprep.subr.bf16.mxu0 0
      %7229 = vmatpush1.bf16.msra.mxu0 %v7205
      %7230 = vmatprep.subr.bf16.mxu0 0
      %7231 = vmatpush1.bf16.msra.mxu0 0
      %7232 = vmatprep.subr.bf16.mxu0 0
      %7233 = vmatpush1.bf16.msra.mxu0 0
      %7234 = vmatprep.subr.bf16.mxu0 0
      %7235 = vmatpush1.bf16.msra.mxu0 0
      %7236 = vmatprep.subr.bf16.mxu0 0
      %7237 = vmatpush1.bf16.msra.mxu0 0
      %7238 = vmatprep.subr.bf16.mxu0 0
      %7239 = vmatpush1.bf16.msra.mxu0 0
      %7240 = vmatprep.subr.bf16.mxu0 0
      %7241 = vmatpush1.bf16.msra.mxu0 0
      %7242 = vmatprep.subr.bf16.mxu0 0
      %7243 = vmatpush1.bf16.msra.mxu0 0
      %7244 = vmatprep.subr.bf16.mxu0 0
      %7245 = vmatpush1.bf16.msra.mxu0 0
      %7246 = vmatprep.mubr.bf16.mxu0 0
      %7247 = vmatmul.mubr.bf16.gmra.mrb[0].mxu0 %v7112
      %v7248 = vpop.f32.mrb[0].mxu0
      %v7249 = vadd.f32 %v7165, %v7248
      %v7250 = vpop.f32.mrb[0].mxu0
      %v7251 = vpop.f32.mrb[0].mxu0
      %v7252 = vadd.f32 %v7165, %v7251
      %v7253 = vpop.f32.mrb[0].mxu0
      %7254 = vmatprep.mubr.bf16.mxu0 0
      %7255 = vmatmul.mubr.bf16.gmra.mrb[0].mxu0 %v7113
      %v7256 = vpop.f32.mrb[0].mxu0
      %v7257 = vadd.f32 %v7165, %v7256
      %v7258 = vpop.f32.mrb[0].mxu0
      %v7259 = vpop.f32.mrb[0].mxu0
      %v7260 = vadd.f32 %v7165, %v7259
      %v7261 = vpop.f32.mrb[0].mxu0
      %7262 = vmatprep.mubr.bf16.mxu0 0
      %7263 = vmatmul.mubr.bf16.gmra.mrb[0].mxu0 %v7114
      %v7264 = vpop.f32.mrb[0].mxu0
      %v7265 = vadd.f32 %v7165, %v7264
      %v7266 = vpop.f32.mrb[0].mxu0
      %v7267 = vpop.f32.mrb[0].mxu0
      %v7268 = vadd.f32 %v7165, %v7267
      %v7269 = vpop.f32.mrb[0].mxu0
      %7270 = vmatprep.mubr.bf16.mxu0 0
      %7271 = vmatmul.mubr.bf16.gmra.mrb[0].mxu0 %v7115
      %v7272 = vpop.f32.mrb[0].mxu0
      %v7273 = vadd.f32 %v7165, %v7272
      %v7274 = vpop.f32.mrb[0].mxu0
      %v7275 = vpop.f32.mrb[0].mxu0
      %v7276 = vadd.f32 %v7165, %v7275
      %v7277 = vpop.f32.mrb[0].mxu0
      %7278 = vmatprep.mubr.bf16.mxu0 0
      %7279 = vmatmul.mubr.bf16.gmra.mrb[0].mxu0 %v7116
      %v7280 = vpop.f32.mrb[0].mxu0
      %v7281 = vadd.f32 %v7165, %v7280
      %v7282 = vpop.f32.mrb[0].mxu0
      %v7283 = vpop.f32.mrb[0].mxu0
      %v7284 = vadd.f32 %v7165, %v7283
      %v7285 = vpop.f32.mrb[0].mxu0
      %7286 = vmatprep.mubr.bf16.mxu0 0
      %7287 = vmatmul.mubr.bf16.gmra.mrb[0].mxu0 %v7117
      %v7288 = vpop.f32.mrb[0].mxu0
      %v7289 = vadd.f32 %v7165, %v7288
      %v7290 = vpop.f32.mrb[0].mxu0
      %v7291 = vpop.f32.mrb[0].mxu0
      %v7292 = vadd.f32 %v7165, %v7291
      %v7293 = vpop.f32.mrb[0].mxu0
      %7294 = vmatprep.mubr.bf16.mxu0 0
      %7295 = vmatmul.mubr.bf16.gmra.mrb[0].mxu0 %v7118
      %v7296 = vpop.f32.mrb[0].mxu0
      %v7297 = vadd.f32 %v7165, %v7296
      %v7298 = vpop.f32.mrb[0].mxu0
      %v7299 = vpop.f32.mrb[0].mxu0
      %v7300 = vadd.f32 %v7165, %v7299
      %v7301 = vpop.f32.mrb[0].mxu0
      %7302 = vmatprep.mubr.bf16.mxu0 0
      %7303 = vmatmul.mubr.bf16.gmra.mrb[0].mxu0 %v7119
      %v7304 = vpop.f32.mrb[0].mxu0
      %v7305 = vadd.f32 %v7165, %v7304
      %v7306 = vpop.f32.mrb[0].mxu0
      %v7307 = vpop.f32.mrb[0].mxu0
      %v7308 = vadd.f32 %v7165, %v7307
      %v7309 = vpop.f32.mrb[0].mxu0
      %7310 = vmatprep.mubr.bf16.mxu0 0
      %7311 = vmatmul.mubr.bf16.gmra.mrb[0].mxu0 %v7120
      %v7312 = vpop.f32.mrb[0].mxu0
      %v7313 = vadd.f32 %v7165, %v7312
      %v7314 = vpop.f32.mrb[0].mxu0
      %v7315 = vpop.f32.mrb[0].mxu0
      %v7316 = vadd.f32 %v7165, %v7315
      %v7317 = vpop.f32.mrb[0].mxu0
      %7318 = vmatprep.mubr.bf16.mxu0 0
      %7319 = vmatmul.mubr.bf16.gmra.mrb[0].mxu0 %v7121
      %v7320 = vpop.f32.mrb[0].mxu0
      %v7321 = vadd.f32 %v7165, %v7320
      %v7322 = vpop.f32.mrb[0].mxu0
      %v7323 = vpop.f32.mrb[0].mxu0
      %v7324 = vadd.f32 %v7165, %v7323
      %v7325 = vpop.f32.mrb[0].mxu0
      %7326 = vmatprep.mubr.bf16.mxu0 0
      %7327 = vmatmul.mubr.bf16.gmra.mrb[0].mxu0 %v7122
      %v7328 = vpop.f32.mrb[0].mxu0
      %v7329 = vadd.f32 %v7165, %v7328
      %v7330 = vpop.f32.mrb[0].mxu0
      %v7331 = vpop.f32.mrb[0].mxu0
      %v7332 = vadd.f32 %v7165, %v7331
      %v7333 = vpop.f32.mrb[0].mxu0
      %7334 = vmatprep.mubr.bf16.mxu0 0
      %7335 = vmatmul.mubr.bf16.gmra.mrb[0].mxu0 %v7123
      %v7336 = vpop.f32.mrb[0].mxu0
      %v7337 = vadd.f32 %v7165, %v7336
      %v7338 = vpop.f32.mrb[0].mxu0
      %v7339 = vpop.f32.mrb[0].mxu0
      %v7340 = vadd.f32 %v7165, %v7339
      %v7341 = vpop.f32.mrb[0].mxu0
      %7342 = vmatprep.mubr.bf16.mxu0 0
      %7343 = vmatmul.mubr.bf16.gmra.mrb[0].mxu0 %v7124
      %v7344 = vpop.f32.mrb[0].mxu0
      %v7345 = vadd.f32 %v7165, %v7344
      %v7346 = vpop.f32.mrb[0].mxu0
      %v7347 = vpop.f32.mrb[0].mxu0
      %v7348 = vadd.f32 %v7165, %v7347
      %v7349 = vpop.f32.mrb[0].mxu0
      %7350 = vmatprep.mubr.bf16.mxu0 0
      %7351 = vmatmul.mubr.bf16.gmra.mrb[0].mxu0 %v7125
      %v7352 = vpop.f32.mrb[0].mxu0
      %v7353 = vadd.f32 %v7165, %v7352
      %v7354 = vpop.f32.mrb[0].mxu0
      %v7355 = vpop.f32.mrb[0].mxu0
      %v7356 = vadd.f32 %v7165, %v7355
      %v7357 = vpop.f32.mrb[0].mxu0
      %7358 = vmatprep.mubr.bf16.mxu0 0
      %7359 = vmatmul.mubr.bf16.gmra.mrb[0].mxu0 %v7126
      %v7360 = vpop.f32.mrb[0].mxu0
      %v7361 = vadd.f32 %v7165, %v7360
      %v7362 = vpop.f32.mrb[0].mxu0
      %v7363 = vpop.f32.mrb[0].mxu0
      %v7364 = vadd.f32 %v7165, %v7363
      %v7365 = vpop.f32.mrb[0].mxu0
      %7366 = vmatprep.mubr.bf16.mxu0 0
      %7367 = vmatmul.mubr.bf16.gmra.mrb[0].mxu0 %v7127
      %v7368 = vpop.f32.mrb[0].mxu0
      %v7369 = vadd.f32 %v7165, %v7368
      %v7370 = vpop.f32.mrb[0].mxu0
      %v7371 = vpop.f32.mrb[0].mxu0
      %v7372 = vadd.f32 %v7165, %v7371
      %v7373 = vpop.f32.mrb[0].mxu0
      %7374 = vmatprep.mubr.bf16.mxu0 0
      %7375 = vmatmul.mubr.bf16.gmra.mrb[0].mxu0 %v7128
      %v7376 = vpop.f32.mrb[0].mxu0
      %v7377 = vadd.f32 %v7165, %v7376
      %v7378 = vpop.f32.mrb[0].mxu0
      %v7379 = vpop.f32.mrb[0].mxu0
      %v7380 = vadd.f32 %v7165, %v7379
      %v7381 = vpop.f32.mrb[0].mxu0
      %7382 = vmatprep.mubr.bf16.mxu0 0
      %7383 = vmatmul.mubr.bf16.gmra.mrb[0].mxu0 %v7129
      %v7384 = vpop.f32.mrb[0].mxu0
      %v7385 = vadd.f32 %v7165, %v7384
      %v7386 = vpop.f32.mrb[0].mxu0
      %v7387 = vpop.f32.mrb[0].mxu0
      %v7388 = vadd.f32 %v7165, %v7387
      %v7389 = vpop.f32.mrb[0].mxu0
      %7390 = vmatprep.mubr.bf16.mxu0 0
      %7391 = vmatmul.mubr.bf16.gmra.mrb[0].mxu0 %v7130
      %v7392 = vpop.f32.mrb[0].mxu0
      %v7393 = vadd.f32 %v7165, %v7392
      %v7394 = vpop.f32.mrb[0].mxu0
      %v7395 = vpop.f32.mrb[0].mxu0
      %v7396 = vadd.f32 %v7165, %v7395
      %v7397 = vpop.f32.mrb[0].mxu0
      %7398 = vmatprep.mubr.bf16.mxu0 0
      %7399 = vmatmul.mubr.bf16.gmra.mrb[0].mxu0 %v7131
      %v7400 = vpop.f32.mrb[0].mxu0
      %v7401 = vadd.f32 %v7165, %v7400
      %v7402 = vpop.f32.mrb[0].mxu0
      %v7403 = vpop.f32.mrb[0].mxu0
      %v7404 = vadd.f32 %v7165, %v7403
      %v7405 = vpop.f32.mrb[0].mxu0
      %7406 = vmatprep.mubr.bf16.mxu0 0
      %7407 = vmatmul.mubr.bf16.gmra.mrb[0].mxu0 %v7132
      %v7408 = vpop.f32.mrb[0].mxu0
      %v7409 = vadd.f32 %v7165, %v7408
      %v7410 = vpop.f32.mrb[0].mxu0
      %v7411 = vpop.f32.mrb[0].mxu0
      %v7412 = vadd.f32 %v7165, %v7411
      %v7413 = vpop.f32.mrb[0].mxu0
      %7414 = vmatprep.mubr.bf16.mxu0 0
      %7415 = vmatmul.mubr.bf16.gmra.mrb[0].mxu0 %v7133
      %v7416 = vpop.f32.mrb[0].mxu0
      %v7417 = vadd.f32 %v7165, %v7416
      %v7418 = vpop.f32.mrb[0].mxu0
      %v7419 = vpop.f32.mrb[0].mxu0
      %v7420 = vadd.f32 %v7165, %v7419
      %v7421 = vpop.f32.mrb[0].mxu0
      %7422 = vmatprep.mubr.bf16.mxu0 0
      %7423 = vmatmul.mubr.bf16.gmra.mrb[0].mxu0 %v7134
      %v7424 = vpop.f32.mrb[0].mxu0
      %v7425 = vadd.f32 %v7165, %v7424
      %v7426 = vpop.f32.mrb[0].mxu0
      %v7427 = vpop.f32.mrb[0].mxu0
      %v7428 = vadd.f32 %v7165, %v7427
      %v7429 = vpop.f32.mrb[0].mxu0
      %7430 = vmatprep.mubr.bf16.mxu0 0
      %7431 = vmatmul.mubr.bf16.gmra.mrb[0].mxu0 %v7135
      %v7432 = vpop.f32.mrb[0].mxu0
      %v7433 = vadd.f32 %v7165, %v7432
      %v7434 = vpop.f32.mrb[0].mxu0
      %v7435 = vpop.f32.mrb[0].mxu0
      %v7436 = vadd.f32 %v7165, %v7435
      %v7437 = vpop.f32.mrb[0].mxu0
      %7438 = vmatprep.mubr.bf16.mxu0 0
      %7439 = vmatmul.mubr.bf16.gmra.mrb[0].mxu0 %v7136
      %v7440 = vpop.f32.mrb[0].mxu0
      %v7441 = vadd.f32 %v7165, %v7440
      %v7442 = vpop.f32.mrb[0].mxu0
      %v7443 = vpop.f32.mrb[0].mxu0
      %v7444 = vadd.f32 %v7165, %v7443
      %v7445 = vpop.f32.mrb[0].mxu0
      %7446 = vmatprep.mubr.bf16.mxu0 0
      %7447 = vmatmul.mubr.bf16.gmra.mrb[0].mxu0 %v7137
      %v7448 = vpop.f32.mrb[0].mxu0
      %v7449 = vadd.f32 %v7165, %v7448
      %v7450 = vpop.f32.mrb[0].mxu0
      %v7451 = vpop.f32.mrb[0].mxu0
      %v7452 = vadd.f32 %v7165, %v7451
      %v7453 = vpop.f32.mrb[0].mxu0
      %7454 = vmatprep.mubr.bf16.mxu0 0
      %7455 = vmatmul.mubr.bf16.gmra.mrb[0].mxu0 %v7138
      %v7456 = vpop.f32.mrb[0].mxu0
      %v7457 = vadd.f32 %v7165, %v7456
      %v7458 = vpop.f32.mrb[0].mxu0
      %v7459 = vpop.f32.mrb[0].mxu0
      %v7460 = vadd.f32 %v7165, %v7459
      %v7461 = vpop.f32.mrb[0].mxu0
      %7462 = vmatprep.mubr.bf16.mxu0 0
      %7463 = vmatmul.mubr.bf16.gmra.mrb[0].mxu0 %v7139
      %v7464 = vpop.f32.mrb[0].mxu0
      %v7465 = vadd.f32 %v7165, %v7464
      %v7466 = vpop.f32.mrb[0].mxu0
      %v7467 = vpop.f32.mrb[0].mxu0
      %v7468 = vadd.f32 %v7165, %v7467
      %v7469 = vpop.f32.mrb[0].mxu0
      %7470 = vmatprep.mubr.bf16.mxu0 0
      %7471 = vmatmul.mubr.bf16.gmra.mrb[0].mxu0 %v7140
      %v7472 = vpop.f32.mrb[0].mxu0
      %v7473 = vadd.f32 %v7165, %v7472
      %v7474 = vpop.f32.mrb[0].mxu0
      %v7475 = vpop.f32.mrb[0].mxu0
      %v7476 = vadd.f32 %v7165, %v7475
      %v7477 = vpop.f32.mrb[0].mxu0
      %7478 = vmatprep.mubr.bf16.mxu0 0
      %7479 = vmatmul.mubr.bf16.gmra.mrb[0].mxu0 %v7141
      %v7480 = vpop.f32.mrb[0].mxu0
      %v7481 = vadd.f32 %v7165, %v7480
      %v7482 = vpop.f32.mrb[0].mxu0
      %v7483 = vpop.f32.mrb[0].mxu0
      %v7484 = vadd.f32 %v7165, %v7483
      %v7485 = vpop.f32.mrb[0].mxu0
      %7486 = vmatprep.mubr.bf16.mxu0 0
      %7487 = vmatmul.mubr.bf16.gmra.mrb[0].mxu0 %v7142
      %v7488 = vpop.f32.mrb[0].mxu0
      %v7489 = vadd.f32 %v7165, %v7488
      %v7490 = vpop.f32.mrb[0].mxu0
      %v7491 = vpop.f32.mrb[0].mxu0
      %v7492 = vadd.f32 %v7165, %v7491
      %v7493 = vpop.f32.mrb[0].mxu0
      %7494 = vmatprep.mubr.bf16.mxu0 0
      %7495 = vmatmul.mubr.bf16.gmra.mrb[0].mxu0 %v7143
      %v7496 = vpop.f32.mrb[0].mxu0
      %v7497 = vadd.f32 %v7165, %v7496
      %v7498 = vpop.f32.mrb[0].mxu0
      %v7499 = vpop.f32.mrb[0].mxu0
      %v7500 = vadd.f32 %v7165, %v7499
      %v7501 = vpop.f32.mrb[0].mxu0
      %7502 = vdwg.mxu0
      %7567 = vrot.lane.b32.xlu0 %v4863, 4
      %v7568 = vpop.permute.xlu0 %7567
      %7569 = vrot.lane.b32.xlu0 %v4866, 4
      %v7570 = vpop.permute.xlu0 %7569
      %7571 = vrot.lane.b32.xlu0 %v4871, 4
      %v7572 = vpop.permute.xlu0 %7571
      %7573 = vrot.lane.b32.xlu0 %v4874, 4
      %v7574 = vpop.permute.xlu0 %7573
      %7575 = vrot.lane.b32.xlu0 %v4879, 4
      %v7576 = vpop.permute.xlu0 %7575
      %7577 = vrot.lane.b32.xlu0 %v4882, 4
      %v7578 = vpop.permute.xlu0 %7577
      %7579 = vrot.lane.b32.xlu0 %v4887, 4
      %v7580 = vpop.permute.xlu0 %7579
      %7581 = vrot.lane.b32.xlu0 %v4890, 4
      %v7582 = vpop.permute.xlu0 %7581
      %7583 = vrot.lane.b32.xlu0 %v4895, 4
      %v7584 = vpop.permute.xlu0 %7583
      %7585 = vrot.lane.b32.xlu0 %v4898, 4
      %v7586 = vpop.permute.xlu0 %7585
      %7587 = vrot.lane.b32.xlu0 %v4903, 4
      %v7588 = vpop.permute.xlu0 %7587
      %7589 = vrot.lane.b32.xlu0 %v4906, 4
      %v7590 = vpop.permute.xlu0 %7589
      %7591 = vrot.lane.b32.xlu0 %v4911, 4
      %v7592 = vpop.permute.xlu0 %7591
      %7593 = vrot.lane.b32.xlu0 %v4914, 4
      %v7594 = vpop.permute.xlu0 %7593
      %7595 = vrot.lane.b32.xlu0 %v4919, 4
      %v7596 = vpop.permute.xlu0 %7595
      %7597 = vrot.lane.b32.xlu0 %v4922, 4
      %v7598 = vpop.permute.xlu0 %7597
      %7599 = vrot.lane.b32.xlu0 %v4927, 4
      %v7600 = vpop.permute.xlu0 %7599
      %7601 = vrot.lane.b32.xlu0 %v4930, 4
      %v7602 = vpop.permute.xlu0 %7601
      %7603 = vrot.lane.b32.xlu0 %v4935, 4
      %v7604 = vpop.permute.xlu0 %7603
      %7605 = vrot.lane.b32.xlu0 %v4938, 4
      %v7606 = vpop.permute.xlu0 %7605
      %7607 = vrot.lane.b32.xlu0 %v4943, 4
      %v7608 = vpop.permute.xlu0 %7607
      %7609 = vrot.lane.b32.xlu0 %v4946, 4
      %v7610 = vpop.permute.xlu0 %7609
      %7611 = vrot.lane.b32.xlu0 %v4951, 4
      %v7612 = vpop.permute.xlu0 %7611
      %7613 = vrot.lane.b32.xlu0 %v4954, 4
      %v7614 = vpop.permute.xlu0 %7613
      %7615 = vrot.lane.b32.xlu0 %v4959, 4
      %v7616 = vpop.permute.xlu0 %7615
      %7617 = vrot.lane.b32.xlu0 %v4962, 4
      %v7618 = vpop.permute.xlu0 %7617
      %7619 = vrot.lane.b32.xlu0 %v4967, 4
      %v7620 = vpop.permute.xlu0 %7619
      %7621 = vrot.lane.b32.xlu0 %v4970, 4
      %v7622 = vpop.permute.xlu0 %7621
      %7623 = vrot.lane.b32.xlu0 %v4975, 4
      %v7624 = vpop.permute.xlu0 %7623
      %7625 = vrot.lane.b32.xlu0 %v4978, 4
      %v7626 = vpop.permute.xlu0 %7625
      %7627 = vrot.lane.b32.xlu0 %v4983, 4
      %v7628 = vpop.permute.xlu0 %7627
      %7629 = vrot.lane.b32.xlu0 %v4986, 4
      %v7630 = vpop.permute.xlu0 %7629
      %7631 = vrot.lane.b32.xlu0 %v4991, 4
      %v7632 = vpop.permute.xlu0 %7631
      %7633 = vrot.lane.b32.xlu0 %v4994, 4
      %v7634 = vpop.permute.xlu0 %7633
      %7635 = vrot.lane.b32.xlu0 %v4999, 4
      %v7636 = vpop.permute.xlu0 %7635
      %7637 = vrot.lane.b32.xlu0 %v5002, 4
      %v7638 = vpop.permute.xlu0 %7637
      %7639 = vrot.lane.b32.xlu0 %v5007, 4
      %v7640 = vpop.permute.xlu0 %7639
      %7641 = vrot.lane.b32.xlu0 %v5010, 4
      %v7642 = vpop.permute.xlu0 %7641
      %7643 = vrot.lane.b32.xlu0 %v5015, 4
      %v7644 = vpop.permute.xlu0 %7643
      %7645 = vrot.lane.b32.xlu0 %v5018, 4
      %v7646 = vpop.permute.xlu0 %7645
      %7647 = vrot.lane.b32.xlu0 %v5023, 4
      %v7648 = vpop.permute.xlu0 %7647
      %7649 = vrot.lane.b32.xlu0 %v5026, 4
      %v7650 = vpop.permute.xlu0 %7649
      %7651 = vrot.lane.b32.xlu0 %v5031, 4
      %v7652 = vpop.permute.xlu0 %7651
      %7653 = vrot.lane.b32.xlu0 %v5034, 4
      %v7654 = vpop.permute.xlu0 %7653
      %7655 = vrot.lane.b32.xlu0 %v5039, 4
      %v7656 = vpop.permute.xlu0 %7655
      %7657 = vrot.lane.b32.xlu0 %v5042, 4
      %v7658 = vpop.permute.xlu0 %7657
      %7659 = vrot.lane.b32.xlu0 %v5047, 4
      %v7660 = vpop.permute.xlu0 %7659
      %7661 = vrot.lane.b32.xlu0 %v5050, 4
      %v7662 = vpop.permute.xlu0 %7661
      %7663 = vrot.lane.b32.xlu0 %v5055, 4
      %v7664 = vpop.permute.xlu0 %7663
      %7665 = vrot.lane.b32.xlu0 %v5058, 4
      %v7666 = vpop.permute.xlu0 %7665
      %7667 = vrot.lane.b32.xlu0 %v5063, 4
      %v7668 = vpop.permute.xlu0 %7667
      %7669 = vrot.lane.b32.xlu0 %v5066, 4
      %v7670 = vpop.permute.xlu0 %7669
      %7671 = vrot.lane.b32.xlu0 %v5071, 4
      %v7672 = vpop.permute.xlu0 %7671
      %7673 = vrot.lane.b32.xlu0 %v5074, 4
      %v7674 = vpop.permute.xlu0 %7673
      %7675 = vrot.lane.b32.xlu0 %v5079, 4
      %v7676 = vpop.permute.xlu0 %7675
      %7677 = vrot.lane.b32.xlu0 %v5082, 4
      %v7678 = vpop.permute.xlu0 %7677
      %7679 = vrot.lane.b32.xlu0 %v5087, 4
      %v7680 = vpop.permute.xlu0 %7679
      %7681 = vrot.lane.b32.xlu0 %v5090, 4
      %v7682 = vpop.permute.xlu0 %7681
      %7683 = vrot.lane.b32.xlu0 %v5095, 4
      %v7684 = vpop.permute.xlu0 %7683
      %7685 = vrot.lane.b32.xlu0 %v5098, 4
      %v7686 = vpop.permute.xlu0 %7685
      %7687 = vrot.lane.b32.xlu0 %v5103, 4
      %v7688 = vpop.permute.xlu0 %7687
      %7689 = vrot.lane.b32.xlu0 %v5106, 4
      %v7690 = vpop.permute.xlu0 %7689
      %7691 = vrot.lane.b32.xlu0 %v5111, 4
      %v7692 = vpop.permute.xlu0 %7691
      %7693 = vrot.lane.b32.xlu0 %v5114, 4
      %v7694 = vpop.permute.xlu0 %7693
      %7823 = vrot.lane.b32.xlu0 %v7249, 6
      %v7824 = vpop.permute.xlu0 %7823
      %7825 = vrot.lane.b32.xlu0 %v7252, 6
      %v7826 = vpop.permute.xlu0 %7825
      %7827 = vrot.lane.b32.xlu0 %v7257, 6
      %v7828 = vpop.permute.xlu0 %7827
      %7829 = vrot.lane.b32.xlu0 %v7260, 6
      %v7830 = vpop.permute.xlu0 %7829
      %7831 = vrot.lane.b32.xlu0 %v7265, 6
      %v7832 = vpop.permute.xlu0 %7831
      %7833 = vrot.lane.b32.xlu0 %v7268, 6
      %v7834 = vpop.permute.xlu0 %7833
      %7835 = vrot.lane.b32.xlu0 %v7273, 6
      %v7836 = vpop.permute.xlu0 %7835
      %7837 = vrot.lane.b32.xlu0 %v7276, 6
      %v7838 = vpop.permute.xlu0 %7837
      %7839 = vrot.lane.b32.xlu0 %v7281, 6
      %v7840 = vpop.permute.xlu0 %7839
      %7841 = vrot.lane.b32.xlu0 %v7284, 6
      %v7842 = vpop.permute.xlu0 %7841
      %7843 = vrot.lane.b32.xlu0 %v7289, 6
      %v7844 = vpop.permute.xlu0 %7843
      %7845 = vrot.lane.b32.xlu0 %v7292, 6
      %v7846 = vpop.permute.xlu0 %7845
      %7847 = vrot.lane.b32.xlu0 %v7297, 6
      %v7848 = vpop.permute.xlu0 %7847
      %7849 = vrot.lane.b32.xlu0 %v7300, 6
      %v7850 = vpop.permute.xlu0 %7849
      %7851 = vrot.lane.b32.xlu0 %v7305, 6
      %v7852 = vpop.permute.xlu0 %7851
      %7853 = vrot.lane.b32.xlu0 %v7308, 6
      %v7854 = vpop.permute.xlu0 %7853
      %7855 = vrot.lane.b32.xlu0 %v7313, 6
      %v7856 = vpop.permute.xlu0 %7855
      %7857 = vrot.lane.b32.xlu0 %v7316, 6
      %v7858 = vpop.permute.xlu0 %7857
      %7859 = vrot.lane.b32.xlu0 %v7321, 6
      %v7860 = vpop.permute.xlu0 %7859
      %7861 = vrot.lane.b32.xlu0 %v7324, 6
      %v7862 = vpop.permute.xlu0 %7861
      %7863 = vrot.lane.b32.xlu0 %v7329, 6
      %v7864 = vpop.permute.xlu0 %7863
      %7865 = vrot.lane.b32.xlu0 %v7332, 6
      %v7866 = vpop.permute.xlu0 %7865
      %7867 = vrot.lane.b32.xlu0 %v7337, 6
      %v7868 = vpop.permute.xlu0 %7867
      %7869 = vrot.lane.b32.xlu0 %v7340, 6
      %v7870 = vpop.permute.xlu0 %7869
      %7871 = vrot.lane.b32.xlu0 %v7345, 6
      %v7872 = vpop.permute.xlu0 %7871
      %7873 = vrot.lane.b32.xlu0 %v7348, 6
      %v7874 = vpop.permute.xlu0 %7873
      %7875 = vrot.lane.b32.xlu0 %v7353, 6
      %v7876 = vpop.permute.xlu0 %7875
      %7877 = vrot.lane.b32.xlu0 %v7356, 6
      %v7878 = vpop.permute.xlu0 %7877
      %7879 = vrot.lane.b32.xlu0 %v7361, 6
      %v7880 = vpop.permute.xlu0 %7879
      %7881 = vrot.lane.b32.xlu0 %v7364, 6
      %v7882 = vpop.permute.xlu0 %7881
      %7883 = vrot.lane.b32.xlu0 %v7369, 6
      %v7884 = vpop.permute.xlu0 %7883
      %7885 = vrot.lane.b32.xlu0 %v7372, 6
      %v7886 = vpop.permute.xlu0 %7885
      %7887 = vrot.lane.b32.xlu0 %v7377, 6
      %v7888 = vpop.permute.xlu0 %7887
      %7889 = vrot.lane.b32.xlu0 %v7380, 6
      %v7890 = vpop.permute.xlu0 %7889
      %7891 = vrot.lane.b32.xlu0 %v7385, 6
      %v7892 = vpop.permute.xlu0 %7891
      %7893 = vrot.lane.b32.xlu0 %v7388, 6
      %v7894 = vpop.permute.xlu0 %7893
      %7895 = vrot.lane.b32.xlu0 %v7393, 6
      %v7896 = vpop.permute.xlu0 %7895
      %7897 = vrot.lane.b32.xlu0 %v7396, 6
      %v7898 = vpop.permute.xlu0 %7897
      %7899 = vrot.lane.b32.xlu0 %v7401, 6
      %v7900 = vpop.permute.xlu0 %7899
      %7901 = vrot.lane.b32.xlu0 %v7404, 6
      %v7902 = vpop.permute.xlu0 %7901
      %7903 = vrot.lane.b32.xlu0 %v7409, 6
      %v7904 = vpop.permute.xlu0 %7903
      %7905 = vrot.lane.b32.xlu0 %v7412, 6
      %v7906 = vpop.permute.xlu0 %7905
      %7907 = vrot.lane.b32.xlu0 %v7417, 6
      %v7908 = vpop.permute.xlu0 %7907
      %7909 = vrot.lane.b32.xlu0 %v7420, 6
      %v7910 = vpop.permute.xlu0 %7909
      %7911 = vrot.lane.b32.xlu0 %v7425, 6
      %v7912 = vpop.permute.xlu0 %7911
      %7913 = vrot.lane.b32.xlu0 %v7428, 6
      %v7914 = vpop.permute.xlu0 %7913
      %7915 = vrot.lane.b32.xlu0 %v7433, 6
      %v7916 = vpop.permute.xlu0 %7915
      %7917 = vrot.lane.b32.xlu0 %v7436, 6
      %v7918 = vpop.permute.xlu0 %7917
      %7919 = vrot.lane.b32.xlu0 %v7441, 6
      %v7920 = vpop.permute.xlu0 %7919
      %7921 = vrot.lane.b32.xlu0 %v7444, 6
      %v7922 = vpop.permute.xlu0 %7921
      %7923 = vrot.lane.b32.xlu0 %v7449, 6
      %v7924 = vpop.permute.xlu0 %7923
      %7925 = vrot.lane.b32.xlu0 %v7452, 6
      %v7926 = vpop.permute.xlu0 %7925
      %7927 = vrot.lane.b32.xlu0 %v7457, 6
      %v7928 = vpop.permute.xlu0 %7927
      %7929 = vrot.lane.b32.xlu0 %v7460, 6
      %v7930 = vpop.permute.xlu0 %7929
      %7931 = vrot.lane.b32.xlu0 %v7465, 6
      %v7932 = vpop.permute.xlu0 %7931
      %7933 = vrot.lane.b32.xlu0 %v7468, 6
      %v7934 = vpop.permute.xlu0 %7933
      %7935 = vrot.lane.b32.xlu0 %v7473, 6
      %v7936 = vpop.permute.xlu0 %7935
      %7937 = vrot.lane.b32.xlu0 %v7476, 6
      %v7938 = vpop.permute.xlu0 %7937
      %7939 = vrot.lane.b32.xlu0 %v7481, 6
      %v7940 = vpop.permute.xlu0 %7939
      %7941 = vrot.lane.b32.xlu0 %v7484, 6
      %v7942 = vpop.permute.xlu0 %7941
      %7943 = vrot.lane.b32.xlu0 %v7489, 6
      %v7944 = vpop.permute.xlu0 %7943
      %7945 = vrot.lane.b32.xlu0 %v7492, 6
      %v7946 = vpop.permute.xlu0 %7945
      %7947 = vrot.lane.b32.xlu0 %v7497, 6
      %v7948 = vpop.permute.xlu0 %7947
      %7949 = vrot.lane.b32.xlu0 %v7500, 6
      %v7950 = vpop.permute.xlu0 %7949
      %vm8015 = vcmask 31744
      %v8016 = vsel %vm8015, %v2479, %v7568
      %v8017 = vsel %vm8015, %v2482, %v7570
      %v8018 = vsel %vm8015, %v2487, %v7572
      %v8019 = vsel %vm8015, %v2490, %v7574
      %v8020 = vsel %vm8015, %v2495, %v7576
      %v8021 = vsel %vm8015, %v2498, %v7578
      %v8022 = vsel %vm8015, %v2503, %v7580
      %v8023 = vsel %vm8015, %v2506, %v7582
      %v8024 = vsel %vm8015, %v2511, %v7584
      %v8025 = vsel %vm8015, %v2514, %v7586
      %v8026 = vsel %vm8015, %v2519, %v7588
      %v8027 = vsel %vm8015, %v2522, %v7590
      %v8028 = vsel %vm8015, %v2527, %v7592
      %v8029 = vsel %vm8015, %v2530, %v7594
      %v8030 = vsel %vm8015, %v2535, %v7596
      %v8031 = vsel %vm8015, %v2538, %v7598
      %v8032 = vsel %vm8015, %v2543, %v7600
      %v8033 = vsel %vm8015, %v2546, %v7602
      %v8034 = vsel %vm8015, %v2551, %v7604
      %v8035 = vsel %vm8015, %v2554, %v7606
      %v8036 = vsel %vm8015, %v2559, %v7608
      %v8037 = vsel %vm8015, %v2562, %v7610
      %v8038 = vsel %vm8015, %v2567, %v7612
      %v8039 = vsel %vm8015, %v2570, %v7614
      %v8040 = vsel %vm8015, %v2575, %v7616
      %v8041 = vsel %vm8015, %v2578, %v7618
      %v8042 = vsel %vm8015, %v2583, %v7620
      %v8043 = vsel %vm8015, %v2586, %v7622
      %v8044 = vsel %vm8015, %v2591, %v7624
      %v8045 = vsel %vm8015, %v2594, %v7626
      %v8046 = vsel %vm8015, %v2599, %v7628
      %v8047 = vsel %vm8015, %v2602, %v7630
      %v8048 = vsel %vm8015, %v2607, %v7632
      %v8049 = vsel %vm8015, %v2610, %v7634
      %v8050 = vsel %vm8015, %v2615, %v7636
      %v8051 = vsel %vm8015, %v2618, %v7638
      %v8052 = vsel %vm8015, %v2623, %v7640
      %v8053 = vsel %vm8015, %v2626, %v7642
      %v8054 = vsel %vm8015, %v2631, %v7644
      %v8055 = vsel %vm8015, %v2634, %v7646
      %v8056 = vsel %vm8015, %v2639, %v7648
      %v8057 = vsel %vm8015, %v2642, %v7650
      %v8058 = vsel %vm8015, %v2647, %v7652
      %v8059 = vsel %vm8015, %v2650, %v7654
      %v8060 = vsel %vm8015, %v2655, %v7656
      %v8061 = vsel %vm8015, %v2658, %v7658
      %v8062 = vsel %vm8015, %v2663, %v7660
      %v8063 = vsel %vm8015, %v2666, %v7662
      %v8064 = vsel %vm8015, %v2671, %v7664
      %v8065 = vsel %vm8015, %v2674, %v7666
      %v8066 = vsel %vm8015, %v2679, %v7668
      %v8067 = vsel %vm8015, %v2682, %v7670
      %v8068 = vsel %vm8015, %v2687, %v7672
      %v8069 = vsel %vm8015, %v2690, %v7674
      %v8070 = vsel %vm8015, %v2695, %v7676
      %v8071 = vsel %vm8015, %v2698, %v7678
      %v8072 = vsel %vm8015, %v2703, %v7680
      %v8073 = vsel %vm8015, %v2706, %v7682
      %v8074 = vsel %vm8015, %v2711, %v7684
      %v8075 = vsel %vm8015, %v2714, %v7686
      %v8076 = vsel %vm8015, %v2719, %v7688
      %v8077 = vsel %vm8015, %v2722, %v7690
      %v8078 = vsel %vm8015, %v2727, %v7692
      %v8079 = vsel %vm8015, %v2730, %v7694
      %vm8080 = vcmask 48128
      %v8081 = vsel %vm8080, %v8016, %v7824
      %v8082 = vsel %vm8080, %v8017, %v7826
      %v8083 = vsel %vm8080, %v8018, %v7828
      %v8084 = vsel %vm8080, %v8019, %v7830
      %v8085 = vsel %vm8080, %v8020, %v7832
      %v8086 = vsel %vm8080, %v8021, %v7834
      %v8087 = vsel %vm8080, %v8022, %v7836
      %v8088 = vsel %vm8080, %v8023, %v7838
      %v8089 = vsel %vm8080, %v8024, %v7840
      %v8090 = vsel %vm8080, %v8025, %v7842
      %v8091 = vsel %vm8080, %v8026, %v7844
      %v8092 = vsel %vm8080, %v8027, %v7846
      %v8093 = vsel %vm8080, %v8028, %v7848
      %v8094 = vsel %vm8080, %v8029, %v7850
      %v8095 = vsel %vm8080, %v8030, %v7852
      %v8096 = vsel %vm8080, %v8031, %v7854
      %v8097 = vsel %vm8080, %v8032, %v7856
      %v8098 = vsel %vm8080, %v8033, %v7858
      %v8099 = vsel %vm8080, %v8034, %v7860
      %v8100 = vsel %vm8080, %v8035, %v7862
      %v8101 = vsel %vm8080, %v8036, %v7864
      %v8102 = vsel %vm8080, %v8037, %v7866
      %v8103 = vsel %vm8080, %v8038, %v7868
      %v8104 = vsel %vm8080, %v8039, %v7870
      %v8105 = vsel %vm8080, %v8040, %v7872
      %v8106 = vsel %vm8080, %v8041, %v7874
      %v8107 = vsel %vm8080, %v8042, %v7876
      %v8108 = vsel %vm8080, %v8043, %v7878
      %v8109 = vsel %vm8080, %v8044, %v7880
      %v8110 = vsel %vm8080, %v8045, %v7882
      %v8111 = vsel %vm8080, %v8046, %v7884
      %v8112 = vsel %vm8080, %v8047, %v7886
      %v8113 = vsel %vm8080, %v8048, %v7888
      %v8114 = vsel %vm8080, %v8049, %v7890
      %v8115 = vsel %vm8080, %v8050, %v7892
      %v8116 = vsel %vm8080, %v8051, %v7894
      %v8117 = vsel %vm8080, %v8052, %v7896
      %v8118 = vsel %vm8080, %v8053, %v7898
      %v8119 = vsel %vm8080, %v8054, %v7900
      %v8120 = vsel %vm8080, %v8055, %v7902
      %v8121 = vsel %vm8080, %v8056, %v7904
      %v8122 = vsel %vm8080, %v8057, %v7906
      %v8123 = vsel %vm8080, %v8058, %v7908
      %v8124 = vsel %vm8080, %v8059, %v7910
      %v8125 = vsel %vm8080, %v8060, %v7912
      %v8126 = vsel %vm8080, %v8061, %v7914
      %v8127 = vsel %vm8080, %v8062, %v7916
      %v8128 = vsel %vm8080, %v8063, %v7918
      %v8129 = vsel %vm8080, %v8064, %v7920
      %v8130 = vsel %vm8080, %v8065, %v7922
      %v8131 = vsel %vm8080, %v8066, %v7924
      %v8132 = vsel %vm8080, %v8067, %v7926
      %v8133 = vsel %vm8080, %v8068, %v7928
      %v8134 = vsel %vm8080, %v8069, %v7930
      %v8135 = vsel %vm8080, %v8070, %v7932
      %v8136 = vsel %vm8080, %v8071, %v7934
      %v8137 = vsel %vm8080, %v8072, %v7936
      %v8138 = vsel %vm8080, %v8073, %v7938
      %v8139 = vsel %vm8080, %v8074, %v7940
      %v8140 = vsel %vm8080, %v8075, %v7942
      %v8141 = vsel %vm8080, %v8076, %v7944
      %v8142 = vsel %vm8080, %v8077, %v7946
      %v8143 = vsel %vm8080, %v8078, %v7948
      %v8144 = vsel %vm8080, %v8079, %v7950
      %vm8145 = vcmask 56320
      %v8146 = vsel %vm8145, %v8081, 0.0
      %v8147 = vsel %vm8145, %v8082, 0.0
      %v8148 = vsel %vm8145, %v8083, 0.0
      %v8149 = vsel %vm8145, %v8084, 0.0
      %v8150 = vsel %vm8145, %v8085, 0.0
      %v8151 = vsel %vm8145, %v8086, 0.0
      %v8152 = vsel %vm8145, %v8087, 0.0
      %v8153 = vsel %vm8145, %v8088, 0.0
      %v8154 = vsel %vm8145, %v8089, 0.0
      %v8155 = vsel %vm8145, %v8090, 0.0
      %v8156 = vsel %vm8145, %v8091, 0.0
      %v8157 = vsel %vm8145, %v8092, 0.0
      %v8158 = vsel %vm8145, %v8093, 0.0
      %v8159 = vsel %vm8145, %v8094, 0.0
      %v8160 = vsel %vm8145, %v8095, 0.0
      %v8161 = vsel %vm8145, %v8096, 0.0
      %v8162 = vsel %vm8145, %v8097, 0.0
      %v8163 = vsel %vm8145, %v8098, 0.0
      %v8164 = vsel %vm8145, %v8099, 0.0
      %v8165 = vsel %vm8145, %v8100, 0.0
      %v8166 = vsel %vm8145, %v8101, 0.0
      %v8167 = vsel %vm8145, %v8102, 0.0
      %v8168 = vsel %vm8145, %v8103, 0.0
      %v8169 = vsel %vm8145, %v8104, 0.0
      %v8170 = vsel %vm8145, %v8105, 0.0
      %v8171 = vsel %vm8145, %v8106, 0.0
      %v8172 = vsel %vm8145, %v8107, 0.0
      %v8173 = vsel %vm8145, %v8108, 0.0
      %v8174 = vsel %vm8145, %v8109, 0.0
      %v8175 = vsel %vm8145, %v8110, 0.0
      %v8176 = vsel %vm8145, %v8111, 0.0
      %v8177 = vsel %vm8145, %v8112, 0.0
      %v8178 = vsel %vm8145, %v8113, 0.0
      %v8179 = vsel %vm8145, %v8114, 0.0
      %v8180 = vsel %vm8145, %v8115, 0.0
      %v8181 = vsel %vm8145, %v8116, 0.0
      %v8182 = vsel %vm8145, %v8117, 0.0
      %v8183 = vsel %vm8145, %v8118, 0.0
      %v8184 = vsel %vm8145, %v8119, 0.0
      %v8185 = vsel %vm8145, %v8120, 0.0
      %v8186 = vsel %vm8145, %v8121, 0.0
      %v8187 = vsel %vm8145, %v8122, 0.0
      %v8188 = vsel %vm8145, %v8123, 0.0
      %v8189 = vsel %vm8145, %v8124, 0.0
      %v8190 = vsel %vm8145, %v8125, 0.0
      %v8191 = vsel %vm8145, %v8126, 0.0
      %v8192 = vsel %vm8145, %v8127, 0.0
      %v8193 = vsel %vm8145, %v8128, 0.0
      %v8194 = vsel %vm8145, %v8129, 0.0
      %v8195 = vsel %vm8145, %v8130, 0.0
      %v8196 = vsel %vm8145, %v8131, 0.0
      %v8197 = vsel %vm8145, %v8132, 0.0
      %v8198 = vsel %vm8145, %v8133, 0.0
      %v8199 = vsel %vm8145, %v8134, 0.0
      %v8200 = vsel %vm8145, %v8135, 0.0
      %v8201 = vsel %vm8145, %v8136, 0.0
      %v8202 = vsel %vm8145, %v8137, 0.0
      %v8203 = vsel %vm8145, %v8138, 0.0
      %v8204 = vsel %vm8145, %v8139, 0.0
      %v8205 = vsel %vm8145, %v8140, 0.0
      %v8206 = vsel %vm8145, %v8141, 0.0
      %v8207 = vsel %vm8145, %v8142, 0.0
      %v8208 = vsel %vm8145, %v8143, 0.0
      %v8209 = vsel %vm8145, %v8144, 0.0
      %8274 = vrot.lane.b32.xlu0 %v2479, 124
      %v8275 = vpop.permute.xlu0 %8274
      %8276 = vrot.lane.b32.xlu0 %v2482, 124
      %v8277 = vpop.permute.xlu0 %8276
      %8278 = vrot.lane.b32.xlu0 %v2487, 124
      %v8279 = vpop.permute.xlu0 %8278
      %8280 = vrot.lane.b32.xlu0 %v2490, 124
      %v8281 = vpop.permute.xlu0 %8280
      %8282 = vrot.lane.b32.xlu0 %v2495, 124
      %v8283 = vpop.permute.xlu0 %8282
      %8284 = vrot.lane.b32.xlu0 %v2498, 124
      %v8285 = vpop.permute.xlu0 %8284
      %8286 = vrot.lane.b32.xlu0 %v2503, 124
      %v8287 = vpop.permute.xlu0 %8286
      %8288 = vrot.lane.b32.xlu0 %v2506, 124
      %v8289 = vpop.permute.xlu0 %8288
      %8290 = vrot.lane.b32.xlu0 %v2511, 124
      %v8291 = vpop.permute.xlu0 %8290
      %8292 = vrot.lane.b32.xlu0 %v2514, 124
      %v8293 = vpop.permute.xlu0 %8292
      %8294 = vrot.lane.b32.xlu0 %v2519, 124
      %v8295 = vpop.permute.xlu0 %8294
      %8296 = vrot.lane.b32.xlu0 %v2522, 124
      %v8297 = vpop.permute.xlu0 %8296
      %8298 = vrot.lane.b32.xlu0 %v2527, 124
      %v8299 = vpop.permute.xlu0 %8298
      %8300 = vrot.lane.b32.xlu0 %v2530, 124
      %v8301 = vpop.permute.xlu0 %8300
      %8302 = vrot.lane.b32.xlu0 %v2535, 124
      %v8303 = vpop.permute.xlu0 %8302
      %8304 = vrot.lane.b32.xlu0 %v2538, 124
      %v8305 = vpop.permute.xlu0 %8304
      %8306 = vrot.lane.b32.xlu0 %v2543, 124
      %v8307 = vpop.permute.xlu0 %8306
      %8308 = vrot.lane.b32.xlu0 %v2546, 124
      %v8309 = vpop.permute.xlu0 %8308
      %8310 = vrot.lane.b32.xlu0 %v2551, 124
      %v8311 = vpop.permute.xlu0 %8310
      %8312 = vrot.lane.b32.xlu0 %v2554, 124
      %v8313 = vpop.permute.xlu0 %8312
      %8314 = vrot.lane.b32.xlu0 %v2559, 124
      %v8315 = vpop.permute.xlu0 %8314
      %8316 = vrot.lane.b32.xlu0 %v2562, 124
      %v8317 = vpop.permute.xlu0 %8316
      %8318 = vrot.lane.b32.xlu0 %v2567, 124
      %v8319 = vpop.permute.xlu0 %8318
      %8320 = vrot.lane.b32.xlu0 %v2570, 124
      %v8321 = vpop.permute.xlu0 %8320
      %8322 = vrot.lane.b32.xlu0 %v2575, 124
      %v8323 = vpop.permute.xlu0 %8322
      %8324 = vrot.lane.b32.xlu0 %v2578, 124
      %v8325 = vpop.permute.xlu0 %8324
      %8326 = vrot.lane.b32.xlu0 %v2583, 124
      %v8327 = vpop.permute.xlu0 %8326
      %8328 = vrot.lane.b32.xlu0 %v2586, 124
      %v8329 = vpop.permute.xlu0 %8328
      %8330 = vrot.lane.b32.xlu0 %v2591, 124
      %v8331 = vpop.permute.xlu0 %8330
      %8332 = vrot.lane.b32.xlu0 %v2594, 124
      %v8333 = vpop.permute.xlu0 %8332
      %8334 = vrot.lane.b32.xlu0 %v2599, 124
      %v8335 = vpop.permute.xlu0 %8334
      %8336 = vrot.lane.b32.xlu0 %v2602, 124
      %v8337 = vpop.permute.xlu0 %8336
      %8338 = vrot.lane.b32.xlu0 %v2607, 124
      %v8339 = vpop.permute.xlu0 %8338
      %8340 = vrot.lane.b32.xlu0 %v2610, 124
      %v8341 = vpop.permute.xlu0 %8340
      %8342 = vrot.lane.b32.xlu0 %v2615, 124
      %v8343 = vpop.permute.xlu0 %8342
      %8344 = vrot.lane.b32.xlu0 %v2618, 124
      %v8345 = vpop.permute.xlu0 %8344
      %8346 = vrot.lane.b32.xlu0 %v2623, 124
      %v8347 = vpop.permute.xlu0 %8346
      %8348 = vrot.lane.b32.xlu0 %v2626, 124
      %v8349 = vpop.permute.xlu0 %8348
      %8350 = vrot.lane.b32.xlu0 %v2631, 124
      %v8351 = vpop.permute.xlu0 %8350
      %8352 = vrot.lane.b32.xlu0 %v2634, 124
      %v8353 = vpop.permute.xlu0 %8352
      %8354 = vrot.lane.b32.xlu0 %v2639, 124
      %v8355 = vpop.permute.xlu0 %8354
      %8356 = vrot.lane.b32.xlu0 %v2642, 124
      %v8357 = vpop.permute.xlu0 %8356
      %8358 = vrot.lane.b32.xlu0 %v2647, 124
      %v8359 = vpop.permute.xlu0 %8358
      %8360 = vrot.lane.b32.xlu0 %v2650, 124
      %v8361 = vpop.permute.xlu0 %8360
      %8362 = vrot.lane.b32.xlu0 %v2655, 124
      %v8363 = vpop.permute.xlu0 %8362
      %8364 = vrot.lane.b32.xlu0 %v2658, 124
      %v8365 = vpop.permute.xlu0 %8364
      %8366 = vrot.lane.b32.xlu0 %v2663, 124
      %v8367 = vpop.permute.xlu0 %8366
      %8368 = vrot.lane.b32.xlu0 %v2666, 124
      %v8369 = vpop.permute.xlu0 %8368
      %8370 = vrot.lane.b32.xlu0 %v2671, 124
      %v8371 = vpop.permute.xlu0 %8370
      %8372 = vrot.lane.b32.xlu0 %v2674, 124
      %v8373 = vpop.permute.xlu0 %8372
      %8374 = vrot.lane.b32.xlu0 %v2679, 124
      %v8375 = vpop.permute.xlu0 %8374
      %8376 = vrot.lane.b32.xlu0 %v2682, 124
      %v8377 = vpop.permute.xlu0 %8376
      %8378 = vrot.lane.b32.xlu0 %v2687, 124
      %v8379 = vpop.permute.xlu0 %8378
      %8380 = vrot.lane.b32.xlu0 %v2690, 124
      %v8381 = vpop.permute.xlu0 %8380
      %8382 = vrot.lane.b32.xlu0 %v2695, 124
      %v8383 = vpop.permute.xlu0 %8382
      %8384 = vrot.lane.b32.xlu0 %v2698, 124
      %v8385 = vpop.permute.xlu0 %8384
      %8386 = vrot.lane.b32.xlu0 %v2703, 124
      %v8387 = vpop.permute.xlu0 %8386
      %8388 = vrot.lane.b32.xlu0 %v2706, 124
      %v8389 = vpop.permute.xlu0 %8388
      %8390 = vrot.lane.b32.xlu0 %v2711, 124
      %v8391 = vpop.permute.xlu0 %8390
      %8392 = vrot.lane.b32.xlu0 %v2714, 124
      %v8393 = vpop.permute.xlu0 %8392
      %8394 = vrot.lane.b32.xlu0 %v2719, 124
      %v8395 = vpop.permute.xlu0 %8394
      %8396 = vrot.lane.b32.xlu0 %v2722, 124
      %v8397 = vpop.permute.xlu0 %8396
      %8398 = vrot.lane.b32.xlu0 %v2727, 124
      %v8399 = vpop.permute.xlu0 %8398
      %8400 = vrot.lane.b32.xlu0 %v2730, 124
      %v8401 = vpop.permute.xlu0 %8400
      %8466 = vrot.lane.b32.xlu0 %v4863, 2
      %v8467 = vpop.permute.xlu0 %8466
      %8468 = vrot.lane.b32.xlu0 %v4866, 2
      %v8469 = vpop.permute.xlu0 %8468
      %8470 = vrot.lane.b32.xlu0 %v4871, 2
      %v8471 = vpop.permute.xlu0 %8470
      %8472 = vrot.lane.b32.xlu0 %v4874, 2
      %v8473 = vpop.permute.xlu0 %8472
      %8474 = vrot.lane.b32.xlu0 %v4879, 2
      %v8475 = vpop.permute.xlu0 %8474
      %8476 = vrot.lane.b32.xlu0 %v4882, 2
      %v8477 = vpop.permute.xlu0 %8476
      %8478 = vrot.lane.b32.xlu0 %v4887, 2
      %v8479 = vpop.permute.xlu0 %8478
      %8480 = vrot.lane.b32.xlu0 %v4890, 2
      %v8481 = vpop.permute.xlu0 %8480
      %8482 = vrot.lane.b32.xlu0 %v4895, 2
      %v8483 = vpop.permute.xlu0 %8482
      %8484 = vrot.lane.b32.xlu0 %v4898, 2
      %v8485 = vpop.permute.xlu0 %8484
      %8486 = vrot.lane.b32.xlu0 %v4903, 2
      %v8487 = vpop.permute.xlu0 %8486
      %8488 = vrot.lane.b32.xlu0 %v4906, 2
      %v8489 = vpop.permute.xlu0 %8488
      %8490 = vrot.lane.b32.xlu0 %v4911, 2
      %v8491 = vpop.permute.xlu0 %8490
      %8492 = vrot.lane.b32.xlu0 %v4914, 2
      %v8493 = vpop.permute.xlu0 %8492
      %8494 = vrot.lane.b32.xlu0 %v4919, 2
      %v8495 = vpop.permute.xlu0 %8494
      %8496 = vrot.lane.b32.xlu0 %v4922, 2
      %v8497 = vpop.permute.xlu0 %8496
      %8498 = vrot.lane.b32.xlu0 %v4927, 2
      %v8499 = vpop.permute.xlu0 %8498
      %8500 = vrot.lane.b32.xlu0 %v4930, 2
      %v8501 = vpop.permute.xlu0 %8500
      %8502 = vrot.lane.b32.xlu0 %v4935, 2
      %v8503 = vpop.permute.xlu0 %8502
      %8504 = vrot.lane.b32.xlu0 %v4938, 2
      %v8505 = vpop.permute.xlu0 %8504
      %8506 = vrot.lane.b32.xlu0 %v4943, 2
      %v8507 = vpop.permute.xlu0 %8506
      %8508 = vrot.lane.b32.xlu0 %v4946, 2
      %v8509 = vpop.permute.xlu0 %8508
      %8510 = vrot.lane.b32.xlu0 %v4951, 2
      %v8511 = vpop.permute.xlu0 %8510
      %8512 = vrot.lane.b32.xlu0 %v4954, 2
      %v8513 = vpop.permute.xlu0 %8512
      %8514 = vrot.lane.b32.xlu0 %v4959, 2
      %v8515 = vpop.permute.xlu0 %8514
      %8516 = vrot.lane.b32.xlu0 %v4962, 2
      %v8517 = vpop.permute.xlu0 %8516
      %8518 = vrot.lane.b32.xlu0 %v4967, 2
      %v8519 = vpop.permute.xlu0 %8518
      %8520 = vrot.lane.b32.xlu0 %v4970, 2
      %v8521 = vpop.permute.xlu0 %8520
      %8522 = vrot.lane.b32.xlu0 %v4975, 2
      %v8523 = vpop.permute.xlu0 %8522
      %8524 = vrot.lane.b32.xlu0 %v4978, 2
      %v8525 = vpop.permute.xlu0 %8524
      %8526 = vrot.lane.b32.xlu0 %v4983, 2
      %v8527 = vpop.permute.xlu0 %8526
      %8528 = vrot.lane.b32.xlu0 %v4986, 2
      %v8529 = vpop.permute.xlu0 %8528
      %8530 = vrot.lane.b32.xlu0 %v4991, 2
      %v8531 = vpop.permute.xlu0 %8530
      %8532 = vrot.lane.b32.xlu0 %v4994, 2
      %v8533 = vpop.permute.xlu0 %8532
      %8534 = vrot.lane.b32.xlu0 %v4999, 2
      %v8535 = vpop.permute.xlu0 %8534
      %8536 = vrot.lane.b32.xlu0 %v5002, 2
      %v8537 = vpop.permute.xlu0 %8536
      %8538 = vrot.lane.b32.xlu0 %v5007, 2
      %v8539 = vpop.permute.xlu0 %8538
      %8540 = vrot.lane.b32.xlu0 %v5010, 2
      %v8541 = vpop.permute.xlu0 %8540
      %8542 = vrot.lane.b32.xlu0 %v5015, 2
      %v8543 = vpop.permute.xlu0 %8542
      %8544 = vrot.lane.b32.xlu0 %v5018, 2
      %v8545 = vpop.permute.xlu0 %8544
      %8546 = vrot.lane.b32.xlu0 %v5023, 2
      %v8547 = vpop.permute.xlu0 %8546
      %8548 = vrot.lane.b32.xlu0 %v5026, 2
      %v8549 = vpop.permute.xlu0 %8548
      %8550 = vrot.lane.b32.xlu0 %v5031, 2
      %v8551 = vpop.permute.xlu0 %8550
      %8552 = vrot.lane.b32.xlu0 %v5034, 2
      %v8553 = vpop.permute.xlu0 %8552
      %8554 = vrot.lane.b32.xlu0 %v5039, 2
      %v8555 = vpop.permute.xlu0 %8554
      %8556 = vrot.lane.b32.xlu0 %v5042, 2
      %v8557 = vpop.permute.xlu0 %8556
      %8558 = vrot.lane.b32.xlu0 %v5047, 2
      %v8559 = vpop.permute.xlu0 %8558
      %8560 = vrot.lane.b32.xlu0 %v5050, 2
      %v8561 = vpop.permute.xlu0 %8560
      %8562 = vrot.lane.b32.xlu0 %v5055, 2
      %v8563 = vpop.permute.xlu0 %8562
      %8564 = vrot.lane.b32.xlu0 %v5058, 2
      %v8565 = vpop.permute.xlu0 %8564
      %8566 = vrot.lane.b32.xlu0 %v5063, 2
      %v8567 = vpop.permute.xlu0 %8566
      %8568 = vrot.lane.b32.xlu0 %v5066, 2
      %v8569 = vpop.permute.xlu0 %8568
      %8570 = vrot.lane.b32.xlu0 %v5071, 2
      %v8571 = vpop.permute.xlu0 %8570
      %8572 = vrot.lane.b32.xlu0 %v5074, 2
      %v8573 = vpop.permute.xlu0 %8572
      %8574 = vrot.lane.b32.xlu0 %v5079, 2
      %v8575 = vpop.permute.xlu0 %8574
      %8576 = vrot.lane.b32.xlu0 %v5082, 2
      %v8577 = vpop.permute.xlu0 %8576
      %8578 = vrot.lane.b32.xlu0 %v5087, 2
      %v8579 = vpop.permute.xlu0 %8578
      %8580 = vrot.lane.b32.xlu0 %v5090, 2
      %v8581 = vpop.permute.xlu0 %8580
      %8582 = vrot.lane.b32.xlu0 %v5095, 2
      %v8583 = vpop.permute.xlu0 %8582
      %8584 = vrot.lane.b32.xlu0 %v5098, 2
      %v8585 = vpop.permute.xlu0 %8584
      %8586 = vrot.lane.b32.xlu0 %v5103, 2
      %v8587 = vpop.permute.xlu0 %8586
      %8588 = vrot.lane.b32.xlu0 %v5106, 2
      %v8589 = vpop.permute.xlu0 %8588
      %8590 = vrot.lane.b32.xlu0 %v5111, 2
      %v8591 = vpop.permute.xlu0 %8590
      %8592 = vrot.lane.b32.xlu0 %v5114, 2
      %v8593 = vpop.permute.xlu0 %8592
      %8658 = vrot.lane.b32.xlu0 %v7249, 5
      %v8659 = vpop.permute.xlu0 %8658
      %8660 = vrot.lane.b32.xlu0 %v7252, 5
      %v8661 = vpop.permute.xlu0 %8660
      %8662 = vrot.lane.b32.xlu0 %v7257, 5
      %v8663 = vpop.permute.xlu0 %8662
      %8664 = vrot.lane.b32.xlu0 %v7260, 5
      %v8665 = vpop.permute.xlu0 %8664
      %8666 = vrot.lane.b32.xlu0 %v7265, 5
      %v8667 = vpop.permute.xlu0 %8666
      %8668 = vrot.lane.b32.xlu0 %v7268, 5
      %v8669 = vpop.permute.xlu0 %8668
      %8670 = vrot.lane.b32.xlu0 %v7273, 5
      %v8671 = vpop.permute.xlu0 %8670
      %8672 = vrot.lane.b32.xlu0 %v7276, 5
      %v8673 = vpop.permute.xlu0 %8672
      %8674 = vrot.lane.b32.xlu0 %v7281, 5
      %v8675 = vpop.permute.xlu0 %8674
      %8676 = vrot.lane.b32.xlu0 %v7284, 5
      %v8677 = vpop.permute.xlu0 %8676
      %8678 = vrot.lane.b32.xlu0 %v7289, 5
      %v8679 = vpop.permute.xlu0 %8678
      %8680 = vrot.lane.b32.xlu0 %v7292, 5
      %v8681 = vpop.permute.xlu0 %8680
      %8682 = vrot.lane.b32.xlu0 %v7297, 5
      %v8683 = vpop.permute.xlu0 %8682
      %8684 = vrot.lane.b32.xlu0 %v7300, 5
      %v8685 = vpop.permute.xlu0 %8684
      %8686 = vrot.lane.b32.xlu0 %v7305, 5
      %v8687 = vpop.permute.xlu0 %8686
      %8688 = vrot.lane.b32.xlu0 %v7308, 5
      %v8689 = vpop.permute.xlu0 %8688
      %8690 = vrot.lane.b32.xlu0 %v7313, 5
      %v8691 = vpop.permute.xlu0 %8690
      %8692 = vrot.lane.b32.xlu0 %v7316, 5
      %v8693 = vpop.permute.xlu0 %8692
      %8694 = vrot.lane.b32.xlu0 %v7321, 5
      %v8695 = vpop.permute.xlu0 %8694
      %8696 = vrot.lane.b32.xlu0 %v7324, 5
      %v8697 = vpop.permute.xlu0 %8696
      %8698 = vrot.lane.b32.xlu0 %v7329, 5
      %v8699 = vpop.permute.xlu0 %8698
      %8700 = vrot.lane.b32.xlu0 %v7332, 5
      %v8701 = vpop.permute.xlu0 %8700
      %8702 = vrot.lane.b32.xlu0 %v7337, 5
      %v8703 = vpop.permute.xlu0 %8702
      %8704 = vrot.lane.b32.xlu0 %v7340, 5
      %v8705 = vpop.permute.xlu0 %8704
      %8706 = vrot.lane.b32.xlu0 %v7345, 5
      %v8707 = vpop.permute.xlu0 %8706
      %8708 = vrot.lane.b32.xlu0 %v7348, 5
      %v8709 = vpop.permute.xlu0 %8708
      %8710 = vrot.lane.b32.xlu0 %v7353, 5
      %v8711 = vpop.permute.xlu0 %8710
      %8712 = vrot.lane.b32.xlu0 %v7356, 5
      %v8713 = vpop.permute.xlu0 %8712
      %8714 = vrot.lane.b32.xlu0 %v7361, 5
      %v8715 = vpop.permute.xlu0 %8714
      %8716 = vrot.lane.b32.xlu0 %v7364, 5
      %v8717 = vpop.permute.xlu0 %8716
      %8718 = vrot.lane.b32.xlu0 %v7369, 5
      %v8719 = vpop.permute.xlu0 %8718
      %8720 = vrot.lane.b32.xlu0 %v7372, 5
      %v8721 = vpop.permute.xlu0 %8720
      %8722 = vrot.lane.b32.xlu0 %v7377, 5
      %v8723 = vpop.permute.xlu0 %8722
      %8724 = vrot.lane.b32.xlu0 %v7380, 5
      %v8725 = vpop.permute.xlu0 %8724
      %8726 = vrot.lane.b32.xlu0 %v7385, 5
      %v8727 = vpop.permute.xlu0 %8726
      %8728 = vrot.lane.b32.xlu0 %v7388, 5
      %v8729 = vpop.permute.xlu0 %8728
      %8730 = vrot.lane.b32.xlu0 %v7393, 5
      %v8731 = vpop.permute.xlu0 %8730
      %8732 = vrot.lane.b32.xlu0 %v7396, 5
      %v8733 = vpop.permute.xlu0 %8732
      %8734 = vrot.lane.b32.xlu0 %v7401, 5
      %v8735 = vpop.permute.xlu0 %8734
      %8736 = vrot.lane.b32.xlu0 %v7404, 5
      %v8737 = vpop.permute.xlu0 %8736
      %8738 = vrot.lane.b32.xlu0 %v7409, 5
      %v8739 = vpop.permute.xlu0 %8738
      %8740 = vrot.lane.b32.xlu0 %v7412, 5
      %v8741 = vpop.permute.xlu0 %8740
      %8742 = vrot.lane.b32.xlu0 %v7417, 5
      %v8743 = vpop.permute.xlu0 %8742
      %8744 = vrot.lane.b32.xlu0 %v7420, 5
      %v8745 = vpop.permute.xlu0 %8744
      %8746 = vrot.lane.b32.xlu0 %v7425, 5
      %v8747 = vpop.permute.xlu0 %8746
      %8748 = vrot.lane.b32.xlu0 %v7428, 5
      %v8749 = vpop.permute.xlu0 %8748
      %8750 = vrot.lane.b32.xlu0 %v7433, 5
      %v8751 = vpop.permute.xlu0 %8750
      %8752 = vrot.lane.b32.xlu0 %v7436, 5
      %v8753 = vpop.permute.xlu0 %8752
      %8754 = vrot.lane.b32.xlu0 %v7441, 5
      %v8755 = vpop.permute.xlu0 %8754
      %8756 = vrot.lane.b32.xlu0 %v7444, 5
      %v8757 = vpop.permute.xlu0 %8756
      %8758 = vrot.lane.b32.xlu0 %v7449, 5
      %v8759 = vpop.permute.xlu0 %8758
      %8760 = vrot.lane.b32.xlu0 %v7452, 5
      %v8761 = vpop.permute.xlu0 %8760
      %8762 = vrot.lane.b32.xlu0 %v7457, 5
      %v8763 = vpop.permute.xlu0 %8762
      %8764 = vrot.lane.b32.xlu0 %v7460, 5
      %v8765 = vpop.permute.xlu0 %8764
      %8766 = vrot.lane.b32.xlu0 %v7465, 5
      %v8767 = vpop.permute.xlu0 %8766
      %8768 = vrot.lane.b32.xlu0 %v7468, 5
      %v8769 = vpop.permute.xlu0 %8768
      %8770 = vrot.lane.b32.xlu0 %v7473, 5
      %v8771 = vpop.permute.xlu0 %8770
      %8772 = vrot.lane.b32.xlu0 %v7476, 5
      %v8773 = vpop.permute.xlu0 %8772
      %8774 = vrot.lane.b32.xlu0 %v7481, 5
      %v8775 = vpop.permute.xlu0 %8774
      %8776 = vrot.lane.b32.xlu0 %v7484, 5
      %v8777 = vpop.permute.xlu0 %8776
      %8778 = vrot.lane.b32.xlu0 %v7489, 5
      %v8779 = vpop.permute.xlu0 %8778
      %8780 = vrot.lane.b32.xlu0 %v7492, 5
      %v8781 = vpop.permute.xlu0 %8780
      %8782 = vrot.lane.b32.xlu0 %v7497, 5
      %v8783 = vpop.permute.xlu0 %8782
      %8784 = vrot.lane.b32.xlu0 %v7500, 5
      %v8785 = vpop.permute.xlu0 %8784
      %v8850 = vsel %vm8015, %v8275, %v8467
      %v8851 = vsel %vm8015, %v8277, %v8469
      %v8852 = vsel %vm8015, %v8279, %v8471
      %v8853 = vsel %vm8015, %v8281, %v8473
      %v8854 = vsel %vm8015, %v8283, %v8475
      %v8855 = vsel %vm8015, %v8285, %v8477
      %v8856 = vsel %vm8015, %v8287, %v8479
      %v8857 = vsel %vm8015, %v8289, %v8481
      %v8858 = vsel %vm8015, %v8291, %v8483
      %v8859 = vsel %vm8015, %v8293, %v8485
      %v8860 = vsel %vm8015, %v8295, %v8487
      %v8861 = vsel %vm8015, %v8297, %v8489
      %v8862 = vsel %vm8015, %v8299, %v8491
      %v8863 = vsel %vm8015, %v8301, %v8493
      %v8864 = vsel %vm8015, %v8303, %v8495
      %v8865 = vsel %vm8015, %v8305, %v8497
      %v8866 = vsel %vm8015, %v8307, %v8499
      %v8867 = vsel %vm8015, %v8309, %v8501
      %v8868 = vsel %vm8015, %v8311, %v8503
      %v8869 = vsel %vm8015, %v8313, %v8505
      %v8870 = vsel %vm8015, %v8315, %v8507
      %v8871 = vsel %vm8015, %v8317, %v8509
      %v8872 = vsel %vm8015, %v8319, %v8511
      %v8873 = vsel %vm8015, %v8321, %v8513
      %v8874 = vsel %vm8015, %v8323, %v8515
      %v8875 = vsel %vm8015, %v8325, %v8517
      %v8876 = vsel %vm8015, %v8327, %v8519
      %v8877 = vsel %vm8015, %v8329, %v8521
      %v8878 = vsel %vm8015, %v8331, %v8523
      %v8879 = vsel %vm8015, %v8333, %v8525
      %v8880 = vsel %vm8015, %v8335, %v8527
      %v8881 = vsel %vm8015, %v8337, %v8529
      %v8882 = vsel %vm8015, %v8339, %v8531
      %v8883 = vsel %vm8015, %v8341, %v8533
      %v8884 = vsel %vm8015, %v8343, %v8535
      %v8885 = vsel %vm8015, %v8345, %v8537
      %v8886 = vsel %vm8015, %v8347, %v8539
      %v8887 = vsel %vm8015, %v8349, %v8541
      %v8888 = vsel %vm8015, %v8351, %v8543
      %v8889 = vsel %vm8015, %v8353, %v8545
      %v8890 = vsel %vm8015, %v8355, %v8547
      %v8891 = vsel %vm8015, %v8357, %v8549
      %v8892 = vsel %vm8015, %v8359, %v8551
      %v8893 = vsel %vm8015, %v8361, %v8553
      %v8894 = vsel %vm8015, %v8363, %v8555
      %v8895 = vsel %vm8015, %v8365, %v8557
      %v8896 = vsel %vm8015, %v8367, %v8559
      %v8897 = vsel %vm8015, %v8369, %v8561
      %v8898 = vsel %vm8015, %v8371, %v8563
      %v8899 = vsel %vm8015, %v8373, %v8565
      %v8900 = vsel %vm8015, %v8375, %v8567
      %v8901 = vsel %vm8015, %v8377, %v8569
      %v8902 = vsel %vm8015, %v8379, %v8571
      %v8903 = vsel %vm8015, %v8381, %v8573
      %v8904 = vsel %vm8015, %v8383, %v8575
      %v8905 = vsel %vm8015, %v8385, %v8577
      %v8906 = vsel %vm8015, %v8387, %v8579
      %v8907 = vsel %vm8015, %v8389, %v8581
      %v8908 = vsel %vm8015, %v8391, %v8583
      %v8909 = vsel %vm8015, %v8393, %v8585
      %v8910 = vsel %vm8015, %v8395, %v8587
      %v8911 = vsel %vm8015, %v8397, %v8589
      %v8912 = vsel %vm8015, %v8399, %v8591
      %v8913 = vsel %vm8015, %v8401, %v8593
      %v8914 = vsel %vm8080, %v8850, %v8659
      %v8915 = vsel %vm8080, %v8851, %v8661
      %v8916 = vsel %vm8080, %v8852, %v8663
      %v8917 = vsel %vm8080, %v8853, %v8665
      %v8918 = vsel %vm8080, %v8854, %v8667
      %v8919 = vsel %vm8080, %v8855, %v8669
      %v8920 = vsel %vm8080, %v8856, %v8671
      %v8921 = vsel %vm8080, %v8857, %v8673
      %v8922 = vsel %vm8080, %v8858, %v8675
      %v8923 = vsel %vm8080, %v8859, %v8677
      %v8924 = vsel %vm8080, %v8860, %v8679
      %v8925 = vsel %vm8080, %v8861, %v8681
      %v8926 = vsel %vm8080, %v8862, %v8683
      %v8927 = vsel %vm8080, %v8863, %v8685
      %v8928 = vsel %vm8080, %v8864, %v8687
      %v8929 = vsel %vm8080, %v8865, %v8689
      %v8930 = vsel %vm8080, %v8866, %v8691
      %v8931 = vsel %vm8080, %v8867, %v8693
      %v8932 = vsel %vm8080, %v8868, %v8695
      %v8933 = vsel %vm8080, %v8869, %v8697
      %v8934 = vsel %vm8080, %v8870, %v8699
      %v8935 = vsel %vm8080, %v8871, %v8701
      %v8936 = vsel %vm8080, %v8872, %v8703
      %v8937 = vsel %vm8080, %v8873, %v8705
      %v8938 = vsel %vm8080, %v8874, %v8707
      %v8939 = vsel %vm8080, %v8875, %v8709
      %v8940 = vsel %vm8080, %v8876, %v8711
      %v8941 = vsel %vm8080, %v8877, %v8713
      %v8942 = vsel %vm8080, %v8878, %v8715
      %v8943 = vsel %vm8080, %v8879, %v8717
      %v8944 = vsel %vm8080, %v8880, %v8719
      %v8945 = vsel %vm8080, %v8881, %v8721
      %v8946 = vsel %vm8080, %v8882, %v8723
      %v8947 = vsel %vm8080, %v8883, %v8725
      %v8948 = vsel %vm8080, %v8884, %v8727
      %v8949 = vsel %vm8080, %v8885, %v8729
      %v8950 = vsel %vm8080, %v8886, %v8731
      %v8951 = vsel %vm8080, %v8887, %v8733
      %v8952 = vsel %vm8080, %v8888, %v8735
      %v8953 = vsel %vm8080, %v8889, %v8737
      %v8954 = vsel %vm8080, %v8890, %v8739
      %v8955 = vsel %vm8080, %v8891, %v8741
      %v8956 = vsel %vm8080, %v8892, %v8743
      %v8957 = vsel %vm8080, %v8893, %v8745
      %v8958 = vsel %vm8080, %v8894, %v8747
      %v8959 = vsel %vm8080, %v8895, %v8749
      %v8960 = vsel %vm8080, %v8896, %v8751
      %v8961 = vsel %vm8080, %v8897, %v8753
      %v8962 = vsel %vm8080, %v8898, %v8755
      %v8963 = vsel %vm8080, %v8899, %v8757
      %v8964 = vsel %vm8080, %v8900, %v8759
      %v8965 = vsel %vm8080, %v8901, %v8761
      %v8966 = vsel %vm8080, %v8902, %v8763
      %v8967 = vsel %vm8080, %v8903, %v8765
      %v8968 = vsel %vm8080, %v8904, %v8767
      %v8969 = vsel %vm8080, %v8905, %v8769
      %v8970 = vsel %vm8080, %v8906, %v8771
      %v8971 = vsel %vm8080, %v8907, %v8773
      %v8972 = vsel %vm8080, %v8908, %v8775
      %v8973 = vsel %vm8080, %v8909, %v8777
      %v8974 = vsel %vm8080, %v8910, %v8779
      %v8975 = vsel %vm8080, %v8911, %v8781
      %v8976 = vsel %vm8080, %v8912, %v8783
      %v8977 = vsel %vm8080, %v8913, %v8785
      %v8978 = vsel %vm8145, %v8914, 0.0
      %v8979 = vsel %vm8145, %v8915, 0.0
      %v8980 = vsel %vm8145, %v8916, 0.0
      %v8981 = vsel %vm8145, %v8917, 0.0
      %v8982 = vsel %vm8145, %v8918, 0.0
      %v8983 = vsel %vm8145, %v8919, 0.0
      %v8984 = vsel %vm8145, %v8920, 0.0
      %v8985 = vsel %vm8145, %v8921, 0.0
      %v8986 = vsel %vm8145, %v8922, 0.0
      %v8987 = vsel %vm8145, %v8923, 0.0
      %v8988 = vsel %vm8145, %v8924, 0.0
      %v8989 = vsel %vm8145, %v8925, 0.0
      %v8990 = vsel %vm8145, %v8926, 0.0
      %v8991 = vsel %vm8145, %v8927, 0.0
      %v8992 = vsel %vm8145, %v8928, 0.0
      %v8993 = vsel %vm8145, %v8929, 0.0
      %v8994 = vsel %vm8145, %v8930, 0.0
      %v8995 = vsel %vm8145, %v8931, 0.0
      %v8996 = vsel %vm8145, %v8932, 0.0
      %v8997 = vsel %vm8145, %v8933, 0.0
      %v8998 = vsel %vm8145, %v8934, 0.0
      %v8999 = vsel %vm8145, %v8935, 0.0
      %v9000 = vsel %vm8145, %v8936, 0.0
      %v9001 = vsel %vm8145, %v8937, 0.0
      %v9002 = vsel %vm8145, %v8938, 0.0
      %v9003 = vsel %vm8145, %v8939, 0.0
      %v9004 = vsel %vm8145, %v8940, 0.0
      %v9005 = vsel %vm8145, %v8941, 0.0
      %v9006 = vsel %vm8145, %v8942, 0.0
      %v9007 = vsel %vm8145, %v8943, 0.0
      %v9008 = vsel %vm8145, %v8944, 0.0
      %v9009 = vsel %vm8145, %v8945, 0.0
      %v9010 = vsel %vm8145, %v8946, 0.0
      %v9011 = vsel %vm8145, %v8947, 0.0
      %v9012 = vsel %vm8145, %v8948, 0.0
      %v9013 = vsel %vm8145, %v8949, 0.0
      %v9014 = vsel %vm8145, %v8950, 0.0
      %v9015 = vsel %vm8145, %v8951, 0.0
      %v9016 = vsel %vm8145, %v8952, 0.0
      %v9017 = vsel %vm8145, %v8953, 0.0
      %v9018 = vsel %vm8145, %v8954, 0.0
      %v9019 = vsel %vm8145, %v8955, 0.0
      %v9020 = vsel %vm8145, %v8956, 0.0
      %v9021 = vsel %vm8145, %v8957, 0.0
      %v9022 = vsel %vm8145, %v8958, 0.0
      %v9023 = vsel %vm8145, %v8959, 0.0
      %v9024 = vsel %vm8145, %v8960, 0.0
      %v9025 = vsel %vm8145, %v8961, 0.0
      %v9026 = vsel %vm8145, %v8962, 0.0
      %v9027 = vsel %vm8145, %v8963, 0.0
      %v9028 = vsel %vm8145, %v8964, 0.0
      %v9029 = vsel %vm8145, %v8965, 0.0
      %v9030 = vsel %vm8145, %v8966, 0.0
      %v9031 = vsel %vm8145, %v8967, 0.0
      %v9032 = vsel %vm8145, %v8968, 0.0
      %v9033 = vsel %vm8145, %v8969, 0.0
      %v9034 = vsel %vm8145, %v8970, 0.0
      %v9035 = vsel %vm8145, %v8971, 0.0
      %v9036 = vsel %vm8145, %v8972, 0.0
      %v9037 = vsel %vm8145, %v8973, 0.0
      %v9038 = vsel %vm8145, %v8974, 0.0
      %v9039 = vsel %vm8145, %v8975, 0.0
      %v9040 = vsel %vm8145, %v8976, 0.0
      %v9041 = vsel %vm8145, %v8977, 0.0
      %v9042 = vmul.f32 %v8978, 0.5
      %v9043 = vmul.f32 %v8979, 0.5
      %v9044 = vmul.f32 %v8980, 0.5
      %v9045 = vmul.f32 %v8981, 0.5
      %v9046 = vmul.f32 %v8982, 0.5
      %v9047 = vmul.f32 %v8983, 0.5
      %v9048 = vmul.f32 %v8984, 0.5
      %v9049 = vmul.f32 %v8985, 0.5
      %v9050 = vmul.f32 %v8986, 0.5
      %v9051 = vmul.f32 %v8987, 0.5
      %v9052 = vmul.f32 %v8988, 0.5
      %v9053 = vmul.f32 %v8989, 0.5
      %v9054 = vmul.f32 %v8990, 0.5
      %v9055 = vmul.f32 %v8991, 0.5
      %v9056 = vmul.f32 %v8992, 0.5
      %v9057 = vmul.f32 %v8993, 0.5
      %v9058 = vmul.f32 %v8994, 0.5
      %v9059 = vmul.f32 %v8995, 0.5
      %v9060 = vmul.f32 %v8996, 0.5
      %v9061 = vmul.f32 %v8997, 0.5
      %v9062 = vmul.f32 %v8998, 0.5
      %v9063 = vmul.f32 %v8999, 0.5
      %v9064 = vmul.f32 %v9000, 0.5
      %v9065 = vmul.f32 %v9001, 0.5
      %v9066 = vmul.f32 %v9002, 0.5
      %v9067 = vmul.f32 %v9003, 0.5
      %v9068 = vmul.f32 %v9004, 0.5
      %v9069 = vmul.f32 %v9005, 0.5
      %v9070 = vmul.f32 %v9006, 0.5
      %v9071 = vmul.f32 %v9007, 0.5
      %v9072 = vmul.f32 %v9008, 0.5
      %v9073 = vmul.f32 %v9009, 0.5
      %v9074 = vmul.f32 %v9010, 0.5
      %v9075 = vmul.f32 %v9011, 0.5
      %v9076 = vmul.f32 %v9012, 0.5
      %v9077 = vmul.f32 %v9013, 0.5
      %v9078 = vmul.f32 %v9014, 0.5
      %v9079 = vmul.f32 %v9015, 0.5
      %v9080 = vmul.f32 %v9016, 0.5
      %v9081 = vmul.f32 %v9017, 0.5
      %v9082 = vmul.f32 %v9018, 0.5
      %v9083 = vmul.f32 %v9019, 0.5
      %v9084 = vmul.f32 %v9020, 0.5
      %v9085 = vmul.f32 %v9021, 0.5
      %v9086 = vmul.f32 %v9022, 0.5
      %v9087 = vmul.f32 %v9023, 0.5
      %v9088 = vmul.f32 %v9024, 0.5
      %v9089 = vmul.f32 %v9025, 0.5
      %v9090 = vmul.f32 %v9026, 0.5
      %v9091 = vmul.f32 %v9027, 0.5
      %v9092 = vmul.f32 %v9028, 0.5
      %v9093 = vmul.f32 %v9029, 0.5
      %v9094 = vmul.f32 %v9030, 0.5
      %v9095 = vmul.f32 %v9031, 0.5
      %v9096 = vmul.f32 %v9032, 0.5
      %v9097 = vmul.f32 %v9033, 0.5
      %v9098 = vmul.f32 %v9034, 0.5
      %v9099 = vmul.f32 %v9035, 0.5
      %v9100 = vmul.f32 %v9036, 0.5
      %v9101 = vmul.f32 %v9037, 0.5
      %v9102 = vmul.f32 %v9038, 0.5
      %v9103 = vmul.f32 %v9039, 0.5
      %v9104 = vmul.f32 %v9040, 0.5
      %v9105 = vmul.f32 %v9041, 0.5
      %v9106 = vmul.f32 %v9042, 1.442695
      %v9107 = vpow.pop %v9106
      %v9108 = vmul.f32 %v9043, 1.442695
      %v9109 = vpow.pop %v9108
      %v9110 = vmul.f32 %v9044, 1.442695
      %v9111 = vpow.pop %v9110
      %v9112 = vmul.f32 %v9045, 1.442695
      %v9113 = vpow.pop %v9112
      %v9114 = vmul.f32 %v9046, 1.442695
      %v9115 = vpow.pop %v9114
      %v9116 = vmul.f32 %v9047, 1.442695
      %v9117 = vpow.pop %v9116
      %v9118 = vmul.f32 %v9048, 1.442695
      %v9119 = vpow.pop %v9118
      %v9120 = vmul.f32 %v9049, 1.442695
      %v9121 = vpow.pop %v9120
      %v9122 = vmul.f32 %v9050, 1.442695
      %v9123 = vpow.pop %v9122
      %v9124 = vmul.f32 %v9051, 1.442695
      %v9125 = vpow.pop %v9124
      %v9126 = vmul.f32 %v9052, 1.442695
      %v9127 = vpow.pop %v9126
      %v9128 = vmul.f32 %v9053, 1.442695
      %v9129 = vpow.pop %v9128
      %v9130 = vmul.f32 %v9054, 1.442695
      %v9131 = vpow.pop %v9130
      %v9132 = vmul.f32 %v9055, 1.442695
      %v9133 = vpow.pop %v9132
      %v9134 = vmul.f32 %v9056, 1.442695
      %v9135 = vpow.pop %v9134
      %v9136 = vmul.f32 %v9057, 1.442695
      %v9137 = vpow.pop %v9136
      %v9138 = vmul.f32 %v9058, 1.442695
      %v9139 = vpow.pop %v9138
      %v9140 = vmul.f32 %v9059, 1.442695
      %v9141 = vpow.pop %v9140
      %v9142 = vmul.f32 %v9060, 1.442695
      %v9143 = vpow.pop %v9142
      %v9144 = vmul.f32 %v9061, 1.442695
      %v9145 = vpow.pop %v9144
      %v9146 = vmul.f32 %v9062, 1.442695
      %v9147 = vpow.pop %v9146
      %v9148 = vmul.f32 %v9063, 1.442695
      %v9149 = vpow.pop %v9148
      %v9150 = vmul.f32 %v9064, 1.442695
      %v9151 = vpow.pop %v9150
      %v9152 = vmul.f32 %v9065, 1.442695
      %v9153 = vpow.pop %v9152
      %v9154 = vmul.f32 %v9066, 1.442695
      %v9155 = vpow.pop %v9154
      %v9156 = vmul.f32 %v9067, 1.442695
      %v9157 = vpow.pop %v9156
      %v9158 = vmul.f32 %v9068, 1.442695
      %v9159 = vpow.pop %v9158
      %v9160 = vmul.f32 %v9069, 1.442695
      %v9161 = vpow.pop %v9160
      %v9162 = vmul.f32 %v9070, 1.442695
      %v9163 = vpow.pop %v9162
      %v9164 = vmul.f32 %v9071, 1.442695
      %v9165 = vpow.pop %v9164
      %v9166 = vmul.f32 %v9072, 1.442695
      %v9167 = vpow.pop %v9166
      %v9168 = vmul.f32 %v9073, 1.442695
      %v9169 = vpow.pop %v9168
      %v9170 = vmul.f32 %v9074, 1.442695
      %v9171 = vpow.pop %v9170
      %v9172 = vmul.f32 %v9075, 1.442695
      %v9173 = vpow.pop %v9172
      %v9174 = vmul.f32 %v9076, 1.442695
      %v9175 = vpow.pop %v9174
      %v9176 = vmul.f32 %v9077, 1.442695
      %v9177 = vpow.pop %v9176
      %v9178 = vmul.f32 %v9078, 1.442695
      %v9179 = vpow.pop %v9178
      %v9180 = vmul.f32 %v9079, 1.442695
      %v9181 = vpow.pop %v9180
      %v9182 = vmul.f32 %v9080, 1.442695
      %v9183 = vpow.pop %v9182
      %v9184 = vmul.f32 %v9081, 1.442695
      %v9185 = vpow.pop %v9184
      %v9186 = vmul.f32 %v9082, 1.442695
      %v9187 = vpow.pop %v9186
      %v9188 = vmul.f32 %v9083, 1.442695
      %v9189 = vpow.pop %v9188
      %v9190 = vmul.f32 %v9084, 1.442695
      %v9191 = vpow.pop %v9190
      %v9192 = vmul.f32 %v9085, 1.442695
      %v9193 = vpow.pop %v9192
      %v9194 = vmul.f32 %v9086, 1.442695
      %v9195 = vpow.pop %v9194
      %v9196 = vmul.f32 %v9087, 1.442695
      %v9197 = vpow.pop %v9196
      %v9198 = vmul.f32 %v9088, 1.442695
      %v9199 = vpow.pop %v9198
      %v9200 = vmul.f32 %v9089, 1.442695
      %v9201 = vpow.pop %v9200
      %v9202 = vmul.f32 %v9090, 1.442695
      %v9203 = vpow.pop %v9202
      %v9204 = vmul.f32 %v9091, 1.442695
      %v9205 = vpow.pop %v9204
      %v9206 = vmul.f32 %v9092, 1.442695
      %v9207 = vpow.pop %v9206
      %v9208 = vmul.f32 %v9093, 1.442695
      %v9209 = vpow.pop %v9208
      %v9210 = vmul.f32 %v9094, 1.442695
      %v9211 = vpow.pop %v9210
      %v9212 = vmul.f32 %v9095, 1.442695
      %v9213 = vpow.pop %v9212
      %v9214 = vmul.f32 %v9096, 1.442695
      %v9215 = vpow.pop %v9214
      %v9216 = vmul.f32 %v9097, 1.442695
      %v9217 = vpow.pop %v9216
      %v9218 = vmul.f32 %v9098, 1.442695
      %v9219 = vpow.pop %v9218
      %v9220 = vmul.f32 %v9099, 1.442695
      %v9221 = vpow.pop %v9220
      %v9222 = vmul.f32 %v9100, 1.442695
      %v9223 = vpow.pop %v9222
      %v9224 = vmul.f32 %v9101, 1.442695
      %v9225 = vpow.pop %v9224
      %v9226 = vmul.f32 %v9102, 1.442695
      %v9227 = vpow.pop %v9226
      %v9228 = vmul.f32 %v9103, 1.442695
      %v9229 = vpow.pop %v9228
      %v9230 = vmul.f32 %v9104, 1.442695
      %v9231 = vpow.pop %v9230
      %v9232 = vmul.f32 %v9105, 1.442695
      %v9233 = vpow.pop %v9232
      %9298 = vrot.lane.b32.xlu0 %v284, 120
      %v9299 = vpop.permute.xlu0 %9298
      %9300 = vrot.lane.b32.xlu0 %v285, 120
      %v9301 = vpop.permute.xlu0 %9300
      %9302 = vrot.lane.b32.xlu0 %v286, 120
      %v9303 = vpop.permute.xlu0 %9302
      %9304 = vrot.lane.b32.xlu0 %v287, 120
      %v9305 = vpop.permute.xlu0 %9304
      %9306 = vrot.lane.b32.xlu0 %v288, 120
      %v9307 = vpop.permute.xlu0 %9306
      %9308 = vrot.lane.b32.xlu0 %v289, 120
      %v9309 = vpop.permute.xlu0 %9308
      %9310 = vrot.lane.b32.xlu0 %v290, 120
      %v9311 = vpop.permute.xlu0 %9310
      %9312 = vrot.lane.b32.xlu0 %v291, 120
      %v9313 = vpop.permute.xlu0 %9312
      %9314 = vrot.lane.b32.xlu0 %v292, 120
      %v9315 = vpop.permute.xlu0 %9314
      %9316 = vrot.lane.b32.xlu0 %v293, 120
      %v9317 = vpop.permute.xlu0 %9316
      %9318 = vrot.lane.b32.xlu0 %v294, 120
      %v9319 = vpop.permute.xlu0 %9318
      %9320 = vrot.lane.b32.xlu0 %v295, 120
      %v9321 = vpop.permute.xlu0 %9320
      %9322 = vrot.lane.b32.xlu0 %v296, 120
      %v9323 = vpop.permute.xlu0 %9322
      %9324 = vrot.lane.b32.xlu0 %v297, 120
      %v9325 = vpop.permute.xlu0 %9324
      %9326 = vrot.lane.b32.xlu0 %v298, 120
      %v9327 = vpop.permute.xlu0 %9326
      %9328 = vrot.lane.b32.xlu0 %v299, 120
      %v9329 = vpop.permute.xlu0 %9328
      %9330 = vrot.lane.b32.xlu0 %v300, 120
      %v9331 = vpop.permute.xlu0 %9330
      %9332 = vrot.lane.b32.xlu0 %v301, 120
      %v9333 = vpop.permute.xlu0 %9332
      %9334 = vrot.lane.b32.xlu0 %v302, 120
      %v9335 = vpop.permute.xlu0 %9334
      %9336 = vrot.lane.b32.xlu0 %v303, 120
      %v9337 = vpop.permute.xlu0 %9336
      %9338 = vrot.lane.b32.xlu0 %v304, 120
      %v9339 = vpop.permute.xlu0 %9338
      %9340 = vrot.lane.b32.xlu0 %v305, 120
      %v9341 = vpop.permute.xlu0 %9340
      %9342 = vrot.lane.b32.xlu0 %v306, 120
      %v9343 = vpop.permute.xlu0 %9342
      %9344 = vrot.lane.b32.xlu0 %v307, 120
      %v9345 = vpop.permute.xlu0 %9344
      %9346 = vrot.lane.b32.xlu0 %v308, 120
      %v9347 = vpop.permute.xlu0 %9346
      %9348 = vrot.lane.b32.xlu0 %v309, 120
      %v9349 = vpop.permute.xlu0 %9348
      %9350 = vrot.lane.b32.xlu0 %v310, 120
      %v9351 = vpop.permute.xlu0 %9350
      %9352 = vrot.lane.b32.xlu0 %v311, 120
      %v9353 = vpop.permute.xlu0 %9352
      %9354 = vrot.lane.b32.xlu0 %v312, 120
      %v9355 = vpop.permute.xlu0 %9354
      %9356 = vrot.lane.b32.xlu0 %v313, 120
      %v9357 = vpop.permute.xlu0 %9356
      %9358 = vrot.lane.b32.xlu0 %v314, 120
      %v9359 = vpop.permute.xlu0 %9358
      %9360 = vrot.lane.b32.xlu0 %v315, 120
      %v9361 = vpop.permute.xlu0 %9360
      %9362 = vrot.lane.b32.xlu0 %v316, 120
      %v9363 = vpop.permute.xlu0 %9362
      %9364 = vrot.lane.b32.xlu0 %v317, 120
      %v9365 = vpop.permute.xlu0 %9364
      %9366 = vrot.lane.b32.xlu0 %v318, 120
      %v9367 = vpop.permute.xlu0 %9366
      %9368 = vrot.lane.b32.xlu0 %v319, 120
      %v9369 = vpop.permute.xlu0 %9368
      %9370 = vrot.lane.b32.xlu0 %v320, 120
      %v9371 = vpop.permute.xlu0 %9370
      %9372 = vrot.lane.b32.xlu0 %v321, 120
      %v9373 = vpop.permute.xlu0 %9372
      %9374 = vrot.lane.b32.xlu0 %v322, 120
      %v9375 = vpop.permute.xlu0 %9374
      %9376 = vrot.lane.b32.xlu0 %v323, 120
      %v9377 = vpop.permute.xlu0 %9376
      %9378 = vrot.lane.b32.xlu0 %v324, 120
      %v9379 = vpop.permute.xlu0 %9378
      %9380 = vrot.lane.b32.xlu0 %v325, 120
      %v9381 = vpop.permute.xlu0 %9380
      %9382 = vrot.lane.b32.xlu0 %v326, 120
      %v9383 = vpop.permute.xlu0 %9382
      %9384 = vrot.lane.b32.xlu0 %v327, 120
      %v9385 = vpop.permute.xlu0 %9384
      %9386 = vrot.lane.b32.xlu0 %v328, 120
      %v9387 = vpop.permute.xlu0 %9386
      %9388 = vrot.lane.b32.xlu0 %v329, 120
      %v9389 = vpop.permute.xlu0 %9388
      %9390 = vrot.lane.b32.xlu0 %v330, 120
      %v9391 = vpop.permute.xlu0 %9390
      %9392 = vrot.lane.b32.xlu0 %v331, 120
      %v9393 = vpop.permute.xlu0 %9392
      %9394 = vrot.lane.b32.xlu0 %v332, 120
      %v9395 = vpop.permute.xlu0 %9394
      %9396 = vrot.lane.b32.xlu0 %v333, 120
      %v9397 = vpop.permute.xlu0 %9396
      %9398 = vrot.lane.b32.xlu0 %v334, 120
      %v9399 = vpop.permute.xlu0 %9398
      %9400 = vrot.lane.b32.xlu0 %v335, 120
      %v9401 = vpop.permute.xlu0 %9400
      %9402 = vrot.lane.b32.xlu0 %v336, 120
      %v9403 = vpop.permute.xlu0 %9402
      %9404 = vrot.lane.b32.xlu0 %v337, 120
      %v9405 = vpop.permute.xlu0 %9404
      %9406 = vrot.lane.b32.xlu0 %v338, 120
      %v9407 = vpop.permute.xlu0 %9406
      %9408 = vrot.lane.b32.xlu0 %v339, 120
      %v9409 = vpop.permute.xlu0 %9408
      %9410 = vrot.lane.b32.xlu0 %v340, 120
      %v9411 = vpop.permute.xlu0 %9410
      %9412 = vrot.lane.b32.xlu0 %v341, 120
      %v9413 = vpop.permute.xlu0 %9412
      %9414 = vrot.lane.b32.xlu0 %v342, 120
      %v9415 = vpop.permute.xlu0 %9414
      %9416 = vrot.lane.b32.xlu0 %v343, 120
      %v9417 = vpop.permute.xlu0 %9416
      %9418 = vrot.lane.b32.xlu0 %v344, 120
      %v9419 = vpop.permute.xlu0 %9418
      %9420 = vrot.lane.b32.xlu0 %v345, 120
      %v9421 = vpop.permute.xlu0 %9420
      %9422 = vrot.lane.b32.xlu0 %v346, 120
      %v9423 = vpop.permute.xlu0 %9422
      %9424 = vrot.lane.b32.xlu0 %v347, 120
      %v9425 = vpop.permute.xlu0 %9424
      %v9490 = vmul.f32 %v9107, %v9299
      %v9491 = vmul.f32 %v9109, %v9301
      %v9492 = vmul.f32 %v9111, %v9303
      %v9493 = vmul.f32 %v9113, %v9305
      %v9494 = vmul.f32 %v9115, %v9307
      %v9495 = vmul.f32 %v9117, %v9309
      %v9496 = vmul.f32 %v9119, %v9311
      %v9497 = vmul.f32 %v9121, %v9313
      %v9498 = vmul.f32 %v9123, %v9315
      %v9499 = vmul.f32 %v9125, %v9317
      %v9500 = vmul.f32 %v9127, %v9319
      %v9501 = vmul.f32 %v9129, %v9321
      %v9502 = vmul.f32 %v9131, %v9323
      %v9503 = vmul.f32 %v9133, %v9325
      %v9504 = vmul.f32 %v9135, %v9327
      %v9505 = vmul.f32 %v9137, %v9329
      %v9506 = vmul.f32 %v9139, %v9331
      %v9507 = vmul.f32 %v9141, %v9333
      %v9508 = vmul.f32 %v9143, %v9335
      %v9509 = vmul.f32 %v9145, %v9337
      %v9510 = vmul.f32 %v9147, %v9339
      %v9511 = vmul.f32 %v9149, %v9341
      %v9512 = vmul.f32 %v9151, %v9343
      %v9513 = vmul.f32 %v9153, %v9345
      %v9514 = vmul.f32 %v9155, %v9347
      %v9515 = vmul.f32 %v9157, %v9349
      %v9516 = vmul.f32 %v9159, %v9351
      %v9517 = vmul.f32 %v9161, %v9353
      %v9518 = vmul.f32 %v9163, %v9355
      %v9519 = vmul.f32 %v9165, %v9357
      %v9520 = vmul.f32 %v9167, %v9359
      %v9521 = vmul.f32 %v9169, %v9361
      %v9522 = vmul.f32 %v9171, %v9363
      %v9523 = vmul.f32 %v9173, %v9365
      %v9524 = vmul.f32 %v9175, %v9367
      %v9525 = vmul.f32 %v9177, %v9369
      %v9526 = vmul.f32 %v9179, %v9371
      %v9527 = vmul.f32 %v9181, %v9373
      %v9528 = vmul.f32 %v9183, %v9375
      %v9529 = vmul.f32 %v9185, %v9377
      %v9530 = vmul.f32 %v9187, %v9379
      %v9531 = vmul.f32 %v9189, %v9381
      %v9532 = vmul.f32 %v9191, %v9383
      %v9533 = vmul.f32 %v9193, %v9385
      %v9534 = vmul.f32 %v9195, %v9387
      %v9535 = vmul.f32 %v9197, %v9389
      %v9536 = vmul.f32 %v9199, %v9391
      %v9537 = vmul.f32 %v9201, %v9393
      %v9538 = vmul.f32 %v9203, %v9395
      %v9539 = vmul.f32 %v9205, %v9397
      %v9540 = vmul.f32 %v9207, %v9399
      %v9541 = vmul.f32 %v9209, %v9401
      %v9542 = vmul.f32 %v9211, %v9403
      %v9543 = vmul.f32 %v9213, %v9405
      %v9544 = vmul.f32 %v9215, %v9407
      %v9545 = vmul.f32 %v9217, %v9409
      %v9546 = vmul.f32 %v9219, %v9411
      %v9547 = vmul.f32 %v9221, %v9413
      %v9548 = vmul.f32 %v9223, %v9415
      %v9549 = vmul.f32 %v9225, %v9417
      %v9550 = vmul.f32 %v9227, %v9419
      %v9551 = vmul.f32 %v9229, %v9421
      %v9552 = vmul.f32 %v9231, %v9423
      %v9553 = vmul.f32 %v9233, %v9425
      %v9554 = vadd.f32 %v8146, %v9490
      %v9555 = vadd.f32 %v8147, %v9491
      %v9556 = vadd.f32 %v8148, %v9492
      %v9557 = vadd.f32 %v8149, %v9493
      %v9558 = vadd.f32 %v8150, %v9494
      %v9559 = vadd.f32 %v8151, %v9495
      %v9560 = vadd.f32 %v8152, %v9496
      %v9561 = vadd.f32 %v8153, %v9497
      %v9562 = vadd.f32 %v8154, %v9498
      %v9563 = vadd.f32 %v8155, %v9499
      %v9564 = vadd.f32 %v8156, %v9500
      %v9565 = vadd.f32 %v8157, %v9501
      %v9566 = vadd.f32 %v8158, %v9502
      %v9567 = vadd.f32 %v8159, %v9503
      %v9568 = vadd.f32 %v8160, %v9504
      %v9569 = vadd.f32 %v8161, %v9505
      %v9570 = vadd.f32 %v8162, %v9506
      %v9571 = vadd.f32 %v8163, %v9507
      %v9572 = vadd.f32 %v8164, %v9508
      %v9573 = vadd.f32 %v8165, %v9509
      %v9574 = vadd.f32 %v8166, %v9510
      %v9575 = vadd.f32 %v8167, %v9511
      %v9576 = vadd.f32 %v8168, %v9512
      %v9577 = vadd.f32 %v8169, %v9513
      %v9578 = vadd.f32 %v8170, %v9514
      %v9579 = vadd.f32 %v8171, %v9515
      %v9580 = vadd.f32 %v8172, %v9516
      %v9581 = vadd.f32 %v8173, %v9517
      %v9582 = vadd.f32 %v8174, %v9518
      %v9583 = vadd.f32 %v8175, %v9519
      %v9584 = vadd.f32 %v8176, %v9520
      %v9585 = vadd.f32 %v8177, %v9521
      %v9586 = vadd.f32 %v8178, %v9522
      %v9587 = vadd.f32 %v8179, %v9523
      %v9588 = vadd.f32 %v8180, %v9524
      %v9589 = vadd.f32 %v8181, %v9525
      %v9590 = vadd.f32 %v8182, %v9526
      %v9591 = vadd.f32 %v8183, %v9527
      %v9592 = vadd.f32 %v8184, %v9528
      %v9593 = vadd.f32 %v8185, %v9529
      %v9594 = vadd.f32 %v8186, %v9530
      %v9595 = vadd.f32 %v8187, %v9531
      %v9596 = vadd.f32 %v8188, %v9532
      %v9597 = vadd.f32 %v8189, %v9533
      %v9598 = vadd.f32 %v8190, %v9534
      %v9599 = vadd.f32 %v8191, %v9535
      %v9600 = vadd.f32 %v8192, %v9536
      %v9601 = vadd.f32 %v8193, %v9537
      %v9602 = vadd.f32 %v8194, %v9538
      %v9603 = vadd.f32 %v8195, %v9539
      %v9604 = vadd.f32 %v8196, %v9540
      %v9605 = vadd.f32 %v8197, %v9541
      %v9606 = vadd.f32 %v8198, %v9542
      %v9607 = vadd.f32 %v8199, %v9543
      %v9608 = vadd.f32 %v8200, %v9544
      %v9609 = vadd.f32 %v8201, %v9545
      %v9610 = vadd.f32 %v8202, %v9546
      %v9611 = vadd.f32 %v8203, %v9547
      %v9612 = vadd.f32 %v8204, %v9548
      %v9613 = vadd.f32 %v8205, %v9549
      %v9614 = vadd.f32 %v8206, %v9550
      %v9615 = vadd.f32 %v8207, %v9551
      %v9616 = vadd.f32 %v8208, %v9552
      %v9617 = vadd.f32 %v8209, %v9553
      %v9618 = vmul.f32 %v9554, 0.2
      %v9619 = vmul.f32 %v9555, 0.2
      %v9620 = vmul.f32 %v9556, 0.2
      %v9621 = vmul.f32 %v9557, 0.2
      %v9622 = vmul.f32 %v9558, 0.2
      %v9623 = vmul.f32 %v9559, 0.2
      %v9624 = vmul.f32 %v9560, 0.2
      %v9625 = vmul.f32 %v9561, 0.2
      %v9626 = vmul.f32 %v9562, 0.2
      %v9627 = vmul.f32 %v9563, 0.2
      %v9628 = vmul.f32 %v9564, 0.2
      %v9629 = vmul.f32 %v9565, 0.2
      %v9630 = vmul.f32 %v9566, 0.2
      %v9631 = vmul.f32 %v9567, 0.2
      %v9632 = vmul.f32 %v9568, 0.2
      %v9633 = vmul.f32 %v9569, 0.2
      %v9634 = vmul.f32 %v9570, 0.2
      %v9635 = vmul.f32 %v9571, 0.2
      %v9636 = vmul.f32 %v9572, 0.2
      %v9637 = vmul.f32 %v9573, 0.2
      %v9638 = vmul.f32 %v9574, 0.2
      %v9639 = vmul.f32 %v9575, 0.2
      %v9640 = vmul.f32 %v9576, 0.2
      %v9641 = vmul.f32 %v9577, 0.2
      %v9642 = vmul.f32 %v9578, 0.2
      %v9643 = vmul.f32 %v9579, 0.2
      %v9644 = vmul.f32 %v9580, 0.2
      %v9645 = vmul.f32 %v9581, 0.2
      %v9646 = vmul.f32 %v9582, 0.2
      %v9647 = vmul.f32 %v9583, 0.2
      %v9648 = vmul.f32 %v9584, 0.2
      %v9649 = vmul.f32 %v9585, 0.2
      %v9650 = vmul.f32 %v9586, 0.2
      %v9651 = vmul.f32 %v9587, 0.2
      %v9652 = vmul.f32 %v9588, 0.2
      %v9653 = vmul.f32 %v9589, 0.2
      %v9654 = vmul.f32 %v9590, 0.2
      %v9655 = vmul.f32 %v9591, 0.2
      %v9656 = vmul.f32 %v9592, 0.2
      %v9657 = vmul.f32 %v9593, 0.2
      %v9658 = vmul.f32 %v9594, 0.2
      %v9659 = vmul.f32 %v9595, 0.2
      %v9660 = vmul.f32 %v9596, 0.2
      %v9661 = vmul.f32 %v9597, 0.2
      %v9662 = vmul.f32 %v9598, 0.2
      %v9663 = vmul.f32 %v9599, 0.2
      %v9664 = vmul.f32 %v9600, 0.2
      %v9665 = vmul.f32 %v9601, 0.2
      %v9666 = vmul.f32 %v9602, 0.2
      %v9667 = vmul.f32 %v9603, 0.2
      %v9668 = vmul.f32 %v9604, 0.2
      %v9669 = vmul.f32 %v9605, 0.2
      %v9670 = vmul.f32 %v9606, 0.2
      %v9671 = vmul.f32 %v9607, 0.2
      %v9672 = vmul.f32 %v9608, 0.2
      %v9673 = vmul.f32 %v9609, 0.2
      %v9674 = vmul.f32 %v9610, 0.2
      %v9675 = vmul.f32 %v9611, 0.2
      %v9676 = vmul.f32 %v9612, 0.2
      %v9677 = vmul.f32 %v9613, 0.2
      %v9678 = vmul.f32 %v9614, 0.2
      %v9679 = vmul.f32 %v9615, 0.2
      %v9680 = vmul.f32 %v9616, 0.2
      %v9681 = vmul.f32 %v9617, 0.2
      %v9682 = vmax.f32 %v9554, %v9618
      %v9683 = vmax.f32 %v9555, %v9619
      %v9684 = vmax.f32 %v9556, %v9620
      %v9685 = vmax.f32 %v9557, %v9621
      %v9686 = vmax.f32 %v9558, %v9622
      %v9687 = vmax.f32 %v9559, %v9623
      %v9688 = vmax.f32 %v9560, %v9624
      %v9689 = vmax.f32 %v9561, %v9625
      %v9690 = vmax.f32 %v9562, %v9626
      %v9691 = vmax.f32 %v9563, %v9627
      %v9692 = vmax.f32 %v9564, %v9628
      %v9693 = vmax.f32 %v9565, %v9629
      %v9694 = vmax.f32 %v9566, %v9630
      %v9695 = vmax.f32 %v9567, %v9631
      %v9696 = vmax.f32 %v9568, %v9632
      %v9697 = vmax.f32 %v9569, %v9633
      %v9698 = vmax.f32 %v9570, %v9634
      %v9699 = vmax.f32 %v9571, %v9635
      %v9700 = vmax.f32 %v9572, %v9636
      %v9701 = vmax.f32 %v9573, %v9637
      %v9702 = vmax.f32 %v9574, %v9638
      %v9703 = vmax.f32 %v9575, %v9639
      %v9704 = vmax.f32 %v9576, %v9640
      %v9705 = vmax.f32 %v9577, %v9641
      %v9706 = vmax.f32 %v9578, %v9642
      %v9707 = vmax.f32 %v9579, %v9643
      %v9708 = vmax.f32 %v9580, %v9644
      %v9709 = vmax.f32 %v9581, %v9645
      %v9710 = vmax.f32 %v9582, %v9646
      %v9711 = vmax.f32 %v9583, %v9647
      %v9712 = vmax.f32 %v9584, %v9648
      %v9713 = vmax.f32 %v9585, %v9649
      %v9714 = vmax.f32 %v9586, %v9650
      %v9715 = vmax.f32 %v9587, %v9651
      %v9716 = vmax.f32 %v9588, %v9652
      %v9717 = vmax.f32 %v9589, %v9653
      %v9718 = vmax.f32 %v9590, %v9654
      %v9719 = vmax.f32 %v9591, %v9655
      %v9720 = vmax.f32 %v9592, %v9656
      %v9721 = vmax.f32 %v9593, %v9657
      %v9722 = vmax.f32 %v9594, %v9658
      %v9723 = vmax.f32 %v9595, %v9659
      %v9724 = vmax.f32 %v9596, %v9660
      %v9725 = vmax.f32 %v9597, %v9661
      %v9726 = vmax.f32 %v9598, %v9662
      %v9727 = vmax.f32 %v9599, %v9663
      %v9728 = vmax.f32 %v9600, %v9664
      %v9729 = vmax.f32 %v9601, %v9665
      %v9730 = vmax.f32 %v9602, %v9666
      %v9731 = vmax.f32 %v9603, %v9667
      %v9732 = vmax.f32 %v9604, %v9668
      %v9733 = vmax.f32 %v9605, %v9669
      %v9734 = vmax.f32 %v9606, %v9670
      %v9735 = vmax.f32 %v9607, %v9671
      %v9736 = vmax.f32 %v9608, %v9672
      %v9737 = vmax.f32 %v9609, %v9673
      %v9738 = vmax.f32 %v9610, %v9674
      %v9739 = vmax.f32 %v9611, %v9675
      %v9740 = vmax.f32 %v9612, %v9676
      %v9741 = vmax.f32 %v9613, %v9677
      %v9742 = vmax.f32 %v9614, %v9678
      %v9743 = vmax.f32 %v9615, %v9679
      %v9744 = vmax.f32 %v9616, %v9680
      %v9745 = vmax.f32 %v9617, %v9681
      %v9746 = vpack.c.bf16 %v9683, %v9682
      %v9747 = vpack.c.bf16 %v9685, %v9684
      %v9748 = vpack.c.bf16 %v9687, %v9686
      %v9749 = vpack.c.bf16 %v9689, %v9688
      %v9750 = vpack.c.bf16 %v9691, %v9690
      %v9751 = vpack.c.bf16 %v9693, %v9692
      %v9752 = vpack.c.bf16 %v9695, %v9694
      %v9753 = vpack.c.bf16 %v9697, %v9696
      %v9754 = vpack.c.bf16 %v9699, %v9698
      %v9755 = vpack.c.bf16 %v9701, %v9700
      %v9756 = vpack.c.bf16 %v9703, %v9702
      %v9757 = vpack.c.bf16 %v9705, %v9704
      %v9758 = vpack.c.bf16 %v9707, %v9706
      %v9759 = vpack.c.bf16 %v9709, %v9708
      %v9760 = vpack.c.bf16 %v9711, %v9710
      %v9761 = vpack.c.bf16 %v9713, %v9712
      %v9762 = vpack.c.bf16 %v9715, %v9714
      %v9763 = vpack.c.bf16 %v9717, %v9716
      %v9764 = vpack.c.bf16 %v9719, %v9718
      %v9765 = vpack.c.bf16 %v9721, %v9720
      %v9766 = vpack.c.bf16 %v9723, %v9722
      %v9767 = vpack.c.bf16 %v9725, %v9724
      %v9768 = vpack.c.bf16 %v9727, %v9726
      %v9769 = vpack.c.bf16 %v9729, %v9728
      %v9770 = vpack.c.bf16 %v9731, %v9730
      %v9771 = vpack.c.bf16 %v9733, %v9732
      %v9772 = vpack.c.bf16 %v9735, %v9734
      %v9773 = vpack.c.bf16 %v9737, %v9736
      %v9774 = vpack.c.bf16 %v9739, %v9738
      %v9775 = vpack.c.bf16 %v9741, %v9740
      %v9776 = vpack.c.bf16 %v9743, %v9742
      %v9777 = vpack.c.bf16 %v9745, %v9744
      %s9778 = scalar_lea.vmem %s1, 12
      %v9779 = vld [vmem:[%s9778] sm:$0xf]
      %v9781 = vsel %vm381, %v9746, 0
      %v9784 = vsel %vm381, %v9747, 0
      %v9787 = vsel %vm381, %v9748, 0
      %v9790 = vsel %vm381, %v9749, 0
      %v9793 = vsel %vm381, %v9750, 0
      %v9796 = vsel %vm381, %v9751, 0
      %v9799 = vsel %vm381, %v9752, 0
      %v9802 = vsel %vm381, %v9753, 0
      %v9805 = vsel %vm381, %v9754, 0
      %v9808 = vsel %vm381, %v9755, 0
      %v9811 = vsel %vm381, %v9756, 0
      %v9814 = vsel %vm381, %v9757, 0
      %v9817 = vsel %vm381, %v9758, 0
      %v9820 = vsel %vm381, %v9759, 0
      %v9823 = vsel %vm381, %v9760, 0
      %v9826 = vsel %vm381, %v9761, 0
      %v9829 = vsel %vm381, %v9762, 0
      %v9832 = vsel %vm381, %v9763, 0
      %v9835 = vsel %vm381, %v9764, 0
      %v9838 = vsel %vm381, %v9765, 0
      %v9841 = vsel %vm381, %v9766, 0
      %v9844 = vsel %vm381, %v9767, 0
      %v9847 = vsel %vm381, %v9768, 0
      %v9850 = vsel %vm381, %v9769, 0
      %v9853 = vsel %vm381, %v9770, 0
      %v9856 = vsel %vm381, %v9771, 0
      %v9859 = vsel %vm381, %v9772, 0
      %v9862 = vsel %vm381, %v9773, 0
      %v9865 = vsel %vm381, %v9774, 0
      %v9868 = vsel %vm381, %v9775, 0
      %v9871 = vsel %vm381, %v9776, 0
      %v9874 = vsel %vm381, %v9777, 0
      %v9877 = vsel %vm478, %v9779, 0
      %9879 = vmatprep.subr.bf16.mxu0 0
      %9880 = vmatpush1.bf16.msra.mxu0 %v9877
      %9881 = vmatprep.subr.bf16.mxu0 0
      %9882 = vmatpush1.bf16.msra.mxu0 0
      %9883 = vmatprep.subr.bf16.mxu0 0
      %9884 = vmatpush1.bf16.msra.mxu0 0
      %9885 = vmatprep.subr.bf16.mxu0 0
      %9886 = vmatpush1.bf16.msra.mxu0 0
      %9887 = vmatprep.subr.bf16.mxu0 0
      %9888 = vmatpush1.bf16.msra.mxu0 0
      %9889 = vmatprep.subr.bf16.mxu0 0
      %9890 = vmatpush1.bf16.msra.mxu0 0
      %9891 = vmatprep.subr.bf16.mxu0 0
      %9892 = vmatpush1.bf16.msra.mxu0 0
      %9893 = vmatprep.subr.bf16.mxu0 0
      %9894 = vmatpush1.bf16.msra.mxu0 0
      %9895 = vmatprep.subr.bf16.mxu0 0
      %9896 = vmatpush1.bf16.msra.mxu0 0
      %9897 = vmatprep.subr.bf16.mxu0 0
      %9898 = vmatpush1.bf16.msra.mxu0 0
      %9899 = vmatprep.subr.bf16.mxu0 0
      %9900 = vmatpush1.bf16.msra.mxu0 0
      %9901 = vmatprep.subr.bf16.mxu0 0
      %9902 = vmatpush1.bf16.msra.mxu0 0
      %9903 = vmatprep.subr.bf16.mxu0 0
      %9904 = vmatpush1.bf16.msra.mxu0 0
      %9905 = vmatprep.subr.bf16.mxu0 0
      %9906 = vmatpush1.bf16.msra.mxu0 0
      %9907 = vmatprep.subr.bf16.mxu0 0
      %9908 = vmatpush1.bf16.msra.mxu0 0
      %9909 = vmatprep.subr.bf16.mxu0 0
      %9910 = vmatpush1.bf16.msra.mxu0 0
      %9911 = vmatprep.mubr.bf16.mxu0 0
      %9912 = vmatmul.mubr.bf16.gmra.mrb[0].mxu0 %v9781
      %v9913 = vpop.f32.mrb[0].mxu0
      %v9914 = vadd.f32 0.0, %v9913
      %v9915 = vpop.f32.mrb[0].mxu0
      %v9916 = vpop.f32.mrb[0].mxu0
      %v9917 = vadd.f32 0.0, %v9916
      %v9918 = vpop.f32.mrb[0].mxu0
      %9919 = vmatprep.mubr.bf16.mxu0 0
      %9920 = vmatmul.mubr.bf16.gmra.mrb[0].mxu0 %v9784
      %v9921 = vpop.f32.mrb[0].mxu0
      %v9922 = vadd.f32 0.0, %v9921
      %v9923 = vpop.f32.mrb[0].mxu0
      %v9924 = vpop.f32.mrb[0].mxu0
      %v9925 = vadd.f32 0.0, %v9924
      %v9926 = vpop.f32.mrb[0].mxu0
      %9927 = vmatprep.mubr.bf16.mxu0 0
      %9928 = vmatmul.mubr.bf16.gmra.mrb[0].mxu0 %v9787
      %v9929 = vpop.f32.mrb[0].mxu0
      %v9930 = vadd.f32 0.0, %v9929
      %v9931 = vpop.f32.mrb[0].mxu0
      %v9932 = vpop.f32.mrb[0].mxu0
      %v9933 = vadd.f32 0.0, %v9932
      %v9934 = vpop.f32.mrb[0].mxu0
      %9935 = vmatprep.mubr.bf16.mxu0 0
      %9936 = vmatmul.mubr.bf16.gmra.mrb[0].mxu0 %v9790
      %v9937 = vpop.f32.mrb[0].mxu0
      %v9938 = vadd.f32 0.0, %v9937
      %v9939 = vpop.f32.mrb[0].mxu0
      %v9940 = vpop.f32.mrb[0].mxu0
      %v9941 = vadd.f32 0.0, %v9940
      %v9942 = vpop.f32.mrb[0].mxu0
      %9943 = vmatprep.mubr.bf16.mxu0 0
      %9944 = vmatmul.mubr.bf16.gmra.mrb[0].mxu0 %v9793
      %v9945 = vpop.f32.mrb[0].mxu0
      %v9946 = vadd.f32 0.0, %v9945
      %v9947 = vpop.f32.mrb[0].mxu0
      %v9948 = vpop.f32.mrb[0].mxu0
      %v9949 = vadd.f32 0.0, %v9948
      %v9950 = vpop.f32.mrb[0].mxu0
      %9951 = vmatprep.mubr.bf16.mxu0 0
      %9952 = vmatmul.mubr.bf16.gmra.mrb[0].mxu0 %v9796
      %v9953 = vpop.f32.mrb[0].mxu0
      %v9954 = vadd.f32 0.0, %v9953
      %v9955 = vpop.f32.mrb[0].mxu0
      %v9956 = vpop.f32.mrb[0].mxu0
      %v9957 = vadd.f32 0.0, %v9956
      %v9958 = vpop.f32.mrb[0].mxu0
      %9959 = vmatprep.mubr.bf16.mxu0 0
      %9960 = vmatmul.mubr.bf16.gmra.mrb[0].mxu0 %v9799
      %v9961 = vpop.f32.mrb[0].mxu0
      %v9962 = vadd.f32 0.0, %v9961
      %v9963 = vpop.f32.mrb[0].mxu0
      %v9964 = vpop.f32.mrb[0].mxu0
      %v9965 = vadd.f32 0.0, %v9964
      %v9966 = vpop.f32.mrb[0].mxu0
      %9967 = vmatprep.mubr.bf16.mxu0 0
      %9968 = vmatmul.mubr.bf16.gmra.mrb[0].mxu0 %v9802
      %v9969 = vpop.f32.mrb[0].mxu0
      %v9970 = vadd.f32 0.0, %v9969
      %v9971 = vpop.f32.mrb[0].mxu0
      %v9972 = vpop.f32.mrb[0].mxu0
      %v9973 = vadd.f32 0.0, %v9972
      %v9974 = vpop.f32.mrb[0].mxu0
      %9975 = vmatprep.mubr.bf16.mxu0 0
      %9976 = vmatmul.mubr.bf16.gmra.mrb[0].mxu0 %v9805
      %v9977 = vpop.f32.mrb[0].mxu0
      %v9978 = vadd.f32 0.0, %v9977
      %v9979 = vpop.f32.mrb[0].mxu0
      %v9980 = vpop.f32.mrb[0].mxu0
      %v9981 = vadd.f32 0.0, %v9980
      %v9982 = vpop.f32.mrb[0].mxu0
      %9983 = vmatprep.mubr.bf16.mxu0 0
      %9984 = vmatmul.mubr.bf16.gmra.mrb[0].mxu0 %v9808
      %v9985 = vpop.f32.mrb[0].mxu0
      %v9986 = vadd.f32 0.0, %v9985
      %v9987 = vpop.f32.mrb[0].mxu0
      %v9988 = vpop.f32.mrb[0].mxu0
      %v9989 = vadd.f32 0.0, %v9988
      %v9990 = vpop.f32.mrb[0].mxu0
      %9991 = vmatprep.mubr.bf16.mxu0 0
      %9992 = vmatmul.mubr.bf16.gmra.mrb[0].mxu0 %v9811
      %v9993 = vpop.f32.mrb[0].mxu0
      %v9994 = vadd.f32 0.0, %v9993
      %v9995 = vpop.f32.mrb[0].mxu0
      %v9996 = vpop.f32.mrb[0].mxu0
      %v9997 = vadd.f32 0.0, %v9996
      %v9998 = vpop.f32.mrb[0].mxu0
      %9999 = vmatprep.mubr.bf16.mxu0 0
      %10000 = vmatmul.mubr.bf16.gmra.mrb[0].mxu0 %v9814
      %v10001 = vpop.f32.mrb[0].mxu0
      %v10002 = vadd.f32 0.0, %v10001
      %v10003 = vpop.f32.mrb[0].mxu0
      %v10004 = vpop.f32.mrb[0].mxu0
      %v10005 = vadd.f32 0.0, %v10004
      %v10006 = vpop.f32.mrb[0].mxu0
      %10007 = vmatprep.mubr.bf16.mxu0 0
      %10008 = vmatmul.mubr.bf16.gmra.mrb[0].mxu0 %v9817
      %v10009 = vpop.f32.mrb[0].mxu0
      %v10010 = vadd.f32 0.0, %v10009
      %v10011 = vpop.f32.mrb[0].mxu0
      %v10012 = vpop.f32.mrb[0].mxu0
      %v10013 = vadd.f32 0.0, %v10012
      %v10014 = vpop.f32.mrb[0].mxu0
      %10015 = vmatprep.mubr.bf16.mxu0 0
      %10016 = vmatmul.mubr.bf16.gmra.mrb[0].mxu0 %v9820
      %v10017 = vpop.f32.mrb[0].mxu0
      %v10018 = vadd.f32 0.0, %v10017
      %v10019 = vpop.f32.mrb[0].mxu0
      %v10020 = vpop.f32.mrb[0].mxu0
      %v10021 = vadd.f32 0.0, %v10020
      %v10022 = vpop.f32.mrb[0].mxu0
      %10023 = vmatprep.mubr.bf16.mxu0 0
      %10024 = vmatmul.mubr.bf16.gmra.mrb[0].mxu0 %v9823
      %v10025 = vpop.f32.mrb[0].mxu0
      %v10026 = vadd.f32 0.0, %v10025
      %v10027 = vpop.f32.mrb[0].mxu0
      %v10028 = vpop.f32.mrb[0].mxu0
      %v10029 = vadd.f32 0.0, %v10028
      %v10030 = vpop.f32.mrb[0].mxu0
      %10031 = vmatprep.mubr.bf16.mxu0 0
      %10032 = vmatmul.mubr.bf16.gmra.mrb[0].mxu0 %v9826
      %v10033 = vpop.f32.mrb[0].mxu0
      %v10034 = vadd.f32 0.0, %v10033
      %v10035 = vpop.f32.mrb[0].mxu0
      %v10036 = vpop.f32.mrb[0].mxu0
      %v10037 = vadd.f32 0.0, %v10036
      %v10038 = vpop.f32.mrb[0].mxu0
      %10039 = vmatprep.mubr.bf16.mxu0 0
      %10040 = vmatmul.mubr.bf16.gmra.mrb[0].mxu0 %v9829
      %v10041 = vpop.f32.mrb[0].mxu0
      %v10042 = vadd.f32 0.0, %v10041
      %v10043 = vpop.f32.mrb[0].mxu0
      %v10044 = vpop.f32.mrb[0].mxu0
      %v10045 = vadd.f32 0.0, %v10044
      %v10046 = vpop.f32.mrb[0].mxu0
      %10047 = vmatprep.mubr.bf16.mxu0 0
      %10048 = vmatmul.mubr.bf16.gmra.mrb[0].mxu0 %v9832
      %v10049 = vpop.f32.mrb[0].mxu0
      %v10050 = vadd.f32 0.0, %v10049
      %v10051 = vpop.f32.mrb[0].mxu0
      %v10052 = vpop.f32.mrb[0].mxu0
      %v10053 = vadd.f32 0.0, %v10052
      %v10054 = vpop.f32.mrb[0].mxu0
      %10055 = vmatprep.mubr.bf16.mxu0 0
      %10056 = vmatmul.mubr.bf16.gmra.mrb[0].mxu0 %v9835
      %v10057 = vpop.f32.mrb[0].mxu0
      %v10058 = vadd.f32 0.0, %v10057
      %v10059 = vpop.f32.mrb[0].mxu0
      %v10060 = vpop.f32.mrb[0].mxu0
      %v10061 = vadd.f32 0.0, %v10060
      %v10062 = vpop.f32.mrb[0].mxu0
      %10063 = vmatprep.mubr.bf16.mxu0 0
      %10064 = vmatmul.mubr.bf16.gmra.mrb[0].mxu0 %v9838
      %v10065 = vpop.f32.mrb[0].mxu0
      %v10066 = vadd.f32 0.0, %v10065
      %v10067 = vpop.f32.mrb[0].mxu0
      %v10068 = vpop.f32.mrb[0].mxu0
      %v10069 = vadd.f32 0.0, %v10068
      %v10070 = vpop.f32.mrb[0].mxu0
      %10071 = vmatprep.mubr.bf16.mxu0 0
      %10072 = vmatmul.mubr.bf16.gmra.mrb[0].mxu0 %v9841
      %v10073 = vpop.f32.mrb[0].mxu0
      %v10074 = vadd.f32 0.0, %v10073
      %v10075 = vpop.f32.mrb[0].mxu0
      %v10076 = vpop.f32.mrb[0].mxu0
      %v10077 = vadd.f32 0.0, %v10076
      %v10078 = vpop.f32.mrb[0].mxu0
      %10079 = vmatprep.mubr.bf16.mxu0 0
      %10080 = vmatmul.mubr.bf16.gmra.mrb[0].mxu0 %v9844
      %v10081 = vpop.f32.mrb[0].mxu0
      %v10082 = vadd.f32 0.0, %v10081
      %v10083 = vpop.f32.mrb[0].mxu0
      %v10084 = vpop.f32.mrb[0].mxu0
      %v10085 = vadd.f32 0.0, %v10084
      %v10086 = vpop.f32.mrb[0].mxu0
      %10087 = vmatprep.mubr.bf16.mxu0 0
      %10088 = vmatmul.mubr.bf16.gmra.mrb[0].mxu0 %v9847
      %v10089 = vpop.f32.mrb[0].mxu0
      %v10090 = vadd.f32 0.0, %v10089
      %v10091 = vpop.f32.mrb[0].mxu0
      %v10092 = vpop.f32.mrb[0].mxu0
      %v10093 = vadd.f32 0.0, %v10092
      %v10094 = vpop.f32.mrb[0].mxu0
      %10095 = vmatprep.mubr.bf16.mxu0 0
      %10096 = vmatmul.mubr.bf16.gmra.mrb[0].mxu0 %v9850
      %v10097 = vpop.f32.mrb[0].mxu0
      %v10098 = vadd.f32 0.0, %v10097
      %v10099 = vpop.f32.mrb[0].mxu0
      %v10100 = vpop.f32.mrb[0].mxu0
      %v10101 = vadd.f32 0.0, %v10100
      %v10102 = vpop.f32.mrb[0].mxu0
      %10103 = vmatprep.mubr.bf16.mxu0 0
      %10104 = vmatmul.mubr.bf16.gmra.mrb[0].mxu0 %v9853
      %v10105 = vpop.f32.mrb[0].mxu0
      %v10106 = vadd.f32 0.0, %v10105
      %v10107 = vpop.f32.mrb[0].mxu0
      %v10108 = vpop.f32.mrb[0].mxu0
      %v10109 = vadd.f32 0.0, %v10108
      %v10110 = vpop.f32.mrb[0].mxu0
      %10111 = vmatprep.mubr.bf16.mxu0 0
      %10112 = vmatmul.mubr.bf16.gmra.mrb[0].mxu0 %v9856
      %v10113 = vpop.f32.mrb[0].mxu0
      %v10114 = vadd.f32 0.0, %v10113
      %v10115 = vpop.f32.mrb[0].mxu0
      %v10116 = vpop.f32.mrb[0].mxu0
      %v10117 = vadd.f32 0.0, %v10116
      %v10118 = vpop.f32.mrb[0].mxu0
      %10119 = vmatprep.mubr.bf16.mxu0 0
      %10120 = vmatmul.mubr.bf16.gmra.mrb[0].mxu0 %v9859
      %v10121 = vpop.f32.mrb[0].mxu0
      %v10122 = vadd.f32 0.0, %v10121
      %v10123 = vpop.f32.mrb[0].mxu0
      %v10124 = vpop.f32.mrb[0].mxu0
      %v10125 = vadd.f32 0.0, %v10124
      %v10126 = vpop.f32.mrb[0].mxu0
      %10127 = vmatprep.mubr.bf16.mxu0 0
      %10128 = vmatmul.mubr.bf16.gmra.mrb[0].mxu0 %v9862
      %v10129 = vpop.f32.mrb[0].mxu0
      %v10130 = vadd.f32 0.0, %v10129
      %v10131 = vpop.f32.mrb[0].mxu0
      %v10132 = vpop.f32.mrb[0].mxu0
      %v10133 = vadd.f32 0.0, %v10132
      %v10134 = vpop.f32.mrb[0].mxu0
      %10135 = vmatprep.mubr.bf16.mxu0 0
      %10136 = vmatmul.mubr.bf16.gmra.mrb[0].mxu0 %v9865
      %v10137 = vpop.f32.mrb[0].mxu0
      %v10138 = vadd.f32 0.0, %v10137
      %v10139 = vpop.f32.mrb[0].mxu0
      %v10140 = vpop.f32.mrb[0].mxu0
      %v10141 = vadd.f32 0.0, %v10140
      %v10142 = vpop.f32.mrb[0].mxu0
      %10143 = vmatprep.mubr.bf16.mxu0 0
      %10144 = vmatmul.mubr.bf16.gmra.mrb[0].mxu0 %v9868
      %v10145 = vpop.f32.mrb[0].mxu0
      %v10146 = vadd.f32 0.0, %v10145
      %v10147 = vpop.f32.mrb[0].mxu0
      %v10148 = vpop.f32.mrb[0].mxu0
      %v10149 = vadd.f32 0.0, %v10148
      %v10150 = vpop.f32.mrb[0].mxu0
      %10151 = vmatprep.mubr.bf16.mxu0 0
      %10152 = vmatmul.mubr.bf16.gmra.mrb[0].mxu0 %v9871
      %v10153 = vpop.f32.mrb[0].mxu0
      %v10154 = vadd.f32 0.0, %v10153
      %v10155 = vpop.f32.mrb[0].mxu0
      %v10156 = vpop.f32.mrb[0].mxu0
      %v10157 = vadd.f32 0.0, %v10156
      %v10158 = vpop.f32.mrb[0].mxu0
      %10159 = vmatprep.mubr.bf16.mxu0 0
      %10160 = vmatmul.mubr.bf16.gmra.mrb[0].mxu0 %v9874
      %v10161 = vpop.f32.mrb[0].mxu0
      %v10162 = vadd.f32 0.0, %v10161
      %v10163 = vpop.f32.mrb[0].mxu0
      %v10164 = vpop.f32.mrb[0].mxu0
      %v10165 = vadd.f32 0.0, %v10164
      %v10166 = vpop.f32.mrb[0].mxu0
      %10167 = vdwg.mxu0
      %v10168 = vpack.c.bf16 %v9917, %v9914
      %v10169 = vpack.c.bf16 %v9925, %v9922
      %v10170 = vpack.c.bf16 %v9933, %v9930
      %v10171 = vpack.c.bf16 %v9941, %v9938
      %v10172 = vpack.c.bf16 %v9949, %v9946
      %v10173 = vpack.c.bf16 %v9957, %v9954
      %v10174 = vpack.c.bf16 %v9965, %v9962
      %v10175 = vpack.c.bf16 %v9973, %v9970
      %v10176 = vpack.c.bf16 %v9981, %v9978
      %v10177 = vpack.c.bf16 %v9989, %v9986
      %v10178 = vpack.c.bf16 %v9997, %v9994
      %v10179 = vpack.c.bf16 %v10005, %v10002
      %v10180 = vpack.c.bf16 %v10013, %v10010
      %v10181 = vpack.c.bf16 %v10021, %v10018
      %v10182 = vpack.c.bf16 %v10029, %v10026
      %v10183 = vpack.c.bf16 %v10037, %v10034
      %v10184 = vpack.c.bf16 %v10045, %v10042
      %v10185 = vpack.c.bf16 %v10053, %v10050
      %v10186 = vpack.c.bf16 %v10061, %v10058
      %v10187 = vpack.c.bf16 %v10069, %v10066
      %v10188 = vpack.c.bf16 %v10077, %v10074
      %v10189 = vpack.c.bf16 %v10085, %v10082
      %v10190 = vpack.c.bf16 %v10093, %v10090
      %v10191 = vpack.c.bf16 %v10101, %v10098
      %v10192 = vpack.c.bf16 %v10109, %v10106
      %v10193 = vpack.c.bf16 %v10117, %v10114
      %v10194 = vpack.c.bf16 %v10125, %v10122
      %v10195 = vpack.c.bf16 %v10133, %v10130
      %v10196 = vpack.c.bf16 %v10141, %v10138
      %v10197 = vpack.c.bf16 %v10149, %v10146
      %v10198 = vpack.c.bf16 %v10157, %v10154
      %v10199 = vpack.c.bf16 %v10165, %v10162
      %v10200 = vshrl.u32 %v5571, 16
      %v10201 = vpack.i.b16 %v10200, %v10200
      %v10203 = vlaneseq
      %v10204 = vshrl.u32 %v10203, 7
      %v10205 = vsub.s32 1, %v10204
      %v10206 = vrot.slane %v10201, %v10205
      %v10207 = vadd.bf16 %v10168, %v10206
      %v10208 = vadd.bf16 %v10169, %v10206
      %v10209 = vadd.bf16 %v10170, %v10206
      %v10210 = vadd.bf16 %v10171, %v10206
      %v10211 = vadd.bf16 %v10172, %v10206
      %v10212 = vadd.bf16 %v10173, %v10206
      %v10213 = vadd.bf16 %v10174, %v10206
      %v10214 = vadd.bf16 %v10175, %v10206
      %v10215 = vadd.bf16 %v10176, %v10206
      %v10216 = vadd.bf16 %v10177, %v10206
      %v10217 = vadd.bf16 %v10178, %v10206
      %v10218 = vadd.bf16 %v10179, %v10206
      %v10219 = vadd.bf16 %v10180, %v10206
      %v10220 = vadd.bf16 %v10181, %v10206
      %v10221 = vadd.bf16 %v10182, %v10206
      %v10222 = vadd.bf16 %v10183, %v10206
      %v10223 = vadd.bf16 %v10184, %v10206
      %v10224 = vadd.bf16 %v10185, %v10206
      %v10225 = vadd.bf16 %v10186, %v10206
      %v10226 = vadd.bf16 %v10187, %v10206
      %v10227 = vadd.bf16 %v10188, %v10206
      %v10228 = vadd.bf16 %v10189, %v10206
      %v10229 = vadd.bf16 %v10190, %v10206
      %v10230 = vadd.bf16 %v10191, %v10206
      %v10231 = vadd.bf16 %v10192, %v10206
      %v10232 = vadd.bf16 %v10193, %v10206
      %v10233 = vadd.bf16 %v10194, %v10206
      %v10234 = vadd.bf16 %v10195, %v10206
      %v10235 = vadd.bf16 %v10196, %v10206
      %v10236 = vadd.bf16 %v10197, %v10206
      %v10237 = vadd.bf16 %v10198, %v10206
      %v10238 = vadd.bf16 %v10199, %v10206
      %v10239 = vmul.bf16 %v10207, 1045249613
      %v10240 = vmul.bf16 %v10208, 1045249613
      %v10241 = vmul.bf16 %v10209, 1045249613
      %v10242 = vmul.bf16 %v10210, 1045249613
      %v10243 = vmul.bf16 %v10211, 1045249613
      %v10244 = vmul.bf16 %v10212, 1045249613
      %v10245 = vmul.bf16 %v10213, 1045249613
      %v10246 = vmul.bf16 %v10214, 1045249613
      %v10247 = vmul.bf16 %v10215, 1045249613
      %v10248 = vmul.bf16 %v10216, 1045249613
      %v10249 = vmul.bf16 %v10217, 1045249613
      %v10250 = vmul.bf16 %v10218, 1045249613
      %v10251 = vmul.bf16 %v10219, 1045249613
      %v10252 = vmul.bf16 %v10220, 1045249613
      %v10253 = vmul.bf16 %v10221, 1045249613
      %v10254 = vmul.bf16 %v10222, 1045249613
      %v10255 = vmul.bf16 %v10223, 1045249613
      %v10256 = vmul.bf16 %v10224, 1045249613
      %v10257 = vmul.bf16 %v10225, 1045249613
      %v10258 = vmul.bf16 %v10226, 1045249613
      %v10259 = vmul.bf16 %v10227, 1045249613
      %v10260 = vmul.bf16 %v10228, 1045249613
      %v10261 = vmul.bf16 %v10229, 1045249613
      %v10262 = vmul.bf16 %v10230, 1045249613
      %v10263 = vmul.bf16 %v10231, 1045249613
      %v10264 = vmul.bf16 %v10232, 1045249613
      %v10265 = vmul.bf16 %v10233, 1045249613
      %v10266 = vmul.bf16 %v10234, 1045249613
      %v10267 = vmul.bf16 %v10235, 1045249613
      %v10268 = vmul.bf16 %v10236, 1045249613
      %v10269 = vmul.bf16 %v10237, 1045249613
      %v10270 = vmul.bf16 %v10238, 1045249613
      %v10271 = vmax.bf16 %v10207, %v10239
      %v10272 = vmax.bf16 %v10208, %v10240
      %v10273 = vmax.bf16 %v10209, %v10241
      %v10274 = vmax.bf16 %v10210, %v10242
      %v10275 = vmax.bf16 %v10211, %v10243
      %v10276 = vmax.bf16 %v10212, %v10244
      %v10277 = vmax.bf16 %v10213, %v10245
      %v10278 = vmax.bf16 %v10214, %v10246
      %v10279 = vmax.bf16 %v10215, %v10247
      %v10280 = vmax.bf16 %v10216, %v10248
      %v10281 = vmax.bf16 %v10217, %v10249
      %v10282 = vmax.bf16 %v10218, %v10250
      %v10283 = vmax.bf16 %v10219, %v10251
      %v10284 = vmax.bf16 %v10220, %v10252
      %v10285 = vmax.bf16 %v10221, %v10253
      %v10286 = vmax.bf16 %v10222, %v10254
      %v10287 = vmax.bf16 %v10223, %v10255
      %v10288 = vmax.bf16 %v10224, %v10256
      %v10289 = vmax.bf16 %v10225, %v10257
      %v10290 = vmax.bf16 %v10226, %v10258
      %v10291 = vmax.bf16 %v10227, %v10259
      %v10292 = vmax.bf16 %v10228, %v10260
      %v10293 = vmax.bf16 %v10229, %v10261
      %v10294 = vmax.bf16 %v10230, %v10262
      %v10295 = vmax.bf16 %v10231, %v10263
      %v10296 = vmax.bf16 %v10232, %v10264
      %v10297 = vmax.bf16 %v10233, %v10265
      %v10298 = vmax.bf16 %v10234, %v10266
      %v10299 = vmax.bf16 %v10235, %v10267
      %v10300 = vmax.bf16 %v10236, %v10268
      %v10301 = vmax.bf16 %v10237, %v10269
      %v10302 = vmax.bf16 %v10238, %v10270
      %s10303 = scalar_lea.vmem %s2, 576
      %v10304 = vld [vmem:[%s10303] sm:$0xf]
      %v10305 = vld [vmem:[%s10303 + $0x4] sm:$0xf]
      %v10306 = vld [vmem:[%s10303 + $0x8] sm:$0xf]
      %v10307 = vld [vmem:[%s10303 + $0xc] sm:$0xf]
      %v10308 = vld [vmem:[%s10303 + $0x10] sm:$0xf]
      %v10309 = vld [vmem:[%s10303 + $0x14] sm:$0xf]
      %v10310 = vld [vmem:[%s10303 + $0x18] sm:$0xf]
      %v10311 = vld [vmem:[%s10303 + $0x1c] sm:$0xf]
      %v10312 = vld [vmem:[%s10303 + $0x20] sm:$0xf]
      %v10313 = vld [vmem:[%s10303 + $0x24] sm:$0xf]
      %v10314 = vld [vmem:[%s10303 + $0x28] sm:$0xf]
      %v10315 = vld [vmem:[%s10303 + $0x2c] sm:$0xf]
      %v10316 = vld [vmem:[%s10303 + $0x30] sm:$0xf]
      %v10317 = vld [vmem:[%s10303 + $0x34] sm:$0xf]
      %v10318 = vld [vmem:[%s10303 + $0x38] sm:$0xf]
      %v10319 = vld [vmem:[%s10303 + $0x3c] sm:$0xf]
      %v10336 = vunpack.c.l.b16 %v10304
      %v10337 = vunpack.c.l.b16 %v10305
      %v10338 = vunpack.c.l.b16 %v10306
      %v10339 = vunpack.c.l.b16 %v10307
      %v10340 = vunpack.c.l.b16 %v10308
      %v10341 = vunpack.c.l.b16 %v10309
      %v10342 = vunpack.c.l.b16 %v10310
      %v10343 = vunpack.c.l.b16 %v10311
      %v10344 = vunpack.c.l.b16 %v10312
      %v10345 = vunpack.c.l.b16 %v10313
      %v10346 = vunpack.c.l.b16 %v10314
      %v10347 = vunpack.c.l.b16 %v10315
      %v10348 = vunpack.c.l.b16 %v10316
      %v10349 = vunpack.c.l.b16 %v10317
      %v10350 = vunpack.c.l.b16 %v10318
      %v10351 = vunpack.c.l.b16 %v10319
      %v10352 = vpack.c.b16 %v10337, %v10336
      %v10353 = vpack.c.b16 %v10339, %v10338
      %v10354 = vpack.c.b16 %v10341, %v10340
      %v10355 = vpack.c.b16 %v10343, %v10342
      %v10356 = vpack.c.b16 %v10345, %v10344
      %v10357 = vpack.c.b16 %v10347, %v10346
      %v10358 = vpack.c.b16 %v10349, %v10348
      %v10359 = vpack.c.b16 %v10351, %v10350
      %10368 = vmatprep.subr.bf16.mxu0 0
      %10369 = vmatpush1.bf16.msra.mxu0 %v10352
      %10370 = vmatprep.subr.bf16.mxu0 0
      %10371 = vmatpush1.bf16.msra.mxu0 %v10353
      %10372 = vmatprep.subr.bf16.mxu0 0
      %10373 = vmatpush1.bf16.msra.mxu0 %v10354
      %10374 = vmatprep.subr.bf16.mxu0 0
      %10375 = vmatpush1.bf16.msra.mxu0 %v10355
      %10376 = vmatprep.subr.bf16.mxu0 0
      %10377 = vmatpush1.bf16.msra.mxu0 %v10356
      %10378 = vmatprep.subr.bf16.mxu0 0
      %10379 = vmatpush1.bf16.msra.mxu0 %v10357
      %10380 = vmatprep.subr.bf16.mxu0 0
      %10381 = vmatpush1.bf16.msra.mxu0 %v10358
      %10382 = vmatprep.subr.bf16.mxu0 0
      %10383 = vmatpush1.bf16.msra.mxu0 %v10359
      %10384 = vmatprep.subr.bf16.mxu0 0
      %10385 = vmatpush1.bf16.msra.mxu0 0
      %10386 = vmatprep.subr.bf16.mxu0 0
      %10387 = vmatpush1.bf16.msra.mxu0 0
      %10388 = vmatprep.subr.bf16.mxu0 0
      %10389 = vmatpush1.bf16.msra.mxu0 0
      %10390 = vmatprep.subr.bf16.mxu0 0
      %10391 = vmatpush1.bf16.msra.mxu0 0
      %10392 = vmatprep.subr.bf16.mxu0 0
      %10393 = vmatpush1.bf16.msra.mxu0 0
      %10394 = vmatprep.subr.bf16.mxu0 0
      %10395 = vmatpush1.bf16.msra.mxu0 0
      %10396 = vmatprep.subr.bf16.mxu0 0
      %10397 = vmatpush1.bf16.msra.mxu0 0
      %10398 = vmatprep.subr.bf16.mxu0 0
      %10399 = vmatpush1.bf16.msra.mxu0 0
      %10400 = vmatprep.mubr.bf16.mxu0 0
      %10401 = vmatmul.mubr.bf16.gmra.mrb[0].mxu0 %v10271
      %v10402 = vpop.f32.mrb[0].mxu0
      %v10403 = vadd.f32 0.0, %v10402
      %v10404 = vpop.f32.mrb[0].mxu0
      %v10405 = vpop.f32.mrb[0].mxu0
      %v10406 = vadd.f32 0.0, %v10405
      %v10407 = vpop.f32.mrb[0].mxu0
      %10408 = vmatprep.mubr.bf16.mxu0 0
      %10409 = vmatmul.mubr.bf16.gmra.mrb[0].mxu0 %v10272
      %v10410 = vpop.f32.mrb[0].mxu0
      %v10411 = vadd.f32 0.0, %v10410
      %v10412 = vpop.f32.mrb[0].mxu0
      %v10413 = vpop.f32.mrb[0].mxu0
      %v10414 = vadd.f32 0.0, %v10413
      %v10415 = vpop.f32.mrb[0].mxu0
      %10416 = vmatprep.mubr.bf16.mxu0 0
      %10417 = vmatmul.mubr.bf16.gmra.mrb[0].mxu0 %v10273
      %v10418 = vpop.f32.mrb[0].mxu0
      %v10419 = vadd.f32 0.0, %v10418
      %v10420 = vpop.f32.mrb[0].mxu0
      %v10421 = vpop.f32.mrb[0].mxu0
      %v10422 = vadd.f32 0.0, %v10421
      %v10423 = vpop.f32.mrb[0].mxu0
      %10424 = vmatprep.mubr.bf16.mxu0 0
      %10425 = vmatmul.mubr.bf16.gmra.mrb[0].mxu0 %v10274
      %v10426 = vpop.f32.mrb[0].mxu0
      %v10427 = vadd.f32 0.0, %v10426
      %v10428 = vpop.f32.mrb[0].mxu0
      %v10429 = vpop.f32.mrb[0].mxu0
      %v10430 = vadd.f32 0.0, %v10429
      %v10431 = vpop.f32.mrb[0].mxu0
      %10432 = vmatprep.mubr.bf16.mxu0 0
      %10433 = vmatmul.mubr.bf16.gmra.mrb[0].mxu0 %v10275
      %v10434 = vpop.f32.mrb[0].mxu0
      %v10435 = vadd.f32 0.0, %v10434
      %v10436 = vpop.f32.mrb[0].mxu0
      %v10437 = vpop.f32.mrb[0].mxu0
      %v10438 = vadd.f32 0.0, %v10437
      %v10439 = vpop.f32.mrb[0].mxu0
      %10440 = vmatprep.mubr.bf16.mxu0 0
      %10441 = vmatmul.mubr.bf16.gmra.mrb[0].mxu0 %v10276
      %v10442 = vpop.f32.mrb[0].mxu0
      %v10443 = vadd.f32 0.0, %v10442
      %v10444 = vpop.f32.mrb[0].mxu0
      %v10445 = vpop.f32.mrb[0].mxu0
      %v10446 = vadd.f32 0.0, %v10445
      %v10447 = vpop.f32.mrb[0].mxu0
      %10448 = vmatprep.mubr.bf16.mxu0 0
      %10449 = vmatmul.mubr.bf16.gmra.mrb[0].mxu0 %v10277
      %v10450 = vpop.f32.mrb[0].mxu0
      %v10451 = vadd.f32 0.0, %v10450
      %v10452 = vpop.f32.mrb[0].mxu0
      %v10453 = vpop.f32.mrb[0].mxu0
      %v10454 = vadd.f32 0.0, %v10453
      %v10455 = vpop.f32.mrb[0].mxu0
      %10456 = vmatprep.mubr.bf16.mxu0 0
      %10457 = vmatmul.mubr.bf16.gmra.mrb[0].mxu0 %v10278
      %v10458 = vpop.f32.mrb[0].mxu0
      %v10459 = vadd.f32 0.0, %v10458
      %v10460 = vpop.f32.mrb[0].mxu0
      %v10461 = vpop.f32.mrb[0].mxu0
      %v10462 = vadd.f32 0.0, %v10461
      %v10463 = vpop.f32.mrb[0].mxu0
      %10464 = vmatprep.mubr.bf16.mxu0 0
      %10465 = vmatmul.mubr.bf16.gmra.mrb[0].mxu0 %v10279
      %v10466 = vpop.f32.mrb[0].mxu0
      %v10467 = vadd.f32 0.0, %v10466
      %v10468 = vpop.f32.mrb[0].mxu0
      %v10469 = vpop.f32.mrb[0].mxu0
      %v10470 = vadd.f32 0.0, %v10469
      %v10471 = vpop.f32.mrb[0].mxu0
      %10472 = vmatprep.mubr.bf16.mxu0 0
      %10473 = vmatmul.mubr.bf16.gmra.mrb[0].mxu0 %v10280
      %v10474 = vpop.f32.mrb[0].mxu0
      %v10475 = vadd.f32 0.0, %v10474
      %v10476 = vpop.f32.mrb[0].mxu0
      %v10477 = vpop.f32.mrb[0].mxu0
      %v10478 = vadd.f32 0.0, %v10477
      %v10479 = vpop.f32.mrb[0].mxu0
      %10480 = vmatprep.mubr.bf16.mxu0 0
      %10481 = vmatmul.mubr.bf16.gmra.mrb[0].mxu0 %v10281
      %v10482 = vpop.f32.mrb[0].mxu0
      %v10483 = vadd.f32 0.0, %v10482
      %v10484 = vpop.f32.mrb[0].mxu0
      %v10485 = vpop.f32.mrb[0].mxu0
      %v10486 = vadd.f32 0.0, %v10485
      %v10487 = vpop.f32.mrb[0].mxu0
      %10488 = vmatprep.mubr.bf16.mxu0 0
      %10489 = vmatmul.mubr.bf16.gmra.mrb[0].mxu0 %v10282
      %v10490 = vpop.f32.mrb[0].mxu0
      %v10491 = vadd.f32 0.0, %v10490
      %v10492 = vpop.f32.mrb[0].mxu0
      %v10493 = vpop.f32.mrb[0].mxu0
      %v10494 = vadd.f32 0.0, %v10493
      %v10495 = vpop.f32.mrb[0].mxu0
      %10496 = vmatprep.mubr.bf16.mxu0 0
      %10497 = vmatmul.mubr.bf16.gmra.mrb[0].mxu0 %v10283
      %v10498 = vpop.f32.mrb[0].mxu0
      %v10499 = vadd.f32 0.0, %v10498
      %v10500 = vpop.f32.mrb[0].mxu0
      %v10501 = vpop.f32.mrb[0].mxu0
      %v10502 = vadd.f32 0.0, %v10501
      %v10503 = vpop.f32.mrb[0].mxu0
      %10504 = vmatprep.mubr.bf16.mxu0 0
      %10505 = vmatmul.mubr.bf16.gmra.mrb[0].mxu0 %v10284
      %v10506 = vpop.f32.mrb[0].mxu0
      %v10507 = vadd.f32 0.0, %v10506
      %v10508 = vpop.f32.mrb[0].mxu0
      %v10509 = vpop.f32.mrb[0].mxu0
      %v10510 = vadd.f32 0.0, %v10509
      %v10511 = vpop.f32.mrb[0].mxu0
      %10512 = vmatprep.mubr.bf16.mxu0 0
      %10513 = vmatmul.mubr.bf16.gmra.mrb[0].mxu0 %v10285
      %v10514 = vpop.f32.mrb[0].mxu0
      %v10515 = vadd.f32 0.0, %v10514
      %v10516 = vpop.f32.mrb[0].mxu0
      %v10517 = vpop.f32.mrb[0].mxu0
      %v10518 = vadd.f32 0.0, %v10517
      %v10519 = vpop.f32.mrb[0].mxu0
      %10520 = vmatprep.mubr.bf16.mxu0 0
      %10521 = vmatmul.mubr.bf16.gmra.mrb[0].mxu0 %v10286
      %v10522 = vpop.f32.mrb[0].mxu0
      %v10523 = vadd.f32 0.0, %v10522
      %v10524 = vpop.f32.mrb[0].mxu0
      %v10525 = vpop.f32.mrb[0].mxu0
      %v10526 = vadd.f32 0.0, %v10525
      %v10527 = vpop.f32.mrb[0].mxu0
      %10528 = vmatprep.mubr.bf16.mxu0 0
      %10529 = vmatmul.mubr.bf16.gmra.mrb[0].mxu0 %v10287
      %v10530 = vpop.f32.mrb[0].mxu0
      %v10531 = vadd.f32 0.0, %v10530
      %v10532 = vpop.f32.mrb[0].mxu0
      %v10533 = vpop.f32.mrb[0].mxu0
      %v10534 = vadd.f32 0.0, %v10533
      %v10535 = vpop.f32.mrb[0].mxu0
      %10536 = vmatprep.mubr.bf16.mxu0 0
      %10537 = vmatmul.mubr.bf16.gmra.mrb[0].mxu0 %v10288
      %v10538 = vpop.f32.mrb[0].mxu0
      %v10539 = vadd.f32 0.0, %v10538
      %v10540 = vpop.f32.mrb[0].mxu0
      %v10541 = vpop.f32.mrb[0].mxu0
      %v10542 = vadd.f32 0.0, %v10541
      %v10543 = vpop.f32.mrb[0].mxu0
      %10544 = vmatprep.mubr.bf16.mxu0 0
      %10545 = vmatmul.mubr.bf16.gmra.mrb[0].mxu0 %v10289
      %v10546 = vpop.f32.mrb[0].mxu0
      %v10547 = vadd.f32 0.0, %v10546
      %v10548 = vpop.f32.mrb[0].mxu0
      %v10549 = vpop.f32.mrb[0].mxu0
      %v10550 = vadd.f32 0.0, %v10549
      %v10551 = vpop.f32.mrb[0].mxu0
      %10552 = vmatprep.mubr.bf16.mxu0 0
      %10553 = vmatmul.mubr.bf16.gmra.mrb[0].mxu0 %v10290
      %v10554 = vpop.f32.mrb[0].mxu0
      %v10555 = vadd.f32 0.0, %v10554
      %v10556 = vpop.f32.mrb[0].mxu0
      %v10557 = vpop.f32.mrb[0].mxu0
      %v10558 = vadd.f32 0.0, %v10557
      %v10559 = vpop.f32.mrb[0].mxu0
      %10560 = vmatprep.mubr.bf16.mxu0 0
      %10561 = vmatmul.mubr.bf16.gmra.mrb[0].mxu0 %v10291
      %v10562 = vpop.f32.mrb[0].mxu0
      %v10563 = vadd.f32 0.0, %v10562
      %v10564 = vpop.f32.mrb[0].mxu0
      %v10565 = vpop.f32.mrb[0].mxu0
      %v10566 = vadd.f32 0.0, %v10565
      %v10567 = vpop.f32.mrb[0].mxu0
      %10568 = vmatprep.mubr.bf16.mxu0 0
      %10569 = vmatmul.mubr.bf16.gmra.mrb[0].mxu0 %v10292
      %v10570 = vpop.f32.mrb[0].mxu0
      %v10571 = vadd.f32 0.0, %v10570
      %v10572 = vpop.f32.mrb[0].mxu0
      %v10573 = vpop.f32.mrb[0].mxu0
      %v10574 = vadd.f32 0.0, %v10573
      %v10575 = vpop.f32.mrb[0].mxu0
      %10576 = vmatprep.mubr.bf16.mxu0 0
      %10577 = vmatmul.mubr.bf16.gmra.mrb[0].mxu0 %v10293
      %v10578 = vpop.f32.mrb[0].mxu0
      %v10579 = vadd.f32 0.0, %v10578
      %v10580 = vpop.f32.mrb[0].mxu0
      %v10581 = vpop.f32.mrb[0].mxu0
      %v10582 = vadd.f32 0.0, %v10581
      %v10583 = vpop.f32.mrb[0].mxu0
      %10584 = vmatprep.mubr.bf16.mxu0 0
      %10585 = vmatmul.mubr.bf16.gmra.mrb[0].mxu0 %v10294
      %v10586 = vpop.f32.mrb[0].mxu0
      %v10587 = vadd.f32 0.0, %v10586
      %v10588 = vpop.f32.mrb[0].mxu0
      %v10589 = vpop.f32.mrb[0].mxu0
      %v10590 = vadd.f32 0.0, %v10589
      %v10591 = vpop.f32.mrb[0].mxu0
      %10592 = vmatprep.mubr.bf16.mxu0 0
      %10593 = vmatmul.mubr.bf16.gmra.mrb[0].mxu0 %v10295
      %v10594 = vpop.f32.mrb[0].mxu0
      %v10595 = vadd.f32 0.0, %v10594
      %v10596 = vpop.f32.mrb[0].mxu0
      %v10597 = vpop.f32.mrb[0].mxu0
      %v10598 = vadd.f32 0.0, %v10597
      %v10599 = vpop.f32.mrb[0].mxu0
      %10600 = vmatprep.mubr.bf16.mxu0 0
      %10601 = vmatmul.mubr.bf16.gmra.mrb[0].mxu0 %v10296
      %v10602 = vpop.f32.mrb[0].mxu0
      %v10603 = vadd.f32 0.0, %v10602
      %v10604 = vpop.f32.mrb[0].mxu0
      %v10605 = vpop.f32.mrb[0].mxu0
      %v10606 = vadd.f32 0.0, %v10605
      %v10607 = vpop.f32.mrb[0].mxu0
      %10608 = vmatprep.mubr.bf16.mxu0 0
      %10609 = vmatmul.mubr.bf16.gmra.mrb[0].mxu0 %v10297
      %v10610 = vpop.f32.mrb[0].mxu0
      %v10611 = vadd.f32 0.0, %v10610
      %v10612 = vpop.f32.mrb[0].mxu0
      %v10613 = vpop.f32.mrb[0].mxu0
      %v10614 = vadd.f32 0.0, %v10613
      %v10615 = vpop.f32.mrb[0].mxu0
      %10616 = vmatprep.mubr.bf16.mxu0 0
      %10617 = vmatmul.mubr.bf16.gmra.mrb[0].mxu0 %v10298
      %v10618 = vpop.f32.mrb[0].mxu0
      %v10619 = vadd.f32 0.0, %v10618
      %v10620 = vpop.f32.mrb[0].mxu0
      %v10621 = vpop.f32.mrb[0].mxu0
      %v10622 = vadd.f32 0.0, %v10621
      %v10623 = vpop.f32.mrb[0].mxu0
      %10624 = vmatprep.mubr.bf16.mxu0 0
      %10625 = vmatmul.mubr.bf16.gmra.mrb[0].mxu0 %v10299
      %v10626 = vpop.f32.mrb[0].mxu0
      %v10627 = vadd.f32 0.0, %v10626
      %v10628 = vpop.f32.mrb[0].mxu0
      %v10629 = vpop.f32.mrb[0].mxu0
      %v10630 = vadd.f32 0.0, %v10629
      %v10631 = vpop.f32.mrb[0].mxu0
      %10632 = vmatprep.mubr.bf16.mxu0 0
      %10633 = vmatmul.mubr.bf16.gmra.mrb[0].mxu0 %v10300
      %v10634 = vpop.f32.mrb[0].mxu0
      %v10635 = vadd.f32 0.0, %v10634
      %v10636 = vpop.f32.mrb[0].mxu0
      %v10637 = vpop.f32.mrb[0].mxu0
      %v10638 = vadd.f32 0.0, %v10637
      %v10639 = vpop.f32.mrb[0].mxu0
      %10640 = vmatprep.mubr.bf16.mxu0 0
      %10641 = vmatmul.mubr.bf16.gmra.mrb[0].mxu0 %v10301
      %v10642 = vpop.f32.mrb[0].mxu0
      %v10643 = vadd.f32 0.0, %v10642
      %v10644 = vpop.f32.mrb[0].mxu0
      %v10645 = vpop.f32.mrb[0].mxu0
      %v10646 = vadd.f32 0.0, %v10645
      %v10647 = vpop.f32.mrb[0].mxu0
      %10648 = vmatprep.mubr.bf16.mxu0 0
      %10649 = vmatmul.mubr.bf16.gmra.mrb[0].mxu0 %v10302
      %v10650 = vpop.f32.mrb[0].mxu0
      %v10651 = vadd.f32 0.0, %v10650
      %v10652 = vpop.f32.mrb[0].mxu0
      %v10653 = vpop.f32.mrb[0].mxu0
      %v10654 = vadd.f32 0.0, %v10653
      %v10655 = vpop.f32.mrb[0].mxu0
      %10656 = vdwg.mxu0
      %v10657 = vpack.c.bf16 %v10406, %v10403
      %v10658 = vpack.c.bf16 %v10414, %v10411
      %v10659 = vpack.c.bf16 %v10422, %v10419
      %v10660 = vpack.c.bf16 %v10430, %v10427
      %v10661 = vpack.c.bf16 %v10438, %v10435
      %v10662 = vpack.c.bf16 %v10446, %v10443
      %v10663 = vpack.c.bf16 %v10454, %v10451
      %v10664 = vpack.c.bf16 %v10462, %v10459
      %v10665 = vpack.c.bf16 %v10470, %v10467
      %v10666 = vpack.c.bf16 %v10478, %v10475
      %v10667 = vpack.c.bf16 %v10486, %v10483
      %v10668 = vpack.c.bf16 %v10494, %v10491
      %v10669 = vpack.c.bf16 %v10502, %v10499
      %v10670 = vpack.c.bf16 %v10510, %v10507
      %v10671 = vpack.c.bf16 %v10518, %v10515
      %v10672 = vpack.c.bf16 %v10526, %v10523
      %v10673 = vpack.c.bf16 %v10534, %v10531
      %v10674 = vpack.c.bf16 %v10542, %v10539
      %v10675 = vpack.c.bf16 %v10550, %v10547
      %v10676 = vpack.c.bf16 %v10558, %v10555
      %v10677 = vpack.c.bf16 %v10566, %v10563
      %v10678 = vpack.c.bf16 %v10574, %v10571
      %v10679 = vpack.c.bf16 %v10582, %v10579
      %v10680 = vpack.c.bf16 %v10590, %v10587
      %v10681 = vpack.c.bf16 %v10598, %v10595
      %v10682 = vpack.c.bf16 %v10606, %v10603
      %v10683 = vpack.c.bf16 %v10614, %v10611
      %v10684 = vpack.c.bf16 %v10622, %v10619
      %v10685 = vpack.c.bf16 %v10630, %v10627
      %v10686 = vpack.c.bf16 %v10638, %v10635
      %v10687 = vpack.c.bf16 %v10646, %v10643
      %v10688 = vpack.c.bf16 %v10654, %v10651
      %v10689 = vshrl.u32 %v7040, 16
      %v10690 = vpack.i.b16 %v10689, %v10689
      %v10692 = vlaneseq
      %v10693 = vshrl.u32 %v10692, 7
      %v10694 = vsub.s32 0, %v10693
      %v10695 = vrot.slane %v10690, %v10694
      %v10696 = vadd.bf16 %v10657, %v10695
      %v10697 = vadd.bf16 %v10658, %v10695
      %v10698 = vadd.bf16 %v10659, %v10695
      %v10699 = vadd.bf16 %v10660, %v10695
      %v10700 = vadd.bf16 %v10661, %v10695
      %v10701 = vadd.bf16 %v10662, %v10695
      %v10702 = vadd.bf16 %v10663, %v10695
      %v10703 = vadd.bf16 %v10664, %v10695
      %v10704 = vadd.bf16 %v10665, %v10695
      %v10705 = vadd.bf16 %v10666, %v10695
      %v10706 = vadd.bf16 %v10667, %v10695
      %v10707 = vadd.bf16 %v10668, %v10695
      %v10708 = vadd.bf16 %v10669, %v10695
      %v10709 = vadd.bf16 %v10670, %v10695
      %v10710 = vadd.bf16 %v10671, %v10695
      %v10711 = vadd.bf16 %v10672, %v10695
      %v10712 = vadd.bf16 %v10673, %v10695
      %v10713 = vadd.bf16 %v10674, %v10695
      %v10714 = vadd.bf16 %v10675, %v10695
      %v10715 = vadd.bf16 %v10676, %v10695
      %v10716 = vadd.bf16 %v10677, %v10695
      %v10717 = vadd.bf16 %v10678, %v10695
      %v10718 = vadd.bf16 %v10679, %v10695
      %v10719 = vadd.bf16 %v10680, %v10695
      %v10720 = vadd.bf16 %v10681, %v10695
      %v10721 = vadd.bf16 %v10682, %v10695
      %v10722 = vadd.bf16 %v10683, %v10695
      %v10723 = vadd.bf16 %v10684, %v10695
      %v10724 = vadd.bf16 %v10685, %v10695
      %v10725 = vadd.bf16 %v10686, %v10695
      %v10726 = vadd.bf16 %v10687, %v10695
      %v10727 = vadd.bf16 %v10688, %v10695
      %v10728 = vmul.bf16 %v10696, 1045249613
      %v10729 = vmul.bf16 %v10697, 1045249613
      %v10730 = vmul.bf16 %v10698, 1045249613
      %v10731 = vmul.bf16 %v10699, 1045249613
      %v10732 = vmul.bf16 %v10700, 1045249613
      %v10733 = vmul.bf16 %v10701, 1045249613
      %v10734 = vmul.bf16 %v10702, 1045249613
      %v10735 = vmul.bf16 %v10703, 1045249613
      %v10736 = vmul.bf16 %v10704, 1045249613
      %v10737 = vmul.bf16 %v10705, 1045249613
      %v10738 = vmul.bf16 %v10706, 1045249613
      %v10739 = vmul.bf16 %v10707, 1045249613
      %v10740 = vmul.bf16 %v10708, 1045249613
      %v10741 = vmul.bf16 %v10709, 1045249613
      %v10742 = vmul.bf16 %v10710, 1045249613
      %v10743 = vmul.bf16 %v10711, 1045249613
      %v10744 = vmul.bf16 %v10712, 1045249613
      %v10745 = vmul.bf16 %v10713, 1045249613
      %v10746 = vmul.bf16 %v10714, 1045249613
      %v10747 = vmul.bf16 %v10715, 1045249613
      %v10748 = vmul.bf16 %v10716, 1045249613
      %v10749 = vmul.bf16 %v10717, 1045249613
      %v10750 = vmul.bf16 %v10718, 1045249613
      %v10751 = vmul.bf16 %v10719, 1045249613
      %v10752 = vmul.bf16 %v10720, 1045249613
      %v10753 = vmul.bf16 %v10721, 1045249613
      %v10754 = vmul.bf16 %v10722, 1045249613
      %v10755 = vmul.bf16 %v10723, 1045249613
      %v10756 = vmul.bf16 %v10724, 1045249613
      %v10757 = vmul.bf16 %v10725, 1045249613
      %v10758 = vmul.bf16 %v10726, 1045249613
      %v10759 = vmul.bf16 %v10727, 1045249613
      %v10760 = vmax.bf16 %v10696, %v10728
      %v10761 = vmax.bf16 %v10697, %v10729
      %v10762 = vmax.bf16 %v10698, %v10730
      %v10763 = vmax.bf16 %v10699, %v10731
      %v10764 = vmax.bf16 %v10700, %v10732
      %v10765 = vmax.bf16 %v10701, %v10733
      %v10766 = vmax.bf16 %v10702, %v10734
      %v10767 = vmax.bf16 %v10703, %v10735
      %v10768 = vmax.bf16 %v10704, %v10736
      %v10769 = vmax.bf16 %v10705, %v10737
      %v10770 = vmax.bf16 %v10706, %v10738
      %v10771 = vmax.bf16 %v10707, %v10739
      %v10772 = vmax.bf16 %v10708, %v10740
      %v10773 = vmax.bf16 %v10709, %v10741
      %v10774 = vmax.bf16 %v10710, %v10742
      %v10775 = vmax.bf16 %v10711, %v10743
      %v10776 = vmax.bf16 %v10712, %v10744
      %v10777 = vmax.bf16 %v10713, %v10745
      %v10778 = vmax.bf16 %v10714, %v10746
      %v10779 = vmax.bf16 %v10715, %v10747
      %v10780 = vmax.bf16 %v10716, %v10748
      %v10781 = vmax.bf16 %v10717, %v10749
      %v10782 = vmax.bf16 %v10718, %v10750
      %v10783 = vmax.bf16 %v10719, %v10751
      %v10784 = vmax.bf16 %v10720, %v10752
      %v10785 = vmax.bf16 %v10721, %v10753
      %v10786 = vmax.bf16 %v10722, %v10754
      %v10787 = vmax.bf16 %v10723, %v10755
      %v10788 = vmax.bf16 %v10724, %v10756
      %v10789 = vmax.bf16 %v10725, %v10757
      %v10790 = vmax.bf16 %v10726, %v10758
      %v10791 = vmax.bf16 %v10727, %v10759
      %s10792 = scalar_lea.vmem %s3, 192
      %v10793 = vld [vmem:[%s10792] sm:$0xf]
      %v10794 = vld [vmem:[%s10792 + $0x4] sm:$0xf]
      %v10795 = vld [vmem:[%s10792 + $0x8] sm:$0xf]
      %v10796 = vld [vmem:[%s10792 + $0xc] sm:$0xf]
      %v10797 = vld [vmem:[%s10792 + $0x10] sm:$0xf]
      %v10798 = vld [vmem:[%s10792 + $0x14] sm:$0xf]
      %v10799 = vld [vmem:[%s10792 + $0x18] sm:$0xf]
      %v10800 = vld [vmem:[%s10792 + $0x1c] sm:$0xf]
      %v10801 = vld [vmem:[%s10792 + $0x20] sm:$0xf]
      %v10802 = vld [vmem:[%s10792 + $0x24] sm:$0xf]
      %v10803 = vld [vmem:[%s10792 + $0x28] sm:$0xf]
      %v10804 = vld [vmem:[%s10792 + $0x2c] sm:$0xf]
      %v10805 = vld [vmem:[%s10792 + $0x30] sm:$0xf]
      %v10806 = vld [vmem:[%s10792 + $0x34] sm:$0xf]
      %v10807 = vld [vmem:[%s10792 + $0x38] sm:$0xf]
      %v10808 = vld [vmem:[%s10792 + $0x3c] sm:$0xf]
      %v10809 = vld [vmem:[%s6 + $0x3] sm:$0x1]
      %v10810 = vlaneseq
      %v10811 = vshrl.u32 %v10810, 7
      %v10812 = vsub.s32 0, %v10811
      %v10813 = vrot.slane %v10809, %v10812
      %v10830 = vunpack.c.l.b16 %v10793
      %v10831 = vunpack.c.l.b16 %v10794
      %v10832 = vunpack.c.l.b16 %v10795
      %v10833 = vunpack.c.l.b16 %v10796
      %v10834 = vunpack.c.l.b16 %v10797
      %v10835 = vunpack.c.l.b16 %v10798
      %v10836 = vunpack.c.l.b16 %v10799
      %v10837 = vunpack.c.l.b16 %v10800
      %v10838 = vunpack.c.l.b16 %v10801
      %v10839 = vunpack.c.l.b16 %v10802
      %v10840 = vunpack.c.l.b16 %v10803
      %v10841 = vunpack.c.l.b16 %v10804
      %v10842 = vunpack.c.l.b16 %v10805
      %v10843 = vunpack.c.l.b16 %v10806
      %v10844 = vunpack.c.l.b16 %v10807
      %v10845 = vunpack.c.l.b16 %v10808
      %v10846 = vpack.c.b16 %v10831, %v10830
      %v10847 = vpack.c.b16 %v10833, %v10832
      %v10848 = vpack.c.b16 %v10835, %v10834
      %v10849 = vpack.c.b16 %v10837, %v10836
      %v10850 = vpack.c.b16 %v10839, %v10838
      %v10851 = vpack.c.b16 %v10841, %v10840
      %v10852 = vpack.c.b16 %v10843, %v10842
      %v10853 = vpack.c.b16 %v10845, %v10844
      %10862 = vmatprep.subr.bf16.mxu0 0
      %10863 = vmatpush1.bf16.msra.mxu0 %v10846
      %10864 = vmatprep.subr.bf16.mxu0 0
      %10865 = vmatpush1.bf16.msra.mxu0 %v10847
      %10866 = vmatprep.subr.bf16.mxu0 0
      %10867 = vmatpush1.bf16.msra.mxu0 %v10848
      %10868 = vmatprep.subr.bf16.mxu0 0
      %10869 = vmatpush1.bf16.msra.mxu0 %v10849
      %10870 = vmatprep.subr.bf16.mxu0 0
      %10871 = vmatpush1.bf16.msra.mxu0 %v10850
      %10872 = vmatprep.subr.bf16.mxu0 0
      %10873 = vmatpush1.bf16.msra.mxu0 %v10851
      %10874 = vmatprep.subr.bf16.mxu0 0
      %10875 = vmatpush1.bf16.msra.mxu0 %v10852
      %10876 = vmatprep.subr.bf16.mxu0 0
      %10877 = vmatpush1.bf16.msra.mxu0 %v10853
      %10878 = vmatprep.subr.bf16.mxu0 0
      %10879 = vmatpush1.bf16.msra.mxu0 0
      %10880 = vmatprep.subr.bf16.mxu0 0
      %10881 = vmatpush1.bf16.msra.mxu0 0
      %10882 = vmatprep.subr.bf16.mxu0 0
      %10883 = vmatpush1.bf16.msra.mxu0 0
      %10884 = vmatprep.subr.bf16.mxu0 0
      %10885 = vmatpush1.bf16.msra.mxu0 0
      %10886 = vmatprep.subr.bf16.mxu0 0
      %10887 = vmatpush1.bf16.msra.mxu0 0
      %10888 = vmatprep.subr.bf16.mxu0 0
      %10889 = vmatpush1.bf16.msra.mxu0 0
      %10890 = vmatprep.subr.bf16.mxu0 0
      %10891 = vmatpush1.bf16.msra.mxu0 0
      %10892 = vmatprep.subr.bf16.mxu0 0
      %10893 = vmatpush1.bf16.msra.mxu0 0
      %10894 = vmatprep.mubr.bf16.mxu0 0
      %10895 = vmatmul.mubr.bf16.gmra.mrb[0].mxu0 %v10760
      %v10896 = vpop.f32.mrb[0].mxu0
      %v10897 = vadd.f32 %v10813, %v10896
      %v10898 = vpop.f32.mrb[0].mxu0
      %v10899 = vpop.f32.mrb[0].mxu0
      %v10900 = vadd.f32 %v10813, %v10899
      %v10901 = vpop.f32.mrb[0].mxu0
      %10902 = vmatprep.mubr.bf16.mxu0 0
      %10903 = vmatmul.mubr.bf16.gmra.mrb[0].mxu0 %v10761
      %v10904 = vpop.f32.mrb[0].mxu0
      %v10905 = vadd.f32 %v10813, %v10904
      %v10906 = vpop.f32.mrb[0].mxu0
      %v10907 = vpop.f32.mrb[0].mxu0
      %v10908 = vadd.f32 %v10813, %v10907
      %v10909 = vpop.f32.mrb[0].mxu0
      %10910 = vmatprep.mubr.bf16.mxu0 0
      %10911 = vmatmul.mubr.bf16.gmra.mrb[0].mxu0 %v10762
      %v10912 = vpop.f32.mrb[0].mxu0
      %v10913 = vadd.f32 %v10813, %v10912
      %v10914 = vpop.f32.mrb[0].mxu0
      %v10915 = vpop.f32.mrb[0].mxu0
      %v10916 = vadd.f32 %v10813, %v10915
      %v10917 = vpop.f32.mrb[0].mxu0
      %10918 = vmatprep.mubr.bf16.mxu0 0
      %10919 = vmatmul.mubr.bf16.gmra.mrb[0].mxu0 %v10763
      %v10920 = vpop.f32.mrb[0].mxu0
      %v10921 = vadd.f32 %v10813, %v10920
      %v10922 = vpop.f32.mrb[0].mxu0
      %v10923 = vpop.f32.mrb[0].mxu0
      %v10924 = vadd.f32 %v10813, %v10923
      %v10925 = vpop.f32.mrb[0].mxu0
      %10926 = vmatprep.mubr.bf16.mxu0 0
      %10927 = vmatmul.mubr.bf16.gmra.mrb[0].mxu0 %v10764
      %v10928 = vpop.f32.mrb[0].mxu0
      %v10929 = vadd.f32 %v10813, %v10928
      %v10930 = vpop.f32.mrb[0].mxu0
      %v10931 = vpop.f32.mrb[0].mxu0
      %v10932 = vadd.f32 %v10813, %v10931
      %v10933 = vpop.f32.mrb[0].mxu0
      %10934 = vmatprep.mubr.bf16.mxu0 0
      %10935 = vmatmul.mubr.bf16.gmra.mrb[0].mxu0 %v10765
      %v10936 = vpop.f32.mrb[0].mxu0
      %v10937 = vadd.f32 %v10813, %v10936
      %v10938 = vpop.f32.mrb[0].mxu0
      %v10939 = vpop.f32.mrb[0].mxu0
      %v10940 = vadd.f32 %v10813, %v10939
      %v10941 = vpop.f32.mrb[0].mxu0
      %10942 = vmatprep.mubr.bf16.mxu0 0
      %10943 = vmatmul.mubr.bf16.gmra.mrb[0].mxu0 %v10766
      %v10944 = vpop.f32.mrb[0].mxu0
      %v10945 = vadd.f32 %v10813, %v10944
      %v10946 = vpop.f32.mrb[0].mxu0
      %v10947 = vpop.f32.mrb[0].mxu0
      %v10948 = vadd.f32 %v10813, %v10947
      %v10949 = vpop.f32.mrb[0].mxu0
      %10950 = vmatprep.mubr.bf16.mxu0 0
      %10951 = vmatmul.mubr.bf16.gmra.mrb[0].mxu0 %v10767
      %v10952 = vpop.f32.mrb[0].mxu0
      %v10953 = vadd.f32 %v10813, %v10952
      %v10954 = vpop.f32.mrb[0].mxu0
      %v10955 = vpop.f32.mrb[0].mxu0
      %v10956 = vadd.f32 %v10813, %v10955
      %v10957 = vpop.f32.mrb[0].mxu0
      %10958 = vmatprep.mubr.bf16.mxu0 0
      %10959 = vmatmul.mubr.bf16.gmra.mrb[0].mxu0 %v10768
      %v10960 = vpop.f32.mrb[0].mxu0
      %v10961 = vadd.f32 %v10813, %v10960
      %v10962 = vpop.f32.mrb[0].mxu0
      %v10963 = vpop.f32.mrb[0].mxu0
      %v10964 = vadd.f32 %v10813, %v10963
      %v10965 = vpop.f32.mrb[0].mxu0
      %10966 = vmatprep.mubr.bf16.mxu0 0
      %10967 = vmatmul.mubr.bf16.gmra.mrb[0].mxu0 %v10769
      %v10968 = vpop.f32.mrb[0].mxu0
      %v10969 = vadd.f32 %v10813, %v10968
      %v10970 = vpop.f32.mrb[0].mxu0
      %v10971 = vpop.f32.mrb[0].mxu0
      %v10972 = vadd.f32 %v10813, %v10971
      %v10973 = vpop.f32.mrb[0].mxu0
      %10974 = vmatprep.mubr.bf16.mxu0 0
      %10975 = vmatmul.mubr.bf16.gmra.mrb[0].mxu0 %v10770
      %v10976 = vpop.f32.mrb[0].mxu0
      %v10977 = vadd.f32 %v10813, %v10976
      %v10978 = vpop.f32.mrb[0].mxu0
      %v10979 = vpop.f32.mrb[0].mxu0
      %v10980 = vadd.f32 %v10813, %v10979
      %v10981 = vpop.f32.mrb[0].mxu0
      %10982 = vmatprep.mubr.bf16.mxu0 0
      %10983 = vmatmul.mubr.bf16.gmra.mrb[0].mxu0 %v10771
      %v10984 = vpop.f32.mrb[0].mxu0
      %v10985 = vadd.f32 %v10813, %v10984
      %v10986 = vpop.f32.mrb[0].mxu0
      %v10987 = vpop.f32.mrb[0].mxu0
      %v10988 = vadd.f32 %v10813, %v10987
      %v10989 = vpop.f32.mrb[0].mxu0
      %10990 = vmatprep.mubr.bf16.mxu0 0
      %10991 = vmatmul.mubr.bf16.gmra.mrb[0].mxu0 %v10772
      %v10992 = vpop.f32.mrb[0].mxu0
      %v10993 = vadd.f32 %v10813, %v10992
      %v10994 = vpop.f32.mrb[0].mxu0
      %v10995 = vpop.f32.mrb[0].mxu0
      %v10996 = vadd.f32 %v10813, %v10995
      %v10997 = vpop.f32.mrb[0].mxu0
      %10998 = vmatprep.mubr.bf16.mxu0 0
      %10999 = vmatmul.mubr.bf16.gmra.mrb[0].mxu0 %v10773
      %v11000 = vpop.f32.mrb[0].mxu0
      %v11001 = vadd.f32 %v10813, %v11000
      %v11002 = vpop.f32.mrb[0].mxu0
      %v11003 = vpop.f32.mrb[0].mxu0
      %v11004 = vadd.f32 %v10813, %v11003
      %v11005 = vpop.f32.mrb[0].mxu0
      %11006 = vmatprep.mubr.bf16.mxu0 0
      %11007 = vmatmul.mubr.bf16.gmra.mrb[0].mxu0 %v10774
      %v11008 = vpop.f32.mrb[0].mxu0
      %v11009 = vadd.f32 %v10813, %v11008
      %v11010 = vpop.f32.mrb[0].mxu0
      %v11011 = vpop.f32.mrb[0].mxu0
      %v11012 = vadd.f32 %v10813, %v11011
      %v11013 = vpop.f32.mrb[0].mxu0
      %11014 = vmatprep.mubr.bf16.mxu0 0
      %11015 = vmatmul.mubr.bf16.gmra.mrb[0].mxu0 %v10775
      %v11016 = vpop.f32.mrb[0].mxu0
      %v11017 = vadd.f32 %v10813, %v11016
      %v11018 = vpop.f32.mrb[0].mxu0
      %v11019 = vpop.f32.mrb[0].mxu0
      %v11020 = vadd.f32 %v10813, %v11019
      %v11021 = vpop.f32.mrb[0].mxu0
      %11022 = vmatprep.mubr.bf16.mxu0 0
      %11023 = vmatmul.mubr.bf16.gmra.mrb[0].mxu0 %v10776
      %v11024 = vpop.f32.mrb[0].mxu0
      %v11025 = vadd.f32 %v10813, %v11024
      %v11026 = vpop.f32.mrb[0].mxu0
      %v11027 = vpop.f32.mrb[0].mxu0
      %v11028 = vadd.f32 %v10813, %v11027
      %v11029 = vpop.f32.mrb[0].mxu0
      %11030 = vmatprep.mubr.bf16.mxu0 0
      %11031 = vmatmul.mubr.bf16.gmra.mrb[0].mxu0 %v10777
      %v11032 = vpop.f32.mrb[0].mxu0
      %v11033 = vadd.f32 %v10813, %v11032
      %v11034 = vpop.f32.mrb[0].mxu0
      %v11035 = vpop.f32.mrb[0].mxu0
      %v11036 = vadd.f32 %v10813, %v11035
      %v11037 = vpop.f32.mrb[0].mxu0
      %11038 = vmatprep.mubr.bf16.mxu0 0
      %11039 = vmatmul.mubr.bf16.gmra.mrb[0].mxu0 %v10778
      %v11040 = vpop.f32.mrb[0].mxu0
      %v11041 = vadd.f32 %v10813, %v11040
      %v11042 = vpop.f32.mrb[0].mxu0
      %v11043 = vpop.f32.mrb[0].mxu0
      %v11044 = vadd.f32 %v10813, %v11043
      %v11045 = vpop.f32.mrb[0].mxu0
      %11046 = vmatprep.mubr.bf16.mxu0 0
      %11047 = vmatmul.mubr.bf16.gmra.mrb[0].mxu0 %v10779
      %v11048 = vpop.f32.mrb[0].mxu0
      %v11049 = vadd.f32 %v10813, %v11048
      %v11050 = vpop.f32.mrb[0].mxu0
      %v11051 = vpop.f32.mrb[0].mxu0
      %v11052 = vadd.f32 %v10813, %v11051
      %v11053 = vpop.f32.mrb[0].mxu0
      %11054 = vmatprep.mubr.bf16.mxu0 0
      %11055 = vmatmul.mubr.bf16.gmra.mrb[0].mxu0 %v10780
      %v11056 = vpop.f32.mrb[0].mxu0
      %v11057 = vadd.f32 %v10813, %v11056
      %v11058 = vpop.f32.mrb[0].mxu0
      %v11059 = vpop.f32.mrb[0].mxu0
      %v11060 = vadd.f32 %v10813, %v11059
      %v11061 = vpop.f32.mrb[0].mxu0
      %11062 = vmatprep.mubr.bf16.mxu0 0
      %11063 = vmatmul.mubr.bf16.gmra.mrb[0].mxu0 %v10781
      %v11064 = vpop.f32.mrb[0].mxu0
      %v11065 = vadd.f32 %v10813, %v11064
      %v11066 = vpop.f32.mrb[0].mxu0
      %v11067 = vpop.f32.mrb[0].mxu0
      %v11068 = vadd.f32 %v10813, %v11067
      %v11069 = vpop.f32.mrb[0].mxu0
      %11070 = vmatprep.mubr.bf16.mxu0 0
      %11071 = vmatmul.mubr.bf16.gmra.mrb[0].mxu0 %v10782
      %v11072 = vpop.f32.mrb[0].mxu0
      %v11073 = vadd.f32 %v10813, %v11072
      %v11074 = vpop.f32.mrb[0].mxu0
      %v11075 = vpop.f32.mrb[0].mxu0
      %v11076 = vadd.f32 %v10813, %v11075
      %v11077 = vpop.f32.mrb[0].mxu0
      %11078 = vmatprep.mubr.bf16.mxu0 0
      %11079 = vmatmul.mubr.bf16.gmra.mrb[0].mxu0 %v10783
      %v11080 = vpop.f32.mrb[0].mxu0
      %v11081 = vadd.f32 %v10813, %v11080
      %v11082 = vpop.f32.mrb[0].mxu0
      %v11083 = vpop.f32.mrb[0].mxu0
      %v11084 = vadd.f32 %v10813, %v11083
      %v11085 = vpop.f32.mrb[0].mxu0
      %11086 = vmatprep.mubr.bf16.mxu0 0
      %11087 = vmatmul.mubr.bf16.gmra.mrb[0].mxu0 %v10784
      %v11088 = vpop.f32.mrb[0].mxu0
      %v11089 = vadd.f32 %v10813, %v11088
      %v11090 = vpop.f32.mrb[0].mxu0
      %v11091 = vpop.f32.mrb[0].mxu0
      %v11092 = vadd.f32 %v10813, %v11091
      %v11093 = vpop.f32.mrb[0].mxu0
      %11094 = vmatprep.mubr.bf16.mxu0 0
      %11095 = vmatmul.mubr.bf16.gmra.mrb[0].mxu0 %v10785
      %v11096 = vpop.f32.mrb[0].mxu0
      %v11097 = vadd.f32 %v10813, %v11096
      %v11098 = vpop.f32.mrb[0].mxu0
      %v11099 = vpop.f32.mrb[0].mxu0
      %v11100 = vadd.f32 %v10813, %v11099
      %v11101 = vpop.f32.mrb[0].mxu0
      %11102 = vmatprep.mubr.bf16.mxu0 0
      %11103 = vmatmul.mubr.bf16.gmra.mrb[0].mxu0 %v10786
      %v11104 = vpop.f32.mrb[0].mxu0
      %v11105 = vadd.f32 %v10813, %v11104
      %v11106 = vpop.f32.mrb[0].mxu0
      %v11107 = vpop.f32.mrb[0].mxu0
      %v11108 = vadd.f32 %v10813, %v11107
      %v11109 = vpop.f32.mrb[0].mxu0
      %11110 = vmatprep.mubr.bf16.mxu0 0
      %11111 = vmatmul.mubr.bf16.gmra.mrb[0].mxu0 %v10787
      %v11112 = vpop.f32.mrb[0].mxu0
      %v11113 = vadd.f32 %v10813, %v11112
      %v11114 = vpop.f32.mrb[0].mxu0
      %v11115 = vpop.f32.mrb[0].mxu0
      %v11116 = vadd.f32 %v10813, %v11115
      %v11117 = vpop.f32.mrb[0].mxu0
      %11118 = vmatprep.mubr.bf16.mxu0 0
      %11119 = vmatmul.mubr.bf16.gmra.mrb[0].mxu0 %v10788
      %v11120 = vpop.f32.mrb[0].mxu0
      %v11121 = vadd.f32 %v10813, %v11120
      %v11122 = vpop.f32.mrb[0].mxu0
      %v11123 = vpop.f32.mrb[0].mxu0
      %v11124 = vadd.f32 %v10813, %v11123
      %v11125 = vpop.f32.mrb[0].mxu0
      %11126 = vmatprep.mubr.bf16.mxu0 0
      %11127 = vmatmul.mubr.bf16.gmra.mrb[0].mxu0 %v10789
      %v11128 = vpop.f32.mrb[0].mxu0
      %v11129 = vadd.f32 %v10813, %v11128
      %v11130 = vpop.f32.mrb[0].mxu0
      %v11131 = vpop.f32.mrb[0].mxu0
      %v11132 = vadd.f32 %v10813, %v11131
      %v11133 = vpop.f32.mrb[0].mxu0
      %11134 = vmatprep.mubr.bf16.mxu0 0
      %11135 = vmatmul.mubr.bf16.gmra.mrb[0].mxu0 %v10790
      %v11136 = vpop.f32.mrb[0].mxu0
      %v11137 = vadd.f32 %v10813, %v11136
      %v11138 = vpop.f32.mrb[0].mxu0
      %v11139 = vpop.f32.mrb[0].mxu0
      %v11140 = vadd.f32 %v10813, %v11139
      %v11141 = vpop.f32.mrb[0].mxu0
      %11142 = vmatprep.mubr.bf16.mxu0 0
      %11143 = vmatmul.mubr.bf16.gmra.mrb[0].mxu0 %v10791
      %v11144 = vpop.f32.mrb[0].mxu0
      %v11145 = vadd.f32 %v10813, %v11144
      %v11146 = vpop.f32.mrb[0].mxu0
      %v11147 = vpop.f32.mrb[0].mxu0
      %v11148 = vadd.f32 %v10813, %v11147
      %v11149 = vpop.f32.mrb[0].mxu0
      %11150 = vdwg.mxu0
      %11151 = vst.msk [vmem:[%s280] sm:$0xff] %vm381, %v10897
      %11152 = vst.msk [vmem:[%s280 + $0x8] sm:$0xff] %vm381, %v10900
      %11153 = vst.msk [vmem:[%s280 + $0x10] sm:$0xff] %vm381, %v10905
      %11154 = vst.msk [vmem:[%s280 + $0x18] sm:$0xff] %vm381, %v10908
      %11155 = vst.msk [vmem:[%s280 + $0x20] sm:$0xff] %vm381, %v10913
      %11156 = vst.msk [vmem:[%s280 + $0x28] sm:$0xff] %vm381, %v10916
      %11157 = vst.msk [vmem:[%s280 + $0x30] sm:$0xff] %vm381, %v10921
      %11158 = vst.msk [vmem:[%s280 + $0x38] sm:$0xff] %vm381, %v10924
      %11159 = vst.msk [vmem:[%s280 + $0x40] sm:$0xff] %vm381, %v10929
      %11160 = vst.msk [vmem:[%s280 + $0x48] sm:$0xff] %vm381, %v10932
      %11161 = vst.msk [vmem:[%s280 + $0x50] sm:$0xff] %vm381, %v10937
      %11162 = vst.msk [vmem:[%s280 + $0x58] sm:$0xff] %vm381, %v10940
      %11163 = vst.msk [vmem:[%s280 + $0x60] sm:$0xff] %vm381, %v10945
      %11164 = vst.msk [vmem:[%s280 + $0x68] sm:$0xff] %vm381, %v10948
      %11165 = vst.msk [vmem:[%s280 + $0x70] sm:$0xff] %vm381, %v10953
      %11166 = vst.msk [vmem:[%s280 + $0x78] sm:$0xff] %vm381, %v10956
      %11167 = vst.msk [vmem:[%s280 + $0x80] sm:$0xff] %vm381, %v10961
      %11168 = vst.msk [vmem:[%s280 + $0x88] sm:$0xff] %vm381, %v10964
      %11169 = vst.msk [vmem:[%s280 + $0x90] sm:$0xff] %vm381, %v10969
      %11170 = vst.msk [vmem:[%s280 + $0x98] sm:$0xff] %vm381, %v10972
      %11171 = vst.msk [vmem:[%s280 + $0xa0] sm:$0xff] %vm381, %v10977
      %11172 = vst.msk [vmem:[%s280 + $0xa8] sm:$0xff] %vm381, %v10980
      %11173 = vst.msk [vmem:[%s280 + $0xb0] sm:$0xff] %vm381, %v10985
      %11174 = vst.msk [vmem:[%s280 + $0xb8] sm:$0xff] %vm381, %v10988
      %11175 = vst.msk [vmem:[%s280 + $0xc0] sm:$0xff] %vm381, %v10993
      %11176 = vst.msk [vmem:[%s280 + $0xc8] sm:$0xff] %vm381, %v10996
      %11177 = vst.msk [vmem:[%s280 + $0xd0] sm:$0xff] %vm381, %v11001
      %11178 = vst.msk [vmem:[%s280 + $0xd8] sm:$0xff] %vm381, %v11004
      %11179 = vst.msk [vmem:[%s280 + $0xe0] sm:$0xff] %vm381, %v11009
      %11180 = vst.msk [vmem:[%s280 + $0xe8] sm:$0xff] %vm381, %v11012
      %11181 = vst.msk [vmem:[%s280 + $0xf0] sm:$0xff] %vm381, %v11017
      %11182 = vst.msk [vmem:[%s280 + $0xf8] sm:$0xff] %vm381, %v11020
      %11183 = vst.msk [vmem:[%s280 + $0x100] sm:$0xff] %vm381, %v11025
      %11184 = vst.msk [vmem:[%s280 + $0x108] sm:$0xff] %vm381, %v11028
      %11185 = vst.msk [vmem:[%s280 + $0x110] sm:$0xff] %vm381, %v11033
      %11186 = vst.msk [vmem:[%s280 + $0x118] sm:$0xff] %vm381, %v11036
      %11187 = vst.msk [vmem:[%s280 + $0x120] sm:$0xff] %vm381, %v11041
      %11188 = vst.msk [vmem:[%s280 + $0x128] sm:$0xff] %vm381, %v11044
      %11189 = vst.msk [vmem:[%s280 + $0x130] sm:$0xff] %vm381, %v11049
      %11190 = vst.msk [vmem:[%s280 + $0x138] sm:$0xff] %vm381, %v11052
      %11191 = vst.msk [vmem:[%s280 + $0x140] sm:$0xff] %vm381, %v11057
      %11192 = vst.msk [vmem:[%s280 + $0x148] sm:$0xff] %vm381, %v11060
      %11193 = vst.msk [vmem:[%s280 + $0x150] sm:$0xff] %vm381, %v11065
      %11194 = vst.msk [vmem:[%s280 + $0x158] sm:$0xff] %vm381, %v11068
      %11195 = vst.msk [vmem:[%s280 + $0x160] sm:$0xff] %vm381, %v11073
      %11196 = vst.msk [vmem:[%s280 + $0x168] sm:$0xff] %vm381, %v11076
      %11197 = vst.msk [vmem:[%s280 + $0x170] sm:$0xff] %vm381, %v11081
      %11198 = vst.msk [vmem:[%s280 + $0x178] sm:$0xff] %vm381, %v11084
      %11199 = vst.msk [vmem:[%s280 + $0x180] sm:$0xff] %vm381, %v11089
      %11200 = vst.msk [vmem:[%s280 + $0x188] sm:$0xff] %vm381, %v11092
      %11201 = vst.msk [vmem:[%s280 + $0x190] sm:$0xff] %vm381, %v11097
      %11202 = vst.msk [vmem:[%s280 + $0x198] sm:$0xff] %vm381, %v11100
      %11203 = vst.msk [vmem:[%s280 + $0x1a0] sm:$0xff] %vm381, %v11105
      %11204 = vst.msk [vmem:[%s280 + $0x1a8] sm:$0xff] %vm381, %v11108
      %11205 = vst.msk [vmem:[%s280 + $0x1b0] sm:$0xff] %vm381, %v11113
      %11206 = vst.msk [vmem:[%s280 + $0x1b8] sm:$0xff] %vm381, %v11116
      %11207 = vst.msk [vmem:[%s280 + $0x1c0] sm:$0xff] %vm381, %v11121
      %11208 = vst.msk [vmem:[%s280 + $0x1c8] sm:$0xff] %vm381, %v11124
      %11209 = vst.msk [vmem:[%s280 + $0x1d0] sm:$0xff] %vm381, %v11129
      %11210 = vst.msk [vmem:[%s280 + $0x1d8] sm:$0xff] %vm381, %v11132
      %11211 = vst.msk [vmem:[%s280 + $0x1e0] sm:$0xff] %vm381, %v11137
      %11212 = vst.msk [vmem:[%s280 + $0x1e8] sm:$0xff] %vm381, %v11140
      %11213 = vst.msk [vmem:[%s280 + $0x1f0] sm:$0xff] %vm381, %v11145
      %11214 = vst.msk [vmem:[%s280 + $0x1f8] sm:$0xff] %vm381, %v11148
      %11279 = vrot.lane.b32.xlu0 %v8146, 8
      %v11280 = vpop.permute.xlu0 %11279
      %11281 = vrot.lane.b32.xlu0 %v8147, 8
      %v11282 = vpop.permute.xlu0 %11281
      %11283 = vrot.lane.b32.xlu0 %v8148, 8
      %v11284 = vpop.permute.xlu0 %11283
      %11285 = vrot.lane.b32.xlu0 %v8149, 8
      %v11286 = vpop.permute.xlu0 %11285
      %11287 = vrot.lane.b32.xlu0 %v8150, 8
      %v11288 = vpop.permute.xlu0 %11287
      %11289 = vrot.lane.b32.xlu0 %v8151, 8
      %v11290 = vpop.permute.xlu0 %11289
      %11291 = vrot.lane.b32.xlu0 %v8152, 8
      %v11292 = vpop.permute.xlu0 %11291
      %11293 = vrot.lane.b32.xlu0 %v8153, 8
      %v11294 = vpop.permute.xlu0 %11293
      %11295 = vrot.lane.b32.xlu0 %v8154, 8
      %v11296 = vpop.permute.xlu0 %11295
      %11297 = vrot.lane.b32.xlu0 %v8155, 8
      %v11298 = vpop.permute.xlu0 %11297
      %11299 = vrot.lane.b32.xlu0 %v8156, 8
      %v11300 = vpop.permute.xlu0 %11299
      %11301 = vrot.lane.b32.xlu0 %v8157, 8
      %v11302 = vpop.permute.xlu0 %11301
      %11303 = vrot.lane.b32.xlu0 %v8158, 8
      %v11304 = vpop.permute.xlu0 %11303
      %11305 = vrot.lane.b32.xlu0 %v8159, 8
      %v11306 = vpop.permute.xlu0 %11305
      %11307 = vrot.lane.b32.xlu0 %v8160, 8
      %v11308 = vpop.permute.xlu0 %11307
      %11309 = vrot.lane.b32.xlu0 %v8161, 8
      %v11310 = vpop.permute.xlu0 %11309
      %11311 = vrot.lane.b32.xlu0 %v8162, 8
      %v11312 = vpop.permute.xlu0 %11311
      %11313 = vrot.lane.b32.xlu0 %v8163, 8
      %v11314 = vpop.permute.xlu0 %11313
      %11315 = vrot.lane.b32.xlu0 %v8164, 8
      %v11316 = vpop.permute.xlu0 %11315
      %11317 = vrot.lane.b32.xlu0 %v8165, 8
      %v11318 = vpop.permute.xlu0 %11317
      %11319 = vrot.lane.b32.xlu0 %v8166, 8
      %v11320 = vpop.permute.xlu0 %11319
      %11321 = vrot.lane.b32.xlu0 %v8167, 8
      %v11322 = vpop.permute.xlu0 %11321
      %11323 = vrot.lane.b32.xlu0 %v8168, 8
      %v11324 = vpop.permute.xlu0 %11323
      %11325 = vrot.lane.b32.xlu0 %v8169, 8
      %v11326 = vpop.permute.xlu0 %11325
      %11327 = vrot.lane.b32.xlu0 %v8170, 8
      %v11328 = vpop.permute.xlu0 %11327
      %11329 = vrot.lane.b32.xlu0 %v8171, 8
      %v11330 = vpop.permute.xlu0 %11329
      %11331 = vrot.lane.b32.xlu0 %v8172, 8
      %v11332 = vpop.permute.xlu0 %11331
      %11333 = vrot.lane.b32.xlu0 %v8173, 8
      %v11334 = vpop.permute.xlu0 %11333
      %11335 = vrot.lane.b32.xlu0 %v8174, 8
      %v11336 = vpop.permute.xlu0 %11335
      %11337 = vrot.lane.b32.xlu0 %v8175, 8
      %v11338 = vpop.permute.xlu0 %11337
      %11339 = vrot.lane.b32.xlu0 %v8176, 8
      %v11340 = vpop.permute.xlu0 %11339
      %11341 = vrot.lane.b32.xlu0 %v8177, 8
      %v11342 = vpop.permute.xlu0 %11341
      %11343 = vrot.lane.b32.xlu0 %v8178, 8
      %v11344 = vpop.permute.xlu0 %11343
      %11345 = vrot.lane.b32.xlu0 %v8179, 8
      %v11346 = vpop.permute.xlu0 %11345
      %11347 = vrot.lane.b32.xlu0 %v8180, 8
      %v11348 = vpop.permute.xlu0 %11347
      %11349 = vrot.lane.b32.xlu0 %v8181, 8
      %v11350 = vpop.permute.xlu0 %11349
      %11351 = vrot.lane.b32.xlu0 %v8182, 8
      %v11352 = vpop.permute.xlu0 %11351
      %11353 = vrot.lane.b32.xlu0 %v8183, 8
      %v11354 = vpop.permute.xlu0 %11353
      %11355 = vrot.lane.b32.xlu0 %v8184, 8
      %v11356 = vpop.permute.xlu0 %11355
      %11357 = vrot.lane.b32.xlu0 %v8185, 8
      %v11358 = vpop.permute.xlu0 %11357
      %11359 = vrot.lane.b32.xlu0 %v8186, 8
      %v11360 = vpop.permute.xlu0 %11359
      %11361 = vrot.lane.b32.xlu0 %v8187, 8
      %v11362 = vpop.permute.xlu0 %11361
      %11363 = vrot.lane.b32.xlu0 %v8188, 8
      %v11364 = vpop.permute.xlu0 %11363
      %11365 = vrot.lane.b32.xlu0 %v8189, 8
      %v11366 = vpop.permute.xlu0 %11365
      %11367 = vrot.lane.b32.xlu0 %v8190, 8
      %v11368 = vpop.permute.xlu0 %11367
      %11369 = vrot.lane.b32.xlu0 %v8191, 8
      %v11370 = vpop.permute.xlu0 %11369
      %11371 = vrot.lane.b32.xlu0 %v8192, 8
      %v11372 = vpop.permute.xlu0 %11371
      %11373 = vrot.lane.b32.xlu0 %v8193, 8
      %v11374 = vpop.permute.xlu0 %11373
      %11375 = vrot.lane.b32.xlu0 %v8194, 8
      %v11376 = vpop.permute.xlu0 %11375
      %11377 = vrot.lane.b32.xlu0 %v8195, 8
      %v11378 = vpop.permute.xlu0 %11377
      %11379 = vrot.lane.b32.xlu0 %v8196, 8
      %v11380 = vpop.permute.xlu0 %11379
      %11381 = vrot.lane.b32.xlu0 %v8197, 8
      %v11382 = vpop.permute.xlu0 %11381
      %11383 = vrot.lane.b32.xlu0 %v8198, 8
      %v11384 = vpop.permute.xlu0 %11383
      %11385 = vrot.lane.b32.xlu0 %v8199, 8
      %v11386 = vpop.permute.xlu0 %11385
      %11387 = vrot.lane.b32.xlu0 %v8200, 8
      %v11388 = vpop.permute.xlu0 %11387
      %11389 = vrot.lane.b32.xlu0 %v8201, 8
      %v11390 = vpop.permute.xlu0 %11389
      %11391 = vrot.lane.b32.xlu0 %v8202, 8
      %v11392 = vpop.permute.xlu0 %11391
      %11393 = vrot.lane.b32.xlu0 %v8203, 8
      %v11394 = vpop.permute.xlu0 %11393
      %11395 = vrot.lane.b32.xlu0 %v8204, 8
      %v11396 = vpop.permute.xlu0 %11395
      %11397 = vrot.lane.b32.xlu0 %v8205, 8
      %v11398 = vpop.permute.xlu0 %11397
      %11399 = vrot.lane.b32.xlu0 %v8206, 8
      %v11400 = vpop.permute.xlu0 %11399
      %11401 = vrot.lane.b32.xlu0 %v8207, 8
      %v11402 = vpop.permute.xlu0 %11401
      %11403 = vrot.lane.b32.xlu0 %v8208, 8
      %v11404 = vpop.permute.xlu0 %11403
      %11405 = vrot.lane.b32.xlu0 %v8209, 8
      %v11406 = vpop.permute.xlu0 %11405
      %vm11471 = vcmask 130112
      %11472 = vst.msk [vmem:[%s280] sm:$0xff] %vm11471, %v11280
      %11473 = vst.msk [vmem:[%s280 + $0x8] sm:$0xff] %vm11471, %v11282
      %11474 = vst.msk [vmem:[%s280 + $0x10] sm:$0xff] %vm11471, %v11284
      %11475 = vst.msk [vmem:[%s280 + $0x18] sm:$0xff] %vm11471, %v11286
      %11476 = vst.msk [vmem:[%s280 + $0x20] sm:$0xff] %vm11471, %v11288
      %11477 = vst.msk [vmem:[%s280 + $0x28] sm:$0xff] %vm11471, %v11290
      %11478 = vst.msk [vmem:[%s280 + $0x30] sm:$0xff] %vm11471, %v11292
      %11479 = vst.msk [vmem:[%s280 + $0x38] sm:$0xff] %vm11471, %v11294
      %11480 = vst.msk [vmem:[%s280 + $0x40] sm:$0xff] %vm11471, %v11296
      %11481 = vst.msk [vmem:[%s280 + $0x48] sm:$0xff] %vm11471, %v11298
      %11482 = vst.msk [vmem:[%s280 + $0x50] sm:$0xff] %vm11471, %v11300
      %11483 = vst.msk [vmem:[%s280 + $0x58] sm:$0xff] %vm11471, %v11302
      %11484 = vst.msk [vmem:[%s280 + $0x60] sm:$0xff] %vm11471, %v11304
      %11485 = vst.msk [vmem:[%s280 + $0x68] sm:$0xff] %vm11471, %v11306
      %11486 = vst.msk [vmem:[%s280 + $0x70] sm:$0xff] %vm11471, %v11308
      %11487 = vst.msk [vmem:[%s280 + $0x78] sm:$0xff] %vm11471, %v11310
      %11488 = vst.msk [vmem:[%s280 + $0x80] sm:$0xff] %vm11471, %v11312
      %11489 = vst.msk [vmem:[%s280 + $0x88] sm:$0xff] %vm11471, %v11314
      %11490 = vst.msk [vmem:[%s280 + $0x90] sm:$0xff] %vm11471, %v11316
      %11491 = vst.msk [vmem:[%s280 + $0x98] sm:$0xff] %vm11471, %v11318
      %11492 = vst.msk [vmem:[%s280 + $0xa0] sm:$0xff] %vm11471, %v11320
      %11493 = vst.msk [vmem:[%s280 + $0xa8] sm:$0xff] %vm11471, %v11322
      %11494 = vst.msk [vmem:[%s280 + $0xb0] sm:$0xff] %vm11471, %v11324
      %11495 = vst.msk [vmem:[%s280 + $0xb8] sm:$0xff] %vm11471, %v11326
      %11496 = vst.msk [vmem:[%s280 + $0xc0] sm:$0xff] %vm11471, %v11328
      %11497 = vst.msk [vmem:[%s280 + $0xc8] sm:$0xff] %vm11471, %v11330
      %11498 = vst.msk [vmem:[%s280 + $0xd0] sm:$0xff] %vm11471, %v11332
      %11499 = vst.msk [vmem:[%s280 + $0xd8] sm:$0xff] %vm11471, %v11334
      %11500 = vst.msk [vmem:[%s280 + $0xe0] sm:$0xff] %vm11471, %v11336
      %11501 = vst.msk [vmem:[%s280 + $0xe8] sm:$0xff] %vm11471, %v11338
      %11502 = vst.msk [vmem:[%s280 + $0xf0] sm:$0xff] %vm11471, %v11340
      %11503 = vst.msk [vmem:[%s280 + $0xf8] sm:$0xff] %vm11471, %v11342
      %11504 = vst.msk [vmem:[%s280 + $0x100] sm:$0xff] %vm11471, %v11344
      %11505 = vst.msk [vmem:[%s280 + $0x108] sm:$0xff] %vm11471, %v11346
      %11506 = vst.msk [vmem:[%s280 + $0x110] sm:$0xff] %vm11471, %v11348
      %11507 = vst.msk [vmem:[%s280 + $0x118] sm:$0xff] %vm11471, %v11350
      %11508 = vst.msk [vmem:[%s280 + $0x120] sm:$0xff] %vm11471, %v11352
      %11509 = vst.msk [vmem:[%s280 + $0x128] sm:$0xff] %vm11471, %v11354
      %11510 = vst.msk [vmem:[%s280 + $0x130] sm:$0xff] %vm11471, %v11356
      %11511 = vst.msk [vmem:[%s280 + $0x138] sm:$0xff] %vm11471, %v11358
      %11512 = vst.msk [vmem:[%s280 + $0x140] sm:$0xff] %vm11471, %v11360
      %11513 = vst.msk [vmem:[%s280 + $0x148] sm:$0xff] %vm11471, %v11362
      %11514 = vst.msk [vmem:[%s280 + $0x150] sm:$0xff] %vm11471, %v11364
      %11515 = vst.msk [vmem:[%s280 + $0x158] sm:$0xff] %vm11471, %v11366
      %11516 = vst.msk [vmem:[%s280 + $0x160] sm:$0xff] %vm11471, %v11368
      %11517 = vst.msk [vmem:[%s280 + $0x168] sm:$0xff] %vm11471, %v11370
      %11518 = vst.msk [vmem:[%s280 + $0x170] sm:$0xff] %vm11471, %v11372
      %11519 = vst.msk [vmem:[%s280 + $0x178] sm:$0xff] %vm11471, %v11374
      %11520 = vst.msk [vmem:[%s280 + $0x180] sm:$0xff] %vm11471, %v11376
      %11521 = vst.msk [vmem:[%s280 + $0x188] sm:$0xff] %vm11471, %v11378
      %11522 = vst.msk [vmem:[%s280 + $0x190] sm:$0xff] %vm11471, %v11380
      %11523 = vst.msk [vmem:[%s280 + $0x198] sm:$0xff] %vm11471, %v11382
      %11524 = vst.msk [vmem:[%s280 + $0x1a0] sm:$0xff] %vm11471, %v11384
      %11525 = vst.msk [vmem:[%s280 + $0x1a8] sm:$0xff] %vm11471, %v11386
      %11526 = vst.msk [vmem:[%s280 + $0x1b0] sm:$0xff] %vm11471, %v11388
      %11527 = vst.msk [vmem:[%s280 + $0x1b8] sm:$0xff] %vm11471, %v11390
      %11528 = vst.msk [vmem:[%s280 + $0x1c0] sm:$0xff] %vm11471, %v11392
      %11529 = vst.msk [vmem:[%s280 + $0x1c8] sm:$0xff] %vm11471, %v11394
      %11530 = vst.msk [vmem:[%s280 + $0x1d0] sm:$0xff] %vm11471, %v11396
      %11531 = vst.msk [vmem:[%s280 + $0x1d8] sm:$0xff] %vm11471, %v11398
      %11532 = vst.msk [vmem:[%s280 + $0x1e0] sm:$0xff] %vm11471, %v11400
      %11533 = vst.msk [vmem:[%s280 + $0x1e8] sm:$0xff] %vm11471, %v11402
      %11534 = vst.msk [vmem:[%s280 + $0x1f0] sm:$0xff] %vm11471, %v11404
      %11535 = vst.msk [vmem:[%s280 + $0x1f8] sm:$0xff] %vm11471, %v11406
      %11600 = vrot.lane.b32.xlu0 %v8978, 16
      %v11601 = vpop.permute.xlu0 %11600
      %11602 = vrot.lane.b32.xlu0 %v8979, 16
      %v11603 = vpop.permute.xlu0 %11602
      %11604 = vrot.lane.b32.xlu0 %v8980, 16
      %v11605 = vpop.permute.xlu0 %11604
      %11606 = vrot.lane.b32.xlu0 %v8981, 16
      %v11607 = vpop.permute.xlu0 %11606
      %11608 = vrot.lane.b32.xlu0 %v8982, 16
      %v11609 = vpop.permute.xlu0 %11608
      %11610 = vrot.lane.b32.xlu0 %v8983, 16
      %v11611 = vpop.permute.xlu0 %11610
      %11612 = vrot.lane.b32.xlu0 %v8984, 16
      %v11613 = vpop.permute.xlu0 %11612
      %11614 = vrot.lane.b32.xlu0 %v8985, 16
      %v11615 = vpop.permute.xlu0 %11614
      %11616 = vrot.lane.b32.xlu0 %v8986, 16
      %v11617 = vpop.permute.xlu0 %11616
      %11618 = vrot.lane.b32.xlu0 %v8987, 16
      %v11619 = vpop.permute.xlu0 %11618
      %11620 = vrot.lane.b32.xlu0 %v8988, 16
      %v11621 = vpop.permute.xlu0 %11620
      %11622 = vrot.lane.b32.xlu0 %v8989, 16
      %v11623 = vpop.permute.xlu0 %11622
      %11624 = vrot.lane.b32.xlu0 %v8990, 16
      %v11625 = vpop.permute.xlu0 %11624
      %11626 = vrot.lane.b32.xlu0 %v8991, 16
      %v11627 = vpop.permute.xlu0 %11626
      %11628 = vrot.lane.b32.xlu0 %v8992, 16
      %v11629 = vpop.permute.xlu0 %11628
      %11630 = vrot.lane.b32.xlu0 %v8993, 16
      %v11631 = vpop.permute.xlu0 %11630
      %11632 = vrot.lane.b32.xlu0 %v8994, 16
      %v11633 = vpop.permute.xlu0 %11632
      %11634 = vrot.lane.b32.xlu0 %v8995, 16
      %v11635 = vpop.permute.xlu0 %11634
      %11636 = vrot.lane.b32.xlu0 %v8996, 16
      %v11637 = vpop.permute.xlu0 %11636
      %11638 = vrot.lane.b32.xlu0 %v8997, 16
      %v11639 = vpop.permute.xlu0 %11638
      %11640 = vrot.lane.b32.xlu0 %v8998, 16
      %v11641 = vpop.permute.xlu0 %11640
      %11642 = vrot.lane.b32.xlu0 %v8999, 16
      %v11643 = vpop.permute.xlu0 %11642
      %11644 = vrot.lane.b32.xlu0 %v9000, 16
      %v11645 = vpop.permute.xlu0 %11644
      %11646 = vrot.lane.b32.xlu0 %v9001, 16
      %v11647 = vpop.permute.xlu0 %11646
      %11648 = vrot.lane.b32.xlu0 %v9002, 16
      %v11649 = vpop.permute.xlu0 %11648
      %11650 = vrot.lane.b32.xlu0 %v9003, 16
      %v11651 = vpop.permute.xlu0 %11650
      %11652 = vrot.lane.b32.xlu0 %v9004, 16
      %v11653 = vpop.permute.xlu0 %11652
      %11654 = vrot.lane.b32.xlu0 %v9005, 16
      %v11655 = vpop.permute.xlu0 %11654
      %11656 = vrot.lane.b32.xlu0 %v9006, 16
      %v11657 = vpop.permute.xlu0 %11656
      %11658 = vrot.lane.b32.xlu0 %v9007, 16
      %v11659 = vpop.permute.xlu0 %11658
      %11660 = vrot.lane.b32.xlu0 %v9008, 16
      %v11661 = vpop.permute.xlu0 %11660
      %11662 = vrot.lane.b32.xlu0 %v9009, 16
      %v11663 = vpop.permute.xlu0 %11662
      %11664 = vrot.lane.b32.xlu0 %v9010, 16
      %v11665 = vpop.permute.xlu0 %11664
      %11666 = vrot.lane.b32.xlu0 %v9011, 16
      %v11667 = vpop.permute.xlu0 %11666
      %11668 = vrot.lane.b32.xlu0 %v9012, 16
      %v11669 = vpop.permute.xlu0 %11668
      %11670 = vrot.lane.b32.xlu0 %v9013, 16
      %v11671 = vpop.permute.xlu0 %11670
      %11672 = vrot.lane.b32.xlu0 %v9014, 16
      %v11673 = vpop.permute.xlu0 %11672
      %11674 = vrot.lane.b32.xlu0 %v9015, 16
      %v11675 = vpop.permute.xlu0 %11674
      %11676 = vrot.lane.b32.xlu0 %v9016, 16
      %v11677 = vpop.permute.xlu0 %11676
      %11678 = vrot.lane.b32.xlu0 %v9017, 16
      %v11679 = vpop.permute.xlu0 %11678
      %11680 = vrot.lane.b32.xlu0 %v9018, 16
      %v11681 = vpop.permute.xlu0 %11680
      %11682 = vrot.lane.b32.xlu0 %v9019, 16
      %v11683 = vpop.permute.xlu0 %11682
      %11684 = vrot.lane.b32.xlu0 %v9020, 16
      %v11685 = vpop.permute.xlu0 %11684
      %11686 = vrot.lane.b32.xlu0 %v9021, 16
      %v11687 = vpop.permute.xlu0 %11686
      %11688 = vrot.lane.b32.xlu0 %v9022, 16
      %v11689 = vpop.permute.xlu0 %11688
      %11690 = vrot.lane.b32.xlu0 %v9023, 16
      %v11691 = vpop.permute.xlu0 %11690
      %11692 = vrot.lane.b32.xlu0 %v9024, 16
      %v11693 = vpop.permute.xlu0 %11692
      %11694 = vrot.lane.b32.xlu0 %v9025, 16
      %v11695 = vpop.permute.xlu0 %11694
      %11696 = vrot.lane.b32.xlu0 %v9026, 16
      %v11697 = vpop.permute.xlu0 %11696
      %11698 = vrot.lane.b32.xlu0 %v9027, 16
      %v11699 = vpop.permute.xlu0 %11698
      %11700 = vrot.lane.b32.xlu0 %v9028, 16
      %v11701 = vpop.permute.xlu0 %11700
      %11702 = vrot.lane.b32.xlu0 %v9029, 16
      %v11703 = vpop.permute.xlu0 %11702
      %11704 = vrot.lane.b32.xlu0 %v9030, 16
      %v11705 = vpop.permute.xlu0 %11704
      %11706 = vrot.lane.b32.xlu0 %v9031, 16
      %v11707 = vpop.permute.xlu0 %11706
      %11708 = vrot.lane.b32.xlu0 %v9032, 16
      %v11709 = vpop.permute.xlu0 %11708
      %11710 = vrot.lane.b32.xlu0 %v9033, 16
      %v11711 = vpop.permute.xlu0 %11710
      %11712 = vrot.lane.b32.xlu0 %v9034, 16
      %v11713 = vpop.permute.xlu0 %11712
      %11714 = vrot.lane.b32.xlu0 %v9035, 16
      %v11715 = vpop.permute.xlu0 %11714
      %11716 = vrot.lane.b32.xlu0 %v9036, 16
      %v11717 = vpop.permute.xlu0 %11716
      %11718 = vrot.lane.b32.xlu0 %v9037, 16
      %v11719 = vpop.permute.xlu0 %11718
      %11720 = vrot.lane.b32.xlu0 %v9038, 16
      %v11721 = vpop.permute.xlu0 %11720
      %11722 = vrot.lane.b32.xlu0 %v9039, 16
      %v11723 = vpop.permute.xlu0 %11722
      %11724 = vrot.lane.b32.xlu0 %v9040, 16
      %v11725 = vpop.permute.xlu0 %11724
      %11726 = vrot.lane.b32.xlu0 %v9041, 16
      %v11727 = vpop.permute.xlu0 %11726
      %vm11792 = vcmask 195712
      %11793 = vst.msk [vmem:[%s280] sm:$0xff] %vm11792, %v11601
      %11794 = vst.msk [vmem:[%s280 + $0x8] sm:$0xff] %vm11792, %v11603
      %11795 = vst.msk [vmem:[%s280 + $0x10] sm:$0xff] %vm11792, %v11605
      %11796 = vst.msk [vmem:[%s280 + $0x18] sm:$0xff] %vm11792, %v11607
      %11797 = vst.msk [vmem:[%s280 + $0x20] sm:$0xff] %vm11792, %v11609
      %11798 = vst.msk [vmem:[%s280 + $0x28] sm:$0xff] %vm11792, %v11611
      %11799 = vst.msk [vmem:[%s280 + $0x30] sm:$0xff] %vm11792, %v11613
      %11800 = vst.msk [vmem:[%s280 + $0x38] sm:$0xff] %vm11792, %v11615
      %11801 = vst.msk [vmem:[%s280 + $0x40] sm:$0xff] %vm11792, %v11617
      %11802 = vst.msk [vmem:[%s280 + $0x48] sm:$0xff] %vm11792, %v11619
      %11803 = vst.msk [vmem:[%s280 + $0x50] sm:$0xff] %vm11792, %v11621
      %11804 = vst.msk [vmem:[%s280 + $0x58] sm:$0xff] %vm11792, %v11623
      %11805 = vst.msk [vmem:[%s280 + $0x60] sm:$0xff] %vm11792, %v11625
      %11806 = vst.msk [vmem:[%s280 + $0x68] sm:$0xff] %vm11792, %v11627
      %11807 = vst.msk [vmem:[%s280 + $0x70] sm:$0xff] %vm11792, %v11629
      %11808 = vst.msk [vmem:[%s280 + $0x78] sm:$0xff] %vm11792, %v11631
      %11809 = vst.msk [vmem:[%s280 + $0x80] sm:$0xff] %vm11792, %v11633
      %11810 = vst.msk [vmem:[%s280 + $0x88] sm:$0xff] %vm11792, %v11635
      %11811 = vst.msk [vmem:[%s280 + $0x90] sm:$0xff] %vm11792, %v11637
      %11812 = vst.msk [vmem:[%s280 + $0x98] sm:$0xff] %vm11792, %v11639
      %11813 = vst.msk [vmem:[%s280 + $0xa0] sm:$0xff] %vm11792, %v11641
      %11814 = vst.msk [vmem:[%s280 + $0xa8] sm:$0xff] %vm11792, %v11643
      %11815 = vst.msk [vmem:[%s280 + $0xb0] sm:$0xff] %vm11792, %v11645
      %11816 = vst.msk [vmem:[%s280 + $0xb8] sm:$0xff] %vm11792, %v11647
      %11817 = vst.msk [vmem:[%s280 + $0xc0] sm:$0xff] %vm11792, %v11649
      %11818 = vst.msk [vmem:[%s280 + $0xc8] sm:$0xff] %vm11792, %v11651
      %11819 = vst.msk [vmem:[%s280 + $0xd0] sm:$0xff] %vm11792, %v11653
      %11820 = vst.msk [vmem:[%s280 + $0xd8] sm:$0xff] %vm11792, %v11655
      %11821 = vst.msk [vmem:[%s280 + $0xe0] sm:$0xff] %vm11792, %v11657
      %11822 = vst.msk [vmem:[%s280 + $0xe8] sm:$0xff] %vm11792, %v11659
      %11823 = vst.msk [vmem:[%s280 + $0xf0] sm:$0xff] %vm11792, %v11661
      %11824 = vst.msk [vmem:[%s280 + $0xf8] sm:$0xff] %vm11792, %v11663
      %11825 = vst.msk [vmem:[%s280 + $0x100] sm:$0xff] %vm11792, %v11665
      %11826 = vst.msk [vmem:[%s280 + $0x108] sm:$0xff] %vm11792, %v11667
      %11827 = vst.msk [vmem:[%s280 + $0x110] sm:$0xff] %vm11792, %v11669
      %11828 = vst.msk [vmem:[%s280 + $0x118] sm:$0xff] %vm11792, %v11671
      %11829 = vst.msk [vmem:[%s280 + $0x120] sm:$0xff] %vm11792, %v11673
      %11830 = vst.msk [vmem:[%s280 + $0x128] sm:$0xff] %vm11792, %v11675
      %11831 = vst.msk [vmem:[%s280 + $0x130] sm:$0xff] %vm11792, %v11677
      %11832 = vst.msk [vmem:[%s280 + $0x138] sm:$0xff] %vm11792, %v11679
      %11833 = vst.msk [vmem:[%s280 + $0x140] sm:$0xff] %vm11792, %v11681
      %11834 = vst.msk [vmem:[%s280 + $0x148] sm:$0xff] %vm11792, %v11683
      %11835 = vst.msk [vmem:[%s280 + $0x150] sm:$0xff] %vm11792, %v11685
      %11836 = vst.msk [vmem:[%s280 + $0x158] sm:$0xff] %vm11792, %v11687
      %11837 = vst.msk [vmem:[%s280 + $0x160] sm:$0xff] %vm11792, %v11689
      %11838 = vst.msk [vmem:[%s280 + $0x168] sm:$0xff] %vm11792, %v11691
      %11839 = vst.msk [vmem:[%s280 + $0x170] sm:$0xff] %vm11792, %v11693
      %11840 = vst.msk [vmem:[%s280 + $0x178] sm:$0xff] %vm11792, %v11695
      %11841 = vst.msk [vmem:[%s280 + $0x180] sm:$0xff] %vm11792, %v11697
      %11842 = vst.msk [vmem:[%s280 + $0x188] sm:$0xff] %vm11792, %v11699
      %11843 = vst.msk [vmem:[%s280 + $0x190] sm:$0xff] %vm11792, %v11701
      %11844 = vst.msk [vmem:[%s280 + $0x198] sm:$0xff] %vm11792, %v11703
      %11845 = vst.msk [vmem:[%s280 + $0x1a0] sm:$0xff] %vm11792, %v11705
      %11846 = vst.msk [vmem:[%s280 + $0x1a8] sm:$0xff] %vm11792, %v11707
      %11847 = vst.msk [vmem:[%s280 + $0x1b0] sm:$0xff] %vm11792, %v11709
      %11848 = vst.msk [vmem:[%s280 + $0x1b8] sm:$0xff] %vm11792, %v11711
      %11849 = vst.msk [vmem:[%s280 + $0x1c0] sm:$0xff] %vm11792, %v11713
      %11850 = vst.msk [vmem:[%s280 + $0x1c8] sm:$0xff] %vm11792, %v11715
      %11851 = vst.msk [vmem:[%s280 + $0x1d0] sm:$0xff] %vm11792, %v11717
      %11852 = vst.msk [vmem:[%s280 + $0x1d8] sm:$0xff] %vm11792, %v11719
      %11853 = vst.msk [vmem:[%s280 + $0x1e0] sm:$0xff] %vm11792, %v11721
      %11854 = vst.msk [vmem:[%s280 + $0x1e8] sm:$0xff] %vm11792, %v11723
      %11855 = vst.msk [vmem:[%s280 + $0x1f0] sm:$0xff] %vm11792, %v11725
      %11856 = vst.msk [vmem:[%s280 + $0x1f8] sm:$0xff] %vm11792, %v11727
      %11921 = vrot.lane.b32.xlu0 %v9554, 24
      %v11922 = vpop.permute.xlu0 %11921
      %11923 = vrot.lane.b32.xlu0 %v9555, 24
      %v11924 = vpop.permute.xlu0 %11923
      %11925 = vrot.lane.b32.xlu0 %v9556, 24
      %v11926 = vpop.permute.xlu0 %11925
      %11927 = vrot.lane.b32.xlu0 %v9557, 24
      %v11928 = vpop.permute.xlu0 %11927
      %11929 = vrot.lane.b32.xlu0 %v9558, 24
      %v11930 = vpop.permute.xlu0 %11929
      %11931 = vrot.lane.b32.xlu0 %v9559, 24
      %v11932 = vpop.permute.xlu0 %11931
      %11933 = vrot.lane.b32.xlu0 %v9560, 24
      %v11934 = vpop.permute.xlu0 %11933
      %11935 = vrot.lane.b32.xlu0 %v9561, 24
      %v11936 = vpop.permute.xlu0 %11935
      %11937 = vrot.lane.b32.xlu0 %v9562, 24
      %v11938 = vpop.permute.xlu0 %11937
      %11939 = vrot.lane.b32.xlu0 %v9563, 24
      %v11940 = vpop.permute.xlu0 %11939
      %11941 = vrot.lane.b32.xlu0 %v9564, 24
      %v11942 = vpop.permute.xlu0 %11941
      %11943 = vrot.lane.b32.xlu0 %v9565, 24
      %v11944 = vpop.permute.xlu0 %11943
      %11945 = vrot.lane.b32.xlu0 %v9566, 24
      %v11946 = vpop.permute.xlu0 %11945
      %11947 = vrot.lane.b32.xlu0 %v9567, 24
      %v11948 = vpop.permute.xlu0 %11947
      %11949 = vrot.lane.b32.xlu0 %v9568, 24
      %v11950 = vpop.permute.xlu0 %11949
      %11951 = vrot.lane.b32.xlu0 %v9569, 24
      %v11952 = vpop.permute.xlu0 %11951
      %11953 = vrot.lane.b32.xlu0 %v9570, 24
      %v11954 = vpop.permute.xlu0 %11953
      %11955 = vrot.lane.b32.xlu0 %v9571, 24
      %v11956 = vpop.permute.xlu0 %11955
      %11957 = vrot.lane.b32.xlu0 %v9572, 24
      %v11958 = vpop.permute.xlu0 %11957
      %11959 = vrot.lane.b32.xlu0 %v9573, 24
      %v11960 = vpop.permute.xlu0 %11959
      %11961 = vrot.lane.b32.xlu0 %v9574, 24
      %v11962 = vpop.permute.xlu0 %11961
      %11963 = vrot.lane.b32.xlu0 %v9575, 24
      %v11964 = vpop.permute.xlu0 %11963
      %11965 = vrot.lane.b32.xlu0 %v9576, 24
      %v11966 = vpop.permute.xlu0 %11965
      %11967 = vrot.lane.b32.xlu0 %v9577, 24
      %v11968 = vpop.permute.xlu0 %11967
      %11969 = vrot.lane.b32.xlu0 %v9578, 24
      %v11970 = vpop.permute.xlu0 %11969
      %11971 = vrot.lane.b32.xlu0 %v9579, 24
      %v11972 = vpop.permute.xlu0 %11971
      %11973 = vrot.lane.b32.xlu0 %v9580, 24
      %v11974 = vpop.permute.xlu0 %11973
      %11975 = vrot.lane.b32.xlu0 %v9581, 24
      %v11976 = vpop.permute.xlu0 %11975
      %11977 = vrot.lane.b32.xlu0 %v9582, 24
      %v11978 = vpop.permute.xlu0 %11977
      %11979 = vrot.lane.b32.xlu0 %v9583, 24
      %v11980 = vpop.permute.xlu0 %11979
      %11981 = vrot.lane.b32.xlu0 %v9584, 24
      %v11982 = vpop.permute.xlu0 %11981
      %11983 = vrot.lane.b32.xlu0 %v9585, 24
      %v11984 = vpop.permute.xlu0 %11983
      %11985 = vrot.lane.b32.xlu0 %v9586, 24
      %v11986 = vpop.permute.xlu0 %11985
      %11987 = vrot.lane.b32.xlu0 %v9587, 24
      %v11988 = vpop.permute.xlu0 %11987
      %11989 = vrot.lane.b32.xlu0 %v9588, 24
      %v11990 = vpop.permute.xlu0 %11989
      %11991 = vrot.lane.b32.xlu0 %v9589, 24
      %v11992 = vpop.permute.xlu0 %11991
      %11993 = vrot.lane.b32.xlu0 %v9590, 24
      %v11994 = vpop.permute.xlu0 %11993
      %11995 = vrot.lane.b32.xlu0 %v9591, 24
      %v11996 = vpop.permute.xlu0 %11995
      %11997 = vrot.lane.b32.xlu0 %v9592, 24
      %v11998 = vpop.permute.xlu0 %11997
      %11999 = vrot.lane.b32.xlu0 %v9593, 24
      %v12000 = vpop.permute.xlu0 %11999
      %12001 = vrot.lane.b32.xlu0 %v9594, 24
      %v12002 = vpop.permute.xlu0 %12001
      %12003 = vrot.lane.b32.xlu0 %v9595, 24
      %v12004 = vpop.permute.xlu0 %12003
      %12005 = vrot.lane.b32.xlu0 %v9596, 24
      %v12006 = vpop.permute.xlu0 %12005
      %12007 = vrot.lane.b32.xlu0 %v9597, 24
      %v12008 = vpop.permute.xlu0 %12007
      %12009 = vrot.lane.b32.xlu0 %v9598, 24
      %v12010 = vpop.permute.xlu0 %12009
      %12011 = vrot.lane.b32.xlu0 %v9599, 24
      %v12012 = vpop.permute.xlu0 %12011
      %12013 = vrot.lane.b32.xlu0 %v9600, 24
      %v12014 = vpop.permute.xlu0 %12013
      %12015 = vrot.lane.b32.xlu0 %v9601, 24
      %v12016 = vpop.permute.xlu0 %12015
      %12017 = vrot.lane.b32.xlu0 %v9602, 24
      %v12018 = vpop.permute.xlu0 %12017
      %12019 = vrot.lane.b32.xlu0 %v9603, 24
      %v12020 = vpop.permute.xlu0 %12019
      %12021 = vrot.lane.b32.xlu0 %v9604, 24
      %v12022 = vpop.permute.xlu0 %12021
      %12023 = vrot.lane.b32.xlu0 %v9605, 24
      %v12024 = vpop.permute.xlu0 %12023
      %12025 = vrot.lane.b32.xlu0 %v9606, 24
      %v12026 = vpop.permute.xlu0 %12025
      %12027 = vrot.lane.b32.xlu0 %v9607, 24
      %v12028 = vpop.permute.xlu0 %12027
      %12029 = vrot.lane.b32.xlu0 %v9608, 24
      %v12030 = vpop.permute.xlu0 %12029
      %12031 = vrot.lane.b32.xlu0 %v9609, 24
      %v12032 = vpop.permute.xlu0 %12031
      %12033 = vrot.lane.b32.xlu0 %v9610, 24
      %v12034 = vpop.permute.xlu0 %12033
      %12035 = vrot.lane.b32.xlu0 %v9611, 24
      %v12036 = vpop.permute.xlu0 %12035
      %12037 = vrot.lane.b32.xlu0 %v9612, 24
      %v12038 = vpop.permute.xlu0 %12037
      %12039 = vrot.lane.b32.xlu0 %v9613, 24
      %v12040 = vpop.permute.xlu0 %12039
      %12041 = vrot.lane.b32.xlu0 %v9614, 24
      %v12042 = vpop.permute.xlu0 %12041
      %12043 = vrot.lane.b32.xlu0 %v9615, 24
      %v12044 = vpop.permute.xlu0 %12043
      %12045 = vrot.lane.b32.xlu0 %v9616, 24
      %v12046 = vpop.permute.xlu0 %12045
      %12047 = vrot.lane.b32.xlu0 %v9617, 24
      %v12048 = vpop.permute.xlu0 %12047
      %vm12113 = vcmask 261312
      %12114 = vst.msk [vmem:[%s280] sm:$0xff] %vm12113, %v11922
      %12115 = vst.msk [vmem:[%s280 + $0x8] sm:$0xff] %vm12113, %v11924
      %12116 = vst.msk [vmem:[%s280 + $0x10] sm:$0xff] %vm12113, %v11926
      %12117 = vst.msk [vmem:[%s280 + $0x18] sm:$0xff] %vm12113, %v11928
      %12118 = vst.msk [vmem:[%s280 + $0x20] sm:$0xff] %vm12113, %v11930
      %12119 = vst.msk [vmem:[%s280 + $0x28] sm:$0xff] %vm12113, %v11932
      %12120 = vst.msk [vmem:[%s280 + $0x30] sm:$0xff] %vm12113, %v11934
      %12121 = vst.msk [vmem:[%s280 + $0x38] sm:$0xff] %vm12113, %v11936
      %12122 = vst.msk [vmem:[%s280 + $0x40] sm:$0xff] %vm12113, %v11938
      %12123 = vst.msk [vmem:[%s280 + $0x48] sm:$0xff] %vm12113, %v11940
      %12124 = vst.msk [vmem:[%s280 + $0x50] sm:$0xff] %vm12113, %v11942
      %12125 = vst.msk [vmem:[%s280 + $0x58] sm:$0xff] %vm12113, %v11944
      %12126 = vst.msk [vmem:[%s280 + $0x60] sm:$0xff] %vm12113, %v11946
      %12127 = vst.msk [vmem:[%s280 + $0x68] sm:$0xff] %vm12113, %v11948
      %12128 = vst.msk [vmem:[%s280 + $0x70] sm:$0xff] %vm12113, %v11950
      %12129 = vst.msk [vmem:[%s280 + $0x78] sm:$0xff] %vm12113, %v11952
      %12130 = vst.msk [vmem:[%s280 + $0x80] sm:$0xff] %vm12113, %v11954
      %12131 = vst.msk [vmem:[%s280 + $0x88] sm:$0xff] %vm12113, %v11956
      %12132 = vst.msk [vmem:[%s280 + $0x90] sm:$0xff] %vm12113, %v11958
      %12133 = vst.msk [vmem:[%s280 + $0x98] sm:$0xff] %vm12113, %v11960
      %12134 = vst.msk [vmem:[%s280 + $0xa0] sm:$0xff] %vm12113, %v11962
      %12135 = vst.msk [vmem:[%s280 + $0xa8] sm:$0xff] %vm12113, %v11964
      %12136 = vst.msk [vmem:[%s280 + $0xb0] sm:$0xff] %vm12113, %v11966
      %12137 = vst.msk [vmem:[%s280 + $0xb8] sm:$0xff] %vm12113, %v11968
      %12138 = vst.msk [vmem:[%s280 + $0xc0] sm:$0xff] %vm12113, %v11970
      %12139 = vst.msk [vmem:[%s280 + $0xc8] sm:$0xff] %vm12113, %v11972
      %12140 = vst.msk [vmem:[%s280 + $0xd0] sm:$0xff] %vm12113, %v11974
      %12141 = vst.msk [vmem:[%s280 + $0xd8] sm:$0xff] %vm12113, %v11976
      %12142 = vst.msk [vmem:[%s280 + $0xe0] sm:$0xff] %vm12113, %v11978
      %12143 = vst.msk [vmem:[%s280 + $0xe8] sm:$0xff] %vm12113, %v11980
      %12144 = vst.msk [vmem:[%s280 + $0xf0] sm:$0xff] %vm12113, %v11982
      %12145 = vst.msk [vmem:[%s280 + $0xf8] sm:$0xff] %vm12113, %v11984
      %12146 = vst.msk [vmem:[%s280 + $0x100] sm:$0xff] %vm12113, %v11986
      %12147 = vst.msk [vmem:[%s280 + $0x108] sm:$0xff] %vm12113, %v11988
      %12148 = vst.msk [vmem:[%s280 + $0x110] sm:$0xff] %vm12113, %v11990
      %12149 = vst.msk [vmem:[%s280 + $0x118] sm:$0xff] %vm12113, %v11992
      %12150 = vst.msk [vmem:[%s280 + $0x120] sm:$0xff] %vm12113, %v11994
      %12151 = vst.msk [vmem:[%s280 + $0x128] sm:$0xff] %vm12113, %v11996
      %12152 = vst.msk [vmem:[%s280 + $0x130] sm:$0xff] %vm12113, %v11998
      %12153 = vst.msk [vmem:[%s280 + $0x138] sm:$0xff] %vm12113, %v12000
      %12154 = vst.msk [vmem:[%s280 + $0x140] sm:$0xff] %vm12113, %v12002
      %12155 = vst.msk [vmem:[%s280 + $0x148] sm:$0xff] %vm12113, %v12004
      %12156 = vst.msk [vmem:[%s280 + $0x150] sm:$0xff] %vm12113, %v12006
      %12157 = vst.msk [vmem:[%s280 + $0x158] sm:$0xff] %vm12113, %v12008
      %12158 = vst.msk [vmem:[%s280 + $0x160] sm:$0xff] %vm12113, %v12010
      %12159 = vst.msk [vmem:[%s280 + $0x168] sm:$0xff] %vm12113, %v12012
      %12160 = vst.msk [vmem:[%s280 + $0x170] sm:$0xff] %vm12113, %v12014
      %12161 = vst.msk [vmem:[%s280 + $0x178] sm:$0xff] %vm12113, %v12016
      %12162 = vst.msk [vmem:[%s280 + $0x180] sm:$0xff] %vm12113, %v12018
      %12163 = vst.msk [vmem:[%s280 + $0x188] sm:$0xff] %vm12113, %v12020
      %12164 = vst.msk [vmem:[%s280 + $0x190] sm:$0xff] %vm12113, %v12022
      %12165 = vst.msk [vmem:[%s280 + $0x198] sm:$0xff] %vm12113, %v12024
      %12166 = vst.msk [vmem:[%s280 + $0x1a0] sm:$0xff] %vm12113, %v12026
      %12167 = vst.msk [vmem:[%s280 + $0x1a8] sm:$0xff] %vm12113, %v12028
      %12168 = vst.msk [vmem:[%s280 + $0x1b0] sm:$0xff] %vm12113, %v12030
      %12169 = vst.msk [vmem:[%s280 + $0x1b8] sm:$0xff] %vm12113, %v12032
      %12170 = vst.msk [vmem:[%s280 + $0x1c0] sm:$0xff] %vm12113, %v12034
      %12171 = vst.msk [vmem:[%s280 + $0x1c8] sm:$0xff] %vm12113, %v12036
      %12172 = vst.msk [vmem:[%s280 + $0x1d0] sm:$0xff] %vm12113, %v12038
      %12173 = vst.msk [vmem:[%s280 + $0x1d8] sm:$0xff] %vm12113, %v12040
      %12174 = vst.msk [vmem:[%s280 + $0x1e0] sm:$0xff] %vm12113, %v12042
      %12175 = vst.msk [vmem:[%s280 + $0x1e8] sm:$0xff] %vm12113, %v12044
      %12176 = vst.msk [vmem:[%s280 + $0x1f0] sm:$0xff] %vm12113, %v12046
      %12177 = vst.msk [vmem:[%s280 + $0x1f8] sm:$0xff] %vm12113, %v12048
      %s12178 = smul.u32 64, %s18
      %p12179 = scmp.lt.s32.totalorder %s12178, 127
      %s12180 = scalar_select %p12179, %s12178, 127
      %s12181 = smul.addr %s12180, 8
      %s12182 = scalar_lea.vmem %s7, %s12181
      // Predicated region
      $region49: #{_lambda_.1} parent=47 // pred_check
        %p12183 = pneg %p188
      $region50: #{_lambda_.1} parent=47 // pred_check_branch
        %12185 = sbr.rel (%p12183) target = $region52
      $region51: #{_lambda_.1} parent=47 // pred_region
        %s12186 = smul.u32 64, %s18
      $region52: #{_lambda_.1} parent=47 // pred_fallthru
        _
    $region48: #{_lambda_.1} parent=5 // pred_fallthru
      _
    %p12187 = scmp.le.s32.totalorder 2, %s13
    // Predicated region
    $region53: #{_lambda_.1} parent=5 // pred_check
      %p12188 = pneg %p12187
    $region54: #{_lambda_.1} parent=5 // pred_check_branch
      %12190 = sbr.rel (%p12188) target = $region56
    $region55: #{_lambda_.1} parent=5 // pred_region
      %s12191 = ssub.s32 %s13, 2
      // Predicated region
      $region57: #{_lambda_.1} parent=55 // pred_check
        %p12192 = pneg %p194
      $region58: #{_lambda_.1} parent=55 // pred_check_branch
        %12194 = sbr.rel (%p12192) target = $region60
      $region59: #{_lambda_.1} parent=55 // pred_region
        %s12195 = smul.u32 64, %s19
        %p12196 = scmp.lt.s32.totalorder %s12195, 127
        %s12197 = scalar_select %p12196, %s12195, 127
        %s12198 = smul.addr %s12197, 8
        %s12199 = scalar_lea.vmem %s7, %s12198
      $region60: #{_lambda_.1} parent=55 // pred_fallthru
        _
    $region56: #{_lambda_.1} parent=5 // pred_fallthru
      _
  $region6: #{_lambda_.1} parent=0 // loop_footer
    %s17 = sadd.s32 1, %s13
  $region7: #{_lambda_.1} parent=0 // loop_footer_branch
    %12 = sbr.rel target = $region3
  $region8: #{_lambda_.1} parent=0 // loop_exit
    _

</llo_original>
